<compile_context>
chip_gen: v5e
topology: v5e:2x2
jax: 0.10.0
libtpu: 0.0.40
codegen_flags: <defaults>
</compile_context>

<pallas_src>
import functools
import math

import jax
import jax.numpy as jnp
from jax import lax
from jax.experimental import pallas as pl
from jax.experimental.pallas import tpu as pltpu

_VMEM = pl.BlockSpec(memory_space=pltpu.MemorySpace.VMEM)
_VMEM_LIMIT = 48 * 1024 * 1024  # explicit scoped-VMEM budget (fits v7x's 64 MiB)


def _round_up(x, m):
    return ((x + m - 1) // m) * m


# ---------------------------------------------------------------------------
# Kernel 1: L2-normalize the item embedding table (vocab-tiled, parallel grid).
# The bf16 output is reused as the scoring target: target = emb / (||emb|| + eps).
# ---------------------------------------------------------------------------
def emb_norm_kernel(emb_ref, o_ref):
    x = emb_ref[...]
    ss = jnp.sum(x * x, axis=-1, keepdims=True)
    o_ref[...] = (x * lax.rsqrt(ss + 1e-24)).astype(o_ref.dtype)


def run_emb_norm(emb, tv=128):
    v, d = emb.shape
    v_pad = _round_up(v, tv)
    if v_pad != v:
        emb = jnp.pad(emb, ((0, v_pad - v), (0, 0)))
    return pl.pallas_call(
        emb_norm_kernel,
        out_shape=jax.ShapeDtypeStruct((v_pad, d), jnp.bfloat16),
        grid=(v_pad // tv,),
        in_specs=[pl.BlockSpec((tv, d), lambda i: (i, 0))],
        out_specs=pl.BlockSpec((tv, d), lambda i: (i, 0)),
        compiler_params=pltpu.CompilerParams(
            dimension_semantics=("parallel",),
            vmem_limit_bytes=_VMEM_LIMIT),
    )(emb)


# ---------------------------------------------------------------------------
# Kernel 2: one SRGNNLayer, tiled over node rows (parallel grid axis).
#   neigh1 = (A  @ feat) / deg_in   (weighted mean over in-edges)
#   neigh2 = (A' @ feat) / deg_out  (weighted mean over out-edges, A' computed
#                                    in-kernel via dot_general, no AT input)
#   GRU gates fused: gi = neigh1 @ M1 + neigh2 @ M2 + b_ih,   M* = W*^T W_ih^T
#                    gh = feat   @ W_hh^T + b_hh
# ---------------------------------------------------------------------------
def srgnn_layer_kernel(feat_ref, a_row_ref, a_col_ref, m1_ref, m2_ref, whh_ref,
                       bi_ref, bh_ref, o_ref, *, tn, d, normalize_input):
    i = pl.program_id(0)

    feat_full = feat_ref[...]                                   # (Np, D) f32
    if normalize_input:                                         # feat/(||feat||+1e-12)
        ss = jnp.sum(feat_full * feat_full, axis=-1, keepdims=True)
        feat_full = feat_full * lax.rsqrt(ss + 1e-24)
    featb = feat_full.astype(jnp.bfloat16)

    a_row = a_row_ref[...]                                      # (TN, Np) bf16
    a_col = a_col_ref[...]                                      # (Np, TN) bf16

    ones = jnp.ones((a_col.shape[0], 1), dtype=jnp.bfloat16)
    deg_in = jnp.dot(a_row, ones, preferred_element_type=jnp.float32)       # (TN,1)
    deg_out = lax.dot_general(a_col, ones, (((0,), (0,)), ((), ())),
                              preferred_element_type=jnp.float32)           # (TN,1)

    msg1 = jnp.dot(a_row, featb, preferred_element_type=jnp.float32)        # (TN,D)
    msg2 = lax.dot_general(a_col, featb, (((0,), (0,)), ((), ())),
                           preferred_element_type=jnp.float32)              # A^T @ feat

    neigh1 = msg1 * jnp.where(deg_in > 0, pl.reciprocal(deg_in, approx=True), 0.0)
    neigh2 = msg2 * jnp.where(deg_out > 0, pl.reciprocal(deg_out, approx=True), 0.0)

    gi = (jnp.dot(neigh1.astype(jnp.bfloat16), m1_ref[...],
                  preferred_element_type=jnp.float32)
          + jnp.dot(neigh2.astype(jnp.bfloat16), m2_ref[...],
                    preferred_element_type=jnp.float32)
          + bi_ref[...])                                                    # (TN,3D)

    row0 = pl.multiple_of(i * tn, 8)
    feat_t = feat_ref[pl.ds(row0, tn), :]                                   # (TN,D) f32
    if normalize_input:
        ss_t = jnp.sum(feat_t * feat_t, axis=-1, keepdims=True)
        feat_t = feat_t * lax.rsqrt(ss_t + 1e-24)

    gh = jnp.dot(feat_t.astype(jnp.bfloat16), whh_ref[...],
                 preferred_element_type=jnp.float32) + bh_ref[...]          # (TN,3D)

    r = jax.nn.sigmoid(gi[:, :d] + gh[:, :d])
    z = jax.nn.sigmoid(gi[:, d:2 * d] + gh[:, d:2 * d])
    n = jnp.tanh(gi[:, 2 * d:] + r * gh[:, 2 * d:])
    o_ref[...] = (1.0 - z) * n + z * feat_t


def run_srgnn_layer(feat, a_bf16, lp, *, tn, normalize_input):
    n_pad, d = feat.shape
    kern = functools.partial(srgnn_layer_kernel, tn=tn, d=d,
                             normalize_input=normalize_input)
    return pl.pallas_call(
        kern,
        out_shape=jax.ShapeDtypeStruct((n_pad, d), jnp.float32),
        grid=(n_pad // tn,),
        in_specs=[
            pl.BlockSpec((n_pad, d), lambda i: (0, 0)),       # feat, resident
            pl.BlockSpec((tn, n_pad), lambda i: (i, 0)),      # A row slab (in-edges)
            pl.BlockSpec((n_pad, tn), lambda i: (0, i)),      # A col slab (out-edges)
            pl.BlockSpec((d, 3 * d), lambda i: (0, 0)),
            pl.BlockSpec((d, 3 * d), lambda i: (0, 0)),
            pl.BlockSpec((d, 3 * d), lambda i: (0, 0)),
            pl.BlockSpec((1, 3 * d), lambda i: (0, 0)),
            pl.BlockSpec((1, 3 * d), lambda i: (0, 0)),
        ],
        out_specs=pl.BlockSpec((tn, d), lambda i: (i, 0)),
        compiler_params=pltpu.CompilerParams(
            dimension_semantics=("parallel",),
            vmem_limit_bytes=_VMEM_LIMIT),
    )(feat, a_bf16, a_bf16, lp["m1"], lp["m2"], lp["whh"], lp["bi"], lp["bh"])


# ---------------------------------------------------------------------------
# Kernel 3: AttnReadout + fc_sr + sr normalize (fused).
# Segment softmax uses only N exponentials (masked (N,G) matrix only for max).
# ---------------------------------------------------------------------------
def readout_fcsr_kernel(featraw_ref, out_ref, segt_ref, last_ref,
                        wu_ref, wv_ref, bv_ref, we_ref, wsrl_ref, wsrg_ref,
                        sr_ref):
    feat_raw = featraw_ref[...]                                  # (Np, D) f32
    ss0 = jnp.sum(feat_raw * feat_raw, axis=-1, keepdims=True)
    feat0 = feat_raw * lax.rsqrt(ss0 + 1e-24)                    # feat/(||feat||+1e-12)

    out = out_ref[...]                                           # (Np, D) last GNN layer
    ss_out = jnp.sum(out * out, axis=-1, keepdims=True)
    # reference divides by ||out|| with no eps; guard keeps (padded / degenerate)
    # zero-norm rows finite instead of inf/NaN.
    feat = feat0 * jnp.where(ss_out > 0, lax.rsqrt(ss_out), 0.0)

    featb = feat.astype(jnp.bfloat16)
    segt = segt_ref[...]                                         # (Np, G) membership
    segtb = segt.astype(jnp.bfloat16)
    lastb = last_ref[...].astype(jnp.bfloat16)                   # (G, Np)

    feat_u = jnp.dot(featb, wu_ref[...], preferred_element_type=jnp.float32)   # (Np,H)
    feat_last = jnp.dot(lastb, featb, preferred_element_type=jnp.float32)      # (G,D)
    feat_v = jnp.dot(feat_last.astype(jnp.bfloat16), wv_ref[...],
                     preferred_element_type=jnp.float32) + bv_ref[...]         # (G,H)
    feat_v_nodes = jnp.dot(segtb, feat_v.astype(jnp.bfloat16),
                           preferred_element_type=jnp.float32)                 # (Np,H)

    e = jnp.sum(jax.nn.sigmoid(feat_u + feat_v_nodes) * we_ref[...],
                axis=-1, keepdims=True)                                        # (Np,1)

    # segment softmax over nodes of each graph
    masked = jnp.where(segt > 0, e, -1e30)                       # (Np, G)
    m = jnp.max(masked, axis=0, keepdims=True)                   # (1, G)
    m_node = jnp.sum(segt * m, axis=-1, keepdims=True)           # (Np, 1)
    ex = jnp.exp(e - m_node)                                     # only N exponentials
    denom = jnp.sum(segt * ex, axis=0, keepdims=True)            # (1, G)
    denom_node = jnp.sum(segt * denom, axis=-1, keepdims=True)   # (Np, 1)
    alpha = jnp.where(denom_node > 0,
                      ex * pl.reciprocal(denom_node, approx=True), 0.0)

    srg = lax.dot_general(segtb, (feat * alpha).astype(jnp.bfloat16),
                          (((0,), (0,)), ((), ())),
                          preferred_element_type=jnp.float32)    # segment sum (G, D)

    # fc_sr on cat(sr_l, sr_g) via split weights, then L2 normalize
    sr = (jnp.dot(feat_last.astype(jnp.bfloat16), wsrl_ref[...],
                  preferred_element_type=jnp.float32)
          + jnp.dot(srg.astype(jnp.bfloat16), wsrg_ref[...],
                    preferred_element_type=jnp.float32))
    ss_sr = jnp.sum(sr * sr, axis=-1, keepdims=True)
    sr_ref[...] = sr * lax.rsqrt(ss_sr + 1e-24)                  # sr/(||sr||+1e-12)


def run_readout(feat_raw, out, segt, last, rp):
    g = last.shape[0]
    d = feat_raw.shape[1]
    return pl.pallas_call(
        readout_fcsr_kernel,
        out_shape=jax.ShapeDtypeStruct((g, d), jnp.float32),
        in_specs=[pl.BlockSpec(memory_space=pltpu.MemorySpace.VMEM)
                  for _ in range(10)],
        out_specs=_VMEM,
        compiler_params=pltpu.CompilerParams(vmem_limit_bytes=_VMEM_LIMIT),
    )(feat_raw, out, segt, last, rp["wu_t"], rp["wv_t"], rp["bv"], rp["we"],
      rp["wsrl_t"], rp["wsrg_t"])


# ---------------------------------------------------------------------------
# Kernel 4: scaled log-softmax scoring against the normalized item table,
# vocab-tiled, two passes: pass 0 accumulates the online log-sum-exp,
# pass 1 re-does the (cheap) tile matmul and writes the log-probs.
# ---------------------------------------------------------------------------
def score_kernel(sr_ref, tgt_ref, o_ref, m_scr, s_scr, *, scale, v_real, tv):
    p = pl.program_id(0)   # 0: accumulate LSE, 1: write log-probs
    v = pl.program_id(1)   # vocab tile

    @pl.when((p == 0) & (v == 0))
    def _():
        m_scr[...] = jnp.full_like(m_scr, -1e30)
        s_scr[...] = jnp.zeros_like(s_scr)

    sr = sr_ref[...].astype(jnp.bfloat16)                                    # (G, D)
    logits = lax.dot_general(sr, tgt_ref[...], (((1,), (1,)), ((), ())),
                             preferred_element_type=jnp.float32)             # (G, TV)
    scaled = scale * logits
    col = v * tv + lax.broadcasted_iota(jnp.int32, (1, scaled.shape[1]), 1)
    scaled = jnp.where(col < v_real, scaled, -1e30)          # mask padded vocab cols

    @pl.when(p == 0)
    def _():
        m_old = m_scr[...]
        m_new = jnp.maximum(m_old, jnp.max(scaled, axis=-1, keepdims=True))
        s_scr[...] = (s_scr[...] * jnp.exp(m_old - m_new)
                      + jnp.sum(jnp.exp(scaled - m_new), axis=-1, keepdims=True))
        m_scr[...] = m_new

    @pl.when(p == 1)
    def _():
        lse = m_scr[...] + jnp.log(s_scr[...])
        o_ref[...] = scaled - lse                            # log softmax(scale*logits)


def run_score(sr, tgt, scale, v_real, tv=128):
    g, d = sr.shape
    v_pad = tgt.shape[0]
    nv = v_pad // tv
    kern = functools.partial(score_kernel, scale=float(scale), v_real=int(v_real), tv=tv)
    return pl.pallas_call(
        kern,
        out_shape=jax.ShapeDtypeStruct((g, v_pad), jnp.float32),
        grid=(2, nv),
        in_specs=[
            pl.BlockSpec((g, d), lambda p, v: (0, 0)),       # sr, resident
            pl.BlockSpec((tv, d), lambda p, v: (v, 0)),      # streamed vocab tiles
        ],
        # pass 0 parks the output on block 0 (no HBM writeback); pass 1 writes block v
        out_specs=pl.BlockSpec((g, tv), lambda p, v: (0, v * p)),
        scratch_shapes=[pltpu.VMEM((g, 1), jnp.float32),
                        pltpu.VMEM((g, 1), jnp.float32)],
        compiler_params=pltpu.CompilerParams(
            dimension_semantics=("arbitrary", "arbitrary"),
            vmem_limit_bytes=_VMEM_LIMIT),
    )(sr, tgt)


# ---------------------------------------------------------------------------
# Parameter init (uniform(-stdv, stdv) like reset_parameters), with host-side
# weight fusion: W1/W2 folded into the GRU input-gate weights, gates concatenated.
# ---------------------------------------------------------------------------
def init_params(key, num_items, D, num_layers):
    stdv = 1.0 / math.sqrt(D)

    def u(k, shape):
        return jax.random.uniform(k, shape, jnp.float32, -stdv, stdv)

    keys = iter(jax.random.split(key, 6 * num_layers + 6))

    emb = u(next(keys), (num_items, D))

    layers = []
    for _ in range(num_layers):
        W1 = u(next(keys), (D, D))           # Linear weight (out, in)
        W2 = u(next(keys), (D, D))
        w_ih = u(next(keys), (3 * D, 2 * D))  # GRUCell weight_ih (rows: r, z, n)
        w_hh = u(next(keys), (3 * D, D))
        b_ih = u(next(keys), (3 * D,))
        b_hh = u(next(keys), (3 * D,))

        wih_t = w_ih.T                        # (2D, 3D)
        m1 = W1.T @ wih_t[:D]                 # (D, 3D): gi += neigh1 @ m1
        m2 = W2.T @ wih_t[D:]                 # (D, 3D): gi += neigh2 @ m2
        layers.append(dict(
            m1=m1.astype(jnp.bfloat16),
            m2=m2.astype(jnp.bfloat16),
            whh=w_hh.T.astype(jnp.bfloat16),  # (D, 3D)
            bi=b_ih.reshape(1, 3 * D),
            bh=b_hh.reshape(1, 3 * D),
        ))

    wu = u(next(keys), (D, D))       # fc_u (no bias)
    wv = u(next(keys), (D, D))       # fc_v
    bv = u(next(keys), (D,))
    we = u(next(keys), (1, D))       # fc_e (no bias)
    wsr = u(next(keys), (D, 2 * D))  # fc_sr (no bias)
    readout = dict(
        wu_t=wu.T.astype(jnp.bfloat16),
        wv_t=wv.T.astype(jnp.bfloat16),
        bv=bv.reshape(1, D),
        we=we,                                     # used elementwise, keep f32
        wsrl_t=wsr[:, :D].T.astype(jnp.bfloat16),
        wsrg_t=wsr[:, D:].T.astype(jnp.bfloat16),
    )
    return dict(emb=emb, layers=layers, readout=readout)


# ---------------------------------------------------------------------------
# NISER forward (feat_drop = 0 -> dropout identity; norm=True; scale=12)
# ---------------------------------------------------------------------------
def niser_forward(params, iid, A, seg_mask, last_onehot, scale, *, tv=128):
    emb = params["emb"]
    V, D = emb.shape
    N = int(iid.shape[0])

    # node tile size / padding (row tile of A must be lane-aligned when < N_pad)
    if N <= 256:
        tn = _round_up(N, 8)
        n_pad = tn
    else:
        tn = 256
        n_pad = _round_up(N, tn)

    # TODO(synk): DGL graph objects / dynamic edge lists have no Pallas equivalent;
    # the batched graph is densified to A / seg_mask / last_onehot on the host.
    feat_raw = jnp.take(emb, iid, axis=0)                 # embedding gather (XLA glue)
    if n_pad != N:
        pad = n_pad - N
        feat_raw = jnp.pad(feat_raw, ((0, pad), (0, 0)))
        A = jnp.pad(A, ((0, pad), (0, pad)))
        seg_mask = jnp.pad(seg_mask, ((0, 0), (0, pad)))
        last_onehot = jnp.pad(last_onehot, ((0, 0), (0, pad)))

    a_bf16 = A.astype(jnp.bfloat16)
    segt = seg_mask.T                                     # (n_pad, G)

    out = feat_raw
    for li, lp in enumerate(params["layers"]):
        out = run_srgnn_layer(out, a_bf16, lp, tn=tn, normalize_input=(li == 0))

    sr = run_readout(feat_raw, out, segt, last_onehot, params["readout"])

    tgt = run_emb_norm(emb, tv=tv)                        # (V_pad, D) bf16 target table
    logp = run_score(sr, tgt, scale, v_real=V, tv=tv)     # (G, V_pad)
    return logp[:, :V]


if __name__ == "__main__":
    num_items, D, num_layers = 300, 128, 2
    G, Ns = 4, 125
    N = G * Ns
    scale = 12.0

    key = jax.random.PRNGKey(0)
    pkey, ikey = jax.random.split(key)
    params = init_params(pkey, num_items, D, num_layers)

    iid = jax.random.randint(ikey, (N,), 0, num_items, dtype=jnp.int32)

    # batched session graphs: each session is a chain with extra weight-0.5 skip edges
    src, dst, w = [], [], []
    for g in range(G):
        base = g * Ns
        for j in range(Ns - 1):
            src.append(base + j); dst.append(base + j + 1); w.append(1.0)
        for j in range(Ns - 2):
            src.append(base + j); dst.append(base + j + 2); w.append(0.5)
    A = jnp.zeros((N, N), jnp.float32).at[
        jnp.array(dst, jnp.int32), jnp.array(src, jnp.int32)
    ].set(jnp.array(w, jnp.float32))

    node_graph = jnp.arange(N) // Ns
    seg_mask = (node_graph[None, :] == jnp.arange(G)[:, None]).astype(jnp.float32)
    last_nodes = jnp.arange(1, G + 1) * Ns - 1
    last_onehot = jnp.zeros((G, N), jnp.float32).at[
        jnp.arange(G), last_nodes].set(1.0)

    logits = niser_forward(params, iid, A, seg_mask, last_onehot, scale)
    logits = jax.block_until_ready(logits)

    assert logits.shape == (G, num_items)
    assert bool(jnp.all(jnp.isfinite(logits)))
    # exp(log-softmax) rows should sum to 1
    assert bool(jnp.allclose(jnp.sum(jnp.exp(logits), axis=-1), 1.0, atol=1e-3))
    print("KERNEL_OK")
</pallas_src>

<mosaic_0001>
module attributes {stable_mosaic.version = 11 : i64} {
  func.func @srgnn_layer_kernel(%arg0: i32, %arg1: memref<512x128xf32, #tpu.memory_space<vmem>>, %arg2: memref<256x512xbf16, #tpu.memory_space<vmem>>, %arg3: memref<512x256xbf16, #tpu.memory_space<vmem>>, %arg4: memref<128x384xbf16, #tpu.memory_space<vmem>>, %arg5: memref<128x384xbf16, #tpu.memory_space<vmem>>, %arg6: memref<128x384xbf16, #tpu.memory_space<vmem>>, %arg7: memref<1x384xf32, #tpu.memory_space<vmem>>, %arg8: memref<1x384xf32, #tpu.memory_space<vmem>>, %arg9: memref<256x128xf32, #tpu.memory_space<vmem>>) attributes {dimension_semantics = [#tpu.dimension_semantics<parallel>], iteration_bounds = array<i64: 2>, scalar_prefetch = 0 : i64, scratch_operands = 0 : i64, tpu.core_type = #tpu.core_type<tc>, window_params = [{pipeline_mode = #tpu.pipeline_mode<synchronous>, transform_indices = @transform_0, window_bounds = array<i64: 512, 128>}, {transform_indices = @transform_1, window_bounds = array<i64: 256, 512>}, {transform_indices = @transform_2, window_bounds = array<i64: 512, 256>}, {pipeline_mode = #tpu.pipeline_mode<synchronous>, transform_indices = @transform_3, window_bounds = array<i64: 128, 384>}, {pipeline_mode = #tpu.pipeline_mode<synchronous>, transform_indices = @transform_4, window_bounds = array<i64: 128, 384>}, {pipeline_mode = #tpu.pipeline_mode<synchronous>, transform_indices = @transform_5, window_bounds = array<i64: 128, 384>}, {pipeline_mode = #tpu.pipeline_mode<synchronous>, transform_indices = @transform_6, window_bounds = array<i64: 1, 384>}, {pipeline_mode = #tpu.pipeline_mode<synchronous>, transform_indices = @transform_7, window_bounds = array<i64: 1, 384>}, {transform_indices = @transform_8, window_bounds = array<i64: 256, 128>}]} {
    %c0 = arith.constant 0 : index
    %c0_0 = arith.constant 0 : index
    %0 = vector.load %arg1[%c0, %c0_0] : memref<512x128xf32, #tpu.memory_space<vmem>>, vector<512x128xf32>
    %1 = arith.mulf %0, %0 : vector<512x128xf32>
    %cst = arith.constant dense<0.000000e+00> : vector<512xf32>
    %2 = vector.multi_reduction <add>, %1, %cst [1] : vector<512x128xf32> to vector<512xf32>
    %3 = vector.shape_cast %2 : vector<512xf32> to vector<512x1xf32>
    %cst_1 = arith.constant 1.000000e-24 : f32
    %4 = vector.broadcast %cst_1 : f32 to vector<512x1xf32>
    %5 = arith.addf %3, %4 : vector<512x1xf32>
    %6 = math.rsqrt %5 : vector<512x1xf32>
    %7 = vector.broadcast %6 : vector<512x1xf32> to vector<512x128xf32>
    %8 = arith.mulf %0, %7 : vector<512x128xf32>
    %9 = arith.truncf %8 : vector<512x128xf32> to vector<512x128xbf16>
    %c0_2 = arith.constant 0 : index
    %c0_3 = arith.constant 0 : index
    %10 = vector.load %arg2[%c0_2, %c0_3] : memref<256x512xbf16, #tpu.memory_space<vmem>>, vector<256x512xbf16>
    %c0_4 = arith.constant 0 : index
    %c0_5 = arith.constant 0 : index
    %11 = vector.load %arg3[%c0_4, %c0_5] : memref<512x256xbf16, #tpu.memory_space<vmem>>, vector<512x256xbf16>
    %cst_6 = arith.constant 1.000000e+00 : bf16
    %12 = vector.broadcast %cst_6 : bf16 to vector<512x1xbf16>
    %cst_7 = arith.constant dense<0.000000e+00> : vector<256x1xf32>
    %13 = tpu.matmul %10, %12, %cst_7 {dimension_numbers = #tpu.dot_dimension_numbers<[1], [0], [0], [1], [0, 0, 1, 1], [], []>} : vector<256x512xbf16>, vector<512x1xbf16>, vector<256x1xf32> -> vector<256x1xf32>
    %cst_8 = arith.constant dense<0.000000e+00> : vector<256x1xf32>
    %14 = tpu.matmul %11, %12, %cst_8 {dimension_numbers = #tpu.dot_dimension_numbers<[0], [0], [1], [1], [0, 1, 1, 1], [], []>} : vector<512x256xbf16>, vector<512x1xbf16>, vector<256x1xf32> -> vector<256x1xf32>
    %cst_9 = arith.constant dense<0.000000e+00> : vector<256x128xf32>
    %15 = tpu.matmul %10, %9, %cst_9 {dimension_numbers = #tpu.dot_dimension_numbers<[1], [0], [0], [1], [0, 0, 1, 1], [], []>} : vector<256x512xbf16>, vector<512x128xbf16>, vector<256x128xf32> -> vector<256x128xf32>
    %cst_10 = arith.constant dense<0.000000e+00> : vector<256x128xf32>
    %16 = tpu.matmul %11, %9, %cst_10 {dimension_numbers = #tpu.dot_dimension_numbers<[0], [0], [1], [1], [0, 1, 1, 1], [], []>} : vector<512x256xbf16>, vector<512x128xbf16>, vector<256x128xf32> -> vector<256x128xf32>
    %cst_11 = arith.constant 0.000000e+00 : f32
    %17 = vector.broadcast %cst_11 : f32 to vector<256x1xf32>
    %18 = arith.cmpf ogt, %13, %17 : vector<256x1xf32>
    %19 = tpu.reciprocal %13 {approx = true} : vector<256x1xf32> -> vector<256x1xf32>
    %cst_12 = arith.constant 0.000000e+00 : f32
    %20 = vector.broadcast %cst_12 : f32 to vector<256x1xf32>
    %21 = arith.select %18, %19, %20 : vector<256x1xi1>, vector<256x1xf32>
    %22 = vector.broadcast %21 : vector<256x1xf32> to vector<256x128xf32>
    %23 = arith.mulf %15, %22 : vector<256x128xf32>
    %cst_13 = arith.constant 0.000000e+00 : f32
    %24 = vector.broadcast %cst_13 : f32 to vector<256x1xf32>
    %25 = arith.cmpf ogt, %14, %24 : vector<256x1xf32>
    %26 = tpu.reciprocal %14 {approx = true} : vector<256x1xf32> -> vector<256x1xf32>
    %cst_14 = arith.constant 0.000000e+00 : f32
    %27 = vector.broadcast %cst_14 : f32 to vector<256x1xf32>
    %28 = arith.select %25, %26, %27 : vector<256x1xi1>, vector<256x1xf32>
    %29 = vector.broadcast %28 : vector<256x1xf32> to vector<256x128xf32>
    %30 = arith.mulf %16, %29 : vector<256x128xf32>
    %31 = arith.truncf %23 : vector<256x128xf32> to vector<256x128xbf16>
    %c0_15 = arith.constant 0 : index
    %c0_16 = arith.constant 0 : index
    %32 = vector.load %arg4[%c0_15, %c0_16] : memref<128x384xbf16, #tpu.memory_space<vmem>>, vector<128x384xbf16>
    %cst_17 = arith.constant dense<0.000000e+00> : vector<256x384xf32>
    %33 = tpu.matmul %31, %32, %cst_17 {dimension_numbers = #tpu.dot_dimension_numbers<[1], [0], [0], [1], [0, 0, 1, 1], [], []>} : vector<256x128xbf16>, vector<128x384xbf16>, vector<256x384xf32> -> vector<256x384xf32>
    %34 = arith.truncf %30 : vector<256x128xf32> to vector<256x128xbf16>
    %c0_18 = arith.constant 0 : index
    %c0_19 = arith.constant 0 : index
    %35 = vector.load %arg5[%c0_18, %c0_19] : memref<128x384xbf16, #tpu.memory_space<vmem>>, vector<128x384xbf16>
    %cst_20 = arith.constant dense<0.000000e+00> : vector<256x384xf32>
    %36 = tpu.matmul %34, %35, %cst_20 {dimension_numbers = #tpu.dot_dimension_numbers<[1], [0], [0], [1], [0, 0, 1, 1], [], []>} : vector<256x128xbf16>, vector<128x384xbf16>, vector<256x384xf32> -> vector<256x384xf32>
    %37 = arith.addf %33, %36 : vector<256x384xf32>
    %c0_21 = arith.constant 0 : index
    %c0_22 = arith.constant 0 : index
    %38 = vector.load %arg7[%c0_21, %c0_22] : memref<1x384xf32, #tpu.memory_space<vmem>>, vector<1x384xf32>
    %39 = vector.broadcast %38 : vector<1x384xf32> to vector<256x384xf32>
    %40 = arith.addf %37, %39 : vector<256x384xf32>
    %c256_i32 = arith.constant 256 : i32
    %41 = arith.muli %arg0, %c256_i32 : i32
    %42 = tpu.assume_multiple %41, 8 : i32
    %43 = arith.index_cast %42 : i32 to index
    %c0_23 = arith.constant 0 : index
    %44 = vector.load %arg1[%43, %c0_23] : memref<512x128xf32, #tpu.memory_space<vmem>>, vector<256x128xf32>
    %45 = arith.mulf %44, %44 : vector<256x128xf32>
    %cst_24 = arith.constant dense<0.000000e+00> : vector<256xf32>
    %46 = vector.multi_reduction <add>, %45, %cst_24 [1] : vector<256x128xf32> to vector<256xf32>
    %47 = vector.shape_cast %46 : vector<256xf32> to vector<256x1xf32>
    %cst_25 = arith.constant 1.000000e-24 : f32
    %48 = vector.broadcast %cst_25 : f32 to vector<256x1xf32>
    %49 = arith.addf %47, %48 : vector<256x1xf32>
    %50 = math.rsqrt %49 : vector<256x1xf32>
    %51 = vector.broadcast %50 : vector<256x1xf32> to vector<256x128xf32>
    %52 = arith.mulf %44, %51 : vector<256x128xf32>
    %53 = arith.truncf %52 : vector<256x128xf32> to vector<256x128xbf16>
    %c0_26 = arith.constant 0 : index
    %c0_27 = arith.constant 0 : index
    %54 = vector.load %arg6[%c0_26, %c0_27] : memref<128x384xbf16, #tpu.memory_space<vmem>>, vector<128x384xbf16>
    %cst_28 = arith.constant dense<0.000000e+00> : vector<256x384xf32>
    %55 = tpu.matmul %53, %54, %cst_28 {dimension_numbers = #tpu.dot_dimension_numbers<[1], [0], [0], [1], [0, 0, 1, 1], [], []>} : vector<256x128xbf16>, vector<128x384xbf16>, vector<256x384xf32> -> vector<256x384xf32>
    %c0_29 = arith.constant 0 : index
    %c0_30 = arith.constant 0 : index
    %56 = vector.load %arg8[%c0_29, %c0_30] : memref<1x384xf32, #tpu.memory_space<vmem>>, vector<1x384xf32>
    %57 = vector.broadcast %56 : vector<1x384xf32> to vector<256x384xf32>
    %58 = arith.addf %55, %57 : vector<256x384xf32>
    %59 = vector.extract_strided_slice %40 {offsets = [0, 0], sizes = [256, 128], strides = [1, 1]} : vector<256x384xf32> to vector<256x128xf32>
    %60 = vector.extract_strided_slice %58 {offsets = [0, 0], sizes = [256, 128], strides = [1, 1]} : vector<256x384xf32> to vector<256x128xf32>
    %61 = arith.addf %59, %60 : vector<256x128xf32>
    %62 = arith.negf %61 : vector<256x128xf32>
    %63 = math.exp %62 : vector<256x128xf32>
    %cst_31 = arith.constant 1.000000e+00 : f32
    %64 = vector.broadcast %cst_31 : f32 to vector<256x128xf32>
    %65 = arith.addf %64, %63 : vector<256x128xf32>
    %66 = arith.divf %64, %65 : vector<256x128xf32>
    %67 = vector.extract_strided_slice %40 {offsets = [0, 128], sizes = [256, 128], strides = [1, 1]} : vector<256x384xf32> to vector<256x128xf32>
    %68 = vector.extract_strided_slice %58 {offsets = [0, 128], sizes = [256, 128], strides = [1, 1]} : vector<256x384xf32> to vector<256x128xf32>
    %69 = arith.addf %67, %68 : vector<256x128xf32>
    %70 = arith.negf %69 : vector<256x128xf32>
    %71 = math.exp %70 : vector<256x128xf32>
    %cst_32 = arith.constant 1.000000e+00 : f32
    %72 = vector.broadcast %cst_32 : f32 to vector<256x128xf32>
    %73 = arith.addf %72, %71 : vector<256x128xf32>
    %74 = arith.divf %72, %73 : vector<256x128xf32>
    %75 = vector.extract_strided_slice %40 {offsets = [0, 256], sizes = [256, 128], strides = [1, 1]} : vector<256x384xf32> to vector<256x128xf32>
    %76 = vector.extract_strided_slice %58 {offsets = [0, 256], sizes = [256, 128], strides = [1, 1]} : vector<256x384xf32> to vector<256x128xf32>
    %77 = arith.mulf %66, %76 : vector<256x128xf32>
    %78 = arith.addf %75, %77 : vector<256x128xf32>
    %79 = math.tanh %78 : vector<256x128xf32>
    %cst_33 = arith.constant 1.000000e+00 : f32
    %80 = vector.broadcast %cst_33 : f32 to vector<256x128xf32>
    %81 = arith.subf %80, %74 : vector<256x128xf32>
    %82 = arith.mulf %81, %79 : vector<256x128xf32>
    %83 = arith.mulf %74, %52 : vector<256x128xf32>
    %84 = arith.addf %82, %83 : vector<256x128xf32>
    %c0_34 = arith.constant 0 : index
    %c0_35 = arith.constant 0 : index
    %85 = vector.load %arg9[%c0_34, %c0_35] : memref<256x128xf32, #tpu.memory_space<vmem>>, vector<256x128xf32>
    tpu.vector_store %arg9[%c0_34, %c0_35], %84 {strides = array<i32>} : memref<256x128xf32, #tpu.memory_space<vmem>>, vector<256x128xf32>,
    return
  }
  func.func @transform_0(%arg0: i32) -> (i32, i32) {
    %c0_i32 = arith.constant 0 : i32
    %c0_i32_0 = arith.constant 0 : i32
    %c0_i32_1 = arith.constant 0 : i32
    return %c0_i32, %c0_i32_0 : i32, i32
  }
  func.func @transform_1(%arg0: i32) -> (i32, i32) {
    %c0_i32 = arith.constant 0 : i32
    %c0_i32_0 = arith.constant 0 : i32
    return %arg0, %c0_i32 : i32, i32
  }
  func.func @transform_2(%arg0: i32) -> (i32, i32) {
    %c0_i32 = arith.constant 0 : i32
    %c0_i32_0 = arith.constant 0 : i32
    return %c0_i32, %arg0 : i32, i32
  }
  func.func @transform_3(%arg0: i32) -> (i32, i32) {
    %c0_i32 = arith.constant 0 : i32
    %c0_i32_0 = arith.constant 0 : i32
    %c0_i32_1 = arith.constant 0 : i32
    return %c0_i32, %c0_i32_0 : i32, i32
  }
  func.func @transform_4(%arg0: i32) -> (i32, i32) {
    %c0_i32 = arith.constant 0 : i32
    %c0_i32_0 = arith.constant 0 : i32
    %c0_i32_1 = arith.constant 0 : i32
    return %c0_i32, %c0_i32_0 : i32, i32
  }
  func.func @transform_5(%arg0: i32) -> (i32, i32) {
    %c0_i32 = arith.constant 0 : i32
    %c0_i32_0 = arith.constant 0 : i32
    %c0_i32_1 = arith.constant 0 : i32
    return %c0_i32, %c0_i32_0 : i32, i32
  }
  func.func @transform_6(%arg0: i32) -> (i32, i32) {
    %c0_i32 = arith.constant 0 : i32
    %c0_i32_0 = arith.constant 0 : i32
    %c0_i32_1 = arith.constant 0 : i32
    return %c0_i32, %c0_i32_0 : i32, i32
  }
  func.func @transform_7(%arg0: i32) -> (i32, i32) {
    %c0_i32 = arith.constant 0 : i32
    %c0_i32_0 = arith.constant 0 : i32
    %c0_i32_1 = arith.constant 0 : i32
    return %c0_i32, %c0_i32_0 : i32, i32
  }
  func.func @transform_8(%arg0: i32) -> (i32, i32) {
    %c0_i32 = arith.constant 0 : i32
    %c0_i32_0 = arith.constant 0 : i32
    return %arg0, %c0_i32 : i32, i32
  }
}

</mosaic_0001>

<llo_original>
// kernel: tpu_custom_call.1
$region0: #{tpu_custom_call.1}
  #allocation0 [shape = 'u32[]', space=smem, size = 0x4, offset = 0x4, fixed_abs, tag = 'smem constant byte address 0x4 - core index']
  #allocation1 [shape = 'u32[72,128]{1,0:T(1,128)}', space=vmem, size = 0x9000, scoped, tag = 'internal scratch']
  %s0 = inlined_call_operand.hbm [shape: f32[512,128], index: 0, kind: input, shape index: {}]
  %s1 = inlined_call_operand.hbm [shape: bf16[512,512], index: 1, kind: input, shape index: {}]
  %s2 = inlined_call_operand.hbm [shape: bf16[512,512], index: 2, kind: input, shape index: {}]
  %s3 = inlined_call_operand.hbm [shape: bf16[128,384], index: 3, kind: input, shape index: {}]
  %s4 = inlined_call_operand.hbm [shape: bf16[128,384], index: 4, kind: input, shape index: {}]
  %s5 = inlined_call_operand.hbm [shape: bf16[128,384], index: 5, kind: input, shape index: {}]
  %s6 = inlined_call_operand.vmem [shape: f32[1,384], index: 6, kind: input, shape index: {}]
  %s7 = inlined_call_operand.vmem [shape: f32[1,384], index: 7, kind: input, shape index: {}]
  %s8 = inlined_call_operand.hbm [shape: f32[512,128], index: 8, kind: output, shape index: {}]
  %s9 = sld [smem:[#allocation0]]
  $region89: #{tpu_custom_call.1} parent=0
    _
  %s11 = ssub.s32 1, %s9
  %s12 = scalar_select 0, %s11, %s9
  $region1: #{tpu_custom_call.1} parent=0
    #allocation2 [shape = 'u8[262144]{0}', space=vmem, size = 0x40000, scoped, tag = 'input window, operand 0, single buffered']
    #allocation3 [shape = 's32[2]{0}', space=sflag, size = 0x8, scoped, tag = 'scoped memory for tpu_custom_call.1']
    #allocation4 [shape = 's32[2]{0}', space=sflag, size = 0x8, scoped, tag = 'scoped memory for tpu_custom_call.1']
    #allocation5 [shape = 'u8[524288]{0}', space=vmem, size = 0x80000, scoped, tag = 'input window, operand 1']
    #allocation6 [shape = 's32[2]{0}', space=sflag, size = 0x8, scoped, tag = 'scoped memory for tpu_custom_call.1']
    #allocation7 [shape = 'u8[524288]{0}', space=vmem, size = 0x80000, scoped, tag = 'input window, operand 2']
    #allocation8 [shape = 'u8[98304]{0}', space=vmem, size = 0x18000, scoped, tag = 'input window, operand 3, single buffered']
    #allocation9 [shape = 's32[1]{0}', space=sflag, size = 0x4, scoped, tag = 'scoped memory for tpu_custom_call.1']
    #allocation10 [shape = 'u8[98304]{0}', space=vmem, size = 0x18000, scoped, tag = 'input window, operand 4, single buffered']
    #allocation11 [shape = 'u8[98304]{0}', space=vmem, size = 0x18000, scoped, tag = 'input window, operand 5, single buffered']
    #allocation12 [shape = 's32[1]{0}', space=sflag, size = 0x4, scoped, tag = 'scoped memory for tpu_custom_call.1']
    #allocation13 [shape = 'u8[262144]{0}', space=vmem, size = 0x40000, scoped, tag = 'output window, operand 0']
    %13 = vsyncpa [#allocation3], 0
    %14 = vsyncpa [#allocation6], 0
    %s15 = scalar_lea.sflag [#allocation6], 1
    %16 = vsyncpa %s15, 0
    %17 = vsyncpa [#allocation9], 0
    %18 = vsyncpa [#allocation12], 0
    %19 = vsyncpa [#allocation4], 0
    %s20 = scalar_lea.sflag [#allocation4], 1
    %21 = vsyncpa %s20, 0
    loop: start=0, step=1, limit=4
    $region2: #{tpu_custom_call.1} parent=1 // loop_pre_header
      _
    $region3: #{tpu_custom_call.1} parent=1 // loop_header
      %s23 = sphi 0, %s27
      %p24 = scmp.ge.s32.totalorder %s23, 4
      %s31 = sphi 0, %s31
      %s33 = sphi 0, %s31
      %s34 = sphi 0, %s33
      %s48 = sphi 0, %s34
      %s54 = sphi 0, %s56
      %s57 = sphi 0, %s54
      %s58 = sphi 0, %s57
      %s74 = sphi 0, %s58
      %s80 = sphi 0, %s82
      %s83 = sphi 0, %s80
      %s84 = sphi 0, %s83
      %s100 = sphi 0, %s84
      %s104 = sphi 0, %s104
      %s106 = sphi 0, %s104
      %s107 = sphi 0, %s106
      %s121 = sphi 0, %s107
      %s125 = sphi 0, %s125
      %s127 = sphi 0, %s125
      %s128 = sphi 0, %s127
      %s142 = sphi 0, %s128
      %s146 = sphi 0, %s146
      %s148 = sphi 0, %s146
      %s149 = sphi 0, %s148
      %s163 = sphi 0, %s149
      %s167 = sphi 0, %s167
      %s169 = sphi 0, %s167
      %s170 = sphi 0, %s169
      %s184 = sphi 0, %s170
      %s188 = sphi 0, %s188
      %s190 = sphi 0, %s188
      %s191 = sphi 0, %s190
      %s205 = sphi 0, %s191
      %s211 = sphi 0, %s213
      %s214 = sphi 0, %s211
      %s215 = sphi 0, %s214
      %s231 = sphi 0, %s215
    $region4: #{tpu_custom_call.1} parent=1 // loop_header_branch
      %26 = sbr.rel (%p24) target = $region8
    $region5: #{tpu_custom_call.1} parent=1 // loop_body
      %s28 = ssub.s32 %s23, 1
      %s29 = ssub.s32 %s23, 2
      %s30 = sadd.s32 %s23, 1
      %s32 = sadd.s32 %s31, 1
      %p35 = scmp.eq.s32.totalorder %s23, 1
      %p36 = scmp.ne.s32.totalorder %s31, %s33
      %p37 = scmp.eq.s32.totalorder %s23, 0
      %p38 = por %p36, %p37
      %p39 = scmp.ne.s32.totalorder %s31, %s33
      %p40 = scmp.eq.s32.totalorder %s28, 1
      %p41 = por %p39, %p40
      %p42 = scmp.ne.s32.totalorder %s33, %s34
      %p43 = scmp.eq.s32.totalorder %s28, 0
      %p44 = por %p42, %p43
      %p45 = scmp.ne.s32.totalorder %s33, %s34
      %p46 = scmp.eq.s32.totalorder %s29, 1
      %p47 = por %p45, %p46
      %p49 = scmp.ne.s32.totalorder %s34, %s48
      %p50 = scmp.eq.s32.totalorder %s29, 0
      %p51 = por %p49, %p50
      %s52 = ssub.s32 %s23, %s30
      %p53 = scmp.eq.s32.totalorder %s52, 0
      %s55 = sadd.s32 %s54, 1
      %s56 = scalar_select %p53, %s54, %s55
      %p59 = pneg %p53
      %p60 = scmp.eq.s32.totalorder %s23, 1
      %p61 = por %p59, %p60
      %p62 = scmp.ne.s32.totalorder %s54, %s57
      %p63 = scmp.eq.s32.totalorder %s23, 0
      %p64 = por %p62, %p63
      %p65 = scmp.ne.s32.totalorder %s54, %s57
      %p66 = scmp.eq.s32.totalorder %s28, 1
      %p67 = por %p65, %p66
      %p68 = scmp.ne.s32.totalorder %s57, %s58
      %p69 = scmp.eq.s32.totalorder %s28, 0
      %p70 = por %p68, %p69
      %p71 = scmp.ne.s32.totalorder %s57, %s58
      %p72 = scmp.eq.s32.totalorder %s29, 1
      %p73 = por %p71, %p72
      %p75 = scmp.ne.s32.totalorder %s58, %s74
      %p76 = scmp.eq.s32.totalorder %s29, 0
      %p77 = por %p75, %p76
      %s78 = ssub.s32 %s23, %s30
      %p79 = scmp.eq.s32.totalorder %s78, 0
      %s81 = sadd.s32 %s80, 1
      %s82 = scalar_select %p79, %s80, %s81
      %p85 = pneg %p79
      %p86 = scmp.eq.s32.totalorder %s23, 1
      %p87 = por %p85, %p86
      %p88 = scmp.ne.s32.totalorder %s80, %s83
      %p89 = scmp.eq.s32.totalorder %s23, 0
      %p90 = por %p88, %p89
      %p91 = scmp.ne.s32.totalorder %s80, %s83
      %p92 = scmp.eq.s32.totalorder %s28, 1
      %p93 = por %p91, %p92
      %p94 = scmp.ne.s32.totalorder %s83, %s84
      %p95 = scmp.eq.s32.totalorder %s28, 0
      %p96 = por %p94, %p95
      %p97 = scmp.ne.s32.totalorder %s83, %s84
      %p98 = scmp.eq.s32.totalorder %s29, 1
      %p99 = por %p97, %p98
      %p101 = scmp.ne.s32.totalorder %s84, %s100
      %p102 = scmp.eq.s32.totalorder %s29, 0
      %p103 = por %p101, %p102
      %s105 = sadd.s32 %s104, 1
      %p108 = scmp.eq.s32.totalorder %s23, 1
      %p109 = scmp.ne.s32.totalorder %s104, %s106
      %p110 = scmp.eq.s32.totalorder %s23, 0
      %p111 = por %p109, %p110
      %p112 = scmp.ne.s32.totalorder %s104, %s106
      %p113 = scmp.eq.s32.totalorder %s28, 1
      %p114 = por %p112, %p113
      %p115 = scmp.ne.s32.totalorder %s106, %s107
      %p116 = scmp.eq.s32.totalorder %s28, 0
      %p117 = por %p115, %p116
      %p118 = scmp.ne.s32.totalorder %s106, %s107
      %p119 = scmp.eq.s32.totalorder %s29, 1
      %p120 = por %p118, %p119
      %p122 = scmp.ne.s32.totalorder %s107, %s121
      %p123 = scmp.eq.s32.totalorder %s29, 0
      %p124 = por %p122, %p123
      %s126 = sadd.s32 %s125, 1
      %p129 = scmp.eq.s32.totalorder %s23, 1
      %p130 = scmp.ne.s32.totalorder %s125, %s127
      %p131 = scmp.eq.s32.totalorder %s23, 0
      %p132 = por %p130, %p131
      %p133 = scmp.ne.s32.totalorder %s125, %s127
      %p134 = scmp.eq.s32.totalorder %s28, 1
      %p135 = por %p133, %p134
      %p136 = scmp.ne.s32.totalorder %s127, %s128
      %p137 = scmp.eq.s32.totalorder %s28, 0
      %p138 = por %p136, %p137
      %p139 = scmp.ne.s32.totalorder %s127, %s128
      %p140 = scmp.eq.s32.totalorder %s29, 1
      %p141 = por %p139, %p140
      %p143 = scmp.ne.s32.totalorder %s128, %s142
      %p144 = scmp.eq.s32.totalorder %s29, 0
      %p145 = por %p143, %p144
      %s147 = sadd.s32 %s146, 1
      %p150 = scmp.eq.s32.totalorder %s23, 1
      %p151 = scmp.ne.s32.totalorder %s146, %s148
      %p152 = scmp.eq.s32.totalorder %s23, 0
      %p153 = por %p151, %p152
      %p154 = scmp.ne.s32.totalorder %s146, %s148
      %p155 = scmp.eq.s32.totalorder %s28, 1
      %p156 = por %p154, %p155
      %p157 = scmp.ne.s32.totalorder %s148, %s149
      %p158 = scmp.eq.s32.totalorder %s28, 0
      %p159 = por %p157, %p158
      %p160 = scmp.ne.s32.totalorder %s148, %s149
      %p161 = scmp.eq.s32.totalorder %s29, 1
      %p162 = por %p160, %p161
      %p164 = scmp.ne.s32.totalorder %s149, %s163
      %p165 = scmp.eq.s32.totalorder %s29, 0
      %p166 = por %p164, %p165
      %s168 = sadd.s32 %s167, 1
      %p171 = scmp.eq.s32.totalorder %s23, 1
      %p172 = scmp.ne.s32.totalorder %s167, %s169
      %p173 = scmp.eq.s32.totalorder %s23, 0
      %p174 = por %p172, %p173
      %p175 = scmp.ne.s32.totalorder %s167, %s169
      %p176 = scmp.eq.s32.totalorder %s28, 1
      %p177 = por %p175, %p176
      %p178 = scmp.ne.s32.totalorder %s169, %s170
      %p179 = scmp.eq.s32.totalorder %s28, 0
      %p180 = por %p178, %p179
      %p181 = scmp.ne.s32.totalorder %s169, %s170
      %p182 = scmp.eq.s32.totalorder %s29, 1
      %p183 = por %p181, %p182
      %p185 = scmp.ne.s32.totalorder %s170, %s184
      %p186 = scmp.eq.s32.totalorder %s29, 0
      %p187 = por %p185, %p186
      %s189 = sadd.s32 %s188, 1
      %p192 = scmp.eq.s32.totalorder %s23, 1
      %p193 = scmp.ne.s32.totalorder %s188, %s190
      %p194 = scmp.eq.s32.totalorder %s23, 0
      %p195 = por %p193, %p194
      %p196 = scmp.ne.s32.totalorder %s188, %s190
      %p197 = scmp.eq.s32.totalorder %s28, 1
      %p198 = por %p196, %p197
      %p199 = scmp.ne.s32.totalorder %s190, %s191
      %p200 = scmp.eq.s32.totalorder %s28, 0
      %p201 = por %p199, %p200
      %p202 = scmp.ne.s32.totalorder %s190, %s191
      %p203 = scmp.eq.s32.totalorder %s29, 1
      %p204 = por %p202, %p203
      %p206 = scmp.ne.s32.totalorder %s191, %s205
      %p207 = scmp.eq.s32.totalorder %s29, 0
      %p208 = por %p206, %p207
      %s209 = ssub.s32 %s23, %s30
      %p210 = scmp.eq.s32.totalorder %s209, 0
      %s212 = sadd.s32 %s211, 1
      %s213 = scalar_select %p210, %s211, %s212
      %p216 = pneg %p210
      %p217 = scmp.eq.s32.totalorder %s23, 1
      %p218 = por %p216, %p217
      %p219 = scmp.ne.s32.totalorder %s211, %s214
      %p220 = scmp.eq.s32.totalorder %s23, 0
      %p221 = por %p219, %p220
      %p222 = scmp.ne.s32.totalorder %s211, %s214
      %p223 = scmp.eq.s32.totalorder %s28, 1
      %p224 = por %p222, %p223
      %p225 = scmp.ne.s32.totalorder %s214, %s215
      %p226 = scmp.eq.s32.totalorder %s28, 0
      %p227 = por %p225, %p226
      %p228 = scmp.ne.s32.totalorder %s214, %s215
      %p229 = scmp.eq.s32.totalorder %s29, 1
      %p230 = por %p228, %p229
      %p232 = scmp.ne.s32.totalorder %s215, %s231
      %p233 = scmp.eq.s32.totalorder %s29, 0
      %p234 = por %p232, %p233
      %p235 = scmp.le.s32.totalorder 1, %s23
      %p236 = scmp.lt.s32.totalorder %s23, 3
      %p237 = pnand %p235, %p236
      %p238 = pneg %p237
      // Predicated region
      $region9: #{tpu_custom_call.1} parent=5 // pred_check
        _
      $region10: #{tpu_custom_call.1} parent=5 // pred_check_branch
        %240 = sbr.rel (%p237) target = $region12
      $region11: #{tpu_custom_call.1} parent=5 // pred_region
        %s241 = ssub.s32 %s23, 1
        // Predicated region
        $region13: #{tpu_custom_call.1} parent=11 // pred_check
          %p242 = pneg %p44
        $region14: #{tpu_custom_call.1} parent=11 // pred_check_branch
          %244 = sbr.rel (%p242) target = $region16
        $region15: #{tpu_custom_call.1} parent=11 // pred_region
          %246 = vsyncadd [#allocation3], 0
          %s247 = sshll.u32 %s0, 4
          %s248 = int_to_ptr.hbm [resolvable:$true] %s247
          %s249 = sshll.u32 [#allocation2], 4
          %s250 = int_to_ptr.vmem [resolvable:$true] %s249
          %255 = dma.hbm_to_vmem [thread:$0]  %s248, 8192, %s250, [#allocation3], 128, 128, 8
        $region16: #{tpu_custom_call.1} parent=11 // pred_fallthru
          _
        // Predicated region
        $region17: #{tpu_custom_call.1} parent=11 // pred_check
          %p256 = pneg %p117
        $region18: #{tpu_custom_call.1} parent=11 // pred_check_branch
          %258 = sbr.rel (%p256) target = $region20
        $region19: #{tpu_custom_call.1} parent=11 // pred_region
          %260 = vsyncadd [#allocation9], 0
          %s261 = sshll.u32 %s3, 4
          %s262 = int_to_ptr.hbm [resolvable:$true] %s261
          %s263 = sshll.u32 [#allocation8], 4
          %s264 = int_to_ptr.vmem [resolvable:$true] %s263
          %269 = dma.hbm_to_vmem [thread:$0]  %s262, 3072, %s264, [#allocation9], 192, 192, 12
        $region20: #{tpu_custom_call.1} parent=11 // pred_fallthru
          _
        // Predicated region
        $region21: #{tpu_custom_call.1} parent=11 // pred_check
          %p270 = pneg %p138
        $region22: #{tpu_custom_call.1} parent=11 // pred_check_branch
          %272 = sbr.rel (%p270) target = $region24
        $region23: #{tpu_custom_call.1} parent=11 // pred_region
          %274 = vsyncadd [#allocation9], 0
          %s275 = sshll.u32 %s4, 4
          %s276 = int_to_ptr.hbm [resolvable:$true] %s275
          %s277 = sshll.u32 [#allocation10], 4
          %s278 = int_to_ptr.vmem [resolvable:$true] %s277
          %283 = dma.hbm_to_vmem [thread:$0]  %s276, 3072, %s278, [#allocation9], 192, 192, 12
        $region24: #{tpu_custom_call.1} parent=11 // pred_fallthru
          _
        // Predicated region
        $region25: #{tpu_custom_call.1} parent=11 // pred_check
          %p284 = pneg %p159
        $region26: #{tpu_custom_call.1} parent=11 // pred_check_branch
          %286 = sbr.rel (%p284) target = $region28
        $region27: #{tpu_custom_call.1} parent=11 // pred_region
          %288 = vsyncadd [#allocation12], 0
          %s289 = sshll.u32 %s5, 4
          %s290 = int_to_ptr.hbm [resolvable:$true] %s289
          %s291 = sshll.u32 [#allocation11], 4
          %s292 = int_to_ptr.vmem [resolvable:$true] %s291
          %297 = dma.hbm_to_vmem [thread:$0]  %s290, 3072, %s292, [#allocation12], 192, 192, 12
        $region28: #{tpu_custom_call.1} parent=11 // pred_fallthru
          _
        // Predicated region
        $region29: #{tpu_custom_call.1} parent=11 // pred_check
          %p298 = pneg %p180
        $region30: #{tpu_custom_call.1} parent=11 // pred_check_branch
          %300 = sbr.rel (%p298) target = $region32
        $region31: #{tpu_custom_call.1} parent=11 // pred_region
          _
        $region32: #{tpu_custom_call.1} parent=11 // pred_fallthru
          _
        // Predicated region
        $region33: #{tpu_custom_call.1} parent=11 // pred_check
          %p301 = pneg %p201
        $region34: #{tpu_custom_call.1} parent=11 // pred_check_branch
          %303 = sbr.rel (%p301) target = $region36
        $region35: #{tpu_custom_call.1} parent=11 // pred_region
          _
        $region36: #{tpu_custom_call.1} parent=11 // pred_fallthru
          _
      $region12: #{tpu_custom_call.1} parent=5 // pred_fallthru
        _
      %p304 = scmp.lt.s32.totalorder %s23, 2
      // Predicated region
      $region37: #{tpu_custom_call.1} parent=5 // pred_check
        %p305 = pneg %p304
      $region38: #{tpu_custom_call.1} parent=5 // pred_check_branch
        %307 = sbr.rel (%p305) target = $region40
      $region39: #{tpu_custom_call.1} parent=5 // pred_region
        // Predicated region
        $region41: #{tpu_custom_call.1} parent=39 // pred_check
          %p308 = pneg %p64
        $region42: #{tpu_custom_call.1} parent=39 // pred_check_branch
          %310 = sbr.rel (%p308) target = $region44
        $region43: #{tpu_custom_call.1} parent=39 // pred_region
          %s311 = sand.u32 %s23, 1
          %s312 = scalar_lea.sflag [#allocation6], %s311
          %s313 = sand.u32 %s54, 1
          %s314 = smul.addr %s313, 512
          %s315 = scalar_lea.vmem [#allocation5], %s314
          %s316 = smul.u32 32, %s23
          %318 = vsyncadd %s312, 0
          %s319 = smul.addr %s316, 4
          %s320 = smul.addr %s319, 4
          %s321 = scalar_lea.hbm %s1, %s320
          %s322 = sshll.u32 %s321, 4
          %s323 = int_to_ptr.hbm [resolvable:$true] %s322
          %s324 = sshll.u32 %s315, 4
          %s325 = int_to_ptr.vmem [resolvable:$true] %s324
          %330 = dma.hbm_to_vmem [thread:$0]  %s323, 8192, %s325, %s312, 256, 256, 16
        $region44: #{tpu_custom_call.1} parent=39 // pred_fallthru
          _
        // Predicated region
        $region45: #{tpu_custom_call.1} parent=39 // pred_check
          %p331 = pneg %p90
        $region46: #{tpu_custom_call.1} parent=39 // pred_check_branch
          %333 = sbr.rel (%p331) target = $region48
        $region47: #{tpu_custom_call.1} parent=39 // pred_region
          %s334 = sand.u32 %s23, 1
          %s335 = scalar_lea.sflag [#allocation6], %s334
          %s336 = sand.u32 %s80, 1
          %s337 = smul.addr %s336, 512
          %s338 = scalar_lea.vmem [#allocation7], %s337
          %s339 = smul.u32 2, %s23
          %341 = vsyncadd %s335, 0
          %s342 = smul.addr %s339, 4
          %s343 = scalar_lea.hbm %s2, %s342
          %s344 = sshll.u32 %s343, 4
          %s345 = int_to_ptr.hbm [resolvable:$true] %s344
          %s346 = sshll.u32 %s338, 4
          %s347 = int_to_ptr.vmem [resolvable:$true] %s346
          %352 = dma.hbm_to_vmem [thread:$0]  %s345, 8192, %s347, %s335, 256, 128, 8
        $region48: #{tpu_custom_call.1} parent=39 // pred_fallthru
          _
      $region40: #{tpu_custom_call.1} parent=5 // pred_fallthru
        _
      %p353 = scmp.le.s32.totalorder 1, %s23
      %p354 = scmp.lt.s32.totalorder %s23, 3
      %p355 = pnand %p353, %p354
      %p356 = pneg %p355
      // Predicated region
      $region49: #{tpu_custom_call.1} parent=5 // pred_check
        _
      $region50: #{tpu_custom_call.1} parent=5 // pred_check_branch
        %358 = sbr.rel (%p355) target = $region52
      $region51: #{tpu_custom_call.1} parent=5 // pred_region
        %s359 = ssub.s32 %s23, 1
        // Predicated region
        $region53: #{tpu_custom_call.1} parent=51 // pred_check
          %p360 = pneg %p44
        $region54: #{tpu_custom_call.1} parent=51 // pred_check_branch
          %362 = sbr.rel (%p360) target = $region56
        $region55: #{tpu_custom_call.1} parent=51 // pred_region
          %364 = dma.done [#allocation3], 8192
        $region56: #{tpu_custom_call.1} parent=51 // pred_fallthru
          _
        %s365 = sand.u32 %s28, 1
        %s366 = scalar_lea.sflag [#allocation6], %s365
        %s367 = sand.u32 %s57, 1
        %s368 = smul.addr %s367, 512
        %s369 = scalar_lea.vmem [#allocation5], %s368
        // Predicated region
        $region57: #{tpu_custom_call.1} parent=51 // pred_check
          %p370 = pneg %p70
        $region58: #{tpu_custom_call.1} parent=51 // pred_check_branch
          %372 = sbr.rel (%p370) target = $region60
        $region59: #{tpu_custom_call.1} parent=51 // pred_region
          %374 = dma.done %s366, 8192
        $region60: #{tpu_custom_call.1} parent=51 // pred_fallthru
          _
        %s375 = sand.u32 %s28, 1
        %s376 = scalar_lea.sflag [#allocation6], %s375
        %s377 = sand.u32 %s83, 1
        %s378 = smul.addr %s377, 512
        %s379 = scalar_lea.vmem [#allocation7], %s378
        // Predicated region
        $region61: #{tpu_custom_call.1} parent=51 // pred_check
          %p380 = pneg %p96
        $region62: #{tpu_custom_call.1} parent=51 // pred_check_branch
          %382 = sbr.rel (%p380) target = $region64
        $region63: #{tpu_custom_call.1} parent=51 // pred_region
          %384 = dma.done %s376, 8192
        $region64: #{tpu_custom_call.1} parent=51 // pred_fallthru
          _
        // Predicated region
        $region65: #{tpu_custom_call.1} parent=51 // pred_check
          %p385 = pneg %p117
        $region66: #{tpu_custom_call.1} parent=51 // pred_check_branch
          %387 = sbr.rel (%p385) target = $region68
        $region67: #{tpu_custom_call.1} parent=51 // pred_region
          %389 = dma.done [#allocation9], 3072
        $region68: #{tpu_custom_call.1} parent=51 // pred_fallthru
          _
        // Predicated region
        $region69: #{tpu_custom_call.1} parent=51 // pred_check
          %p390 = pneg %p138
        $region70: #{tpu_custom_call.1} parent=51 // pred_check_branch
          %392 = sbr.rel (%p390) target = $region72
        $region71: #{tpu_custom_call.1} parent=51 // pred_region
          %394 = dma.done [#allocation9], 3072
        $region72: #{tpu_custom_call.1} parent=51 // pred_fallthru
          _
        // Predicated region
        $region73: #{tpu_custom_call.1} parent=51 // pred_check
          %p395 = pneg %p159
        $region74: #{tpu_custom_call.1} parent=51 // pred_check_branch
          %397 = sbr.rel (%p395) target = $region76
        $region75: #{tpu_custom_call.1} parent=51 // pred_region
          %399 = dma.done [#allocation12], 3072
        $region76: #{tpu_custom_call.1} parent=51 // pred_fallthru
          _
        %p400 = pneg %p44
        %p401 = pneg %p41
        %s402 = sand.u32 %s28, 1
        %s403 = scalar_lea.sflag [#allocation6], %s402
        %s404 = sand.u32 %s57, 1
        %s405 = smul.addr %s404, 512
        %s406 = scalar_lea.vmem [#allocation5], %s405
        %p407 = pneg %p70
        %p408 = pneg %p67
        %s409 = sand.u32 %s28, 1
        %s410 = scalar_lea.sflag [#allocation6], %s409
        %s411 = sand.u32 %s83, 1
        %s412 = smul.addr %s411, 512
        %s413 = scalar_lea.vmem [#allocation7], %s412
        %p414 = pneg %p96
        %p415 = pneg %p93
        %p416 = pneg %p117
        %p417 = pneg %p114
        %p418 = pneg %p138
        %p419 = pneg %p135
        %p420 = pneg %p159
        %p421 = pneg %p156
        %p422 = pneg %p180
        %p423 = pneg %p177
        %p424 = pneg %p201
        %p425 = pneg %p198
        %p426 = pneg %p227
        %p427 = pneg %p224
        %s428 = sand.u32 %s214, 1
        %s429 = scalar_lea.sflag [#allocation4], %s428
        %s430 = sand.u32 %s214, 1
        %s431 = smul.addr %s430, 256
        %s432 = scalar_lea.vmem [#allocation13], %s431
        %s433 = smul.u32 32, %s28
        %s434 = smul.u32 2, %s28
        %s435 = smul.u32 32, %s28
        %v437 = vld [vmem:[#allocation2] sm:$0xff]
        %v438 = vld [vmem:[#allocation2 + $0x8] sm:$0xff]
        %v439 = vld [vmem:[#allocation2 + $0x10] sm:$0xff]
        %v440 = vld [vmem:[#allocation2 + $0x18] sm:$0xff]
        %v441 = vld [vmem:[#allocation2 + $0x20] sm:$0xff]
        %v442 = vld [vmem:[#allocation2 + $0x28] sm:$0xff]
        %v443 = vld [vmem:[#allocation2 + $0x30] sm:$0xff]
        %v444 = vld [vmem:[#allocation2 + $0x38] sm:$0xff]
        %v445 = vld [vmem:[#allocation2 + $0x40] sm:$0xff]
        %v446 = vld [vmem:[#allocation2 + $0x48] sm:$0xff]
        %v447 = vld [vmem:[#allocation2 + $0x50] sm:$0xff]
        %v448 = vld [vmem:[#allocation2 + $0x58] sm:$0xff]
        %v449 = vld [vmem:[#allocation2 + $0x60] sm:$0xff]
        %v450 = vld [vmem:[#allocation2 + $0x68] sm:$0xff]
        %v451 = vld [vmem:[#allocation2 + $0x70] sm:$0xff]
        %v452 = vld [vmem:[#allocation2 + $0x78] sm:$0xff]
        %v453 = vld [vmem:[#allocation2 + $0x80] sm:$0xff]
        %v454 = vld [vmem:[#allocation2 + $0x88] sm:$0xff]
        %v455 = vld [vmem:[#allocation2 + $0x90] sm:$0xff]
        %v456 = vld [vmem:[#allocation2 + $0x98] sm:$0xff]
        %v457 = vld [vmem:[#allocation2 + $0xa0] sm:$0xff]
        %v458 = vld [vmem:[#allocation2 + $0xa8] sm:$0xff]
        %v459 = vld [vmem:[#allocation2 + $0xb0] sm:$0xff]
        %v460 = vld [vmem:[#allocation2 + $0xb8] sm:$0xff]
        %v461 = vld [vmem:[#allocation2 + $0xc0] sm:$0xff]
        %v462 = vld [vmem:[#allocation2 + $0xc8] sm:$0xff]
        %v463 = vld [vmem:[#allocation2 + $0xd0] sm:$0xff]
        %v464 = vld [vmem:[#allocation2 + $0xd8] sm:$0xff]
        %v465 = vld [vmem:[#allocation2 + $0xe0] sm:$0xff]
        %v466 = vld [vmem:[#allocation2 + $0xe8] sm:$0xff]
        %v467 = vld [vmem:[#allocation2 + $0xf0] sm:$0xff]
        %v468 = vld [vmem:[#allocation2 + $0xf8] sm:$0xff]
        %v469 = vld [vmem:[#allocation2 + $0x100] sm:$0xff]
        %v470 = vld [vmem:[#allocation2 + $0x108] sm:$0xff]
        %v471 = vld [vmem:[#allocation2 + $0x110] sm:$0xff]
        %v472 = vld [vmem:[#allocation2 + $0x118] sm:$0xff]
        %v473 = vld [vmem:[#allocation2 + $0x120] sm:$0xff]
        %v474 = vld [vmem:[#allocation2 + $0x128] sm:$0xff]
        %v475 = vld [vmem:[#allocation2 + $0x130] sm:$0xff]
        %v476 = vld [vmem:[#allocation2 + $0x138] sm:$0xff]
        %v477 = vld [vmem:[#allocation2 + $0x140] sm:$0xff]
        %v478 = vld [vmem:[#allocation2 + $0x148] sm:$0xff]
        %v479 = vld [vmem:[#allocation2 + $0x150] sm:$0xff]
        %v480 = vld [vmem:[#allocation2 + $0x158] sm:$0xff]
        %v481 = vld [vmem:[#allocation2 + $0x160] sm:$0xff]
        %v482 = vld [vmem:[#allocation2 + $0x168] sm:$0xff]
        %v483 = vld [vmem:[#allocation2 + $0x170] sm:$0xff]
        %v484 = vld [vmem:[#allocation2 + $0x178] sm:$0xff]
        %v485 = vld [vmem:[#allocation2 + $0x180] sm:$0xff]
        %v486 = vld [vmem:[#allocation2 + $0x188] sm:$0xff]
        %v487 = vld [vmem:[#allocation2 + $0x190] sm:$0xff]
        %v488 = vld [vmem:[#allocation2 + $0x198] sm:$0xff]
        %v489 = vld [vmem:[#allocation2 + $0x1a0] sm:$0xff]
        %v490 = vld [vmem:[#allocation2 + $0x1a8] sm:$0xff]
        %v491 = vld [vmem:[#allocation2 + $0x1b0] sm:$0xff]
        %v492 = vld [vmem:[#allocation2 + $0x1b8] sm:$0xff]
        %v493 = vld [vmem:[#allocation2 + $0x1c0] sm:$0xff]
        %v494 = vld [vmem:[#allocation2 + $0x1c8] sm:$0xff]
        %v495 = vld [vmem:[#allocation2 + $0x1d0] sm:$0xff]
        %v496 = vld [vmem:[#allocation2 + $0x1d8] sm:$0xff]
        %v497 = vld [vmem:[#allocation2 + $0x1e0] sm:$0xff]
        %v498 = vld [vmem:[#allocation2 + $0x1e8] sm:$0xff]
        %v499 = vld [vmem:[#allocation2 + $0x1f0] sm:$0xff]
        %v500 = vld [vmem:[#allocation2 + $0x1f8] sm:$0xff]
        %v501 = vmul.f32 %v437, %v437
        %v502 = vmul.f32 %v438, %v438
        %v503 = vmul.f32 %v439, %v439
        %v504 = vmul.f32 %v440, %v440
        %v505 = vmul.f32 %v441, %v441
        %v506 = vmul.f32 %v442, %v442
        %v507 = vmul.f32 %v443, %v443
        %v508 = vmul.f32 %v444, %v444
        %v509 = vmul.f32 %v445, %v445
        %v510 = vmul.f32 %v446, %v446
        %v511 = vmul.f32 %v447, %v447
        %v512 = vmul.f32 %v448, %v448
        %v513 = vmul.f32 %v449, %v449
        %v514 = vmul.f32 %v450, %v450
        %v515 = vmul.f32 %v451, %v451
        %v516 = vmul.f32 %v452, %v452
        %v517 = vmul.f32 %v453, %v453
        %v518 = vmul.f32 %v454, %v454
        %v519 = vmul.f32 %v455, %v455
        %v520 = vmul.f32 %v456, %v456
        %v521 = vmul.f32 %v457, %v457
        %v522 = vmul.f32 %v458, %v458
        %v523 = vmul.f32 %v459, %v459
        %v524 = vmul.f32 %v460, %v460
        %v525 = vmul.f32 %v461, %v461
        %v526 = vmul.f32 %v462, %v462
        %v527 = vmul.f32 %v463, %v463
        %v528 = vmul.f32 %v464, %v464
        %v529 = vmul.f32 %v465, %v465
        %v530 = vmul.f32 %v466, %v466
        %v531 = vmul.f32 %v467, %v467
        %v532 = vmul.f32 %v468, %v468
        %v533 = vmul.f32 %v469, %v469
        %v534 = vmul.f32 %v470, %v470
        %v535 = vmul.f32 %v471, %v471
        %v536 = vmul.f32 %v472, %v472
        %v537 = vmul.f32 %v473, %v473
        %v538 = vmul.f32 %v474, %v474
        %v539 = vmul.f32 %v475, %v475
        %v540 = vmul.f32 %v476, %v476
        %v541 = vmul.f32 %v477, %v477
        %v542 = vmul.f32 %v478, %v478
        %v543 = vmul.f32 %v479, %v479
        %v544 = vmul.f32 %v480, %v480
        %v545 = vmul.f32 %v481, %v481
        %v546 = vmul.f32 %v482, %v482
        %v547 = vmul.f32 %v483, %v483
        %v548 = vmul.f32 %v484, %v484
        %v549 = vmul.f32 %v485, %v485
        %v550 = vmul.f32 %v486, %v486
        %v551 = vmul.f32 %v487, %v487
        %v552 = vmul.f32 %v488, %v488
        %v553 = vmul.f32 %v489, %v489
        %v554 = vmul.f32 %v490, %v490
        %v555 = vmul.f32 %v491, %v491
        %v556 = vmul.f32 %v492, %v492
        %v557 = vmul.f32 %v493, %v493
        %v558 = vmul.f32 %v494, %v494
        %v559 = vmul.f32 %v495, %v495
        %v560 = vmul.f32 %v496, %v496
        %v561 = vmul.f32 %v497, %v497
        %v562 = vmul.f32 %v498, %v498
        %v563 = vmul.f32 %v499, %v499
        %v564 = vmul.f32 %v500, %v500
        %565 = vadd.xlane.f32.xlu0 %v501
        %v566 = vpop.xlane.xlu0 %565
        %567 = vadd.xlane.f32.xlu0 %v502
        %v568 = vpop.xlane.xlu0 %567
        %569 = vadd.xlane.f32.xlu0 %v503
        %v570 = vpop.xlane.xlu0 %569
        %571 = vadd.xlane.f32.xlu0 %v504
        %v572 = vpop.xlane.xlu0 %571
        %573 = vadd.xlane.f32.xlu0 %v505
        %v574 = vpop.xlane.xlu0 %573
        %575 = vadd.xlane.f32.xlu0 %v506
        %v576 = vpop.xlane.xlu0 %575
        %577 = vadd.xlane.f32.xlu0 %v507
        %v578 = vpop.xlane.xlu0 %577
        %579 = vadd.xlane.f32.xlu0 %v508
        %v580 = vpop.xlane.xlu0 %579
        %581 = vadd.xlane.f32.xlu0 %v509
        %v582 = vpop.xlane.xlu0 %581
        %583 = vadd.xlane.f32.xlu0 %v510
        %v584 = vpop.xlane.xlu0 %583
        %585 = vadd.xlane.f32.xlu0 %v511
        %v586 = vpop.xlane.xlu0 %585
        %587 = vadd.xlane.f32.xlu0 %v512
        %v588 = vpop.xlane.xlu0 %587
        %589 = vadd.xlane.f32.xlu0 %v513
        %v590 = vpop.xlane.xlu0 %589
        %591 = vadd.xlane.f32.xlu0 %v514
        %v592 = vpop.xlane.xlu0 %591
        %593 = vadd.xlane.f32.xlu0 %v515
        %v594 = vpop.xlane.xlu0 %593
        %595 = vadd.xlane.f32.xlu0 %v516
        %v596 = vpop.xlane.xlu0 %595
        %597 = vadd.xlane.f32.xlu0 %v517
        %v598 = vpop.xlane.xlu0 %597
        %599 = vadd.xlane.f32.xlu0 %v518
        %v600 = vpop.xlane.xlu0 %599
        %601 = vadd.xlane.f32.xlu0 %v519
        %v602 = vpop.xlane.xlu0 %601
        %603 = vadd.xlane.f32.xlu0 %v520
        %v604 = vpop.xlane.xlu0 %603
        %605 = vadd.xlane.f32.xlu0 %v521
        %v606 = vpop.xlane.xlu0 %605
        %607 = vadd.xlane.f32.xlu0 %v522
        %v608 = vpop.xlane.xlu0 %607
        %609 = vadd.xlane.f32.xlu0 %v523
        %v610 = vpop.xlane.xlu0 %609
        %611 = vadd.xlane.f32.xlu0 %v524
        %v612 = vpop.xlane.xlu0 %611
        %613 = vadd.xlane.f32.xlu0 %v525
        %v614 = vpop.xlane.xlu0 %613
        %615 = vadd.xlane.f32.xlu0 %v526
        %v616 = vpop.xlane.xlu0 %615
        %617 = vadd.xlane.f32.xlu0 %v527
        %v618 = vpop.xlane.xlu0 %617
        %619 = vadd.xlane.f32.xlu0 %v528
        %v620 = vpop.xlane.xlu0 %619
        %621 = vadd.xlane.f32.xlu0 %v529
        %v622 = vpop.xlane.xlu0 %621
        %623 = vadd.xlane.f32.xlu0 %v530
        %v624 = vpop.xlane.xlu0 %623
        %625 = vadd.xlane.f32.xlu0 %v531
        %v626 = vpop.xlane.xlu0 %625
        %627 = vadd.xlane.f32.xlu0 %v532
        %v628 = vpop.xlane.xlu0 %627
        %629 = vadd.xlane.f32.xlu0 %v533
        %v630 = vpop.xlane.xlu0 %629
        %631 = vadd.xlane.f32.xlu0 %v534
        %v632 = vpop.xlane.xlu0 %631
        %633 = vadd.xlane.f32.xlu0 %v535
        %v634 = vpop.xlane.xlu0 %633
        %635 = vadd.xlane.f32.xlu0 %v536
        %v636 = vpop.xlane.xlu0 %635
        %637 = vadd.xlane.f32.xlu0 %v537
        %v638 = vpop.xlane.xlu0 %637
        %639 = vadd.xlane.f32.xlu0 %v538
        %v640 = vpop.xlane.xlu0 %639
        %641 = vadd.xlane.f32.xlu0 %v539
        %v642 = vpop.xlane.xlu0 %641
        %643 = vadd.xlane.f32.xlu0 %v540
        %v644 = vpop.xlane.xlu0 %643
        %645 = vadd.xlane.f32.xlu0 %v541
        %v646 = vpop.xlane.xlu0 %645
        %647 = vadd.xlane.f32.xlu0 %v542
        %v648 = vpop.xlane.xlu0 %647
        %649 = vadd.xlane.f32.xlu0 %v543
        %v650 = vpop.xlane.xlu0 %649
        %651 = vadd.xlane.f32.xlu0 %v544
        %v652 = vpop.xlane.xlu0 %651
        %653 = vadd.xlane.f32.xlu0 %v545
        %v654 = vpop.xlane.xlu0 %653
        %655 = vadd.xlane.f32.xlu0 %v546
        %v656 = vpop.xlane.xlu0 %655
        %657 = vadd.xlane.f32.xlu0 %v547
        %v658 = vpop.xlane.xlu0 %657
        %659 = vadd.xlane.f32.xlu0 %v548
        %v660 = vpop.xlane.xlu0 %659
        %661 = vadd.xlane.f32.xlu0 %v549
        %v662 = vpop.xlane.xlu0 %661
        %663 = vadd.xlane.f32.xlu0 %v550
        %v664 = vpop.xlane.xlu0 %663
        %665 = vadd.xlane.f32.xlu0 %v551
        %v666 = vpop.xlane.xlu0 %665
        %667 = vadd.xlane.f32.xlu0 %v552
        %v668 = vpop.xlane.xlu0 %667
        %669 = vadd.xlane.f32.xlu0 %v553
        %v670 = vpop.xlane.xlu0 %669
        %671 = vadd.xlane.f32.xlu0 %v554
        %v672 = vpop.xlane.xlu0 %671
        %673 = vadd.xlane.f32.xlu0 %v555
        %v674 = vpop.xlane.xlu0 %673
        %675 = vadd.xlane.f32.xlu0 %v556
        %v676 = vpop.xlane.xlu0 %675
        %677 = vadd.xlane.f32.xlu0 %v557
        %v678 = vpop.xlane.xlu0 %677
        %679 = vadd.xlane.f32.xlu0 %v558
        %v680 = vpop.xlane.xlu0 %679
        %681 = vadd.xlane.f32.xlu0 %v559
        %v682 = vpop.xlane.xlu0 %681
        %683 = vadd.xlane.f32.xlu0 %v560
        %v684 = vpop.xlane.xlu0 %683
        %685 = vadd.xlane.f32.xlu0 %v561
        %v686 = vpop.xlane.xlu0 %685
        %687 = vadd.xlane.f32.xlu0 %v562
        %v688 = vpop.xlane.xlu0 %687
        %689 = vadd.xlane.f32.xlu0 %v563
        %v690 = vpop.xlane.xlu0 %689
        %691 = vadd.xlane.f32.xlu0 %v564
        %v692 = vpop.xlane.xlu0 %691
        %v693 = vadd.f32 %v566, 1e-24
        %v694 = vadd.f32 %v568, 1e-24
        %v695 = vadd.f32 %v570, 1e-24
        %v696 = vadd.f32 %v572, 1e-24
        %v697 = vadd.f32 %v574, 1e-24
        %v698 = vadd.f32 %v576, 1e-24
        %v699 = vadd.f32 %v578, 1e-24
        %v700 = vadd.f32 %v580, 1e-24
        %v701 = vadd.f32 %v582, 1e-24
        %v702 = vadd.f32 %v584, 1e-24
        %v703 = vadd.f32 %v586, 1e-24
        %v704 = vadd.f32 %v588, 1e-24
        %v705 = vadd.f32 %v590, 1e-24
        %v706 = vadd.f32 %v592, 1e-24
        %v707 = vadd.f32 %v594, 1e-24
        %v708 = vadd.f32 %v596, 1e-24
        %v709 = vadd.f32 %v598, 1e-24
        %v710 = vadd.f32 %v600, 1e-24
        %v711 = vadd.f32 %v602, 1e-24
        %v712 = vadd.f32 %v604, 1e-24
        %v713 = vadd.f32 %v606, 1e-24
        %v714 = vadd.f32 %v608, 1e-24
        %v715 = vadd.f32 %v610, 1e-24
        %v716 = vadd.f32 %v612, 1e-24
        %v717 = vadd.f32 %v614, 1e-24
        %v718 = vadd.f32 %v616, 1e-24
        %v719 = vadd.f32 %v618, 1e-24
        %v720 = vadd.f32 %v620, 1e-24
        %v721 = vadd.f32 %v622, 1e-24
        %v722 = vadd.f32 %v624, 1e-24
        %v723 = vadd.f32 %v626, 1e-24
        %v724 = vadd.f32 %v628, 1e-24
        %v725 = vadd.f32 %v630, 1e-24
        %v726 = vadd.f32 %v632, 1e-24
        %v727 = vadd.f32 %v634, 1e-24
        %v728 = vadd.f32 %v636, 1e-24
        %v729 = vadd.f32 %v638, 1e-24
        %v730 = vadd.f32 %v640, 1e-24
        %v731 = vadd.f32 %v642, 1e-24
        %v732 = vadd.f32 %v644, 1e-24
        %v733 = vadd.f32 %v646, 1e-24
        %v734 = vadd.f32 %v648, 1e-24
        %v735 = vadd.f32 %v650, 1e-24
        %v736 = vadd.f32 %v652, 1e-24
        %v737 = vadd.f32 %v654, 1e-24
        %v738 = vadd.f32 %v656, 1e-24
        %v739 = vadd.f32 %v658, 1e-24
        %v740 = vadd.f32 %v660, 1e-24
        %v741 = vadd.f32 %v662, 1e-24
        %v742 = vadd.f32 %v664, 1e-24
        %v743 = vadd.f32 %v666, 1e-24
        %v744 = vadd.f32 %v668, 1e-24
        %v745 = vadd.f32 %v670, 1e-24
        %v746 = vadd.f32 %v672, 1e-24
        %v747 = vadd.f32 %v674, 1e-24
        %v748 = vadd.f32 %v676, 1e-24
        %v749 = vadd.f32 %v678, 1e-24
        %v750 = vadd.f32 %v680, 1e-24
        %v751 = vadd.f32 %v682, 1e-24
        %v752 = vadd.f32 %v684, 1e-24
        %v753 = vadd.f32 %v686, 1e-24
        %v754 = vadd.f32 %v688, 1e-24
        %v755 = vadd.f32 %v690, 1e-24
        %v756 = vadd.f32 %v692, 1e-24
        %v757 = vrsqrt.pop %v693
        %v758 = vmul.f32 %v757, %v693
        %v759 = vmul.f32 %v758, %v757
        %v760 = vmul.f32 0.5, %v759
        %v761 = vsub.f32 1.5, %v760
        %v762 = vmul.f32 %v757, %v761
        %vm763 = vweird.f32 %v693
        %vm764 = vweird.f32 %v757
        %vm765 = vmor %vm763, %vm764
        %v766 = vsel %vm765, %v757, %v762
        %v767 = vrsqrt.pop %v694
        %v768 = vmul.f32 %v767, %v694
        %v769 = vmul.f32 %v768, %v767
        %v770 = vmul.f32 0.5, %v769
        %v771 = vsub.f32 1.5, %v770
        %v772 = vmul.f32 %v767, %v771
        %vm773 = vweird.f32 %v694
        %vm774 = vweird.f32 %v767
        %vm775 = vmor %vm773, %vm774
        %v776 = vsel %vm775, %v767, %v772
        %v777 = vrsqrt.pop %v695
        %v778 = vmul.f32 %v777, %v695
        %v779 = vmul.f32 %v778, %v777
        %v780 = vmul.f32 0.5, %v779
        %v781 = vsub.f32 1.5, %v780
        %v782 = vmul.f32 %v777, %v781
        %vm783 = vweird.f32 %v695
        %vm784 = vweird.f32 %v777
        %vm785 = vmor %vm783, %vm784
        %v786 = vsel %vm785, %v777, %v782
        %v787 = vrsqrt.pop %v696
        %v788 = vmul.f32 %v787, %v696
        %v789 = vmul.f32 %v788, %v787
        %v790 = vmul.f32 0.5, %v789
        %v791 = vsub.f32 1.5, %v790
        %v792 = vmul.f32 %v787, %v791
        %vm793 = vweird.f32 %v696
        %vm794 = vweird.f32 %v787
        %vm795 = vmor %vm793, %vm794
        %v796 = vsel %vm795, %v787, %v792
        %v797 = vrsqrt.pop %v697
        %v798 = vmul.f32 %v797, %v697
        %v799 = vmul.f32 %v798, %v797
        %v800 = vmul.f32 0.5, %v799
        %v801 = vsub.f32 1.5, %v800
        %v802 = vmul.f32 %v797, %v801
        %vm803 = vweird.f32 %v697
        %vm804 = vweird.f32 %v797
        %vm805 = vmor %vm803, %vm804
        %v806 = vsel %vm805, %v797, %v802
        %v807 = vrsqrt.pop %v698
        %v808 = vmul.f32 %v807, %v698
        %v809 = vmul.f32 %v808, %v807
        %v810 = vmul.f32 0.5, %v809
        %v811 = vsub.f32 1.5, %v810
        %v812 = vmul.f32 %v807, %v811
        %vm813 = vweird.f32 %v698
        %vm814 = vweird.f32 %v807
        %vm815 = vmor %vm813, %vm814
        %v816 = vsel %vm815, %v807, %v812
        %v817 = vrsqrt.pop %v699
        %v818 = vmul.f32 %v817, %v699
        %v819 = vmul.f32 %v818, %v817
        %v820 = vmul.f32 0.5, %v819
        %v821 = vsub.f32 1.5, %v820
        %v822 = vmul.f32 %v817, %v821
        %vm823 = vweird.f32 %v699
        %vm824 = vweird.f32 %v817
        %vm825 = vmor %vm823, %vm824
        %v826 = vsel %vm825, %v817, %v822
        %v827 = vrsqrt.pop %v700
        %v828 = vmul.f32 %v827, %v700
        %v829 = vmul.f32 %v828, %v827
        %v830 = vmul.f32 0.5, %v829
        %v831 = vsub.f32 1.5, %v830
        %v832 = vmul.f32 %v827, %v831
        %vm833 = vweird.f32 %v700
        %vm834 = vweird.f32 %v827
        %vm835 = vmor %vm833, %vm834
        %v836 = vsel %vm835, %v827, %v832
        %v837 = vrsqrt.pop %v701
        %v838 = vmul.f32 %v837, %v701
        %v839 = vmul.f32 %v838, %v837
        %v840 = vmul.f32 0.5, %v839
        %v841 = vsub.f32 1.5, %v840
        %v842 = vmul.f32 %v837, %v841
        %vm843 = vweird.f32 %v701
        %vm844 = vweird.f32 %v837
        %vm845 = vmor %vm843, %vm844
        %v846 = vsel %vm845, %v837, %v842
        %v847 = vrsqrt.pop %v702
        %v848 = vmul.f32 %v847, %v702
        %v849 = vmul.f32 %v848, %v847
        %v850 = vmul.f32 0.5, %v849
        %v851 = vsub.f32 1.5, %v850
        %v852 = vmul.f32 %v847, %v851
        %vm853 = vweird.f32 %v702
        %vm854 = vweird.f32 %v847
        %vm855 = vmor %vm853, %vm854
        %v856 = vsel %vm855, %v847, %v852
        %v857 = vrsqrt.pop %v703
        %v858 = vmul.f32 %v857, %v703
        %v859 = vmul.f32 %v858, %v857
        %v860 = vmul.f32 0.5, %v859
        %v861 = vsub.f32 1.5, %v860
        %v862 = vmul.f32 %v857, %v861
        %vm863 = vweird.f32 %v703
        %vm864 = vweird.f32 %v857
        %vm865 = vmor %vm863, %vm864
        %v866 = vsel %vm865, %v857, %v862
        %v867 = vrsqrt.pop %v704
        %v868 = vmul.f32 %v867, %v704
        %v869 = vmul.f32 %v868, %v867
        %v870 = vmul.f32 0.5, %v869
        %v871 = vsub.f32 1.5, %v870
        %v872 = vmul.f32 %v867, %v871
        %vm873 = vweird.f32 %v704
        %vm874 = vweird.f32 %v867
        %vm875 = vmor %vm873, %vm874
        %v876 = vsel %vm875, %v867, %v872
        %v877 = vrsqrt.pop %v705
        %v878 = vmul.f32 %v877, %v705
        %v879 = vmul.f32 %v878, %v877
        %v880 = vmul.f32 0.5, %v879
        %v881 = vsub.f32 1.5, %v880
        %v882 = vmul.f32 %v877, %v881
        %vm883 = vweird.f32 %v705
        %vm884 = vweird.f32 %v877
        %vm885 = vmor %vm883, %vm884
        %v886 = vsel %vm885, %v877, %v882
        %v887 = vrsqrt.pop %v706
        %v888 = vmul.f32 %v887, %v706
        %v889 = vmul.f32 %v888, %v887
        %v890 = vmul.f32 0.5, %v889
        %v891 = vsub.f32 1.5, %v890
        %v892 = vmul.f32 %v887, %v891
        %vm893 = vweird.f32 %v706
        %vm894 = vweird.f32 %v887
        %vm895 = vmor %vm893, %vm894
        %v896 = vsel %vm895, %v887, %v892
        %v897 = vrsqrt.pop %v707
        %v898 = vmul.f32 %v897, %v707
        %v899 = vmul.f32 %v898, %v897
        %v900 = vmul.f32 0.5, %v899
        %v901 = vsub.f32 1.5, %v900
        %v902 = vmul.f32 %v897, %v901
        %vm903 = vweird.f32 %v707
        %vm904 = vweird.f32 %v897
        %vm905 = vmor %vm903, %vm904
        %v906 = vsel %vm905, %v897, %v902
        %v907 = vrsqrt.pop %v708
        %v908 = vmul.f32 %v907, %v708
        %v909 = vmul.f32 %v908, %v907
        %v910 = vmul.f32 0.5, %v909
        %v911 = vsub.f32 1.5, %v910
        %v912 = vmul.f32 %v907, %v911
        %vm913 = vweird.f32 %v708
        %vm914 = vweird.f32 %v907
        %vm915 = vmor %vm913, %vm914
        %v916 = vsel %vm915, %v907, %v912
        %v917 = vrsqrt.pop %v709
        %v918 = vmul.f32 %v917, %v709
        %v919 = vmul.f32 %v918, %v917
        %v920 = vmul.f32 0.5, %v919
        %v921 = vsub.f32 1.5, %v920
        %v922 = vmul.f32 %v917, %v921
        %vm923 = vweird.f32 %v709
        %vm924 = vweird.f32 %v917
        %vm925 = vmor %vm923, %vm924
        %v926 = vsel %vm925, %v917, %v922
        %v927 = vrsqrt.pop %v710
        %v928 = vmul.f32 %v927, %v710
        %v929 = vmul.f32 %v928, %v927
        %v930 = vmul.f32 0.5, %v929
        %v931 = vsub.f32 1.5, %v930
        %v932 = vmul.f32 %v927, %v931
        %vm933 = vweird.f32 %v710
        %vm934 = vweird.f32 %v927
        %vm935 = vmor %vm933, %vm934
        %v936 = vsel %vm935, %v927, %v932
        %v937 = vrsqrt.pop %v711
        %v938 = vmul.f32 %v937, %v711
        %v939 = vmul.f32 %v938, %v937
        %v940 = vmul.f32 0.5, %v939
        %v941 = vsub.f32 1.5, %v940
        %v942 = vmul.f32 %v937, %v941
        %vm943 = vweird.f32 %v711
        %vm944 = vweird.f32 %v937
        %vm945 = vmor %vm943, %vm944
        %v946 = vsel %vm945, %v937, %v942
        %v947 = vrsqrt.pop %v712
        %v948 = vmul.f32 %v947, %v712
        %v949 = vmul.f32 %v948, %v947
        %v950 = vmul.f32 0.5, %v949
        %v951 = vsub.f32 1.5, %v950
        %v952 = vmul.f32 %v947, %v951
        %vm953 = vweird.f32 %v712
        %vm954 = vweird.f32 %v947
        %vm955 = vmor %vm953, %vm954
        %v956 = vsel %vm955, %v947, %v952
        %v957 = vrsqrt.pop %v713
        %v958 = vmul.f32 %v957, %v713
        %v959 = vmul.f32 %v958, %v957
        %v960 = vmul.f32 0.5, %v959
        %v961 = vsub.f32 1.5, %v960
        %v962 = vmul.f32 %v957, %v961
        %vm963 = vweird.f32 %v713
        %vm964 = vweird.f32 %v957
        %vm965 = vmor %vm963, %vm964
        %v966 = vsel %vm965, %v957, %v962
        %v967 = vrsqrt.pop %v714
        %v968 = vmul.f32 %v967, %v714
        %v969 = vmul.f32 %v968, %v967
        %v970 = vmul.f32 0.5, %v969
        %v971 = vsub.f32 1.5, %v970
        %v972 = vmul.f32 %v967, %v971
        %vm973 = vweird.f32 %v714
        %vm974 = vweird.f32 %v967
        %vm975 = vmor %vm973, %vm974
        %v976 = vsel %vm975, %v967, %v972
        %v977 = vrsqrt.pop %v715
        %v978 = vmul.f32 %v977, %v715
        %v979 = vmul.f32 %v978, %v977
        %v980 = vmul.f32 0.5, %v979
        %v981 = vsub.f32 1.5, %v980
        %v982 = vmul.f32 %v977, %v981
        %vm983 = vweird.f32 %v715
        %vm984 = vweird.f32 %v977
        %vm985 = vmor %vm983, %vm984
        %v986 = vsel %vm985, %v977, %v982
        %v987 = vrsqrt.pop %v716
        %v988 = vmul.f32 %v987, %v716
        %v989 = vmul.f32 %v988, %v987
        %v990 = vmul.f32 0.5, %v989
        %v991 = vsub.f32 1.5, %v990
        %v992 = vmul.f32 %v987, %v991
        %vm993 = vweird.f32 %v716
        %vm994 = vweird.f32 %v987
        %vm995 = vmor %vm993, %vm994
        %v996 = vsel %vm995, %v987, %v992
        %v997 = vrsqrt.pop %v717
        %v998 = vmul.f32 %v997, %v717
        %v999 = vmul.f32 %v998, %v997
        %v1000 = vmul.f32 0.5, %v999
        %v1001 = vsub.f32 1.5, %v1000
        %v1002 = vmul.f32 %v997, %v1001
        %vm1003 = vweird.f32 %v717
        %vm1004 = vweird.f32 %v997
        %vm1005 = vmor %vm1003, %vm1004
        %v1006 = vsel %vm1005, %v997, %v1002
        %v1007 = vrsqrt.pop %v718
        %v1008 = vmul.f32 %v1007, %v718
        %v1009 = vmul.f32 %v1008, %v1007
        %v1010 = vmul.f32 0.5, %v1009
        %v1011 = vsub.f32 1.5, %v1010
        %v1012 = vmul.f32 %v1007, %v1011
        %vm1013 = vweird.f32 %v718
        %vm1014 = vweird.f32 %v1007
        %vm1015 = vmor %vm1013, %vm1014
        %v1016 = vsel %vm1015, %v1007, %v1012
        %v1017 = vrsqrt.pop %v719
        %v1018 = vmul.f32 %v1017, %v719
        %v1019 = vmul.f32 %v1018, %v1017
        %v1020 = vmul.f32 0.5, %v1019
        %v1021 = vsub.f32 1.5, %v1020
        %v1022 = vmul.f32 %v1017, %v1021
        %vm1023 = vweird.f32 %v719
        %vm1024 = vweird.f32 %v1017
        %vm1025 = vmor %vm1023, %vm1024
        %v1026 = vsel %vm1025, %v1017, %v1022
        %v1027 = vrsqrt.pop %v720
        %v1028 = vmul.f32 %v1027, %v720
        %v1029 = vmul.f32 %v1028, %v1027
        %v1030 = vmul.f32 0.5, %v1029
        %v1031 = vsub.f32 1.5, %v1030
        %v1032 = vmul.f32 %v1027, %v1031
        %vm1033 = vweird.f32 %v720
        %vm1034 = vweird.f32 %v1027
        %vm1035 = vmor %vm1033, %vm1034
        %v1036 = vsel %vm1035, %v1027, %v1032
        %v1037 = vrsqrt.pop %v721
        %v1038 = vmul.f32 %v1037, %v721
        %v1039 = vmul.f32 %v1038, %v1037
        %v1040 = vmul.f32 0.5, %v1039
        %v1041 = vsub.f32 1.5, %v1040
        %v1042 = vmul.f32 %v1037, %v1041
        %vm1043 = vweird.f32 %v721
        %vm1044 = vweird.f32 %v1037
        %vm1045 = vmor %vm1043, %vm1044
        %v1046 = vsel %vm1045, %v1037, %v1042
        %v1047 = vrsqrt.pop %v722
        %v1048 = vmul.f32 %v1047, %v722
        %v1049 = vmul.f32 %v1048, %v1047
        %v1050 = vmul.f32 0.5, %v1049
        %v1051 = vsub.f32 1.5, %v1050
        %v1052 = vmul.f32 %v1047, %v1051
        %vm1053 = vweird.f32 %v722
        %vm1054 = vweird.f32 %v1047
        %vm1055 = vmor %vm1053, %vm1054
        %v1056 = vsel %vm1055, %v1047, %v1052
        %v1057 = vrsqrt.pop %v723
        %v1058 = vmul.f32 %v1057, %v723
        %v1059 = vmul.f32 %v1058, %v1057
        %v1060 = vmul.f32 0.5, %v1059
        %v1061 = vsub.f32 1.5, %v1060
        %v1062 = vmul.f32 %v1057, %v1061
        %vm1063 = vweird.f32 %v723
        %vm1064 = vweird.f32 %v1057
        %vm1065 = vmor %vm1063, %vm1064
        %v1066 = vsel %vm1065, %v1057, %v1062
        %v1067 = vrsqrt.pop %v724
        %v1068 = vmul.f32 %v1067, %v724
        %v1069 = vmul.f32 %v1068, %v1067
        %v1070 = vmul.f32 0.5, %v1069
        %v1071 = vsub.f32 1.5, %v1070
        %v1072 = vmul.f32 %v1067, %v1071
        %vm1073 = vweird.f32 %v724
        %vm1074 = vweird.f32 %v1067
        %vm1075 = vmor %vm1073, %vm1074
        %v1076 = vsel %vm1075, %v1067, %v1072
        %v1077 = vrsqrt.pop %v725
        %v1078 = vmul.f32 %v1077, %v725
        %v1079 = vmul.f32 %v1078, %v1077
        %v1080 = vmul.f32 0.5, %v1079
        %v1081 = vsub.f32 1.5, %v1080
        %v1082 = vmul.f32 %v1077, %v1081
        %vm1083 = vweird.f32 %v725
        %vm1084 = vweird.f32 %v1077
        %vm1085 = vmor %vm1083, %vm1084
        %v1086 = vsel %vm1085, %v1077, %v1082
        %v1087 = vrsqrt.pop %v726
        %v1088 = vmul.f32 %v1087, %v726
        %v1089 = vmul.f32 %v1088, %v1087
        %v1090 = vmul.f32 0.5, %v1089
        %v1091 = vsub.f32 1.5, %v1090
        %v1092 = vmul.f32 %v1087, %v1091
        %vm1093 = vweird.f32 %v726
        %vm1094 = vweird.f32 %v1087
        %vm1095 = vmor %vm1093, %vm1094
        %v1096 = vsel %vm1095, %v1087, %v1092
        %v1097 = vrsqrt.pop %v727
        %v1098 = vmul.f32 %v1097, %v727
        %v1099 = vmul.f32 %v1098, %v1097
        %v1100 = vmul.f32 0.5, %v1099
        %v1101 = vsub.f32 1.5, %v1100
        %v1102 = vmul.f32 %v1097, %v1101
        %vm1103 = vweird.f32 %v727
        %vm1104 = vweird.f32 %v1097
        %vm1105 = vmor %vm1103, %vm1104
        %v1106 = vsel %vm1105, %v1097, %v1102
        %v1107 = vrsqrt.pop %v728
        %v1108 = vmul.f32 %v1107, %v728
        %v1109 = vmul.f32 %v1108, %v1107
        %v1110 = vmul.f32 0.5, %v1109
        %v1111 = vsub.f32 1.5, %v1110
        %v1112 = vmul.f32 %v1107, %v1111
        %vm1113 = vweird.f32 %v728
        %vm1114 = vweird.f32 %v1107
        %vm1115 = vmor %vm1113, %vm1114
        %v1116 = vsel %vm1115, %v1107, %v1112
        %v1117 = vrsqrt.pop %v729
        %v1118 = vmul.f32 %v1117, %v729
        %v1119 = vmul.f32 %v1118, %v1117
        %v1120 = vmul.f32 0.5, %v1119
        %v1121 = vsub.f32 1.5, %v1120
        %v1122 = vmul.f32 %v1117, %v1121
        %vm1123 = vweird.f32 %v729
        %vm1124 = vweird.f32 %v1117
        %vm1125 = vmor %vm1123, %vm1124
        %v1126 = vsel %vm1125, %v1117, %v1122
        %v1127 = vrsqrt.pop %v730
        %v1128 = vmul.f32 %v1127, %v730
        %v1129 = vmul.f32 %v1128, %v1127
        %v1130 = vmul.f32 0.5, %v1129
        %v1131 = vsub.f32 1.5, %v1130
        %v1132 = vmul.f32 %v1127, %v1131
        %vm1133 = vweird.f32 %v730
        %vm1134 = vweird.f32 %v1127
        %vm1135 = vmor %vm1133, %vm1134
        %v1136 = vsel %vm1135, %v1127, %v1132
        %v1137 = vrsqrt.pop %v731
        %v1138 = vmul.f32 %v1137, %v731
        %v1139 = vmul.f32 %v1138, %v1137
        %v1140 = vmul.f32 0.5, %v1139
        %v1141 = vsub.f32 1.5, %v1140
        %v1142 = vmul.f32 %v1137, %v1141
        %vm1143 = vweird.f32 %v731
        %vm1144 = vweird.f32 %v1137
        %vm1145 = vmor %vm1143, %vm1144
        %v1146 = vsel %vm1145, %v1137, %v1142
        %v1147 = vrsqrt.pop %v732
        %v1148 = vmul.f32 %v1147, %v732
        %v1149 = vmul.f32 %v1148, %v1147
        %v1150 = vmul.f32 0.5, %v1149
        %v1151 = vsub.f32 1.5, %v1150
        %v1152 = vmul.f32 %v1147, %v1151
        %vm1153 = vweird.f32 %v732
        %vm1154 = vweird.f32 %v1147
        %vm1155 = vmor %vm1153, %vm1154
        %v1156 = vsel %vm1155, %v1147, %v1152
        %v1157 = vrsqrt.pop %v733
        %v1158 = vmul.f32 %v1157, %v733
        %v1159 = vmul.f32 %v1158, %v1157
        %v1160 = vmul.f32 0.5, %v1159
        %v1161 = vsub.f32 1.5, %v1160
        %v1162 = vmul.f32 %v1157, %v1161
        %vm1163 = vweird.f32 %v733
        %vm1164 = vweird.f32 %v1157
        %vm1165 = vmor %vm1163, %vm1164
        %v1166 = vsel %vm1165, %v1157, %v1162
        %v1167 = vrsqrt.pop %v734
        %v1168 = vmul.f32 %v1167, %v734
        %v1169 = vmul.f32 %v1168, %v1167
        %v1170 = vmul.f32 0.5, %v1169
        %v1171 = vsub.f32 1.5, %v1170
        %v1172 = vmul.f32 %v1167, %v1171
        %vm1173 = vweird.f32 %v734
        %vm1174 = vweird.f32 %v1167
        %vm1175 = vmor %vm1173, %vm1174
        %v1176 = vsel %vm1175, %v1167, %v1172
        %v1177 = vrsqrt.pop %v735
        %v1178 = vmul.f32 %v1177, %v735
        %v1179 = vmul.f32 %v1178, %v1177
        %v1180 = vmul.f32 0.5, %v1179
        %v1181 = vsub.f32 1.5, %v1180
        %v1182 = vmul.f32 %v1177, %v1181
        %vm1183 = vweird.f32 %v735
        %vm1184 = vweird.f32 %v1177
        %vm1185 = vmor %vm1183, %vm1184
        %v1186 = vsel %vm1185, %v1177, %v1182
        %v1187 = vrsqrt.pop %v736
        %v1188 = vmul.f32 %v1187, %v736
        %v1189 = vmul.f32 %v1188, %v1187
        %v1190 = vmul.f32 0.5, %v1189
        %v1191 = vsub.f32 1.5, %v1190
        %v1192 = vmul.f32 %v1187, %v1191
        %vm1193 = vweird.f32 %v736
        %vm1194 = vweird.f32 %v1187
        %vm1195 = vmor %vm1193, %vm1194
        %v1196 = vsel %vm1195, %v1187, %v1192
        %v1197 = vrsqrt.pop %v737
        %v1198 = vmul.f32 %v1197, %v737
        %v1199 = vmul.f32 %v1198, %v1197
        %v1200 = vmul.f32 0.5, %v1199
        %v1201 = vsub.f32 1.5, %v1200
        %v1202 = vmul.f32 %v1197, %v1201
        %vm1203 = vweird.f32 %v737
        %vm1204 = vweird.f32 %v1197
        %vm1205 = vmor %vm1203, %vm1204
        %v1206 = vsel %vm1205, %v1197, %v1202
        %v1207 = vrsqrt.pop %v738
        %v1208 = vmul.f32 %v1207, %v738
        %v1209 = vmul.f32 %v1208, %v1207
        %v1210 = vmul.f32 0.5, %v1209
        %v1211 = vsub.f32 1.5, %v1210
        %v1212 = vmul.f32 %v1207, %v1211
        %vm1213 = vweird.f32 %v738
        %vm1214 = vweird.f32 %v1207
        %vm1215 = vmor %vm1213, %vm1214
        %v1216 = vsel %vm1215, %v1207, %v1212
        %v1217 = vrsqrt.pop %v739
        %v1218 = vmul.f32 %v1217, %v739
        %v1219 = vmul.f32 %v1218, %v1217
        %v1220 = vmul.f32 0.5, %v1219
        %v1221 = vsub.f32 1.5, %v1220
        %v1222 = vmul.f32 %v1217, %v1221
        %vm1223 = vweird.f32 %v739
        %vm1224 = vweird.f32 %v1217
        %vm1225 = vmor %vm1223, %vm1224
        %v1226 = vsel %vm1225, %v1217, %v1222
        %v1227 = vrsqrt.pop %v740
        %v1228 = vmul.f32 %v1227, %v740
        %v1229 = vmul.f32 %v1228, %v1227
        %v1230 = vmul.f32 0.5, %v1229
        %v1231 = vsub.f32 1.5, %v1230
        %v1232 = vmul.f32 %v1227, %v1231
        %vm1233 = vweird.f32 %v740
        %vm1234 = vweird.f32 %v1227
        %vm1235 = vmor %vm1233, %vm1234
        %v1236 = vsel %vm1235, %v1227, %v1232
        %v1237 = vrsqrt.pop %v741
        %v1238 = vmul.f32 %v1237, %v741
        %v1239 = vmul.f32 %v1238, %v1237
        %v1240 = vmul.f32 0.5, %v1239
        %v1241 = vsub.f32 1.5, %v1240
        %v1242 = vmul.f32 %v1237, %v1241
        %vm1243 = vweird.f32 %v741
        %vm1244 = vweird.f32 %v1237
        %vm1245 = vmor %vm1243, %vm1244
        %v1246 = vsel %vm1245, %v1237, %v1242
        %v1247 = vrsqrt.pop %v742
        %v1248 = vmul.f32 %v1247, %v742
        %v1249 = vmul.f32 %v1248, %v1247
        %v1250 = vmul.f32 0.5, %v1249
        %v1251 = vsub.f32 1.5, %v1250
        %v1252 = vmul.f32 %v1247, %v1251
        %vm1253 = vweird.f32 %v742
        %vm1254 = vweird.f32 %v1247
        %vm1255 = vmor %vm1253, %vm1254
        %v1256 = vsel %vm1255, %v1247, %v1252
        %v1257 = vrsqrt.pop %v743
        %v1258 = vmul.f32 %v1257, %v743
        %v1259 = vmul.f32 %v1258, %v1257
        %v1260 = vmul.f32 0.5, %v1259
        %v1261 = vsub.f32 1.5, %v1260
        %v1262 = vmul.f32 %v1257, %v1261
        %vm1263 = vweird.f32 %v743
        %vm1264 = vweird.f32 %v1257
        %vm1265 = vmor %vm1263, %vm1264
        %v1266 = vsel %vm1265, %v1257, %v1262
        %v1267 = vrsqrt.pop %v744
        %v1268 = vmul.f32 %v1267, %v744
        %v1269 = vmul.f32 %v1268, %v1267
        %v1270 = vmul.f32 0.5, %v1269
        %v1271 = vsub.f32 1.5, %v1270
        %v1272 = vmul.f32 %v1267, %v1271
        %vm1273 = vweird.f32 %v744
        %vm1274 = vweird.f32 %v1267
        %vm1275 = vmor %vm1273, %vm1274
        %v1276 = vsel %vm1275, %v1267, %v1272
        %v1277 = vrsqrt.pop %v745
        %v1278 = vmul.f32 %v1277, %v745
        %v1279 = vmul.f32 %v1278, %v1277
        %v1280 = vmul.f32 0.5, %v1279
        %v1281 = vsub.f32 1.5, %v1280
        %v1282 = vmul.f32 %v1277, %v1281
        %vm1283 = vweird.f32 %v745
        %vm1284 = vweird.f32 %v1277
        %vm1285 = vmor %vm1283, %vm1284
        %v1286 = vsel %vm1285, %v1277, %v1282
        %v1287 = vrsqrt.pop %v746
        %v1288 = vmul.f32 %v1287, %v746
        %v1289 = vmul.f32 %v1288, %v1287
        %v1290 = vmul.f32 0.5, %v1289
        %v1291 = vsub.f32 1.5, %v1290
        %v1292 = vmul.f32 %v1287, %v1291
        %vm1293 = vweird.f32 %v746
        %vm1294 = vweird.f32 %v1287
        %vm1295 = vmor %vm1293, %vm1294
        %v1296 = vsel %vm1295, %v1287, %v1292
        %v1297 = vrsqrt.pop %v747
        %v1298 = vmul.f32 %v1297, %v747
        %v1299 = vmul.f32 %v1298, %v1297
        %v1300 = vmul.f32 0.5, %v1299
        %v1301 = vsub.f32 1.5, %v1300
        %v1302 = vmul.f32 %v1297, %v1301
        %vm1303 = vweird.f32 %v747
        %vm1304 = vweird.f32 %v1297
        %vm1305 = vmor %vm1303, %vm1304
        %v1306 = vsel %vm1305, %v1297, %v1302
        %v1307 = vrsqrt.pop %v748
        %v1308 = vmul.f32 %v1307, %v748
        %v1309 = vmul.f32 %v1308, %v1307
        %v1310 = vmul.f32 0.5, %v1309
        %v1311 = vsub.f32 1.5, %v1310
        %v1312 = vmul.f32 %v1307, %v1311
        %vm1313 = vweird.f32 %v748
        %vm1314 = vweird.f32 %v1307
        %vm1315 = vmor %vm1313, %vm1314
        %v1316 = vsel %vm1315, %v1307, %v1312
        %v1317 = vrsqrt.pop %v749
        %v1318 = vmul.f32 %v1317, %v749
        %v1319 = vmul.f32 %v1318, %v1317
        %v1320 = vmul.f32 0.5, %v1319
        %v1321 = vsub.f32 1.5, %v1320
        %v1322 = vmul.f32 %v1317, %v1321
        %vm1323 = vweird.f32 %v749
        %vm1324 = vweird.f32 %v1317
        %vm1325 = vmor %vm1323, %vm1324
        %v1326 = vsel %vm1325, %v1317, %v1322
        %v1327 = vrsqrt.pop %v750
        %v1328 = vmul.f32 %v1327, %v750
        %v1329 = vmul.f32 %v1328, %v1327
        %v1330 = vmul.f32 0.5, %v1329
        %v1331 = vsub.f32 1.5, %v1330
        %v1332 = vmul.f32 %v1327, %v1331
        %vm1333 = vweird.f32 %v750
        %vm1334 = vweird.f32 %v1327
        %vm1335 = vmor %vm1333, %vm1334
        %v1336 = vsel %vm1335, %v1327, %v1332
        %v1337 = vrsqrt.pop %v751
        %v1338 = vmul.f32 %v1337, %v751
        %v1339 = vmul.f32 %v1338, %v1337
        %v1340 = vmul.f32 0.5, %v1339
        %v1341 = vsub.f32 1.5, %v1340
        %v1342 = vmul.f32 %v1337, %v1341
        %vm1343 = vweird.f32 %v751
        %vm1344 = vweird.f32 %v1337
        %vm1345 = vmor %vm1343, %vm1344
        %v1346 = vsel %vm1345, %v1337, %v1342
        %v1347 = vrsqrt.pop %v752
        %v1348 = vmul.f32 %v1347, %v752
        %v1349 = vmul.f32 %v1348, %v1347
        %v1350 = vmul.f32 0.5, %v1349
        %v1351 = vsub.f32 1.5, %v1350
        %v1352 = vmul.f32 %v1347, %v1351
        %vm1353 = vweird.f32 %v752
        %vm1354 = vweird.f32 %v1347
        %vm1355 = vmor %vm1353, %vm1354
        %v1356 = vsel %vm1355, %v1347, %v1352
        %v1357 = vrsqrt.pop %v753
        %v1358 = vmul.f32 %v1357, %v753
        %v1359 = vmul.f32 %v1358, %v1357
        %v1360 = vmul.f32 0.5, %v1359
        %v1361 = vsub.f32 1.5, %v1360
        %v1362 = vmul.f32 %v1357, %v1361
        %vm1363 = vweird.f32 %v753
        %vm1364 = vweird.f32 %v1357
        %vm1365 = vmor %vm1363, %vm1364
        %v1366 = vsel %vm1365, %v1357, %v1362
        %v1367 = vrsqrt.pop %v754
        %v1368 = vmul.f32 %v1367, %v754
        %v1369 = vmul.f32 %v1368, %v1367
        %v1370 = vmul.f32 0.5, %v1369
        %v1371 = vsub.f32 1.5, %v1370
        %v1372 = vmul.f32 %v1367, %v1371
        %vm1373 = vweird.f32 %v754
        %vm1374 = vweird.f32 %v1367
        %vm1375 = vmor %vm1373, %vm1374
        %v1376 = vsel %vm1375, %v1367, %v1372
        %v1377 = vrsqrt.pop %v755
        %v1378 = vmul.f32 %v1377, %v755
        %v1379 = vmul.f32 %v1378, %v1377
        %v1380 = vmul.f32 0.5, %v1379
        %v1381 = vsub.f32 1.5, %v1380
        %v1382 = vmul.f32 %v1377, %v1381
        %vm1383 = vweird.f32 %v755
        %vm1384 = vweird.f32 %v1377
        %vm1385 = vmor %vm1383, %vm1384
        %v1386 = vsel %vm1385, %v1377, %v1382
        %v1387 = vrsqrt.pop %v756
        %v1388 = vmul.f32 %v1387, %v756
        %v1389 = vmul.f32 %v1388, %v1387
        %v1390 = vmul.f32 0.5, %v1389
        %v1391 = vsub.f32 1.5, %v1390
        %v1392 = vmul.f32 %v1387, %v1391
        %vm1393 = vweird.f32 %v756
        %vm1394 = vweird.f32 %v1387
        %vm1395 = vmor %vm1393, %vm1394
        %v1396 = vsel %vm1395, %v1387, %v1392
        %v1397 = vmul.f32 %v437, %v766
        %v1398 = vmul.f32 %v438, %v776
        %v1399 = vmul.f32 %v439, %v786
        %v1400 = vmul.f32 %v440, %v796
        %v1401 = vmul.f32 %v441, %v806
        %v1402 = vmul.f32 %v442, %v816
        %v1403 = vmul.f32 %v443, %v826
        %v1404 = vmul.f32 %v444, %v836
        %v1405 = vmul.f32 %v445, %v846
        %v1406 = vmul.f32 %v446, %v856
        %v1407 = vmul.f32 %v447, %v866
        %v1408 = vmul.f32 %v448, %v876
        %v1409 = vmul.f32 %v449, %v886
        %v1410 = vmul.f32 %v450, %v896
        %v1411 = vmul.f32 %v451, %v906
        %v1412 = vmul.f32 %v452, %v916
        %v1413 = vmul.f32 %v453, %v926
        %v1414 = vmul.f32 %v454, %v936
        %v1415 = vmul.f32 %v455, %v946
        %v1416 = vmul.f32 %v456, %v956
        %v1417 = vmul.f32 %v457, %v966
        %v1418 = vmul.f32 %v458, %v976
        %v1419 = vmul.f32 %v459, %v986
        %v1420 = vmul.f32 %v460, %v996
        %v1421 = vmul.f32 %v461, %v1006
        %v1422 = vmul.f32 %v462, %v1016
        %v1423 = vmul.f32 %v463, %v1026
        %v1424 = vmul.f32 %v464, %v1036
        %v1425 = vmul.f32 %v465, %v1046
        %v1426 = vmul.f32 %v466, %v1056
        %v1427 = vmul.f32 %v467, %v1066
        %v1428 = vmul.f32 %v468, %v1076
        %v1429 = vmul.f32 %v469, %v1086
        %v1430 = vmul.f32 %v470, %v1096
        %v1431 = vmul.f32 %v471, %v1106
        %v1432 = vmul.f32 %v472, %v1116
        %v1433 = vmul.f32 %v473, %v1126
        %v1434 = vmul.f32 %v474, %v1136
        %v1435 = vmul.f32 %v475, %v1146
        %v1436 = vmul.f32 %v476, %v1156
        %v1437 = vmul.f32 %v477, %v1166
        %v1438 = vmul.f32 %v478, %v1176
        %v1439 = vmul.f32 %v479, %v1186
        %v1440 = vmul.f32 %v480, %v1196
        %v1441 = vmul.f32 %v481, %v1206
        %v1442 = vmul.f32 %v482, %v1216
        %v1443 = vmul.f32 %v483, %v1226
        %v1444 = vmul.f32 %v484, %v1236
        %v1445 = vmul.f32 %v485, %v1246
        %v1446 = vmul.f32 %v486, %v1256
        %v1447 = vmul.f32 %v487, %v1266
        %v1448 = vmul.f32 %v488, %v1276
        %v1449 = vmul.f32 %v489, %v1286
        %v1450 = vmul.f32 %v490, %v1296
        %v1451 = vmul.f32 %v491, %v1306
        %v1452 = vmul.f32 %v492, %v1316
        %v1453 = vmul.f32 %v493, %v1326
        %v1454 = vmul.f32 %v494, %v1336
        %v1455 = vmul.f32 %v495, %v1346
        %v1456 = vmul.f32 %v496, %v1356
        %v1457 = vmul.f32 %v497, %v1366
        %v1458 = vmul.f32 %v498, %v1376
        %v1459 = vmul.f32 %v499, %v1386
        %v1460 = vmul.f32 %v500, %v1396
        %v1461 = vpack.c.bf16 %v1398, %v1397
        %v1462 = vpack.c.bf16 %v1400, %v1399
        %v1463 = vpack.c.bf16 %v1402, %v1401
        %v1464 = vpack.c.bf16 %v1404, %v1403
        %v1465 = vpack.c.bf16 %v1406, %v1405
        %v1466 = vpack.c.bf16 %v1408, %v1407
        %v1467 = vpack.c.bf16 %v1410, %v1409
        %v1468 = vpack.c.bf16 %v1412, %v1411
        %v1469 = vpack.c.bf16 %v1414, %v1413
        %v1470 = vpack.c.bf16 %v1416, %v1415
        %v1471 = vpack.c.bf16 %v1418, %v1417
        %v1472 = vpack.c.bf16 %v1420, %v1419
        %v1473 = vpack.c.bf16 %v1422, %v1421
        %v1474 = vpack.c.bf16 %v1424, %v1423
        %v1475 = vpack.c.bf16 %v1426, %v1425
        %v1476 = vpack.c.bf16 %v1428, %v1427
        %v1477 = vpack.c.bf16 %v1430, %v1429
        %v1478 = vpack.c.bf16 %v1432, %v1431
        %v1479 = vpack.c.bf16 %v1434, %v1433
        %v1480 = vpack.c.bf16 %v1436, %v1435
        %v1481 = vpack.c.bf16 %v1438, %v1437
        %v1482 = vpack.c.bf16 %v1440, %v1439
        %v1483 = vpack.c.bf16 %v1442, %v1441
        %v1484 = vpack.c.bf16 %v1444, %v1443
        %v1485 = vpack.c.bf16 %v1446, %v1445
        %v1486 = vpack.c.bf16 %v1448, %v1447
        %v1487 = vpack.c.bf16 %v1450, %v1449
        %v1488 = vpack.c.bf16 %v1452, %v1451
        %v1489 = vpack.c.bf16 %v1454, %v1453
        %v1490 = vpack.c.bf16 %v1456, %v1455
        %v1491 = vpack.c.bf16 %v1458, %v1457
        %v1492 = vpack.c.bf16 %v1460, %v1459
        %v1493 = vld [vmem:[%s369] sm:$0xff]
        %v1494 = vld [vmem:[%s369 + $0x8] sm:$0xff]
        %v1495 = vld [vmem:[%s369 + $0x10] sm:$0xff]
        %v1496 = vld [vmem:[%s369 + $0x18] sm:$0xff]
        %v1497 = vld [vmem:[%s369 + $0x20] sm:$0xff]
        %v1498 = vld [vmem:[%s369 + $0x28] sm:$0xff]
        %v1499 = vld [vmem:[%s369 + $0x30] sm:$0xff]
        %v1500 = vld [vmem:[%s369 + $0x38] sm:$0xff]
        %v1501 = vld [vmem:[%s369 + $0x40] sm:$0xff]
        %v1502 = vld [vmem:[%s369 + $0x48] sm:$0xff]
        %v1503 = vld [vmem:[%s369 + $0x50] sm:$0xff]
        %v1504 = vld [vmem:[%s369 + $0x58] sm:$0xff]
        %v1505 = vld [vmem:[%s369 + $0x60] sm:$0xff]
        %v1506 = vld [vmem:[%s369 + $0x68] sm:$0xff]
        %v1507 = vld [vmem:[%s369 + $0x70] sm:$0xff]
        %v1508 = vld [vmem:[%s369 + $0x78] sm:$0xff]
        %v1509 = vld [vmem:[%s369 + $0x80] sm:$0xff]
        %v1510 = vld [vmem:[%s369 + $0x88] sm:$0xff]
        %v1511 = vld [vmem:[%s369 + $0x90] sm:$0xff]
        %v1512 = vld [vmem:[%s369 + $0x98] sm:$0xff]
        %v1513 = vld [vmem:[%s369 + $0xa0] sm:$0xff]
        %v1514 = vld [vmem:[%s369 + $0xa8] sm:$0xff]
        %v1515 = vld [vmem:[%s369 + $0xb0] sm:$0xff]
        %v1516 = vld [vmem:[%s369 + $0xb8] sm:$0xff]
        %v1517 = vld [vmem:[%s369 + $0xc0] sm:$0xff]
        %v1518 = vld [vmem:[%s369 + $0xc8] sm:$0xff]
        %v1519 = vld [vmem:[%s369 + $0xd0] sm:$0xff]
        %v1520 = vld [vmem:[%s369 + $0xd8] sm:$0xff]
        %v1521 = vld [vmem:[%s369 + $0xe0] sm:$0xff]
        %v1522 = vld [vmem:[%s369 + $0xe8] sm:$0xff]
        %v1523 = vld [vmem:[%s369 + $0xf0] sm:$0xff]
        %v1524 = vld [vmem:[%s369 + $0xf8] sm:$0xff]
        %v1525 = vld [vmem:[%s369 + $0x100] sm:$0xff]
        %v1526 = vld [vmem:[%s369 + $0x108] sm:$0xff]
        %v1527 = vld [vmem:[%s369 + $0x110] sm:$0xff]
        %v1528 = vld [vmem:[%s369 + $0x118] sm:$0xff]
        %v1529 = vld [vmem:[%s369 + $0x120] sm:$0xff]
        %v1530 = vld [vmem:[%s369 + $0x128] sm:$0xff]
        %v1531 = vld [vmem:[%s369 + $0x130] sm:$0xff]
        %v1532 = vld [vmem:[%s369 + $0x138] sm:$0xff]
        %v1533 = vld [vmem:[%s369 + $0x140] sm:$0xff]
        %v1534 = vld [vmem:[%s369 + $0x148] sm:$0xff]
        %v1535 = vld [vmem:[%s369 + $0x150] sm:$0xff]
        %v1536 = vld [vmem:[%s369 + $0x158] sm:$0xff]
        %v1537 = vld [vmem:[%s369 + $0x160] sm:$0xff]
        %v1538 = vld [vmem:[%s369 + $0x168] sm:$0xff]
        %v1539 = vld [vmem:[%s369 + $0x170] sm:$0xff]
        %v1540 = vld [vmem:[%s369 + $0x178] sm:$0xff]
        %v1541 = vld [vmem:[%s369 + $0x180] sm:$0xff]
        %v1542 = vld [vmem:[%s369 + $0x188] sm:$0xff]
        %v1543 = vld [vmem:[%s369 + $0x190] sm:$0xff]
        %v1544 = vld [vmem:[%s369 + $0x198] sm:$0xff]
        %v1545 = vld [vmem:[%s369 + $0x1a0] sm:$0xff]
        %v1546 = vld [vmem:[%s369 + $0x1a8] sm:$0xff]
        %v1547 = vld [vmem:[%s369 + $0x1b0] sm:$0xff]
        %v1548 = vld [vmem:[%s369 + $0x1b8] sm:$0xff]
        %v1549 = vld [vmem:[%s369 + $0x1c0] sm:$0xff]
        %v1550 = vld [vmem:[%s369 + $0x1c8] sm:$0xff]
        %v1551 = vld [vmem:[%s369 + $0x1d0] sm:$0xff]
        %v1552 = vld [vmem:[%s369 + $0x1d8] sm:$0xff]
        %v1553 = vld [vmem:[%s369 + $0x1e0] sm:$0xff]
        %v1554 = vld [vmem:[%s369 + $0x1e8] sm:$0xff]
        %v1555 = vld [vmem:[%s369 + $0x1f0] sm:$0xff]
        %v1556 = vld [vmem:[%s369 + $0x1f8] sm:$0xff]
        %v1557 = vld [vmem:[%s379] sm:$0xff]
        %v1558 = vld [vmem:[%s379 + $0x8] sm:$0xff]
        %v1559 = vld [vmem:[%s379 + $0x10] sm:$0xff]
        %v1560 = vld [vmem:[%s379 + $0x18] sm:$0xff]
        %v1561 = vld [vmem:[%s379 + $0x20] sm:$0xff]
        %v1562 = vld [vmem:[%s379 + $0x28] sm:$0xff]
        %v1563 = vld [vmem:[%s379 + $0x30] sm:$0xff]
        %v1564 = vld [vmem:[%s379 + $0x38] sm:$0xff]
        %v1565 = vld [vmem:[%s379 + $0x40] sm:$0xff]
        %v1566 = vld [vmem:[%s379 + $0x48] sm:$0xff]
        %v1567 = vld [vmem:[%s379 + $0x50] sm:$0xff]
        %v1568 = vld [vmem:[%s379 + $0x58] sm:$0xff]
        %v1569 = vld [vmem:[%s379 + $0x60] sm:$0xff]
        %v1570 = vld [vmem:[%s379 + $0x68] sm:$0xff]
        %v1571 = vld [vmem:[%s379 + $0x70] sm:$0xff]
        %v1572 = vld [vmem:[%s379 + $0x78] sm:$0xff]
        %v1573 = vld [vmem:[%s379 + $0x80] sm:$0xff]
        %v1574 = vld [vmem:[%s379 + $0x88] sm:$0xff]
        %v1575 = vld [vmem:[%s379 + $0x90] sm:$0xff]
        %v1576 = vld [vmem:[%s379 + $0x98] sm:$0xff]
        %v1577 = vld [vmem:[%s379 + $0xa0] sm:$0xff]
        %v1578 = vld [vmem:[%s379 + $0xa8] sm:$0xff]
        %v1579 = vld [vmem:[%s379 + $0xb0] sm:$0xff]
        %v1580 = vld [vmem:[%s379 + $0xb8] sm:$0xff]
        %v1581 = vld [vmem:[%s379 + $0xc0] sm:$0xff]
        %v1582 = vld [vmem:[%s379 + $0xc8] sm:$0xff]
        %v1583 = vld [vmem:[%s379 + $0xd0] sm:$0xff]
        %v1584 = vld [vmem:[%s379 + $0xd8] sm:$0xff]
        %v1585 = vld [vmem:[%s379 + $0xe0] sm:$0xff]
        %v1586 = vld [vmem:[%s379 + $0xe8] sm:$0xff]
        %v1587 = vld [vmem:[%s379 + $0xf0] sm:$0xff]
        %v1588 = vld [vmem:[%s379 + $0xf8] sm:$0xff]
        %v1589 = vld [vmem:[%s379 + $0x100] sm:$0xff]
        %v1590 = vld [vmem:[%s379 + $0x108] sm:$0xff]
        %v1591 = vld [vmem:[%s379 + $0x110] sm:$0xff]
        %v1592 = vld [vmem:[%s379 + $0x118] sm:$0xff]
        %v1593 = vld [vmem:[%s379 + $0x120] sm:$0xff]
        %v1594 = vld [vmem:[%s379 + $0x128] sm:$0xff]
        %v1595 = vld [vmem:[%s379 + $0x130] sm:$0xff]
        %v1596 = vld [vmem:[%s379 + $0x138] sm:$0xff]
        %v1597 = vld [vmem:[%s379 + $0x140] sm:$0xff]
        %v1598 = vld [vmem:[%s379 + $0x148] sm:$0xff]
        %v1599 = vld [vmem:[%s379 + $0x150] sm:$0xff]
        %v1600 = vld [vmem:[%s379 + $0x158] sm:$0xff]
        %v1601 = vld [vmem:[%s379 + $0x160] sm:$0xff]
        %v1602 = vld [vmem:[%s379 + $0x168] sm:$0xff]
        %v1603 = vld [vmem:[%s379 + $0x170] sm:$0xff]
        %v1604 = vld [vmem:[%s379 + $0x178] sm:$0xff]
        %v1605 = vld [vmem:[%s379 + $0x180] sm:$0xff]
        %v1606 = vld [vmem:[%s379 + $0x188] sm:$0xff]
        %v1607 = vld [vmem:[%s379 + $0x190] sm:$0xff]
        %v1608 = vld [vmem:[%s379 + $0x198] sm:$0xff]
        %v1609 = vld [vmem:[%s379 + $0x1a0] sm:$0xff]
        %v1610 = vld [vmem:[%s379 + $0x1a8] sm:$0xff]
        %v1611 = vld [vmem:[%s379 + $0x1b0] sm:$0xff]
        %v1612 = vld [vmem:[%s379 + $0x1b8] sm:$0xff]
        %v1613 = vld [vmem:[%s379 + $0x1c0] sm:$0xff]
        %v1614 = vld [vmem:[%s379 + $0x1c8] sm:$0xff]
        %v1615 = vld [vmem:[%s379 + $0x1d0] sm:$0xff]
        %v1616 = vld [vmem:[%s379 + $0x1d8] sm:$0xff]
        %v1617 = vld [vmem:[%s379 + $0x1e0] sm:$0xff]
        %v1618 = vld [vmem:[%s379 + $0x1e8] sm:$0xff]
        %v1619 = vld [vmem:[%s379 + $0x1f0] sm:$0xff]
        %v1620 = vld [vmem:[%s379 + $0x1f8] sm:$0xff]
        %v1685 = vunpack.c.l.b16 %v1493
        %v1686 = vunpack.c.h.b16 %v1493
        %v1687 = vunpack.c.l.b16 %v1494
        %v1688 = vunpack.c.h.b16 %v1494
        %v1689 = vunpack.c.l.b16 %v1495
        %v1690 = vunpack.c.h.b16 %v1495
        %v1691 = vunpack.c.l.b16 %v1496
        %v1692 = vunpack.c.h.b16 %v1496
        %v1693 = vunpack.c.l.b16 %v1497
        %v1694 = vunpack.c.h.b16 %v1497
        %v1695 = vunpack.c.l.b16 %v1498
        %v1696 = vunpack.c.h.b16 %v1498
        %v1697 = vunpack.c.l.b16 %v1499
        %v1698 = vunpack.c.h.b16 %v1499
        %v1699 = vunpack.c.l.b16 %v1500
        %v1700 = vunpack.c.h.b16 %v1500
        %v1701 = vunpack.c.l.b16 %v1501
        %v1702 = vunpack.c.h.b16 %v1501
        %v1703 = vunpack.c.l.b16 %v1502
        %v1704 = vunpack.c.h.b16 %v1502
        %v1705 = vunpack.c.l.b16 %v1503
        %v1706 = vunpack.c.h.b16 %v1503
        %v1707 = vunpack.c.l.b16 %v1504
        %v1708 = vunpack.c.h.b16 %v1504
        %v1709 = vunpack.c.l.b16 %v1505
        %v1710 = vunpack.c.h.b16 %v1505
        %v1711 = vunpack.c.l.b16 %v1506
        %v1712 = vunpack.c.h.b16 %v1506
        %v1713 = vunpack.c.l.b16 %v1507
        %v1714 = vunpack.c.h.b16 %v1507
        %v1715 = vunpack.c.l.b16 %v1508
        %v1716 = vunpack.c.h.b16 %v1508
        %v1717 = vunpack.c.l.b16 %v1509
        %v1718 = vunpack.c.h.b16 %v1509
        %v1719 = vunpack.c.l.b16 %v1510
        %v1720 = vunpack.c.h.b16 %v1510
        %v1721 = vunpack.c.l.b16 %v1511
        %v1722 = vunpack.c.h.b16 %v1511
        %v1723 = vunpack.c.l.b16 %v1512
        %v1724 = vunpack.c.h.b16 %v1512
        %v1725 = vunpack.c.l.b16 %v1513
        %v1726 = vunpack.c.h.b16 %v1513
        %v1727 = vunpack.c.l.b16 %v1514
        %v1728 = vunpack.c.h.b16 %v1514
        %v1729 = vunpack.c.l.b16 %v1515
        %v1730 = vunpack.c.h.b16 %v1515
        %v1731 = vunpack.c.l.b16 %v1516
        %v1732 = vunpack.c.h.b16 %v1516
        %v1733 = vunpack.c.l.b16 %v1517
        %v1734 = vunpack.c.h.b16 %v1517
        %v1735 = vunpack.c.l.b16 %v1518
        %v1736 = vunpack.c.h.b16 %v1518
        %v1737 = vunpack.c.l.b16 %v1519
        %v1738 = vunpack.c.h.b16 %v1519
        %v1739 = vunpack.c.l.b16 %v1520
        %v1740 = vunpack.c.h.b16 %v1520
        %v1741 = vunpack.c.l.b16 %v1521
        %v1742 = vunpack.c.h.b16 %v1521
        %v1743 = vunpack.c.l.b16 %v1522
        %v1744 = vunpack.c.h.b16 %v1522
        %v1745 = vunpack.c.l.b16 %v1523
        %v1746 = vunpack.c.h.b16 %v1523
        %v1747 = vunpack.c.l.b16 %v1524
        %v1748 = vunpack.c.h.b16 %v1524
        %v1749 = vunpack.c.l.b16 %v1525
        %v1750 = vunpack.c.h.b16 %v1525
        %v1751 = vunpack.c.l.b16 %v1526
        %v1752 = vunpack.c.h.b16 %v1526
        %v1753 = vunpack.c.l.b16 %v1527
        %v1754 = vunpack.c.h.b16 %v1527
        %v1755 = vunpack.c.l.b16 %v1528
        %v1756 = vunpack.c.h.b16 %v1528
        %v1757 = vunpack.c.l.b16 %v1529
        %v1758 = vunpack.c.h.b16 %v1529
        %v1759 = vunpack.c.l.b16 %v1530
        %v1760 = vunpack.c.h.b16 %v1530
        %v1761 = vunpack.c.l.b16 %v1531
        %v1762 = vunpack.c.h.b16 %v1531
        %v1763 = vunpack.c.l.b16 %v1532
        %v1764 = vunpack.c.h.b16 %v1532
        %v1765 = vunpack.c.l.b16 %v1533
        %v1766 = vunpack.c.h.b16 %v1533
        %v1767 = vunpack.c.l.b16 %v1534
        %v1768 = vunpack.c.h.b16 %v1534
        %v1769 = vunpack.c.l.b16 %v1535
        %v1770 = vunpack.c.h.b16 %v1535
        %v1771 = vunpack.c.l.b16 %v1536
        %v1772 = vunpack.c.h.b16 %v1536
        %v1773 = vunpack.c.l.b16 %v1537
        %v1774 = vunpack.c.h.b16 %v1537
        %v1775 = vunpack.c.l.b16 %v1538
        %v1776 = vunpack.c.h.b16 %v1538
        %v1777 = vunpack.c.l.b16 %v1539
        %v1778 = vunpack.c.h.b16 %v1539
        %v1779 = vunpack.c.l.b16 %v1540
        %v1780 = vunpack.c.h.b16 %v1540
        %v1781 = vunpack.c.l.b16 %v1541
        %v1782 = vunpack.c.h.b16 %v1541
        %v1783 = vunpack.c.l.b16 %v1542
        %v1784 = vunpack.c.h.b16 %v1542
        %v1785 = vunpack.c.l.b16 %v1543
        %v1786 = vunpack.c.h.b16 %v1543
        %v1787 = vunpack.c.l.b16 %v1544
        %v1788 = vunpack.c.h.b16 %v1544
        %v1789 = vunpack.c.l.b16 %v1545
        %v1790 = vunpack.c.h.b16 %v1545
        %v1791 = vunpack.c.l.b16 %v1546
        %v1792 = vunpack.c.h.b16 %v1546
        %v1793 = vunpack.c.l.b16 %v1547
        %v1794 = vunpack.c.h.b16 %v1547
        %v1795 = vunpack.c.l.b16 %v1548
        %v1796 = vunpack.c.h.b16 %v1548
        %v1797 = vunpack.c.l.b16 %v1549
        %v1798 = vunpack.c.h.b16 %v1549
        %v1799 = vunpack.c.l.b16 %v1550
        %v1800 = vunpack.c.h.b16 %v1550
        %v1801 = vunpack.c.l.b16 %v1551
        %v1802 = vunpack.c.h.b16 %v1551
        %v1803 = vunpack.c.l.b16 %v1552
        %v1804 = vunpack.c.h.b16 %v1552
        %v1805 = vunpack.c.l.b16 %v1553
        %v1806 = vunpack.c.h.b16 %v1553
        %v1807 = vunpack.c.l.b16 %v1554
        %v1808 = vunpack.c.h.b16 %v1554
        %v1809 = vunpack.c.l.b16 %v1555
        %v1810 = vunpack.c.h.b16 %v1555
        %v1811 = vunpack.c.l.b16 %v1556
        %v1812 = vunpack.c.h.b16 %v1556
        %v1813 = vpack.c.b16 %v1689, %v1685
        %v1814 = vpack.c.b16 %v1690, %v1686
        %v1815 = vpack.c.b16 %v1691, %v1687
        %v1816 = vpack.c.b16 %v1692, %v1688
        %v1817 = vpack.c.b16 %v1697, %v1693
        %v1818 = vpack.c.b16 %v1698, %v1694
        %v1819 = vpack.c.b16 %v1699, %v1695
        %v1820 = vpack.c.b16 %v1700, %v1696
        %v1821 = vpack.c.b16 %v1705, %v1701
        %v1822 = vpack.c.b16 %v1706, %v1702
        %v1823 = vpack.c.b16 %v1707, %v1703
        %v1824 = vpack.c.b16 %v1708, %v1704
        %v1825 = vpack.c.b16 %v1713, %v1709
        %v1826 = vpack.c.b16 %v1714, %v1710
        %v1827 = vpack.c.b16 %v1715, %v1711
        %v1828 = vpack.c.b16 %v1716, %v1712
        %v1829 = vpack.c.b16 %v1721, %v1717
        %v1830 = vpack.c.b16 %v1722, %v1718
        %v1831 = vpack.c.b16 %v1723, %v1719
        %v1832 = vpack.c.b16 %v1724, %v1720
        %v1833 = vpack.c.b16 %v1729, %v1725
        %v1834 = vpack.c.b16 %v1730, %v1726
        %v1835 = vpack.c.b16 %v1731, %v1727
        %v1836 = vpack.c.b16 %v1732, %v1728
        %v1837 = vpack.c.b16 %v1737, %v1733
        %v1838 = vpack.c.b16 %v1738, %v1734
        %v1839 = vpack.c.b16 %v1739, %v1735
        %v1840 = vpack.c.b16 %v1740, %v1736
        %v1841 = vpack.c.b16 %v1745, %v1741
        %v1842 = vpack.c.b16 %v1746, %v1742
        %v1843 = vpack.c.b16 %v1747, %v1743
        %v1844 = vpack.c.b16 %v1748, %v1744
        %v1845 = vpack.c.b16 %v1753, %v1749
        %v1846 = vpack.c.b16 %v1754, %v1750
        %v1847 = vpack.c.b16 %v1755, %v1751
        %v1848 = vpack.c.b16 %v1756, %v1752
        %v1849 = vpack.c.b16 %v1761, %v1757
        %v1850 = vpack.c.b16 %v1762, %v1758
        %v1851 = vpack.c.b16 %v1763, %v1759
        %v1852 = vpack.c.b16 %v1764, %v1760
        %v1853 = vpack.c.b16 %v1769, %v1765
        %v1854 = vpack.c.b16 %v1770, %v1766
        %v1855 = vpack.c.b16 %v1771, %v1767
        %v1856 = vpack.c.b16 %v1772, %v1768
        %v1857 = vpack.c.b16 %v1777, %v1773
        %v1858 = vpack.c.b16 %v1778, %v1774
        %v1859 = vpack.c.b16 %v1779, %v1775
        %v1860 = vpack.c.b16 %v1780, %v1776
        %v1861 = vpack.c.b16 %v1785, %v1781
        %v1862 = vpack.c.b16 %v1786, %v1782
        %v1863 = vpack.c.b16 %v1787, %v1783
        %v1864 = vpack.c.b16 %v1788, %v1784
        %v1865 = vpack.c.b16 %v1793, %v1789
        %v1866 = vpack.c.b16 %v1794, %v1790
        %v1867 = vpack.c.b16 %v1795, %v1791
        %v1868 = vpack.c.b16 %v1796, %v1792
        %v1869 = vpack.c.b16 %v1801, %v1797
        %v1870 = vpack.c.b16 %v1802, %v1798
        %v1871 = vpack.c.b16 %v1803, %v1799
        %v1872 = vpack.c.b16 %v1804, %v1800
        %v1873 = vpack.c.b16 %v1809, %v1805
        %v1874 = vpack.c.b16 %v1810, %v1806
        %v1875 = vpack.c.b16 %v1811, %v1807
        %v1876 = vpack.c.b16 %v1812, %v1808
        %1941 = vmatpush.bf16.msra.mxu0 1065369472
        %1942 = vmatpush.bf16.msra.mxu0 1065369472
        %1943 = vmatpush.bf16.msra.mxu0 1065369472
        %1944 = vmatpush.bf16.msra.mxu0 1065369472
        %1945 = vmatpush.bf16.msra.mxu0 1065369472
        %1946 = vmatpush.bf16.msra.mxu0 1065369472
        %1947 = vmatpush.bf16.msra.mxu0 1065369472
        %1948 = vmatpush.bf16.msra.mxu0 1065369472
        %1949 = vmatmul.bf16.gmra.mxu0 %v1813
        %v1950 = vpop.f32.mrf.mxu0
        %v1951 = vadd.f32 0.0, %v1950
        %v1952 = vpop.f32.mrf.mxu0
        %v1953 = vadd.f32 0.0, %v1952
        %1954 = vmatmul.bf16.gmra.mxu0 %v1817
        %v1955 = vpop.f32.mrf.mxu0
        %v1956 = vadd.f32 0.0, %v1955
        %v1957 = vpop.f32.mrf.mxu0
        %v1958 = vadd.f32 0.0, %v1957
        %1959 = vmatmul.bf16.gmra.mxu0 %v1821
        %v1960 = vpop.f32.mrf.mxu0
        %v1961 = vadd.f32 0.0, %v1960
        %v1962 = vpop.f32.mrf.mxu0
        %v1963 = vadd.f32 0.0, %v1962
        %1964 = vmatmul.bf16.gmra.mxu0 %v1825
        %v1965 = vpop.f32.mrf.mxu0
        %v1966 = vadd.f32 0.0, %v1965
        %v1967 = vpop.f32.mrf.mxu0
        %v1968 = vadd.f32 0.0, %v1967
        %1969 = vmatmul.bf16.gmra.mxu0 %v1829
        %v1970 = vpop.f32.mrf.mxu0
        %v1971 = vadd.f32 0.0, %v1970
        %v1972 = vpop.f32.mrf.mxu0
        %v1973 = vadd.f32 0.0, %v1972
        %1974 = vmatmul.bf16.gmra.mxu0 %v1833
        %v1975 = vpop.f32.mrf.mxu0
        %v1976 = vadd.f32 0.0, %v1975
        %v1977 = vpop.f32.mrf.mxu0
        %v1978 = vadd.f32 0.0, %v1977
        %1979 = vmatmul.bf16.gmra.mxu0 %v1837
        %v1980 = vpop.f32.mrf.mxu0
        %v1981 = vadd.f32 0.0, %v1980
        %v1982 = vpop.f32.mrf.mxu0
        %v1983 = vadd.f32 0.0, %v1982
        %1984 = vmatmul.bf16.gmra.mxu0 %v1841
        %v1985 = vpop.f32.mrf.mxu0
        %v1986 = vadd.f32 0.0, %v1985
        %v1987 = vpop.f32.mrf.mxu0
        %v1988 = vadd.f32 0.0, %v1987
        %1989 = vmatmul.bf16.gmra.mxu0 %v1845
        %v1990 = vpop.f32.mrf.mxu0
        %v1991 = vadd.f32 0.0, %v1990
        %v1992 = vpop.f32.mrf.mxu0
        %v1993 = vadd.f32 0.0, %v1992
        %1994 = vmatmul.bf16.gmra.mxu0 %v1849
        %v1995 = vpop.f32.mrf.mxu0
        %v1996 = vadd.f32 0.0, %v1995
        %v1997 = vpop.f32.mrf.mxu0
        %v1998 = vadd.f32 0.0, %v1997
        %1999 = vmatmul.bf16.gmra.mxu0 %v1853
        %v2000 = vpop.f32.mrf.mxu0
        %v2001 = vadd.f32 0.0, %v2000
        %v2002 = vpop.f32.mrf.mxu0
        %v2003 = vadd.f32 0.0, %v2002
        %2004 = vmatmul.bf16.gmra.mxu0 %v1857
        %v2005 = vpop.f32.mrf.mxu0
        %v2006 = vadd.f32 0.0, %v2005
        %v2007 = vpop.f32.mrf.mxu0
        %v2008 = vadd.f32 0.0, %v2007
        %2009 = vmatmul.bf16.gmra.mxu0 %v1861
        %v2010 = vpop.f32.mrf.mxu0
        %v2011 = vadd.f32 0.0, %v2010
        %v2012 = vpop.f32.mrf.mxu0
        %v2013 = vadd.f32 0.0, %v2012
        %2014 = vmatmul.bf16.gmra.mxu0 %v1865
        %v2015 = vpop.f32.mrf.mxu0
        %v2016 = vadd.f32 0.0, %v2015
        %v2017 = vpop.f32.mrf.mxu0
        %v2018 = vadd.f32 0.0, %v2017
        %2019 = vmatmul.bf16.gmra.mxu0 %v1869
        %v2020 = vpop.f32.mrf.mxu0
        %v2021 = vadd.f32 0.0, %v2020
        %v2022 = vpop.f32.mrf.mxu0
        %v2023 = vadd.f32 0.0, %v2022
        %2024 = vmatmul.bf16.gmra.mxu0 %v1873
        %v2025 = vpop.f32.mrf.mxu0
        %v2026 = vadd.f32 0.0, %v2025
        %v2027 = vpop.f32.mrf.mxu0
        %v2028 = vadd.f32 0.0, %v2027
        %2029 = vdwg.mxu0
        %2030 = vmatpush.bf16.msra.mxu0 1065369472
        %2031 = vmatpush.bf16.msra.mxu0 1065369472
        %2032 = vmatpush.bf16.msra.mxu0 1065369472
        %2033 = vmatpush.bf16.msra.mxu0 1065369472
        %2034 = vmatpush.bf16.msra.mxu0 1065369472
        %2035 = vmatpush.bf16.msra.mxu0 1065369472
        %2036 = vmatpush.bf16.msra.mxu0 1065369472
        %2037 = vmatpush.bf16.msra.mxu0 1065369472
        %2038 = vmatmul.bf16.gmra.mxu0 %v1814
        %v2039 = vpop.f32.mrf.mxu0
        %v2040 = vadd.f32 %v1951, %v2039
        %v2041 = vpop.f32.mrf.mxu0
        %v2042 = vadd.f32 %v1953, %v2041
        %2043 = vmatmul.bf16.gmra.mxu0 %v1818
        %v2044 = vpop.f32.mrf.mxu0
        %v2045 = vadd.f32 %v1956, %v2044
        %v2046 = vpop.f32.mrf.mxu0
        %v2047 = vadd.f32 %v1958, %v2046
        %2048 = vmatmul.bf16.gmra.mxu0 %v1822
        %v2049 = vpop.f32.mrf.mxu0
        %v2050 = vadd.f32 %v1961, %v2049
        %v2051 = vpop.f32.mrf.mxu0
        %v2052 = vadd.f32 %v1963, %v2051
        %2053 = vmatmul.bf16.gmra.mxu0 %v1826
        %v2054 = vpop.f32.mrf.mxu0
        %v2055 = vadd.f32 %v1966, %v2054
        %v2056 = vpop.f32.mrf.mxu0
        %v2057 = vadd.f32 %v1968, %v2056
        %2058 = vmatmul.bf16.gmra.mxu0 %v1830
        %v2059 = vpop.f32.mrf.mxu0
        %v2060 = vadd.f32 %v1971, %v2059
        %v2061 = vpop.f32.mrf.mxu0
        %v2062 = vadd.f32 %v1973, %v2061
        %2063 = vmatmul.bf16.gmra.mxu0 %v1834
        %v2064 = vpop.f32.mrf.mxu0
        %v2065 = vadd.f32 %v1976, %v2064
        %v2066 = vpop.f32.mrf.mxu0
        %v2067 = vadd.f32 %v1978, %v2066
        %2068 = vmatmul.bf16.gmra.mxu0 %v1838
        %v2069 = vpop.f32.mrf.mxu0
        %v2070 = vadd.f32 %v1981, %v2069
        %v2071 = vpop.f32.mrf.mxu0
        %v2072 = vadd.f32 %v1983, %v2071
        %2073 = vmatmul.bf16.gmra.mxu0 %v1842
        %v2074 = vpop.f32.mrf.mxu0
        %v2075 = vadd.f32 %v1986, %v2074
        %v2076 = vpop.f32.mrf.mxu0
        %v2077 = vadd.f32 %v1988, %v2076
        %2078 = vmatmul.bf16.gmra.mxu0 %v1846
        %v2079 = vpop.f32.mrf.mxu0
        %v2080 = vadd.f32 %v1991, %v2079
        %v2081 = vpop.f32.mrf.mxu0
        %v2082 = vadd.f32 %v1993, %v2081
        %2083 = vmatmul.bf16.gmra.mxu0 %v1850
        %v2084 = vpop.f32.mrf.mxu0
        %v2085 = vadd.f32 %v1996, %v2084
        %v2086 = vpop.f32.mrf.mxu0
        %v2087 = vadd.f32 %v1998, %v2086
        %2088 = vmatmul.bf16.gmra.mxu0 %v1854
        %v2089 = vpop.f32.mrf.mxu0
        %v2090 = vadd.f32 %v2001, %v2089
        %v2091 = vpop.f32.mrf.mxu0
        %v2092 = vadd.f32 %v2003, %v2091
        %2093 = vmatmul.bf16.gmra.mxu0 %v1858
        %v2094 = vpop.f32.mrf.mxu0
        %v2095 = vadd.f32 %v2006, %v2094
        %v2096 = vpop.f32.mrf.mxu0
        %v2097 = vadd.f32 %v2008, %v2096
        %2098 = vmatmul.bf16.gmra.mxu0 %v1862
        %v2099 = vpop.f32.mrf.mxu0
        %v2100 = vadd.f32 %v2011, %v2099
        %v2101 = vpop.f32.mrf.mxu0
        %v2102 = vadd.f32 %v2013, %v2101
        %2103 = vmatmul.bf16.gmra.mxu0 %v1866
        %v2104 = vpop.f32.mrf.mxu0
        %v2105 = vadd.f32 %v2016, %v2104
        %v2106 = vpop.f32.mrf.mxu0
        %v2107 = vadd.f32 %v2018, %v2106
        %2108 = vmatmul.bf16.gmra.mxu0 %v1870
        %v2109 = vpop.f32.mrf.mxu0
        %v2110 = vadd.f32 %v2021, %v2109
        %v2111 = vpop.f32.mrf.mxu0
        %v2112 = vadd.f32 %v2023, %v2111
        %2113 = vmatmul.bf16.gmra.mxu0 %v1874
        %v2114 = vpop.f32.mrf.mxu0
        %v2115 = vadd.f32 %v2026, %v2114
        %v2116 = vpop.f32.mrf.mxu0
        %v2117 = vadd.f32 %v2028, %v2116
        %2118 = vdwg.mxu0
        %2119 = vmatpush.bf16.msra.mxu0 1065369472
        %2120 = vmatpush.bf16.msra.mxu0 1065369472
        %2121 = vmatpush.bf16.msra.mxu0 1065369472
        %2122 = vmatpush.bf16.msra.mxu0 1065369472
        %2123 = vmatpush.bf16.msra.mxu0 1065369472
        %2124 = vmatpush.bf16.msra.mxu0 1065369472
        %2125 = vmatpush.bf16.msra.mxu0 1065369472
        %2126 = vmatpush.bf16.msra.mxu0 1065369472
        %2127 = vmatmul.bf16.gmra.mxu0 %v1815
        %v2128 = vpop.f32.mrf.mxu0
        %v2129 = vadd.f32 %v2040, %v2128
        %v2130 = vpop.f32.mrf.mxu0
        %v2131 = vadd.f32 %v2042, %v2130
        %2132 = vmatmul.bf16.gmra.mxu0 %v1819
        %v2133 = vpop.f32.mrf.mxu0
        %v2134 = vadd.f32 %v2045, %v2133
        %v2135 = vpop.f32.mrf.mxu0
        %v2136 = vadd.f32 %v2047, %v2135
        %2137 = vmatmul.bf16.gmra.mxu0 %v1823
        %v2138 = vpop.f32.mrf.mxu0
        %v2139 = vadd.f32 %v2050, %v2138
        %v2140 = vpop.f32.mrf.mxu0
        %v2141 = vadd.f32 %v2052, %v2140
        %2142 = vmatmul.bf16.gmra.mxu0 %v1827
        %v2143 = vpop.f32.mrf.mxu0
        %v2144 = vadd.f32 %v2055, %v2143
        %v2145 = vpop.f32.mrf.mxu0
        %v2146 = vadd.f32 %v2057, %v2145
        %2147 = vmatmul.bf16.gmra.mxu0 %v1831
        %v2148 = vpop.f32.mrf.mxu0
        %v2149 = vadd.f32 %v2060, %v2148
        %v2150 = vpop.f32.mrf.mxu0
        %v2151 = vadd.f32 %v2062, %v2150
        %2152 = vmatmul.bf16.gmra.mxu0 %v1835
        %v2153 = vpop.f32.mrf.mxu0
        %v2154 = vadd.f32 %v2065, %v2153
        %v2155 = vpop.f32.mrf.mxu0
        %v2156 = vadd.f32 %v2067, %v2155
        %2157 = vmatmul.bf16.gmra.mxu0 %v1839
        %v2158 = vpop.f32.mrf.mxu0
        %v2159 = vadd.f32 %v2070, %v2158
        %v2160 = vpop.f32.mrf.mxu0
        %v2161 = vadd.f32 %v2072, %v2160
        %2162 = vmatmul.bf16.gmra.mxu0 %v1843
        %v2163 = vpop.f32.mrf.mxu0
        %v2164 = vadd.f32 %v2075, %v2163
        %v2165 = vpop.f32.mrf.mxu0
        %v2166 = vadd.f32 %v2077, %v2165
        %2167 = vmatmul.bf16.gmra.mxu0 %v1847
        %v2168 = vpop.f32.mrf.mxu0
        %v2169 = vadd.f32 %v2080, %v2168
        %v2170 = vpop.f32.mrf.mxu0
        %v2171 = vadd.f32 %v2082, %v2170
        %2172 = vmatmul.bf16.gmra.mxu0 %v1851
        %v2173 = vpop.f32.mrf.mxu0
        %v2174 = vadd.f32 %v2085, %v2173
        %v2175 = vpop.f32.mrf.mxu0
        %v2176 = vadd.f32 %v2087, %v2175
        %2177 = vmatmul.bf16.gmra.mxu0 %v1855
        %v2178 = vpop.f32.mrf.mxu0
        %v2179 = vadd.f32 %v2090, %v2178
        %v2180 = vpop.f32.mrf.mxu0
        %v2181 = vadd.f32 %v2092, %v2180
        %2182 = vmatmul.bf16.gmra.mxu0 %v1859
        %v2183 = vpop.f32.mrf.mxu0
        %v2184 = vadd.f32 %v2095, %v2183
        %v2185 = vpop.f32.mrf.mxu0
        %v2186 = vadd.f32 %v2097, %v2185
        %2187 = vmatmul.bf16.gmra.mxu0 %v1863
        %v2188 = vpop.f32.mrf.mxu0
        %v2189 = vadd.f32 %v2100, %v2188
        %v2190 = vpop.f32.mrf.mxu0
        %v2191 = vadd.f32 %v2102, %v2190
        %2192 = vmatmul.bf16.gmra.mxu0 %v1867
        %v2193 = vpop.f32.mrf.mxu0
        %v2194 = vadd.f32 %v2105, %v2193
        %v2195 = vpop.f32.mrf.mxu0
        %v2196 = vadd.f32 %v2107, %v2195
        %2197 = vmatmul.bf16.gmra.mxu0 %v1871
        %v2198 = vpop.f32.mrf.mxu0
        %v2199 = vadd.f32 %v2110, %v2198
        %v2200 = vpop.f32.mrf.mxu0
        %v2201 = vadd.f32 %v2112, %v2200
        %2202 = vmatmul.bf16.gmra.mxu0 %v1875
        %v2203 = vpop.f32.mrf.mxu0
        %v2204 = vadd.f32 %v2115, %v2203
        %v2205 = vpop.f32.mrf.mxu0
        %v2206 = vadd.f32 %v2117, %v2205
        %2207 = vdwg.mxu0
        %2208 = vmatpush.bf16.msra.mxu0 1065369472
        %2209 = vmatpush.bf16.msra.mxu0 1065369472
        %2210 = vmatpush.bf16.msra.mxu0 1065369472
        %2211 = vmatpush.bf16.msra.mxu0 1065369472
        %2212 = vmatpush.bf16.msra.mxu0 1065369472
        %2213 = vmatpush.bf16.msra.mxu0 1065369472
        %2214 = vmatpush.bf16.msra.mxu0 1065369472
        %2215 = vmatpush.bf16.msra.mxu0 1065369472
        %2216 = vmatmul.bf16.gmra.mxu0 %v1816
        %v2217 = vpop.f32.mrf.mxu0
        %v2218 = vadd.f32 %v2129, %v2217
        %v2219 = vpop.f32.mrf.mxu0
        %v2220 = vadd.f32 %v2131, %v2219
        %2221 = vmatmul.bf16.gmra.mxu0 %v1820
        %v2222 = vpop.f32.mrf.mxu0
        %v2223 = vadd.f32 %v2134, %v2222
        %v2224 = vpop.f32.mrf.mxu0
        %v2225 = vadd.f32 %v2136, %v2224
        %2226 = vmatmul.bf16.gmra.mxu0 %v1824
        %v2227 = vpop.f32.mrf.mxu0
        %v2228 = vadd.f32 %v2139, %v2227
        %v2229 = vpop.f32.mrf.mxu0
        %v2230 = vadd.f32 %v2141, %v2229
        %2231 = vmatmul.bf16.gmra.mxu0 %v1828
        %v2232 = vpop.f32.mrf.mxu0
        %v2233 = vadd.f32 %v2144, %v2232
        %v2234 = vpop.f32.mrf.mxu0
        %v2235 = vadd.f32 %v2146, %v2234
        %2236 = vmatmul.bf16.gmra.mxu0 %v1832
        %v2237 = vpop.f32.mrf.mxu0
        %v2238 = vadd.f32 %v2149, %v2237
        %v2239 = vpop.f32.mrf.mxu0
        %v2240 = vadd.f32 %v2151, %v2239
        %2241 = vmatmul.bf16.gmra.mxu0 %v1836
        %v2242 = vpop.f32.mrf.mxu0
        %v2243 = vadd.f32 %v2154, %v2242
        %v2244 = vpop.f32.mrf.mxu0
        %v2245 = vadd.f32 %v2156, %v2244
        %2246 = vmatmul.bf16.gmra.mxu0 %v1840
        %v2247 = vpop.f32.mrf.mxu0
        %v2248 = vadd.f32 %v2159, %v2247
        %v2249 = vpop.f32.mrf.mxu0
        %v2250 = vadd.f32 %v2161, %v2249
        %2251 = vmatmul.bf16.gmra.mxu0 %v1844
        %v2252 = vpop.f32.mrf.mxu0
        %v2253 = vadd.f32 %v2164, %v2252
        %v2254 = vpop.f32.mrf.mxu0
        %v2255 = vadd.f32 %v2166, %v2254
        %2256 = vmatmul.bf16.gmra.mxu0 %v1848
        %v2257 = vpop.f32.mrf.mxu0
        %v2258 = vadd.f32 %v2169, %v2257
        %v2259 = vpop.f32.mrf.mxu0
        %v2260 = vadd.f32 %v2171, %v2259
        %2261 = vmatmul.bf16.gmra.mxu0 %v1852
        %v2262 = vpop.f32.mrf.mxu0
        %v2263 = vadd.f32 %v2174, %v2262
        %v2264 = vpop.f32.mrf.mxu0
        %v2265 = vadd.f32 %v2176, %v2264
        %2266 = vmatmul.bf16.gmra.mxu0 %v1856
        %v2267 = vpop.f32.mrf.mxu0
        %v2268 = vadd.f32 %v2179, %v2267
        %v2269 = vpop.f32.mrf.mxu0
        %v2270 = vadd.f32 %v2181, %v2269
        %2271 = vmatmul.bf16.gmra.mxu0 %v1860
        %v2272 = vpop.f32.mrf.mxu0
        %v2273 = vadd.f32 %v2184, %v2272
        %v2274 = vpop.f32.mrf.mxu0
        %v2275 = vadd.f32 %v2186, %v2274
        %2276 = vmatmul.bf16.gmra.mxu0 %v1864
        %v2277 = vpop.f32.mrf.mxu0
        %v2278 = vadd.f32 %v2189, %v2277
        %v2279 = vpop.f32.mrf.mxu0
        %v2280 = vadd.f32 %v2191, %v2279
        %2281 = vmatmul.bf16.gmra.mxu0 %v1868
        %v2282 = vpop.f32.mrf.mxu0
        %v2283 = vadd.f32 %v2194, %v2282
        %v2284 = vpop.f32.mrf.mxu0
        %v2285 = vadd.f32 %v2196, %v2284
        %2286 = vmatmul.bf16.gmra.mxu0 %v1872
        %v2287 = vpop.f32.mrf.mxu0
        %v2288 = vadd.f32 %v2199, %v2287
        %v2289 = vpop.f32.mrf.mxu0
        %v2290 = vadd.f32 %v2201, %v2289
        %2291 = vmatmul.bf16.gmra.mxu0 %v1876
        %v2292 = vpop.f32.mrf.mxu0
        %v2293 = vadd.f32 %v2204, %v2292
        %v2294 = vpop.f32.mrf.mxu0
        %v2295 = vadd.f32 %v2206, %v2294
        %2296 = vdwg.mxu0
        %v2361 = vunpack.c.l.b16 %v1557
        %v2362 = vunpack.c.h.b16 %v1557
        %v2363 = vunpack.c.l.b16 %v1558
        %v2364 = vunpack.c.h.b16 %v1558
        %v2365 = vunpack.c.l.b16 %v1559
        %v2366 = vunpack.c.h.b16 %v1559
        %v2367 = vunpack.c.l.b16 %v1560
        %v2368 = vunpack.c.h.b16 %v1560
        %v2369 = vunpack.c.l.b16 %v1561
        %v2370 = vunpack.c.h.b16 %v1561
        %v2371 = vunpack.c.l.b16 %v1562
        %v2372 = vunpack.c.h.b16 %v1562
        %v2373 = vunpack.c.l.b16 %v1563
        %v2374 = vunpack.c.h.b16 %v1563
        %v2375 = vunpack.c.l.b16 %v1564
        %v2376 = vunpack.c.h.b16 %v1564
        %v2377 = vunpack.c.l.b16 %v1565
        %v2378 = vunpack.c.h.b16 %v1565
        %v2379 = vunpack.c.l.b16 %v1566
        %v2380 = vunpack.c.h.b16 %v1566
        %v2381 = vunpack.c.l.b16 %v1567
        %v2382 = vunpack.c.h.b16 %v1567
        %v2383 = vunpack.c.l.b16 %v1568
        %v2384 = vunpack.c.h.b16 %v1568
        %v2385 = vunpack.c.l.b16 %v1569
        %v2386 = vunpack.c.h.b16 %v1569
        %v2387 = vunpack.c.l.b16 %v1570
        %v2388 = vunpack.c.h.b16 %v1570
        %v2389 = vunpack.c.l.b16 %v1571
        %v2390 = vunpack.c.h.b16 %v1571
        %v2391 = vunpack.c.l.b16 %v1572
        %v2392 = vunpack.c.h.b16 %v1572
        %v2393 = vunpack.c.l.b16 %v1573
        %v2394 = vunpack.c.h.b16 %v1573
        %v2395 = vunpack.c.l.b16 %v1574
        %v2396 = vunpack.c.h.b16 %v1574
        %v2397 = vunpack.c.l.b16 %v1575
        %v2398 = vunpack.c.h.b16 %v1575
        %v2399 = vunpack.c.l.b16 %v1576
        %v2400 = vunpack.c.h.b16 %v1576
        %v2401 = vunpack.c.l.b16 %v1577
        %v2402 = vunpack.c.h.b16 %v1577
        %v2403 = vunpack.c.l.b16 %v1578
        %v2404 = vunpack.c.h.b16 %v1578
        %v2405 = vunpack.c.l.b16 %v1579
        %v2406 = vunpack.c.h.b16 %v1579
        %v2407 = vunpack.c.l.b16 %v1580
        %v2408 = vunpack.c.h.b16 %v1580
        %v2409 = vunpack.c.l.b16 %v1581
        %v2410 = vunpack.c.h.b16 %v1581
        %v2411 = vunpack.c.l.b16 %v1582
        %v2412 = vunpack.c.h.b16 %v1582
        %v2413 = vunpack.c.l.b16 %v1583
        %v2414 = vunpack.c.h.b16 %v1583
        %v2415 = vunpack.c.l.b16 %v1584
        %v2416 = vunpack.c.h.b16 %v1584
        %v2417 = vunpack.c.l.b16 %v1585
        %v2418 = vunpack.c.h.b16 %v1585
        %v2419 = vunpack.c.l.b16 %v1586
        %v2420 = vunpack.c.h.b16 %v1586
        %v2421 = vunpack.c.l.b16 %v1587
        %v2422 = vunpack.c.h.b16 %v1587
        %v2423 = vunpack.c.l.b16 %v1588
        %v2424 = vunpack.c.h.b16 %v1588
        %v2425 = vunpack.c.l.b16 %v1589
        %v2426 = vunpack.c.h.b16 %v1589
        %v2427 = vunpack.c.l.b16 %v1590
        %v2428 = vunpack.c.h.b16 %v1590
        %v2429 = vunpack.c.l.b16 %v1591
        %v2430 = vunpack.c.h.b16 %v1591
        %v2431 = vunpack.c.l.b16 %v1592
        %v2432 = vunpack.c.h.b16 %v1592
        %v2433 = vunpack.c.l.b16 %v1593
        %v2434 = vunpack.c.h.b16 %v1593
        %v2435 = vunpack.c.l.b16 %v1594
        %v2436 = vunpack.c.h.b16 %v1594
        %v2437 = vunpack.c.l.b16 %v1595
        %v2438 = vunpack.c.h.b16 %v1595
        %v2439 = vunpack.c.l.b16 %v1596
        %v2440 = vunpack.c.h.b16 %v1596
        %v2441 = vunpack.c.l.b16 %v1597
        %v2442 = vunpack.c.h.b16 %v1597
        %v2443 = vunpack.c.l.b16 %v1598
        %v2444 = vunpack.c.h.b16 %v1598
        %v2445 = vunpack.c.l.b16 %v1599
        %v2446 = vunpack.c.h.b16 %v1599
        %v2447 = vunpack.c.l.b16 %v1600
        %v2448 = vunpack.c.h.b16 %v1600
        %v2449 = vunpack.c.l.b16 %v1601
        %v2450 = vunpack.c.h.b16 %v1601
        %v2451 = vunpack.c.l.b16 %v1602
        %v2452 = vunpack.c.h.b16 %v1602
        %v2453 = vunpack.c.l.b16 %v1603
        %v2454 = vunpack.c.h.b16 %v1603
        %v2455 = vunpack.c.l.b16 %v1604
        %v2456 = vunpack.c.h.b16 %v1604
        %v2457 = vunpack.c.l.b16 %v1605
        %v2458 = vunpack.c.h.b16 %v1605
        %v2459 = vunpack.c.l.b16 %v1606
        %v2460 = vunpack.c.h.b16 %v1606
        %v2461 = vunpack.c.l.b16 %v1607
        %v2462 = vunpack.c.h.b16 %v1607
        %v2463 = vunpack.c.l.b16 %v1608
        %v2464 = vunpack.c.h.b16 %v1608
        %v2465 = vunpack.c.l.b16 %v1609
        %v2466 = vunpack.c.h.b16 %v1609
        %v2467 = vunpack.c.l.b16 %v1610
        %v2468 = vunpack.c.h.b16 %v1610
        %v2469 = vunpack.c.l.b16 %v1611
        %v2470 = vunpack.c.h.b16 %v1611
        %v2471 = vunpack.c.l.b16 %v1612
        %v2472 = vunpack.c.h.b16 %v1612
        %v2473 = vunpack.c.l.b16 %v1613
        %v2474 = vunpack.c.h.b16 %v1613
        %v2475 = vunpack.c.l.b16 %v1614
        %v2476 = vunpack.c.h.b16 %v1614
        %v2477 = vunpack.c.l.b16 %v1615
        %v2478 = vunpack.c.h.b16 %v1615
        %v2479 = vunpack.c.l.b16 %v1616
        %v2480 = vunpack.c.h.b16 %v1616
        %v2481 = vunpack.c.l.b16 %v1617
        %v2482 = vunpack.c.h.b16 %v1617
        %v2483 = vunpack.c.l.b16 %v1618
        %v2484 = vunpack.c.h.b16 %v1618
        %v2485 = vunpack.c.l.b16 %v1619
        %v2486 = vunpack.c.h.b16 %v1619
        %v2487 = vunpack.c.l.b16 %v1620
        %v2488 = vunpack.c.h.b16 %v1620
        %v2489 = vpack.c.b16 %v2363, %v2361
        %v2490 = vpack.c.b16 %v2364, %v2362
        %v2491 = vpack.c.b16 %v2367, %v2365
        %v2492 = vpack.c.b16 %v2368, %v2366
        %v2493 = vpack.c.b16 %v2371, %v2369
        %v2494 = vpack.c.b16 %v2372, %v2370
        %v2495 = vpack.c.b16 %v2375, %v2373
        %v2496 = vpack.c.b16 %v2376, %v2374
        %v2497 = vpack.c.b16 %v2379, %v2377
        %v2498 = vpack.c.b16 %v2380, %v2378
        %v2499 = vpack.c.b16 %v2383, %v2381
        %v2500 = vpack.c.b16 %v2384, %v2382
        %v2501 = vpack.c.b16 %v2387, %v2385
        %v2502 = vpack.c.b16 %v2388, %v2386
        %v2503 = vpack.c.b16 %v2391, %v2389
        %v2504 = vpack.c.b16 %v2392, %v2390
        %v2505 = vpack.c.b16 %v2395, %v2393
        %v2506 = vpack.c.b16 %v2396, %v2394
        %v2507 = vpack.c.b16 %v2399, %v2397
        %v2508 = vpack.c.b16 %v2400, %v2398
        %v2509 = vpack.c.b16 %v2403, %v2401
        %v2510 = vpack.c.b16 %v2404, %v2402
        %v2511 = vpack.c.b16 %v2407, %v2405
        %v2512 = vpack.c.b16 %v2408, %v2406
        %v2513 = vpack.c.b16 %v2411, %v2409
        %v2514 = vpack.c.b16 %v2412, %v2410
        %v2515 = vpack.c.b16 %v2415, %v2413
        %v2516 = vpack.c.b16 %v2416, %v2414
        %v2517 = vpack.c.b16 %v2419, %v2417
        %v2518 = vpack.c.b16 %v2420, %v2418
        %v2519 = vpack.c.b16 %v2423, %v2421
        %v2520 = vpack.c.b16 %v2424, %v2422
        %v2521 = vpack.c.b16 %v2427, %v2425
        %v2522 = vpack.c.b16 %v2428, %v2426
        %v2523 = vpack.c.b16 %v2431, %v2429
        %v2524 = vpack.c.b16 %v2432, %v2430
        %v2525 = vpack.c.b16 %v2435, %v2433
        %v2526 = vpack.c.b16 %v2436, %v2434
        %v2527 = vpack.c.b16 %v2439, %v2437
        %v2528 = vpack.c.b16 %v2440, %v2438
        %v2529 = vpack.c.b16 %v2443, %v2441
        %v2530 = vpack.c.b16 %v2444, %v2442
        %v2531 = vpack.c.b16 %v2447, %v2445
        %v2532 = vpack.c.b16 %v2448, %v2446
        %v2533 = vpack.c.b16 %v2451, %v2449
        %v2534 = vpack.c.b16 %v2452, %v2450
        %v2535 = vpack.c.b16 %v2455, %v2453
        %v2536 = vpack.c.b16 %v2456, %v2454
        %v2537 = vpack.c.b16 %v2459, %v2457
        %v2538 = vpack.c.b16 %v2460, %v2458
        %v2539 = vpack.c.b16 %v2463, %v2461
        %v2540 = vpack.c.b16 %v2464, %v2462
        %v2541 = vpack.c.b16 %v2467, %v2465
        %v2542 = vpack.c.b16 %v2468, %v2466
        %v2543 = vpack.c.b16 %v2471, %v2469
        %v2544 = vpack.c.b16 %v2472, %v2470
        %v2545 = vpack.c.b16 %v2475, %v2473
        %v2546 = vpack.c.b16 %v2476, %v2474
        %v2547 = vpack.c.b16 %v2479, %v2477
        %v2548 = vpack.c.b16 %v2480, %v2478
        %v2549 = vpack.c.b16 %v2483, %v2481
        %v2550 = vpack.c.b16 %v2484, %v2482
        %v2551 = vpack.c.b16 %v2487, %v2485
        %v2552 = vpack.c.b16 %v2488, %v2486
        %2617 = vxpose.binary.xlu0.c.b16.start [1/16] %v2490, %v2489, 128
        %2618 = vxpose.binary.xlu0.c.b16.cont [2/16] %v2492, %v2491, 128
        %2619 = vxpose.binary.xlu0.c.b16.cont [3/16] %v2494, %v2493, 128
        %2620 = vxpose.binary.xlu0.c.b16.cont [4/16] %v2496, %v2495, 128
        %2621 = vxpose.binary.xlu0.c.b16.cont [5/16] %v2498, %v2497, 128
        %2622 = vxpose.binary.xlu0.c.b16.cont [6/16] %v2500, %v2499, 128
        %2623 = vxpose.binary.xlu0.c.b16.cont [7/16] %v2502, %v2501, 128
        %2624 = vxpose.binary.xlu0.c.b16.end [8/16] %v2504, %v2503, 128
        %v2625 = vpop.trf.xlu0
        %v2626 = vpop.trf.xlu0
        %v2627 = vpop.trf.xlu0
        %v2628 = vpop.trf.xlu0
        %v2629 = vpop.trf.xlu0
        %v2630 = vpop.trf.xlu0
        %v2631 = vpop.trf.xlu0
        %v2632 = vpop.trf.xlu0
        %v2633 = vpop.trf.xlu0
        %v2634 = vpop.trf.xlu0
        %v2635 = vpop.trf.xlu0
        %v2636 = vpop.trf.xlu0
        %v2637 = vpop.trf.xlu0
        %v2638 = vpop.trf.xlu0
        %v2639 = vpop.trf.xlu0
        %v2640 = vpop.trf.xlu0
        %2641 = vxpose.binary.xlu0.c.b16.start [1/16] %v2506, %v2505, 128
        %2642 = vxpose.binary.xlu0.c.b16.cont [2/16] %v2508, %v2507, 128
        %2643 = vxpose.binary.xlu0.c.b16.cont [3/16] %v2510, %v2509, 128
        %2644 = vxpose.binary.xlu0.c.b16.cont [4/16] %v2512, %v2511, 128
        %2645 = vxpose.binary.xlu0.c.b16.cont [5/16] %v2514, %v2513, 128
        %2646 = vxpose.binary.xlu0.c.b16.cont [6/16] %v2516, %v2515, 128
        %2647 = vxpose.binary.xlu0.c.b16.cont [7/16] %v2518, %v2517, 128
        %2648 = vxpose.binary.xlu0.c.b16.end [8/16] %v2520, %v2519, 128
        %v2649 = vpop.trf.xlu0
        %v2650 = vpop.trf.xlu0
        %v2651 = vpop.trf.xlu0
        %v2652 = vpop.trf.xlu0
        %v2653 = vpop.trf.xlu0
        %v2654 = vpop.trf.xlu0
        %v2655 = vpop.trf.xlu0
        %v2656 = vpop.trf.xlu0
        %v2657 = vpop.trf.xlu0
        %v2658 = vpop.trf.xlu0
        %v2659 = vpop.trf.xlu0
        %v2660 = vpop.trf.xlu0
        %v2661 = vpop.trf.xlu0
        %v2662 = vpop.trf.xlu0
        %v2663 = vpop.trf.xlu0
        %v2664 = vpop.trf.xlu0
        %2665 = vxpose.binary.xlu0.c.b16.start [1/16] %v2522, %v2521, 128
        %2666 = vxpose.binary.xlu0.c.b16.cont [2/16] %v2524, %v2523, 128
        %2667 = vxpose.binary.xlu0.c.b16.cont [3/16] %v2526, %v2525, 128
        %2668 = vxpose.binary.xlu0.c.b16.cont [4/16] %v2528, %v2527, 128
        %2669 = vxpose.binary.xlu0.c.b16.cont [5/16] %v2530, %v2529, 128
        %2670 = vxpose.binary.xlu0.c.b16.cont [6/16] %v2532, %v2531, 128
        %2671 = vxpose.binary.xlu0.c.b16.cont [7/16] %v2534, %v2533, 128
        %2672 = vxpose.binary.xlu0.c.b16.end [8/16] %v2536, %v2535, 128
        %v2673 = vpop.trf.xlu0
        %v2674 = vpop.trf.xlu0
        %v2675 = vpop.trf.xlu0
        %v2676 = vpop.trf.xlu0
        %v2677 = vpop.trf.xlu0
        %v2678 = vpop.trf.xlu0
        %v2679 = vpop.trf.xlu0
        %v2680 = vpop.trf.xlu0
        %v2681 = vpop.trf.xlu0
        %v2682 = vpop.trf.xlu0
        %v2683 = vpop.trf.xlu0
        %v2684 = vpop.trf.xlu0
        %v2685 = vpop.trf.xlu0
        %v2686 = vpop.trf.xlu0
        %v2687 = vpop.trf.xlu0
        %v2688 = vpop.trf.xlu0
        %2689 = vxpose.binary.xlu0.c.b16.start [1/16] %v2538, %v2537, 128
        %2690 = vxpose.binary.xlu0.c.b16.cont [2/16] %v2540, %v2539, 128
        %2691 = vxpose.binary.xlu0.c.b16.cont [3/16] %v2542, %v2541, 128
        %2692 = vxpose.binary.xlu0.c.b16.cont [4/16] %v2544, %v2543, 128
        %2693 = vxpose.binary.xlu0.c.b16.cont [5/16] %v2546, %v2545, 128
        %2694 = vxpose.binary.xlu0.c.b16.cont [6/16] %v2548, %v2547, 128
        %2695 = vxpose.binary.xlu0.c.b16.cont [7/16] %v2550, %v2549, 128
        %2696 = vxpose.binary.xlu0.c.b16.end [8/16] %v2552, %v2551, 128
        %v2697 = vpop.trf.xlu0
        %v2698 = vpop.trf.xlu0
        %v2699 = vpop.trf.xlu0
        %v2700 = vpop.trf.xlu0
        %v2701 = vpop.trf.xlu0
        %v2702 = vpop.trf.xlu0
        %v2703 = vpop.trf.xlu0
        %v2704 = vpop.trf.xlu0
        %v2705 = vpop.trf.xlu0
        %v2706 = vpop.trf.xlu0
        %v2707 = vpop.trf.xlu0
        %v2708 = vpop.trf.xlu0
        %v2709 = vpop.trf.xlu0
        %v2710 = vpop.trf.xlu0
        %v2711 = vpop.trf.xlu0
        %v2712 = vpop.trf.xlu0
        %2713 = vmatpush.bf16.msra.mxu0 1065369472
        %2714 = vmatpush.bf16.msra.mxu0 1065369472
        %2715 = vmatpush.bf16.msra.mxu0 1065369472
        %2716 = vmatpush.bf16.msra.mxu0 1065369472
        %2717 = vmatpush.bf16.msra.mxu0 1065369472
        %2718 = vmatpush.bf16.msra.mxu0 1065369472
        %2719 = vmatpush.bf16.msra.mxu0 1065369472
        %2720 = vmatpush.bf16.msra.mxu0 1065369472
        %2721 = vmatmul.bf16.gmra.mxu0 %v2625
        %v2722 = vpop.f32.mrf.mxu0
        %v2723 = vadd.f32 0.0, %v2722
        %v2724 = vpop.f32.mrf.mxu0
        %v2725 = vadd.f32 0.0, %v2724
        %2726 = vmatmul.bf16.gmra.mxu0 %v2627
        %v2727 = vpop.f32.mrf.mxu0
        %v2728 = vadd.f32 0.0, %v2727
        %v2729 = vpop.f32.mrf.mxu0
        %v2730 = vadd.f32 0.0, %v2729
        %2731 = vmatmul.bf16.gmra.mxu0 %v2629
        %v2732 = vpop.f32.mrf.mxu0
        %v2733 = vadd.f32 0.0, %v2732
        %v2734 = vpop.f32.mrf.mxu0
        %v2735 = vadd.f32 0.0, %v2734
        %2736 = vmatmul.bf16.gmra.mxu0 %v2631
        %v2737 = vpop.f32.mrf.mxu0
        %v2738 = vadd.f32 0.0, %v2737
        %v2739 = vpop.f32.mrf.mxu0
        %v2740 = vadd.f32 0.0, %v2739
        %2741 = vmatmul.bf16.gmra.mxu0 %v2633
        %v2742 = vpop.f32.mrf.mxu0
        %v2743 = vadd.f32 0.0, %v2742
        %v2744 = vpop.f32.mrf.mxu0
        %v2745 = vadd.f32 0.0, %v2744
        %2746 = vmatmul.bf16.gmra.mxu0 %v2635
        %v2747 = vpop.f32.mrf.mxu0
        %v2748 = vadd.f32 0.0, %v2747
        %v2749 = vpop.f32.mrf.mxu0
        %v2750 = vadd.f32 0.0, %v2749
        %2751 = vmatmul.bf16.gmra.mxu0 %v2637
        %v2752 = vpop.f32.mrf.mxu0
        %v2753 = vadd.f32 0.0, %v2752
        %v2754 = vpop.f32.mrf.mxu0
        %v2755 = vadd.f32 0.0, %v2754
        %2756 = vmatmul.bf16.gmra.mxu0 %v2639
        %v2757 = vpop.f32.mrf.mxu0
        %v2758 = vadd.f32 0.0, %v2757
        %v2759 = vpop.f32.mrf.mxu0
        %v2760 = vadd.f32 0.0, %v2759
        %2761 = vmatmul.bf16.gmra.mxu0 %v2626
        %v2762 = vpop.f32.mrf.mxu0
        %v2763 = vadd.f32 0.0, %v2762
        %v2764 = vpop.f32.mrf.mxu0
        %v2765 = vadd.f32 0.0, %v2764
        %2766 = vmatmul.bf16.gmra.mxu0 %v2628
        %v2767 = vpop.f32.mrf.mxu0
        %v2768 = vadd.f32 0.0, %v2767
        %v2769 = vpop.f32.mrf.mxu0
        %v2770 = vadd.f32 0.0, %v2769
        %2771 = vmatmul.bf16.gmra.mxu0 %v2630
        %v2772 = vpop.f32.mrf.mxu0
        %v2773 = vadd.f32 0.0, %v2772
        %v2774 = vpop.f32.mrf.mxu0
        %v2775 = vadd.f32 0.0, %v2774
        %2776 = vmatmul.bf16.gmra.mxu0 %v2632
        %v2777 = vpop.f32.mrf.mxu0
        %v2778 = vadd.f32 0.0, %v2777
        %v2779 = vpop.f32.mrf.mxu0
        %v2780 = vadd.f32 0.0, %v2779
        %2781 = vmatmul.bf16.gmra.mxu0 %v2634
        %v2782 = vpop.f32.mrf.mxu0
        %v2783 = vadd.f32 0.0, %v2782
        %v2784 = vpop.f32.mrf.mxu0
        %v2785 = vadd.f32 0.0, %v2784
        %2786 = vmatmul.bf16.gmra.mxu0 %v2636
        %v2787 = vpop.f32.mrf.mxu0
        %v2788 = vadd.f32 0.0, %v2787
        %v2789 = vpop.f32.mrf.mxu0
        %v2790 = vadd.f32 0.0, %v2789
        %2791 = vmatmul.bf16.gmra.mxu0 %v2638
        %v2792 = vpop.f32.mrf.mxu0
        %v2793 = vadd.f32 0.0, %v2792
        %v2794 = vpop.f32.mrf.mxu0
        %v2795 = vadd.f32 0.0, %v2794
        %2796 = vmatmul.bf16.gmra.mxu0 %v2640
        %v2797 = vpop.f32.mrf.mxu0
        %v2798 = vadd.f32 0.0, %v2797
        %v2799 = vpop.f32.mrf.mxu0
        %v2800 = vadd.f32 0.0, %v2799
        %2801 = vdwg.mxu0
        %2802 = vmatpush.bf16.msra.mxu0 1065369472
        %2803 = vmatpush.bf16.msra.mxu0 1065369472
        %2804 = vmatpush.bf16.msra.mxu0 1065369472
        %2805 = vmatpush.bf16.msra.mxu0 1065369472
        %2806 = vmatpush.bf16.msra.mxu0 1065369472
        %2807 = vmatpush.bf16.msra.mxu0 1065369472
        %2808 = vmatpush.bf16.msra.mxu0 1065369472
        %2809 = vmatpush.bf16.msra.mxu0 1065369472
        %2810 = vmatmul.bf16.gmra.mxu0 %v2649
        %v2811 = vpop.f32.mrf.mxu0
        %v2812 = vadd.f32 %v2723, %v2811
        %v2813 = vpop.f32.mrf.mxu0
        %v2814 = vadd.f32 %v2725, %v2813
        %2815 = vmatmul.bf16.gmra.mxu0 %v2651
        %v2816 = vpop.f32.mrf.mxu0
        %v2817 = vadd.f32 %v2728, %v2816
        %v2818 = vpop.f32.mrf.mxu0
        %v2819 = vadd.f32 %v2730, %v2818
        %2820 = vmatmul.bf16.gmra.mxu0 %v2653
        %v2821 = vpop.f32.mrf.mxu0
        %v2822 = vadd.f32 %v2733, %v2821
        %v2823 = vpop.f32.mrf.mxu0
        %v2824 = vadd.f32 %v2735, %v2823
        %2825 = vmatmul.bf16.gmra.mxu0 %v2655
        %v2826 = vpop.f32.mrf.mxu0
        %v2827 = vadd.f32 %v2738, %v2826
        %v2828 = vpop.f32.mrf.mxu0
        %v2829 = vadd.f32 %v2740, %v2828
        %2830 = vmatmul.bf16.gmra.mxu0 %v2657
        %v2831 = vpop.f32.mrf.mxu0
        %v2832 = vadd.f32 %v2743, %v2831
        %v2833 = vpop.f32.mrf.mxu0
        %v2834 = vadd.f32 %v2745, %v2833
        %2835 = vmatmul.bf16.gmra.mxu0 %v2659
        %v2836 = vpop.f32.mrf.mxu0
        %v2837 = vadd.f32 %v2748, %v2836
        %v2838 = vpop.f32.mrf.mxu0
        %v2839 = vadd.f32 %v2750, %v2838
        %2840 = vmatmul.bf16.gmra.mxu0 %v2661
        %v2841 = vpop.f32.mrf.mxu0
        %v2842 = vadd.f32 %v2753, %v2841
        %v2843 = vpop.f32.mrf.mxu0
        %v2844 = vadd.f32 %v2755, %v2843
        %2845 = vmatmul.bf16.gmra.mxu0 %v2663
        %v2846 = vpop.f32.mrf.mxu0
        %v2847 = vadd.f32 %v2758, %v2846
        %v2848 = vpop.f32.mrf.mxu0
        %v2849 = vadd.f32 %v2760, %v2848
        %2850 = vmatmul.bf16.gmra.mxu0 %v2650
        %v2851 = vpop.f32.mrf.mxu0
        %v2852 = vadd.f32 %v2763, %v2851
        %v2853 = vpop.f32.mrf.mxu0
        %v2854 = vadd.f32 %v2765, %v2853
        %2855 = vmatmul.bf16.gmra.mxu0 %v2652
        %v2856 = vpop.f32.mrf.mxu0
        %v2857 = vadd.f32 %v2768, %v2856
        %v2858 = vpop.f32.mrf.mxu0
        %v2859 = vadd.f32 %v2770, %v2858
        %2860 = vmatmul.bf16.gmra.mxu0 %v2654
        %v2861 = vpop.f32.mrf.mxu0
        %v2862 = vadd.f32 %v2773, %v2861
        %v2863 = vpop.f32.mrf.mxu0
        %v2864 = vadd.f32 %v2775, %v2863
        %2865 = vmatmul.bf16.gmra.mxu0 %v2656
        %v2866 = vpop.f32.mrf.mxu0
        %v2867 = vadd.f32 %v2778, %v2866
        %v2868 = vpop.f32.mrf.mxu0
        %v2869 = vadd.f32 %v2780, %v2868
        %2870 = vmatmul.bf16.gmra.mxu0 %v2658
        %v2871 = vpop.f32.mrf.mxu0
        %v2872 = vadd.f32 %v2783, %v2871
        %v2873 = vpop.f32.mrf.mxu0
        %v2874 = vadd.f32 %v2785, %v2873
        %2875 = vmatmul.bf16.gmra.mxu0 %v2660
        %v2876 = vpop.f32.mrf.mxu0
        %v2877 = vadd.f32 %v2788, %v2876
        %v2878 = vpop.f32.mrf.mxu0
        %v2879 = vadd.f32 %v2790, %v2878
        %2880 = vmatmul.bf16.gmra.mxu0 %v2662
        %v2881 = vpop.f32.mrf.mxu0
        %v2882 = vadd.f32 %v2793, %v2881
        %v2883 = vpop.f32.mrf.mxu0
        %v2884 = vadd.f32 %v2795, %v2883
        %2885 = vmatmul.bf16.gmra.mxu0 %v2664
        %v2886 = vpop.f32.mrf.mxu0
        %v2887 = vadd.f32 %v2798, %v2886
        %v2888 = vpop.f32.mrf.mxu0
        %v2889 = vadd.f32 %v2800, %v2888
        %2890 = vdwg.mxu0
        %2891 = vmatpush.bf16.msra.mxu0 1065369472
        %2892 = vmatpush.bf16.msra.mxu0 1065369472
        %2893 = vmatpush.bf16.msra.mxu0 1065369472
        %2894 = vmatpush.bf16.msra.mxu0 1065369472
        %2895 = vmatpush.bf16.msra.mxu0 1065369472
        %2896 = vmatpush.bf16.msra.mxu0 1065369472
        %2897 = vmatpush.bf16.msra.mxu0 1065369472
        %2898 = vmatpush.bf16.msra.mxu0 1065369472
        %2899 = vmatmul.bf16.gmra.mxu0 %v2673
        %v2900 = vpop.f32.mrf.mxu0
        %v2901 = vadd.f32 %v2812, %v2900
        %v2902 = vpop.f32.mrf.mxu0
        %v2903 = vadd.f32 %v2814, %v2902
        %2904 = vmatmul.bf16.gmra.mxu0 %v2675
        %v2905 = vpop.f32.mrf.mxu0
        %v2906 = vadd.f32 %v2817, %v2905
        %v2907 = vpop.f32.mrf.mxu0
        %v2908 = vadd.f32 %v2819, %v2907
        %2909 = vmatmul.bf16.gmra.mxu0 %v2677
        %v2910 = vpop.f32.mrf.mxu0
        %v2911 = vadd.f32 %v2822, %v2910
        %v2912 = vpop.f32.mrf.mxu0
        %v2913 = vadd.f32 %v2824, %v2912
        %2914 = vmatmul.bf16.gmra.mxu0 %v2679
        %v2915 = vpop.f32.mrf.mxu0
        %v2916 = vadd.f32 %v2827, %v2915
        %v2917 = vpop.f32.mrf.mxu0
        %v2918 = vadd.f32 %v2829, %v2917
        %2919 = vmatmul.bf16.gmra.mxu0 %v2681
        %v2920 = vpop.f32.mrf.mxu0
        %v2921 = vadd.f32 %v2832, %v2920
        %v2922 = vpop.f32.mrf.mxu0
        %v2923 = vadd.f32 %v2834, %v2922
        %2924 = vmatmul.bf16.gmra.mxu0 %v2683
        %v2925 = vpop.f32.mrf.mxu0
        %v2926 = vadd.f32 %v2837, %v2925
        %v2927 = vpop.f32.mrf.mxu0
        %v2928 = vadd.f32 %v2839, %v2927
        %2929 = vmatmul.bf16.gmra.mxu0 %v2685
        %v2930 = vpop.f32.mrf.mxu0
        %v2931 = vadd.f32 %v2842, %v2930
        %v2932 = vpop.f32.mrf.mxu0
        %v2933 = vadd.f32 %v2844, %v2932
        %2934 = vmatmul.bf16.gmra.mxu0 %v2687
        %v2935 = vpop.f32.mrf.mxu0
        %v2936 = vadd.f32 %v2847, %v2935
        %v2937 = vpop.f32.mrf.mxu0
        %v2938 = vadd.f32 %v2849, %v2937
        %2939 = vmatmul.bf16.gmra.mxu0 %v2674
        %v2940 = vpop.f32.mrf.mxu0
        %v2941 = vadd.f32 %v2852, %v2940
        %v2942 = vpop.f32.mrf.mxu0
        %v2943 = vadd.f32 %v2854, %v2942
        %2944 = vmatmul.bf16.gmra.mxu0 %v2676
        %v2945 = vpop.f32.mrf.mxu0
        %v2946 = vadd.f32 %v2857, %v2945
        %v2947 = vpop.f32.mrf.mxu0
        %v2948 = vadd.f32 %v2859, %v2947
        %2949 = vmatmul.bf16.gmra.mxu0 %v2678
        %v2950 = vpop.f32.mrf.mxu0
        %v2951 = vadd.f32 %v2862, %v2950
        %v2952 = vpop.f32.mrf.mxu0
        %v2953 = vadd.f32 %v2864, %v2952
        %2954 = vmatmul.bf16.gmra.mxu0 %v2680
        %v2955 = vpop.f32.mrf.mxu0
        %v2956 = vadd.f32 %v2867, %v2955
        %v2957 = vpop.f32.mrf.mxu0
        %v2958 = vadd.f32 %v2869, %v2957
        %2959 = vmatmul.bf16.gmra.mxu0 %v2682
        %v2960 = vpop.f32.mrf.mxu0
        %v2961 = vadd.f32 %v2872, %v2960
        %v2962 = vpop.f32.mrf.mxu0
        %v2963 = vadd.f32 %v2874, %v2962
        %2964 = vmatmul.bf16.gmra.mxu0 %v2684
        %v2965 = vpop.f32.mrf.mxu0
        %v2966 = vadd.f32 %v2877, %v2965
        %v2967 = vpop.f32.mrf.mxu0
        %v2968 = vadd.f32 %v2879, %v2967
        %2969 = vmatmul.bf16.gmra.mxu0 %v2686
        %v2970 = vpop.f32.mrf.mxu0
        %v2971 = vadd.f32 %v2882, %v2970
        %v2972 = vpop.f32.mrf.mxu0
        %v2973 = vadd.f32 %v2884, %v2972
        %2974 = vmatmul.bf16.gmra.mxu0 %v2688
        %v2975 = vpop.f32.mrf.mxu0
        %v2976 = vadd.f32 %v2887, %v2975
        %v2977 = vpop.f32.mrf.mxu0
        %v2978 = vadd.f32 %v2889, %v2977
        %2979 = vdwg.mxu0
        %2980 = vmatpush.bf16.msra.mxu0 1065369472
        %2981 = vmatpush.bf16.msra.mxu0 1065369472
        %2982 = vmatpush.bf16.msra.mxu0 1065369472
        %2983 = vmatpush.bf16.msra.mxu0 1065369472
        %2984 = vmatpush.bf16.msra.mxu0 1065369472
        %2985 = vmatpush.bf16.msra.mxu0 1065369472
        %2986 = vmatpush.bf16.msra.mxu0 1065369472
        %2987 = vmatpush.bf16.msra.mxu0 1065369472
        %2988 = vmatmul.bf16.gmra.mxu0 %v2697
        %v2989 = vpop.f32.mrf.mxu0
        %v2990 = vadd.f32 %v2901, %v2989
        %v2991 = vpop.f32.mrf.mxu0
        %v2992 = vadd.f32 %v2903, %v2991
        %2993 = vmatmul.bf16.gmra.mxu0 %v2699
        %v2994 = vpop.f32.mrf.mxu0
        %v2995 = vadd.f32 %v2906, %v2994
        %v2996 = vpop.f32.mrf.mxu0
        %v2997 = vadd.f32 %v2908, %v2996
        %2998 = vmatmul.bf16.gmra.mxu0 %v2701
        %v2999 = vpop.f32.mrf.mxu0
        %v3000 = vadd.f32 %v2911, %v2999
        %v3001 = vpop.f32.mrf.mxu0
        %v3002 = vadd.f32 %v2913, %v3001
        %3003 = vmatmul.bf16.gmra.mxu0 %v2703
        %v3004 = vpop.f32.mrf.mxu0
        %v3005 = vadd.f32 %v2916, %v3004
        %v3006 = vpop.f32.mrf.mxu0
        %v3007 = vadd.f32 %v2918, %v3006
        %3008 = vmatmul.bf16.gmra.mxu0 %v2705
        %v3009 = vpop.f32.mrf.mxu0
        %v3010 = vadd.f32 %v2921, %v3009
        %v3011 = vpop.f32.mrf.mxu0
        %v3012 = vadd.f32 %v2923, %v3011
        %3013 = vmatmul.bf16.gmra.mxu0 %v2707
        %v3014 = vpop.f32.mrf.mxu0
        %v3015 = vadd.f32 %v2926, %v3014
        %v3016 = vpop.f32.mrf.mxu0
        %v3017 = vadd.f32 %v2928, %v3016
        %3018 = vmatmul.bf16.gmra.mxu0 %v2709
        %v3019 = vpop.f32.mrf.mxu0
        %v3020 = vadd.f32 %v2931, %v3019
        %v3021 = vpop.f32.mrf.mxu0
        %v3022 = vadd.f32 %v2933, %v3021
        %3023 = vmatmul.bf16.gmra.mxu0 %v2711
        %v3024 = vpop.f32.mrf.mxu0
        %v3025 = vadd.f32 %v2936, %v3024
        %v3026 = vpop.f32.mrf.mxu0
        %v3027 = vadd.f32 %v2938, %v3026
        %3028 = vmatmul.bf16.gmra.mxu0 %v2698
        %v3029 = vpop.f32.mrf.mxu0
        %v3030 = vadd.f32 %v2941, %v3029
        %v3031 = vpop.f32.mrf.mxu0
        %v3032 = vadd.f32 %v2943, %v3031
        %3033 = vmatmul.bf16.gmra.mxu0 %v2700
        %v3034 = vpop.f32.mrf.mxu0
        %v3035 = vadd.f32 %v2946, %v3034
        %v3036 = vpop.f32.mrf.mxu0
        %v3037 = vadd.f32 %v2948, %v3036
        %3038 = vmatmul.bf16.gmra.mxu0 %v2702
        %v3039 = vpop.f32.mrf.mxu0
        %v3040 = vadd.f32 %v2951, %v3039
        %v3041 = vpop.f32.mrf.mxu0
        %v3042 = vadd.f32 %v2953, %v3041
        %3043 = vmatmul.bf16.gmra.mxu0 %v2704
        %v3044 = vpop.f32.mrf.mxu0
        %v3045 = vadd.f32 %v2956, %v3044
        %v3046 = vpop.f32.mrf.mxu0
        %v3047 = vadd.f32 %v2958, %v3046
        %3048 = vmatmul.bf16.gmra.mxu0 %v2706
        %v3049 = vpop.f32.mrf.mxu0
        %v3050 = vadd.f32 %v2961, %v3049
        %v3051 = vpop.f32.mrf.mxu0
        %v3052 = vadd.f32 %v2963, %v3051
        %3053 = vmatmul.bf16.gmra.mxu0 %v2708
        %v3054 = vpop.f32.mrf.mxu0
        %v3055 = vadd.f32 %v2966, %v3054
        %v3056 = vpop.f32.mrf.mxu0
        %v3057 = vadd.f32 %v2968, %v3056
        %3058 = vmatmul.bf16.gmra.mxu0 %v2710
        %v3059 = vpop.f32.mrf.mxu0
        %v3060 = vadd.f32 %v2971, %v3059
        %v3061 = vpop.f32.mrf.mxu0
        %v3062 = vadd.f32 %v2973, %v3061
        %3063 = vmatmul.bf16.gmra.mxu0 %v2712
        %v3064 = vpop.f32.mrf.mxu0
        %v3065 = vadd.f32 %v2976, %v3064
        %v3066 = vpop.f32.mrf.mxu0
        %v3067 = vadd.f32 %v2978, %v3066
        %3068 = vdwg.mxu0
        %3069 = vmatpush.bf16.msra.mxu0 %v1468
        %3070 = vmatpush.bf16.msra.mxu0 %v1467
        %3071 = vmatpush.bf16.msra.mxu0 %v1466
        %3072 = vmatpush.bf16.msra.mxu0 %v1465
        %3073 = vmatpush.bf16.msra.mxu0 %v1464
        %3074 = vmatpush.bf16.msra.mxu0 %v1463
        %3075 = vmatpush.bf16.msra.mxu0 %v1462
        %3076 = vmatpush.bf16.msra.mxu0 %v1461
        %3077 = vmatmul.bf16.gmra.mxu0 %v1813
        %v3078 = vpop.f32.mrf.mxu0
        %v3079 = vadd.f32 0.0, %v3078
        %v3080 = vpop.f32.mrf.mxu0
        %v3081 = vadd.f32 0.0, %v3080
        %3082 = vmatmul.bf16.gmra.mxu0 %v1817
        %v3083 = vpop.f32.mrf.mxu0
        %v3084 = vadd.f32 0.0, %v3083
        %v3085 = vpop.f32.mrf.mxu0
        %v3086 = vadd.f32 0.0, %v3085
        %3087 = vmatmul.bf16.gmra.mxu0 %v1821
        %v3088 = vpop.f32.mrf.mxu0
        %v3089 = vadd.f32 0.0, %v3088
        %v3090 = vpop.f32.mrf.mxu0
        %v3091 = vadd.f32 0.0, %v3090
        %3092 = vmatmul.bf16.gmra.mxu0 %v1825
        %v3093 = vpop.f32.mrf.mxu0
        %v3094 = vadd.f32 0.0, %v3093
        %v3095 = vpop.f32.mrf.mxu0
        %v3096 = vadd.f32 0.0, %v3095
        %3097 = vmatmul.bf16.gmra.mxu0 %v1829
        %v3098 = vpop.f32.mrf.mxu0
        %v3099 = vadd.f32 0.0, %v3098
        %v3100 = vpop.f32.mrf.mxu0
        %v3101 = vadd.f32 0.0, %v3100
        %3102 = vmatmul.bf16.gmra.mxu0 %v1833
        %v3103 = vpop.f32.mrf.mxu0
        %v3104 = vadd.f32 0.0, %v3103
        %v3105 = vpop.f32.mrf.mxu0
        %v3106 = vadd.f32 0.0, %v3105
        %3107 = vmatmul.bf16.gmra.mxu0 %v1837
        %v3108 = vpop.f32.mrf.mxu0
        %v3109 = vadd.f32 0.0, %v3108
        %v3110 = vpop.f32.mrf.mxu0
        %v3111 = vadd.f32 0.0, %v3110
        %3112 = vmatmul.bf16.gmra.mxu0 %v1841
        %v3113 = vpop.f32.mrf.mxu0
        %v3114 = vadd.f32 0.0, %v3113
        %v3115 = vpop.f32.mrf.mxu0
        %v3116 = vadd.f32 0.0, %v3115
        %3117 = vmatmul.bf16.gmra.mxu0 %v1845
        %v3118 = vpop.f32.mrf.mxu0
        %v3119 = vadd.f32 0.0, %v3118
        %v3120 = vpop.f32.mrf.mxu0
        %v3121 = vadd.f32 0.0, %v3120
        %3122 = vmatmul.bf16.gmra.mxu0 %v1849
        %v3123 = vpop.f32.mrf.mxu0
        %v3124 = vadd.f32 0.0, %v3123
        %v3125 = vpop.f32.mrf.mxu0
        %v3126 = vadd.f32 0.0, %v3125
        %3127 = vmatmul.bf16.gmra.mxu0 %v1853
        %v3128 = vpop.f32.mrf.mxu0
        %v3129 = vadd.f32 0.0, %v3128
        %v3130 = vpop.f32.mrf.mxu0
        %v3131 = vadd.f32 0.0, %v3130
        %3132 = vmatmul.bf16.gmra.mxu0 %v1857
        %v3133 = vpop.f32.mrf.mxu0
        %v3134 = vadd.f32 0.0, %v3133
        %v3135 = vpop.f32.mrf.mxu0
        %v3136 = vadd.f32 0.0, %v3135
        %3137 = vmatmul.bf16.gmra.mxu0 %v1861
        %v3138 = vpop.f32.mrf.mxu0
        %v3139 = vadd.f32 0.0, %v3138
        %v3140 = vpop.f32.mrf.mxu0
        %v3141 = vadd.f32 0.0, %v3140
        %3142 = vmatmul.bf16.gmra.mxu0 %v1865
        %v3143 = vpop.f32.mrf.mxu0
        %v3144 = vadd.f32 0.0, %v3143
        %v3145 = vpop.f32.mrf.mxu0
        %v3146 = vadd.f32 0.0, %v3145
        %3147 = vmatmul.bf16.gmra.mxu0 %v1869
        %v3148 = vpop.f32.mrf.mxu0
        %v3149 = vadd.f32 0.0, %v3148
        %v3150 = vpop.f32.mrf.mxu0
        %v3151 = vadd.f32 0.0, %v3150
        %3152 = vmatmul.bf16.gmra.mxu0 %v1873
        %v3153 = vpop.f32.mrf.mxu0
        %v3154 = vadd.f32 0.0, %v3153
        %v3155 = vpop.f32.mrf.mxu0
        %v3156 = vadd.f32 0.0, %v3155
        %3157 = vdwg.mxu0
        %3158 = vmatpush.bf16.msra.mxu0 %v1476
        %3159 = vmatpush.bf16.msra.mxu0 %v1475
        %3160 = vmatpush.bf16.msra.mxu0 %v1474
        %3161 = vmatpush.bf16.msra.mxu0 %v1473
        %3162 = vmatpush.bf16.msra.mxu0 %v1472
        %3163 = vmatpush.bf16.msra.mxu0 %v1471
        %3164 = vmatpush.bf16.msra.mxu0 %v1470
        %3165 = vmatpush.bf16.msra.mxu0 %v1469
        %3166 = vmatmul.bf16.gmra.mxu0 %v1814
        %v3167 = vpop.f32.mrf.mxu0
        %v3168 = vadd.f32 %v3079, %v3167
        %v3169 = vpop.f32.mrf.mxu0
        %v3170 = vadd.f32 %v3081, %v3169
        %3171 = vmatmul.bf16.gmra.mxu0 %v1818
        %v3172 = vpop.f32.mrf.mxu0
        %v3173 = vadd.f32 %v3084, %v3172
        %v3174 = vpop.f32.mrf.mxu0
        %v3175 = vadd.f32 %v3086, %v3174
        %3176 = vmatmul.bf16.gmra.mxu0 %v1822
        %v3177 = vpop.f32.mrf.mxu0
        %v3178 = vadd.f32 %v3089, %v3177
        %v3179 = vpop.f32.mrf.mxu0
        %v3180 = vadd.f32 %v3091, %v3179
        %3181 = vmatmul.bf16.gmra.mxu0 %v1826
        %v3182 = vpop.f32.mrf.mxu0
        %v3183 = vadd.f32 %v3094, %v3182
        %v3184 = vpop.f32.mrf.mxu0
        %v3185 = vadd.f32 %v3096, %v3184
        %3186 = vmatmul.bf16.gmra.mxu0 %v1830
        %v3187 = vpop.f32.mrf.mxu0
        %v3188 = vadd.f32 %v3099, %v3187
        %v3189 = vpop.f32.mrf.mxu0
        %v3190 = vadd.f32 %v3101, %v3189
        %3191 = vmatmul.bf16.gmra.mxu0 %v1834
        %v3192 = vpop.f32.mrf.mxu0
        %v3193 = vadd.f32 %v3104, %v3192
        %v3194 = vpop.f32.mrf.mxu0
        %v3195 = vadd.f32 %v3106, %v3194
        %3196 = vmatmul.bf16.gmra.mxu0 %v1838
        %v3197 = vpop.f32.mrf.mxu0
        %v3198 = vadd.f32 %v3109, %v3197
        %v3199 = vpop.f32.mrf.mxu0
        %v3200 = vadd.f32 %v3111, %v3199
        %3201 = vmatmul.bf16.gmra.mxu0 %v1842
        %v3202 = vpop.f32.mrf.mxu0
        %v3203 = vadd.f32 %v3114, %v3202
        %v3204 = vpop.f32.mrf.mxu0
        %v3205 = vadd.f32 %v3116, %v3204
        %3206 = vmatmul.bf16.gmra.mxu0 %v1846
        %v3207 = vpop.f32.mrf.mxu0
        %v3208 = vadd.f32 %v3119, %v3207
        %v3209 = vpop.f32.mrf.mxu0
        %v3210 = vadd.f32 %v3121, %v3209
        %3211 = vmatmul.bf16.gmra.mxu0 %v1850
        %v3212 = vpop.f32.mrf.mxu0
        %v3213 = vadd.f32 %v3124, %v3212
        %v3214 = vpop.f32.mrf.mxu0
        %v3215 = vadd.f32 %v3126, %v3214
        %3216 = vmatmul.bf16.gmra.mxu0 %v1854
        %v3217 = vpop.f32.mrf.mxu0
        %v3218 = vadd.f32 %v3129, %v3217
        %v3219 = vpop.f32.mrf.mxu0
        %v3220 = vadd.f32 %v3131, %v3219
        %3221 = vmatmul.bf16.gmra.mxu0 %v1858
        %v3222 = vpop.f32.mrf.mxu0
        %v3223 = vadd.f32 %v3134, %v3222
        %v3224 = vpop.f32.mrf.mxu0
        %v3225 = vadd.f32 %v3136, %v3224
        %3226 = vmatmul.bf16.gmra.mxu0 %v1862
        %v3227 = vpop.f32.mrf.mxu0
        %v3228 = vadd.f32 %v3139, %v3227
        %v3229 = vpop.f32.mrf.mxu0
        %v3230 = vadd.f32 %v3141, %v3229
        %3231 = vmatmul.bf16.gmra.mxu0 %v1866
        %v3232 = vpop.f32.mrf.mxu0
        %v3233 = vadd.f32 %v3144, %v3232
        %v3234 = vpop.f32.mrf.mxu0
        %v3235 = vadd.f32 %v3146, %v3234
        %3236 = vmatmul.bf16.gmra.mxu0 %v1870
        %v3237 = vpop.f32.mrf.mxu0
        %v3238 = vadd.f32 %v3149, %v3237
        %v3239 = vpop.f32.mrf.mxu0
        %v3240 = vadd.f32 %v3151, %v3239
        %3241 = vmatmul.bf16.gmra.mxu0 %v1874
        %v3242 = vpop.f32.mrf.mxu0
        %v3243 = vadd.f32 %v3154, %v3242
        %v3244 = vpop.f32.mrf.mxu0
        %v3245 = vadd.f32 %v3156, %v3244
        %3246 = vdwg.mxu0
        %3247 = vmatpush.bf16.msra.mxu0 %v1484
        %3248 = vmatpush.bf16.msra.mxu0 %v1483
        %3249 = vmatpush.bf16.msra.mxu0 %v1482
        %3250 = vmatpush.bf16.msra.mxu0 %v1481
        %3251 = vmatpush.bf16.msra.mxu0 %v1480
        %3252 = vmatpush.bf16.msra.mxu0 %v1479
        %3253 = vmatpush.bf16.msra.mxu0 %v1478
        %3254 = vmatpush.bf16.msra.mxu0 %v1477
        %3255 = vmatmul.bf16.gmra.mxu0 %v1815
        %v3256 = vpop.f32.mrf.mxu0
        %v3257 = vadd.f32 %v3168, %v3256
        %v3258 = vpop.f32.mrf.mxu0
        %v3259 = vadd.f32 %v3170, %v3258
        %3260 = vmatmul.bf16.gmra.mxu0 %v1819
        %v3261 = vpop.f32.mrf.mxu0
        %v3262 = vadd.f32 %v3173, %v3261
        %v3263 = vpop.f32.mrf.mxu0
        %v3264 = vadd.f32 %v3175, %v3263
        %3265 = vmatmul.bf16.gmra.mxu0 %v1823
        %v3266 = vpop.f32.mrf.mxu0
        %v3267 = vadd.f32 %v3178, %v3266
        %v3268 = vpop.f32.mrf.mxu0
        %v3269 = vadd.f32 %v3180, %v3268
        %3270 = vmatmul.bf16.gmra.mxu0 %v1827
        %v3271 = vpop.f32.mrf.mxu0
        %v3272 = vadd.f32 %v3183, %v3271
        %v3273 = vpop.f32.mrf.mxu0
        %v3274 = vadd.f32 %v3185, %v3273
        %3275 = vmatmul.bf16.gmra.mxu0 %v1831
        %v3276 = vpop.f32.mrf.mxu0
        %v3277 = vadd.f32 %v3188, %v3276
        %v3278 = vpop.f32.mrf.mxu0
        %v3279 = vadd.f32 %v3190, %v3278
        %3280 = vmatmul.bf16.gmra.mxu0 %v1835
        %v3281 = vpop.f32.mrf.mxu0
        %v3282 = vadd.f32 %v3193, %v3281
        %v3283 = vpop.f32.mrf.mxu0
        %v3284 = vadd.f32 %v3195, %v3283
        %3285 = vmatmul.bf16.gmra.mxu0 %v1839
        %v3286 = vpop.f32.mrf.mxu0
        %v3287 = vadd.f32 %v3198, %v3286
        %v3288 = vpop.f32.mrf.mxu0
        %v3289 = vadd.f32 %v3200, %v3288
        %3290 = vmatmul.bf16.gmra.mxu0 %v1843
        %v3291 = vpop.f32.mrf.mxu0
        %v3292 = vadd.f32 %v3203, %v3291
        %v3293 = vpop.f32.mrf.mxu0
        %v3294 = vadd.f32 %v3205, %v3293
        %3295 = vmatmul.bf16.gmra.mxu0 %v1847
        %v3296 = vpop.f32.mrf.mxu0
        %v3297 = vadd.f32 %v3208, %v3296
        %v3298 = vpop.f32.mrf.mxu0
        %v3299 = vadd.f32 %v3210, %v3298
        %3300 = vmatmul.bf16.gmra.mxu0 %v1851
        %v3301 = vpop.f32.mrf.mxu0
        %v3302 = vadd.f32 %v3213, %v3301
        %v3303 = vpop.f32.mrf.mxu0
        %v3304 = vadd.f32 %v3215, %v3303
        %3305 = vmatmul.bf16.gmra.mxu0 %v1855
        %v3306 = vpop.f32.mrf.mxu0
        %v3307 = vadd.f32 %v3218, %v3306
        %v3308 = vpop.f32.mrf.mxu0
        %v3309 = vadd.f32 %v3220, %v3308
        %3310 = vmatmul.bf16.gmra.mxu0 %v1859
        %v3311 = vpop.f32.mrf.mxu0
        %v3312 = vadd.f32 %v3223, %v3311
        %v3313 = vpop.f32.mrf.mxu0
        %v3314 = vadd.f32 %v3225, %v3313
        %3315 = vmatmul.bf16.gmra.mxu0 %v1863
        %v3316 = vpop.f32.mrf.mxu0
        %v3317 = vadd.f32 %v3228, %v3316
        %v3318 = vpop.f32.mrf.mxu0
        %v3319 = vadd.f32 %v3230, %v3318
        %3320 = vmatmul.bf16.gmra.mxu0 %v1867
        %v3321 = vpop.f32.mrf.mxu0
        %v3322 = vadd.f32 %v3233, %v3321
        %v3323 = vpop.f32.mrf.mxu0
        %v3324 = vadd.f32 %v3235, %v3323
        %3325 = vmatmul.bf16.gmra.mxu0 %v1871
        %v3326 = vpop.f32.mrf.mxu0
        %v3327 = vadd.f32 %v3238, %v3326
        %v3328 = vpop.f32.mrf.mxu0
        %v3329 = vadd.f32 %v3240, %v3328
        %3330 = vmatmul.bf16.gmra.mxu0 %v1875
        %v3331 = vpop.f32.mrf.mxu0
        %v3332 = vadd.f32 %v3243, %v3331
        %v3333 = vpop.f32.mrf.mxu0
        %v3334 = vadd.f32 %v3245, %v3333
        %3335 = vdwg.mxu0
        %3336 = vmatpush.bf16.msra.mxu0 %v1492
        %3337 = vmatpush.bf16.msra.mxu0 %v1491
        %3338 = vmatpush.bf16.msra.mxu0 %v1490
        %3339 = vmatpush.bf16.msra.mxu0 %v1489
        %3340 = vmatpush.bf16.msra.mxu0 %v1488
        %3341 = vmatpush.bf16.msra.mxu0 %v1487
        %3342 = vmatpush.bf16.msra.mxu0 %v1486
        %3343 = vmatpush.bf16.msra.mxu0 %v1485
        %3344 = vmatmul.bf16.gmra.mxu0 %v1816
        %v3345 = vpop.f32.mrf.mxu0
        %v3346 = vadd.f32 %v3257, %v3345
        %v3347 = vpop.f32.mrf.mxu0
        %v3348 = vadd.f32 %v3259, %v3347
        %3349 = vmatmul.bf16.gmra.mxu0 %v1820
        %v3350 = vpop.f32.mrf.mxu0
        %v3351 = vadd.f32 %v3262, %v3350
        %v3352 = vpop.f32.mrf.mxu0
        %v3353 = vadd.f32 %v3264, %v3352
        %3354 = vmatmul.bf16.gmra.mxu0 %v1824
        %v3355 = vpop.f32.mrf.mxu0
        %v3356 = vadd.f32 %v3267, %v3355
        %v3357 = vpop.f32.mrf.mxu0
        %v3358 = vadd.f32 %v3269, %v3357
        %3359 = vmatmul.bf16.gmra.mxu0 %v1828
        %v3360 = vpop.f32.mrf.mxu0
        %v3361 = vadd.f32 %v3272, %v3360
        %v3362 = vpop.f32.mrf.mxu0
        %v3363 = vadd.f32 %v3274, %v3362
        %3364 = vmatmul.bf16.gmra.mxu0 %v1832
        %v3365 = vpop.f32.mrf.mxu0
        %v3366 = vadd.f32 %v3277, %v3365
        %v3367 = vpop.f32.mrf.mxu0
        %v3368 = vadd.f32 %v3279, %v3367
        %3369 = vmatmul.bf16.gmra.mxu0 %v1836
        %v3370 = vpop.f32.mrf.mxu0
        %v3371 = vadd.f32 %v3282, %v3370
        %v3372 = vpop.f32.mrf.mxu0
        %v3373 = vadd.f32 %v3284, %v3372
        %3374 = vmatmul.bf16.gmra.mxu0 %v1840
        %v3375 = vpop.f32.mrf.mxu0
        %v3376 = vadd.f32 %v3287, %v3375
        %v3377 = vpop.f32.mrf.mxu0
        %v3378 = vadd.f32 %v3289, %v3377
        %3379 = vmatmul.bf16.gmra.mxu0 %v1844
        %v3380 = vpop.f32.mrf.mxu0
        %v3381 = vadd.f32 %v3292, %v3380
        %v3382 = vpop.f32.mrf.mxu0
        %v3383 = vadd.f32 %v3294, %v3382
        %3384 = vmatmul.bf16.gmra.mxu0 %v1848
        %v3385 = vpop.f32.mrf.mxu0
        %v3386 = vadd.f32 %v3297, %v3385
        %v3387 = vpop.f32.mrf.mxu0
        %v3388 = vadd.f32 %v3299, %v3387
        %3389 = vmatmul.bf16.gmra.mxu0 %v1852
        %v3390 = vpop.f32.mrf.mxu0
        %v3391 = vadd.f32 %v3302, %v3390
        %v3392 = vpop.f32.mrf.mxu0
        %v3393 = vadd.f32 %v3304, %v3392
        %3394 = vmatmul.bf16.gmra.mxu0 %v1856
        %v3395 = vpop.f32.mrf.mxu0
        %v3396 = vadd.f32 %v3307, %v3395
        %v3397 = vpop.f32.mrf.mxu0
        %v3398 = vadd.f32 %v3309, %v3397
        %3399 = vmatmul.bf16.gmra.mxu0 %v1860
        %v3400 = vpop.f32.mrf.mxu0
        %v3401 = vadd.f32 %v3312, %v3400
        %v3402 = vpop.f32.mrf.mxu0
        %v3403 = vadd.f32 %v3314, %v3402
        %3404 = vmatmul.bf16.gmra.mxu0 %v1864
        %v3405 = vpop.f32.mrf.mxu0
        %v3406 = vadd.f32 %v3317, %v3405
        %v3407 = vpop.f32.mrf.mxu0
        %v3408 = vadd.f32 %v3319, %v3407
        %3409 = vmatmul.bf16.gmra.mxu0 %v1868
        %v3410 = vpop.f32.mrf.mxu0
        %v3411 = vadd.f32 %v3322, %v3410
        %v3412 = vpop.f32.mrf.mxu0
        %v3413 = vadd.f32 %v3324, %v3412
        %3414 = vmatmul.bf16.gmra.mxu0 %v1872
        %v3415 = vpop.f32.mrf.mxu0
        %v3416 = vadd.f32 %v3327, %v3415
        %v3417 = vpop.f32.mrf.mxu0
        %v3418 = vadd.f32 %v3329, %v3417
        %3419 = vmatmul.bf16.gmra.mxu0 %v1876
        %v3420 = vpop.f32.mrf.mxu0
        %v3421 = vadd.f32 %v3332, %v3420
        %v3422 = vpop.f32.mrf.mxu0
        %v3423 = vadd.f32 %v3334, %v3422
        %3424 = vdwg.mxu0
        %3425 = vmatpush.bf16.msra.mxu0 %v1468
        %3426 = vmatpush.bf16.msra.mxu0 %v1467
        %3427 = vmatpush.bf16.msra.mxu0 %v1466
        %3428 = vmatpush.bf16.msra.mxu0 %v1465
        %3429 = vmatpush.bf16.msra.mxu0 %v1464
        %3430 = vmatpush.bf16.msra.mxu0 %v1463
        %3431 = vmatpush.bf16.msra.mxu0 %v1462
        %3432 = vmatpush.bf16.msra.mxu0 %v1461
        %3433 = vmatmul.bf16.gmra.mxu0 %v2625
        %v3434 = vpop.f32.mrf.mxu0
        %v3435 = vadd.f32 0.0, %v3434
        %v3436 = vpop.f32.mrf.mxu0
        %v3437 = vadd.f32 0.0, %v3436
        %3438 = vmatmul.bf16.gmra.mxu0 %v2627
        %v3439 = vpop.f32.mrf.mxu0
        %v3440 = vadd.f32 0.0, %v3439
        %v3441 = vpop.f32.mrf.mxu0
        %v3442 = vadd.f32 0.0, %v3441
        %3443 = vmatmul.bf16.gmra.mxu0 %v2629
        %v3444 = vpop.f32.mrf.mxu0
        %v3445 = vadd.f32 0.0, %v3444
        %v3446 = vpop.f32.mrf.mxu0
        %v3447 = vadd.f32 0.0, %v3446
        %3448 = vmatmul.bf16.gmra.mxu0 %v2631
        %v3449 = vpop.f32.mrf.mxu0
        %v3450 = vadd.f32 0.0, %v3449
        %v3451 = vpop.f32.mrf.mxu0
        %v3452 = vadd.f32 0.0, %v3451
        %3453 = vmatmul.bf16.gmra.mxu0 %v2633
        %v3454 = vpop.f32.mrf.mxu0
        %v3455 = vadd.f32 0.0, %v3454
        %v3456 = vpop.f32.mrf.mxu0
        %v3457 = vadd.f32 0.0, %v3456
        %3458 = vmatmul.bf16.gmra.mxu0 %v2635
        %v3459 = vpop.f32.mrf.mxu0
        %v3460 = vadd.f32 0.0, %v3459
        %v3461 = vpop.f32.mrf.mxu0
        %v3462 = vadd.f32 0.0, %v3461
        %3463 = vmatmul.bf16.gmra.mxu0 %v2637
        %v3464 = vpop.f32.mrf.mxu0
        %v3465 = vadd.f32 0.0, %v3464
        %v3466 = vpop.f32.mrf.mxu0
        %v3467 = vadd.f32 0.0, %v3466
        %3468 = vmatmul.bf16.gmra.mxu0 %v2639
        %v3469 = vpop.f32.mrf.mxu0
        %v3470 = vadd.f32 0.0, %v3469
        %v3471 = vpop.f32.mrf.mxu0
        %v3472 = vadd.f32 0.0, %v3471
        %3473 = vmatmul.bf16.gmra.mxu0 %v2626
        %v3474 = vpop.f32.mrf.mxu0
        %v3475 = vadd.f32 0.0, %v3474
        %v3476 = vpop.f32.mrf.mxu0
        %v3477 = vadd.f32 0.0, %v3476
        %3478 = vmatmul.bf16.gmra.mxu0 %v2628
        %v3479 = vpop.f32.mrf.mxu0
        %v3480 = vadd.f32 0.0, %v3479
        %v3481 = vpop.f32.mrf.mxu0
        %v3482 = vadd.f32 0.0, %v3481
        %3483 = vmatmul.bf16.gmra.mxu0 %v2630
        %v3484 = vpop.f32.mrf.mxu0
        %v3485 = vadd.f32 0.0, %v3484
        %v3486 = vpop.f32.mrf.mxu0
        %v3487 = vadd.f32 0.0, %v3486
        %3488 = vmatmul.bf16.gmra.mxu0 %v2632
        %v3489 = vpop.f32.mrf.mxu0
        %v3490 = vadd.f32 0.0, %v3489
        %v3491 = vpop.f32.mrf.mxu0
        %v3492 = vadd.f32 0.0, %v3491
        %3493 = vmatmul.bf16.gmra.mxu0 %v2634
        %v3494 = vpop.f32.mrf.mxu0
        %v3495 = vadd.f32 0.0, %v3494
        %v3496 = vpop.f32.mrf.mxu0
        %v3497 = vadd.f32 0.0, %v3496
        %3498 = vmatmul.bf16.gmra.mxu0 %v2636
        %v3499 = vpop.f32.mrf.mxu0
        %v3500 = vadd.f32 0.0, %v3499
        %v3501 = vpop.f32.mrf.mxu0
        %v3502 = vadd.f32 0.0, %v3501
        %3503 = vmatmul.bf16.gmra.mxu0 %v2638
        %v3504 = vpop.f32.mrf.mxu0
        %v3505 = vadd.f32 0.0, %v3504
        %v3506 = vpop.f32.mrf.mxu0
        %v3507 = vadd.f32 0.0, %v3506
        %3508 = vmatmul.bf16.gmra.mxu0 %v2640
        %v3509 = vpop.f32.mrf.mxu0
        %v3510 = vadd.f32 0.0, %v3509
        %v3511 = vpop.f32.mrf.mxu0
        %v3512 = vadd.f32 0.0, %v3511
        %3513 = vdwg.mxu0
        %3514 = vmatpush.bf16.msra.mxu0 %v1476
        %3515 = vmatpush.bf16.msra.mxu0 %v1475
        %3516 = vmatpush.bf16.msra.mxu0 %v1474
        %3517 = vmatpush.bf16.msra.mxu0 %v1473
        %3518 = vmatpush.bf16.msra.mxu0 %v1472
        %3519 = vmatpush.bf16.msra.mxu0 %v1471
        %3520 = vmatpush.bf16.msra.mxu0 %v1470
        %3521 = vmatpush.bf16.msra.mxu0 %v1469
        %3522 = vmatmul.bf16.gmra.mxu0 %v2649
        %v3523 = vpop.f32.mrf.mxu0
        %v3524 = vadd.f32 %v3435, %v3523
        %v3525 = vpop.f32.mrf.mxu0
        %v3526 = vadd.f32 %v3437, %v3525
        %3527 = vmatmul.bf16.gmra.mxu0 %v2651
        %v3528 = vpop.f32.mrf.mxu0
        %v3529 = vadd.f32 %v3440, %v3528
        %v3530 = vpop.f32.mrf.mxu0
        %v3531 = vadd.f32 %v3442, %v3530
        %3532 = vmatmul.bf16.gmra.mxu0 %v2653
        %v3533 = vpop.f32.mrf.mxu0
        %v3534 = vadd.f32 %v3445, %v3533
        %v3535 = vpop.f32.mrf.mxu0
        %v3536 = vadd.f32 %v3447, %v3535
        %3537 = vmatmul.bf16.gmra.mxu0 %v2655
        %v3538 = vpop.f32.mrf.mxu0
        %v3539 = vadd.f32 %v3450, %v3538
        %v3540 = vpop.f32.mrf.mxu0
        %v3541 = vadd.f32 %v3452, %v3540
        %3542 = vmatmul.bf16.gmra.mxu0 %v2657
        %v3543 = vpop.f32.mrf.mxu0
        %v3544 = vadd.f32 %v3455, %v3543
        %v3545 = vpop.f32.mrf.mxu0
        %v3546 = vadd.f32 %v3457, %v3545
        %3547 = vmatmul.bf16.gmra.mxu0 %v2659
        %v3548 = vpop.f32.mrf.mxu0
        %v3549 = vadd.f32 %v3460, %v3548
        %v3550 = vpop.f32.mrf.mxu0
        %v3551 = vadd.f32 %v3462, %v3550
        %3552 = vmatmul.bf16.gmra.mxu0 %v2661
        %v3553 = vpop.f32.mrf.mxu0
        %v3554 = vadd.f32 %v3465, %v3553
        %v3555 = vpop.f32.mrf.mxu0
        %v3556 = vadd.f32 %v3467, %v3555
        %3557 = vmatmul.bf16.gmra.mxu0 %v2663
        %v3558 = vpop.f32.mrf.mxu0
        %v3559 = vadd.f32 %v3470, %v3558
        %v3560 = vpop.f32.mrf.mxu0
        %v3561 = vadd.f32 %v3472, %v3560
        %3562 = vmatmul.bf16.gmra.mxu0 %v2650
        %v3563 = vpop.f32.mrf.mxu0
        %v3564 = vadd.f32 %v3475, %v3563
        %v3565 = vpop.f32.mrf.mxu0
        %v3566 = vadd.f32 %v3477, %v3565
        %3567 = vmatmul.bf16.gmra.mxu0 %v2652
        %v3568 = vpop.f32.mrf.mxu0
        %v3569 = vadd.f32 %v3480, %v3568
        %v3570 = vpop.f32.mrf.mxu0
        %v3571 = vadd.f32 %v3482, %v3570
        %3572 = vmatmul.bf16.gmra.mxu0 %v2654
        %v3573 = vpop.f32.mrf.mxu0
        %v3574 = vadd.f32 %v3485, %v3573
        %v3575 = vpop.f32.mrf.mxu0
        %v3576 = vadd.f32 %v3487, %v3575
        %3577 = vmatmul.bf16.gmra.mxu0 %v2656
        %v3578 = vpop.f32.mrf.mxu0
        %v3579 = vadd.f32 %v3490, %v3578
        %v3580 = vpop.f32.mrf.mxu0
        %v3581 = vadd.f32 %v3492, %v3580
        %3582 = vmatmul.bf16.gmra.mxu0 %v2658
        %v3583 = vpop.f32.mrf.mxu0
        %v3584 = vadd.f32 %v3495, %v3583
        %v3585 = vpop.f32.mrf.mxu0
        %v3586 = vadd.f32 %v3497, %v3585
        %3587 = vmatmul.bf16.gmra.mxu0 %v2660
        %v3588 = vpop.f32.mrf.mxu0
        %v3589 = vadd.f32 %v3500, %v3588
        %v3590 = vpop.f32.mrf.mxu0
        %v3591 = vadd.f32 %v3502, %v3590
        %3592 = vmatmul.bf16.gmra.mxu0 %v2662
        %v3593 = vpop.f32.mrf.mxu0
        %v3594 = vadd.f32 %v3505, %v3593
        %v3595 = vpop.f32.mrf.mxu0
        %v3596 = vadd.f32 %v3507, %v3595
        %3597 = vmatmul.bf16.gmra.mxu0 %v2664
        %v3598 = vpop.f32.mrf.mxu0
        %v3599 = vadd.f32 %v3510, %v3598
        %v3600 = vpop.f32.mrf.mxu0
        %v3601 = vadd.f32 %v3512, %v3600
        %3602 = vdwg.mxu0
        %3603 = vmatpush.bf16.msra.mxu0 %v1484
        %3604 = vmatpush.bf16.msra.mxu0 %v1483
        %3605 = vmatpush.bf16.msra.mxu0 %v1482
        %3606 = vmatpush.bf16.msra.mxu0 %v1481
        %3607 = vmatpush.bf16.msra.mxu0 %v1480
        %3608 = vmatpush.bf16.msra.mxu0 %v1479
        %3609 = vmatpush.bf16.msra.mxu0 %v1478
        %3610 = vmatpush.bf16.msra.mxu0 %v1477
        %3611 = vmatmul.bf16.gmra.mxu0 %v2673
        %v3612 = vpop.f32.mrf.mxu0
        %v3613 = vadd.f32 %v3524, %v3612
        %v3614 = vpop.f32.mrf.mxu0
        %v3615 = vadd.f32 %v3526, %v3614
        %3616 = vmatmul.bf16.gmra.mxu0 %v2675
        %v3617 = vpop.f32.mrf.mxu0
        %v3618 = vadd.f32 %v3529, %v3617
        %v3619 = vpop.f32.mrf.mxu0
        %v3620 = vadd.f32 %v3531, %v3619
        %3621 = vmatmul.bf16.gmra.mxu0 %v2677
        %v3622 = vpop.f32.mrf.mxu0
        %v3623 = vadd.f32 %v3534, %v3622
        %v3624 = vpop.f32.mrf.mxu0
        %v3625 = vadd.f32 %v3536, %v3624
        %3626 = vmatmul.bf16.gmra.mxu0 %v2679
        %v3627 = vpop.f32.mrf.mxu0
        %v3628 = vadd.f32 %v3539, %v3627
        %v3629 = vpop.f32.mrf.mxu0
        %v3630 = vadd.f32 %v3541, %v3629
        %3631 = vmatmul.bf16.gmra.mxu0 %v2681
        %v3632 = vpop.f32.mrf.mxu0
        %v3633 = vadd.f32 %v3544, %v3632
        %v3634 = vpop.f32.mrf.mxu0
        %v3635 = vadd.f32 %v3546, %v3634
        %3636 = vmatmul.bf16.gmra.mxu0 %v2683
        %v3637 = vpop.f32.mrf.mxu0
        %v3638 = vadd.f32 %v3549, %v3637
        %v3639 = vpop.f32.mrf.mxu0
        %v3640 = vadd.f32 %v3551, %v3639
        %3641 = vmatmul.bf16.gmra.mxu0 %v2685
        %v3642 = vpop.f32.mrf.mxu0
        %v3643 = vadd.f32 %v3554, %v3642
        %v3644 = vpop.f32.mrf.mxu0
        %v3645 = vadd.f32 %v3556, %v3644
        %3646 = vmatmul.bf16.gmra.mxu0 %v2687
        %v3647 = vpop.f32.mrf.mxu0
        %v3648 = vadd.f32 %v3559, %v3647
        %v3649 = vpop.f32.mrf.mxu0
        %v3650 = vadd.f32 %v3561, %v3649
        %3651 = vmatmul.bf16.gmra.mxu0 %v2674
        %v3652 = vpop.f32.mrf.mxu0
        %v3653 = vadd.f32 %v3564, %v3652
        %v3654 = vpop.f32.mrf.mxu0
        %v3655 = vadd.f32 %v3566, %v3654
        %3656 = vmatmul.bf16.gmra.mxu0 %v2676
        %v3657 = vpop.f32.mrf.mxu0
        %v3658 = vadd.f32 %v3569, %v3657
        %v3659 = vpop.f32.mrf.mxu0
        %v3660 = vadd.f32 %v3571, %v3659
        %3661 = vmatmul.bf16.gmra.mxu0 %v2678
        %v3662 = vpop.f32.mrf.mxu0
        %v3663 = vadd.f32 %v3574, %v3662
        %v3664 = vpop.f32.mrf.mxu0
        %v3665 = vadd.f32 %v3576, %v3664
        %3666 = vmatmul.bf16.gmra.mxu0 %v2680
        %v3667 = vpop.f32.mrf.mxu0
        %v3668 = vadd.f32 %v3579, %v3667
        %v3669 = vpop.f32.mrf.mxu0
        %v3670 = vadd.f32 %v3581, %v3669
        %3671 = vmatmul.bf16.gmra.mxu0 %v2682
        %v3672 = vpop.f32.mrf.mxu0
        %v3673 = vadd.f32 %v3584, %v3672
        %v3674 = vpop.f32.mrf.mxu0
        %v3675 = vadd.f32 %v3586, %v3674
        %3676 = vmatmul.bf16.gmra.mxu0 %v2684
        %v3677 = vpop.f32.mrf.mxu0
        %v3678 = vadd.f32 %v3589, %v3677
        %v3679 = vpop.f32.mrf.mxu0
        %v3680 = vadd.f32 %v3591, %v3679
        %3681 = vmatmul.bf16.gmra.mxu0 %v2686
        %v3682 = vpop.f32.mrf.mxu0
        %v3683 = vadd.f32 %v3594, %v3682
        %v3684 = vpop.f32.mrf.mxu0
        %v3685 = vadd.f32 %v3596, %v3684
        %3686 = vmatmul.bf16.gmra.mxu0 %v2688
        %v3687 = vpop.f32.mrf.mxu0
        %v3688 = vadd.f32 %v3599, %v3687
        %v3689 = vpop.f32.mrf.mxu0
        %v3690 = vadd.f32 %v3601, %v3689
        %3691 = vdwg.mxu0
        %3692 = vmatpush.bf16.msra.mxu0 %v1492
        %3693 = vmatpush.bf16.msra.mxu0 %v1491
        %3694 = vmatpush.bf16.msra.mxu0 %v1490
        %3695 = vmatpush.bf16.msra.mxu0 %v1489
        %3696 = vmatpush.bf16.msra.mxu0 %v1488
        %3697 = vmatpush.bf16.msra.mxu0 %v1487
        %3698 = vmatpush.bf16.msra.mxu0 %v1486
        %3699 = vmatpush.bf16.msra.mxu0 %v1485
        %3700 = vmatmul.bf16.gmra.mxu0 %v2697
        %v3701 = vpop.f32.mrf.mxu0
        %v3702 = vadd.f32 %v3613, %v3701
        %v3703 = vpop.f32.mrf.mxu0
        %v3704 = vadd.f32 %v3615, %v3703
        %3705 = vmatmul.bf16.gmra.mxu0 %v2699
        %v3706 = vpop.f32.mrf.mxu0
        %v3707 = vadd.f32 %v3618, %v3706
        %v3708 = vpop.f32.mrf.mxu0
        %v3709 = vadd.f32 %v3620, %v3708
        %3710 = vmatmul.bf16.gmra.mxu0 %v2701
        %v3711 = vpop.f32.mrf.mxu0
        %v3712 = vadd.f32 %v3623, %v3711
        %v3713 = vpop.f32.mrf.mxu0
        %v3714 = vadd.f32 %v3625, %v3713
        %3715 = vmatmul.bf16.gmra.mxu0 %v2703
        %v3716 = vpop.f32.mrf.mxu0
        %v3717 = vadd.f32 %v3628, %v3716
        %v3718 = vpop.f32.mrf.mxu0
        %v3719 = vadd.f32 %v3630, %v3718
        %3720 = vmatmul.bf16.gmra.mxu0 %v2705
        %v3721 = vpop.f32.mrf.mxu0
        %v3722 = vadd.f32 %v3633, %v3721
        %v3723 = vpop.f32.mrf.mxu0
        %v3724 = vadd.f32 %v3635, %v3723
        %3725 = vmatmul.bf16.gmra.mxu0 %v2707
        %v3726 = vpop.f32.mrf.mxu0
        %v3727 = vadd.f32 %v3638, %v3726
        %v3728 = vpop.f32.mrf.mxu0
        %v3729 = vadd.f32 %v3640, %v3728
        %3730 = vmatmul.bf16.gmra.mxu0 %v2709
        %v3731 = vpop.f32.mrf.mxu0
        %v3732 = vadd.f32 %v3643, %v3731
        %v3733 = vpop.f32.mrf.mxu0
        %v3734 = vadd.f32 %v3645, %v3733
        %3735 = vmatmul.bf16.gmra.mxu0 %v2711
        %v3736 = vpop.f32.mrf.mxu0
        %v3737 = vadd.f32 %v3648, %v3736
        %v3738 = vpop.f32.mrf.mxu0
        %v3739 = vadd.f32 %v3650, %v3738
        %3740 = vmatmul.bf16.gmra.mxu0 %v2698
        %v3741 = vpop.f32.mrf.mxu0
        %v3742 = vadd.f32 %v3653, %v3741
        %v3743 = vpop.f32.mrf.mxu0
        %v3744 = vadd.f32 %v3655, %v3743
        %3745 = vmatmul.bf16.gmra.mxu0 %v2700
        %v3746 = vpop.f32.mrf.mxu0
        %v3747 = vadd.f32 %v3658, %v3746
        %v3748 = vpop.f32.mrf.mxu0
        %v3749 = vadd.f32 %v3660, %v3748
        %3750 = vmatmul.bf16.gmra.mxu0 %v2702
        %v3751 = vpop.f32.mrf.mxu0
        %v3752 = vadd.f32 %v3663, %v3751
        %v3753 = vpop.f32.mrf.mxu0
        %v3754 = vadd.f32 %v3665, %v3753
        %3755 = vmatmul.bf16.gmra.mxu0 %v2704
        %v3756 = vpop.f32.mrf.mxu0
        %v3757 = vadd.f32 %v3668, %v3756
        %v3758 = vpop.f32.mrf.mxu0
        %v3759 = vadd.f32 %v3670, %v3758
        %3760 = vmatmul.bf16.gmra.mxu0 %v2706
        %v3761 = vpop.f32.mrf.mxu0
        %v3762 = vadd.f32 %v3673, %v3761
        %v3763 = vpop.f32.mrf.mxu0
        %v3764 = vadd.f32 %v3675, %v3763
        %3765 = vmatmul.bf16.gmra.mxu0 %v2708
        %v3766 = vpop.f32.mrf.mxu0
        %v3767 = vadd.f32 %v3678, %v3766
        %v3768 = vpop.f32.mrf.mxu0
        %v3769 = vadd.f32 %v3680, %v3768
        %3770 = vmatmul.bf16.gmra.mxu0 %v2710
        %v3771 = vpop.f32.mrf.mxu0
        %v3772 = vadd.f32 %v3683, %v3771
        %v3773 = vpop.f32.mrf.mxu0
        %v3774 = vadd.f32 %v3685, %v3773
        %3775 = vmatmul.bf16.gmra.mxu0 %v2712
        %v3776 = vpop.f32.mrf.mxu0
        %v3777 = vadd.f32 %v3688, %v3776
        %v3778 = vpop.f32.mrf.mxu0
        %v3779 = vadd.f32 %v3690, %v3778
        %3780 = vdwg.mxu0
        %vm3781 = vcmp.gt.f32.partialorder %v2218, 0.0
        %vm3782 = vcmp.gt.f32.partialorder %v2220, 0.0
        %vm3783 = vcmp.gt.f32.partialorder %v2223, 0.0
        %vm3784 = vcmp.gt.f32.partialorder %v2225, 0.0
        %vm3785 = vcmp.gt.f32.partialorder %v2228, 0.0
        %vm3786 = vcmp.gt.f32.partialorder %v2230, 0.0
        %vm3787 = vcmp.gt.f32.partialorder %v2233, 0.0
        %vm3788 = vcmp.gt.f32.partialorder %v2235, 0.0
        %vm3789 = vcmp.gt.f32.partialorder %v2238, 0.0
        %vm3790 = vcmp.gt.f32.partialorder %v2240, 0.0
        %vm3791 = vcmp.gt.f32.partialorder %v2243, 0.0
        %vm3792 = vcmp.gt.f32.partialorder %v2245, 0.0
        %vm3793 = vcmp.gt.f32.partialorder %v2248, 0.0
        %vm3794 = vcmp.gt.f32.partialorder %v2250, 0.0
        %vm3795 = vcmp.gt.f32.partialorder %v2253, 0.0
        %vm3796 = vcmp.gt.f32.partialorder %v2255, 0.0
        %vm3797 = vcmp.gt.f32.partialorder %v2258, 0.0
        %vm3798 = vcmp.gt.f32.partialorder %v2260, 0.0
        %vm3799 = vcmp.gt.f32.partialorder %v2263, 0.0
        %vm3800 = vcmp.gt.f32.partialorder %v2265, 0.0
        %vm3801 = vcmp.gt.f32.partialorder %v2268, 0.0
        %vm3802 = vcmp.gt.f32.partialorder %v2270, 0.0
        %vm3803 = vcmp.gt.f32.partialorder %v2273, 0.0
        %vm3804 = vcmp.gt.f32.partialorder %v2275, 0.0
        %vm3805 = vcmp.gt.f32.partialorder %v2278, 0.0
        %vm3806 = vcmp.gt.f32.partialorder %v2280, 0.0
        %vm3807 = vcmp.gt.f32.partialorder %v2283, 0.0
        %vm3808 = vcmp.gt.f32.partialorder %v2285, 0.0
        %vm3809 = vcmp.gt.f32.partialorder %v2288, 0.0
        %vm3810 = vcmp.gt.f32.partialorder %v2290, 0.0
        %vm3811 = vcmp.gt.f32.partialorder %v2293, 0.0
        %vm3812 = vcmp.gt.f32.partialorder %v2295, 0.0
        %v3813 = vrcp.pop %v2218
        %v3814 = vrcp.pop %v2220
        %v3815 = vrcp.pop %v2223
        %v3816 = vrcp.pop %v2225
        %v3817 = vrcp.pop %v2228
        %v3818 = vrcp.pop %v2230
        %v3819 = vrcp.pop %v2233
        %v3820 = vrcp.pop %v2235
        %v3821 = vrcp.pop %v2238
        %v3822 = vrcp.pop %v2240
        %v3823 = vrcp.pop %v2243
        %v3824 = vrcp.pop %v2245
        %v3825 = vrcp.pop %v2248
        %v3826 = vrcp.pop %v2250
        %v3827 = vrcp.pop %v2253
        %v3828 = vrcp.pop %v2255
        %v3829 = vrcp.pop %v2258
        %v3830 = vrcp.pop %v2260
        %v3831 = vrcp.pop %v2263
        %v3832 = vrcp.pop %v2265
        %v3833 = vrcp.pop %v2268
        %v3834 = vrcp.pop %v2270
        %v3835 = vrcp.pop %v2273
        %v3836 = vrcp.pop %v2275
        %v3837 = vrcp.pop %v2278
        %v3838 = vrcp.pop %v2280
        %v3839 = vrcp.pop %v2283
        %v3840 = vrcp.pop %v2285
        %v3841 = vrcp.pop %v2288
        %v3842 = vrcp.pop %v2290
        %v3843 = vrcp.pop %v2293
        %v3844 = vrcp.pop %v2295
        %v3845 = vsel %vm3781, %v3813, 0.0
        %v3846 = vsel %vm3782, %v3814, 0.0
        %v3847 = vsel %vm3783, %v3815, 0.0
        %v3848 = vsel %vm3784, %v3816, 0.0
        %v3849 = vsel %vm3785, %v3817, 0.0
        %v3850 = vsel %vm3786, %v3818, 0.0
        %v3851 = vsel %vm3787, %v3819, 0.0
        %v3852 = vsel %vm3788, %v3820, 0.0
        %v3853 = vsel %vm3789, %v3821, 0.0
        %v3854 = vsel %vm3790, %v3822, 0.0
        %v3855 = vsel %vm3791, %v3823, 0.0
        %v3856 = vsel %vm3792, %v3824, 0.0
        %v3857 = vsel %vm3793, %v3825, 0.0
        %v3858 = vsel %vm3794, %v3826, 0.0
        %v3859 = vsel %vm3795, %v3827, 0.0
        %v3860 = vsel %vm3796, %v3828, 0.0
        %v3861 = vsel %vm3797, %v3829, 0.0
        %v3862 = vsel %vm3798, %v3830, 0.0
        %v3863 = vsel %vm3799, %v3831, 0.0
        %v3864 = vsel %vm3800, %v3832, 0.0
        %v3865 = vsel %vm3801, %v3833, 0.0
        %v3866 = vsel %vm3802, %v3834, 0.0
        %v3867 = vsel %vm3803, %v3835, 0.0
        %v3868 = vsel %vm3804, %v3836, 0.0
        %v3869 = vsel %vm3805, %v3837, 0.0
        %v3870 = vsel %vm3806, %v3838, 0.0
        %v3871 = vsel %vm3807, %v3839, 0.0
        %v3872 = vsel %vm3808, %v3840, 0.0
        %v3873 = vsel %vm3809, %v3841, 0.0
        %v3874 = vsel %vm3810, %v3842, 0.0
        %v3875 = vsel %vm3811, %v3843, 0.0
        %v3876 = vsel %vm3812, %v3844, 0.0
        %3878 = vset.pattern.permute.xlu0 0
        %3879 = vperm.xlu0 %3878, %v3845
        %v3880 = vpop.permute.xlu0 %3879
        %3883 = vset.pattern.permute.xlu0 0
        %3884 = vperm.xlu0 %3883, %v3846
        %v3885 = vpop.permute.xlu0 %3884
        %3888 = vset.pattern.permute.xlu0 0
        %3889 = vperm.xlu0 %3888, %v3847
        %v3890 = vpop.permute.xlu0 %3889
        %3893 = vset.pattern.permute.xlu0 0
        %3894 = vperm.xlu0 %3893, %v3848
        %v3895 = vpop.permute.xlu0 %3894
        %3898 = vset.pattern.permute.xlu0 0
        %3899 = vperm.xlu0 %3898, %v3849
        %v3900 = vpop.permute.xlu0 %3899
        %3903 = vset.pattern.permute.xlu0 0
        %3904 = vperm.xlu0 %3903, %v3850
        %v3905 = vpop.permute.xlu0 %3904
        %3908 = vset.pattern.permute.xlu0 0
        %3909 = vperm.xlu0 %3908, %v3851
        %v3910 = vpop.permute.xlu0 %3909
        %3913 = vset.pattern.permute.xlu0 0
        %3914 = vperm.xlu0 %3913, %v3852
        %v3915 = vpop.permute.xlu0 %3914
        %3918 = vset.pattern.permute.xlu0 0
        %3919 = vperm.xlu0 %3918, %v3853
        %v3920 = vpop.permute.xlu0 %3919
        %3923 = vset.pattern.permute.xlu0 0
        %3924 = vperm.xlu0 %3923, %v3854
        %v3925 = vpop.permute.xlu0 %3924
        %3928 = vset.pattern.permute.xlu0 0
        %3929 = vperm.xlu0 %3928, %v3855
        %v3930 = vpop.permute.xlu0 %3929
        %3933 = vset.pattern.permute.xlu0 0
        %3934 = vperm.xlu0 %3933, %v3856
        %v3935 = vpop.permute.xlu0 %3934
        %3938 = vset.pattern.permute.xlu0 0
        %3939 = vperm.xlu0 %3938, %v3857
        %v3940 = vpop.permute.xlu0 %3939
        %3943 = vset.pattern.permute.xlu0 0
        %3944 = vperm.xlu0 %3943, %v3858
        %v3945 = vpop.permute.xlu0 %3944
        %3948 = vset.pattern.permute.xlu0 0
        %3949 = vperm.xlu0 %3948, %v3859
        %v3950 = vpop.permute.xlu0 %3949
        %3953 = vset.pattern.permute.xlu0 0
        %3954 = vperm.xlu0 %3953, %v3860
        %v3955 = vpop.permute.xlu0 %3954
        %3958 = vset.pattern.permute.xlu0 0
        %3959 = vperm.xlu0 %3958, %v3861
        %v3960 = vpop.permute.xlu0 %3959
        %3963 = vset.pattern.permute.xlu0 0
        %3964 = vperm.xlu0 %3963, %v3862
        %v3965 = vpop.permute.xlu0 %3964
        %3968 = vset.pattern.permute.xlu0 0
        %3969 = vperm.xlu0 %3968, %v3863
        %v3970 = vpop.permute.xlu0 %3969
        %3973 = vset.pattern.permute.xlu0 0
        %3974 = vperm.xlu0 %3973, %v3864
        %v3975 = vpop.permute.xlu0 %3974
        %3978 = vset.pattern.permute.xlu0 0
        %3979 = vperm.xlu0 %3978, %v3865
        %v3980 = vpop.permute.xlu0 %3979
        %3983 = vset.pattern.permute.xlu0 0
        %3984 = vperm.xlu0 %3983, %v3866
        %v3985 = vpop.permute.xlu0 %3984
        %3988 = vset.pattern.permute.xlu0 0
        %3989 = vperm.xlu0 %3988, %v3867
        %v3990 = vpop.permute.xlu0 %3989
        %3993 = vset.pattern.permute.xlu0 0
        %3994 = vperm.xlu0 %3993, %v3868
        %v3995 = vpop.permute.xlu0 %3994
        %3998 = vset.pattern.permute.xlu0 0
        %3999 = vperm.xlu0 %3998, %v3869
        %v4000 = vpop.permute.xlu0 %3999
        %4003 = vset.pattern.permute.xlu0 0
        %4004 = vperm.xlu0 %4003, %v3870
        %v4005 = vpop.permute.xlu0 %4004
        %4008 = vset.pattern.permute.xlu0 0
        %4009 = vperm.xlu0 %4008, %v3871
        %v4010 = vpop.permute.xlu0 %4009
        %4013 = vset.pattern.permute.xlu0 0
        %4014 = vperm.xlu0 %4013, %v3872
        %v4015 = vpop.permute.xlu0 %4014
        %4018 = vset.pattern.permute.xlu0 0
        %4019 = vperm.xlu0 %4018, %v3873
        %v4020 = vpop.permute.xlu0 %4019
        %4023 = vset.pattern.permute.xlu0 0
        %4024 = vperm.xlu0 %4023, %v3874
        %v4025 = vpop.permute.xlu0 %4024
        %4028 = vset.pattern.permute.xlu0 0
        %4029 = vperm.xlu0 %4028, %v3875
        %v4030 = vpop.permute.xlu0 %4029
        %4033 = vset.pattern.permute.xlu0 0
        %4034 = vperm.xlu0 %4033, %v3876
        %v4035 = vpop.permute.xlu0 %4034
        %v4037 = vmul.f32 %v3346, %v3880
        %v4038 = vmul.f32 %v3348, %v3885
        %v4039 = vmul.f32 %v3351, %v3890
        %v4040 = vmul.f32 %v3353, %v3895
        %v4041 = vmul.f32 %v3356, %v3900
        %v4042 = vmul.f32 %v3358, %v3905
        %v4043 = vmul.f32 %v3361, %v3910
        %v4044 = vmul.f32 %v3363, %v3915
        %v4045 = vmul.f32 %v3366, %v3920
        %v4046 = vmul.f32 %v3368, %v3925
        %v4047 = vmul.f32 %v3371, %v3930
        %v4048 = vmul.f32 %v3373, %v3935
        %v4049 = vmul.f32 %v3376, %v3940
        %v4050 = vmul.f32 %v3378, %v3945
        %v4051 = vmul.f32 %v3381, %v3950
        %v4052 = vmul.f32 %v3383, %v3955
        %v4053 = vmul.f32 %v3386, %v3960
        %v4054 = vmul.f32 %v3388, %v3965
        %v4055 = vmul.f32 %v3391, %v3970
        %v4056 = vmul.f32 %v3393, %v3975
        %v4057 = vmul.f32 %v3396, %v3980
        %v4058 = vmul.f32 %v3398, %v3985
        %v4059 = vmul.f32 %v3401, %v3990
        %v4060 = vmul.f32 %v3403, %v3995
        %v4061 = vmul.f32 %v3406, %v4000
        %v4062 = vmul.f32 %v3408, %v4005
        %v4063 = vmul.f32 %v3411, %v4010
        %v4064 = vmul.f32 %v3413, %v4015
        %v4065 = vmul.f32 %v3416, %v4020
        %v4066 = vmul.f32 %v3418, %v4025
        %v4067 = vmul.f32 %v3421, %v4030
        %v4068 = vmul.f32 %v3423, %v4035
        %vm4069 = vcmp.gt.f32.partialorder %v2990, 0.0
        %vm4070 = vcmp.gt.f32.partialorder %v2992, 0.0
        %vm4071 = vcmp.gt.f32.partialorder %v2995, 0.0
        %vm4072 = vcmp.gt.f32.partialorder %v2997, 0.0
        %vm4073 = vcmp.gt.f32.partialorder %v3000, 0.0
        %vm4074 = vcmp.gt.f32.partialorder %v3002, 0.0
        %vm4075 = vcmp.gt.f32.partialorder %v3005, 0.0
        %vm4076 = vcmp.gt.f32.partialorder %v3007, 0.0
        %vm4077 = vcmp.gt.f32.partialorder %v3010, 0.0
        %vm4078 = vcmp.gt.f32.partialorder %v3012, 0.0
        %vm4079 = vcmp.gt.f32.partialorder %v3015, 0.0
        %vm4080 = vcmp.gt.f32.partialorder %v3017, 0.0
        %vm4081 = vcmp.gt.f32.partialorder %v3020, 0.0
        %vm4082 = vcmp.gt.f32.partialorder %v3022, 0.0
        %vm4083 = vcmp.gt.f32.partialorder %v3025, 0.0
        %vm4084 = vcmp.gt.f32.partialorder %v3027, 0.0
        %vm4085 = vcmp.gt.f32.partialorder %v3030, 0.0
        %vm4086 = vcmp.gt.f32.partialorder %v3032, 0.0
        %vm4087 = vcmp.gt.f32.partialorder %v3035, 0.0
        %vm4088 = vcmp.gt.f32.partialorder %v3037, 0.0
        %vm4089 = vcmp.gt.f32.partialorder %v3040, 0.0
        %vm4090 = vcmp.gt.f32.partialorder %v3042, 0.0
        %vm4091 = vcmp.gt.f32.partialorder %v3045, 0.0
        %vm4092 = vcmp.gt.f32.partialorder %v3047, 0.0
        %vm4093 = vcmp.gt.f32.partialorder %v3050, 0.0
        %vm4094 = vcmp.gt.f32.partialorder %v3052, 0.0
        %vm4095 = vcmp.gt.f32.partialorder %v3055, 0.0
        %vm4096 = vcmp.gt.f32.partialorder %v3057, 0.0
        %vm4097 = vcmp.gt.f32.partialorder %v3060, 0.0
        %vm4098 = vcmp.gt.f32.partialorder %v3062, 0.0
        %vm4099 = vcmp.gt.f32.partialorder %v3065, 0.0
        %vm4100 = vcmp.gt.f32.partialorder %v3067, 0.0
        %v4101 = vrcp.pop %v2990
        %v4102 = vrcp.pop %v2992
        %v4103 = vrcp.pop %v2995
        %v4104 = vrcp.pop %v2997
        %v4105 = vrcp.pop %v3000
        %v4106 = vrcp.pop %v3002
        %v4107 = vrcp.pop %v3005
        %v4108 = vrcp.pop %v3007
        %v4109 = vrcp.pop %v3010
        %v4110 = vrcp.pop %v3012
        %v4111 = vrcp.pop %v3015
        %v4112 = vrcp.pop %v3017
        %v4113 = vrcp.pop %v3020
        %v4114 = vrcp.pop %v3022
        %v4115 = vrcp.pop %v3025
        %v4116 = vrcp.pop %v3027
        %v4117 = vrcp.pop %v3030
        %v4118 = vrcp.pop %v3032
        %v4119 = vrcp.pop %v3035
        %v4120 = vrcp.pop %v3037
        %v4121 = vrcp.pop %v3040
        %v4122 = vrcp.pop %v3042
        %v4123 = vrcp.pop %v3045
        %v4124 = vrcp.pop %v3047
        %v4125 = vrcp.pop %v3050
        %v4126 = vrcp.pop %v3052
        %v4127 = vrcp.pop %v3055
        %v4128 = vrcp.pop %v3057
        %v4129 = vrcp.pop %v3060
        %v4130 = vrcp.pop %v3062
        %v4131 = vrcp.pop %v3065
        %v4132 = vrcp.pop %v3067
        %v4133 = vsel %vm4069, %v4101, 0.0
        %v4134 = vsel %vm4070, %v4102, 0.0
        %v4135 = vsel %vm4071, %v4103, 0.0
        %v4136 = vsel %vm4072, %v4104, 0.0
        %v4137 = vsel %vm4073, %v4105, 0.0
        %v4138 = vsel %vm4074, %v4106, 0.0
        %v4139 = vsel %vm4075, %v4107, 0.0
        %v4140 = vsel %vm4076, %v4108, 0.0
        %v4141 = vsel %vm4077, %v4109, 0.0
        %v4142 = vsel %vm4078, %v4110, 0.0
        %v4143 = vsel %vm4079, %v4111, 0.0
        %v4144 = vsel %vm4080, %v4112, 0.0
        %v4145 = vsel %vm4081, %v4113, 0.0
        %v4146 = vsel %vm4082, %v4114, 0.0
        %v4147 = vsel %vm4083, %v4115, 0.0
        %v4148 = vsel %vm4084, %v4116, 0.0
        %v4149 = vsel %vm4085, %v4117, 0.0
        %v4150 = vsel %vm4086, %v4118, 0.0
        %v4151 = vsel %vm4087, %v4119, 0.0
        %v4152 = vsel %vm4088, %v4120, 0.0
        %v4153 = vsel %vm4089, %v4121, 0.0
        %v4154 = vsel %vm4090, %v4122, 0.0
        %v4155 = vsel %vm4091, %v4123, 0.0
        %v4156 = vsel %vm4092, %v4124, 0.0
        %v4157 = vsel %vm4093, %v4125, 0.0
        %v4158 = vsel %vm4094, %v4126, 0.0
        %v4159 = vsel %vm4095, %v4127, 0.0
        %v4160 = vsel %vm4096, %v4128, 0.0
        %v4161 = vsel %vm4097, %v4129, 0.0
        %v4162 = vsel %vm4098, %v4130, 0.0
        %v4163 = vsel %vm4099, %v4131, 0.0
        %v4164 = vsel %vm4100, %v4132, 0.0
        %4166 = vset.pattern.permute.xlu0 0
        %4167 = vperm.xlu0 %4166, %v4133
        %v4168 = vpop.permute.xlu0 %4167
        %4171 = vset.pattern.permute.xlu0 0
        %4172 = vperm.xlu0 %4171, %v4134
        %v4173 = vpop.permute.xlu0 %4172
        %4176 = vset.pattern.permute.xlu0 0
        %4177 = vperm.xlu0 %4176, %v4135
        %v4178 = vpop.permute.xlu0 %4177
        %4181 = vset.pattern.permute.xlu0 0
        %4182 = vperm.xlu0 %4181, %v4136
        %v4183 = vpop.permute.xlu0 %4182
        %4186 = vset.pattern.permute.xlu0 0
        %4187 = vperm.xlu0 %4186, %v4137
        %v4188 = vpop.permute.xlu0 %4187
        %4191 = vset.pattern.permute.xlu0 0
        %4192 = vperm.xlu0 %4191, %v4138
        %v4193 = vpop.permute.xlu0 %4192
        %4196 = vset.pattern.permute.xlu0 0
        %4197 = vperm.xlu0 %4196, %v4139
        %v4198 = vpop.permute.xlu0 %4197
        %4201 = vset.pattern.permute.xlu0 0
        %4202 = vperm.xlu0 %4201, %v4140
        %v4203 = vpop.permute.xlu0 %4202
        %4206 = vset.pattern.permute.xlu0 0
        %4207 = vperm.xlu0 %4206, %v4141
        %v4208 = vpop.permute.xlu0 %4207
        %4211 = vset.pattern.permute.xlu0 0
        %4212 = vperm.xlu0 %4211, %v4142
        %v4213 = vpop.permute.xlu0 %4212
        %4216 = vset.pattern.permute.xlu0 0
        %4217 = vperm.xlu0 %4216, %v4143
        %v4218 = vpop.permute.xlu0 %4217
        %4221 = vset.pattern.permute.xlu0 0
        %4222 = vperm.xlu0 %4221, %v4144
        %v4223 = vpop.permute.xlu0 %4222
        %4226 = vset.pattern.permute.xlu0 0
        %4227 = vperm.xlu0 %4226, %v4145
        %v4228 = vpop.permute.xlu0 %4227
        %4231 = vset.pattern.permute.xlu0 0
        %4232 = vperm.xlu0 %4231, %v4146
        %v4233 = vpop.permute.xlu0 %4232
        %4236 = vset.pattern.permute.xlu0 0
        %4237 = vperm.xlu0 %4236, %v4147
        %v4238 = vpop.permute.xlu0 %4237
        %4241 = vset.pattern.permute.xlu0 0
        %4242 = vperm.xlu0 %4241, %v4148
        %v4243 = vpop.permute.xlu0 %4242
        %4246 = vset.pattern.permute.xlu0 0
        %4247 = vperm.xlu0 %4246, %v4149
        %v4248 = vpop.permute.xlu0 %4247
        %4251 = vset.pattern.permute.xlu0 0
        %4252 = vperm.xlu0 %4251, %v4150
        %v4253 = vpop.permute.xlu0 %4252
        %4256 = vset.pattern.permute.xlu0 0
        %4257 = vperm.xlu0 %4256, %v4151
        %v4258 = vpop.permute.xlu0 %4257
        %4261 = vset.pattern.permute.xlu0 0
        %4262 = vperm.xlu0 %4261, %v4152
        %v4263 = vpop.permute.xlu0 %4262
        %4266 = vset.pattern.permute.xlu0 0
        %4267 = vperm.xlu0 %4266, %v4153
        %v4268 = vpop.permute.xlu0 %4267
        %4271 = vset.pattern.permute.xlu0 0
        %4272 = vperm.xlu0 %4271, %v4154
        %v4273 = vpop.permute.xlu0 %4272
        %4276 = vset.pattern.permute.xlu0 0
        %4277 = vperm.xlu0 %4276, %v4155
        %v4278 = vpop.permute.xlu0 %4277
        %4281 = vset.pattern.permute.xlu0 0
        %4282 = vperm.xlu0 %4281, %v4156
        %v4283 = vpop.permute.xlu0 %4282
        %4286 = vset.pattern.permute.xlu0 0
        %4287 = vperm.xlu0 %4286, %v4157
        %v4288 = vpop.permute.xlu0 %4287
        %4291 = vset.pattern.permute.xlu0 0
        %4292 = vperm.xlu0 %4291, %v4158
        %v4293 = vpop.permute.xlu0 %4292
        %4296 = vset.pattern.permute.xlu0 0
        %4297 = vperm.xlu0 %4296, %v4159
        %v4298 = vpop.permute.xlu0 %4297
        %4301 = vset.pattern.permute.xlu0 0
        %4302 = vperm.xlu0 %4301, %v4160
        %v4303 = vpop.permute.xlu0 %4302
        %4306 = vset.pattern.permute.xlu0 0
        %4307 = vperm.xlu0 %4306, %v4161
        %v4308 = vpop.permute.xlu0 %4307
        %4311 = vset.pattern.permute.xlu0 0
        %4312 = vperm.xlu0 %4311, %v4162
        %v4313 = vpop.permute.xlu0 %4312
        %4316 = vset.pattern.permute.xlu0 0
        %4317 = vperm.xlu0 %4316, %v4163
        %v4318 = vpop.permute.xlu0 %4317
        %4321 = vset.pattern.permute.xlu0 0
        %4322 = vperm.xlu0 %4321, %v4164
        %v4323 = vpop.permute.xlu0 %4322
        %v4325 = vmul.f32 %v3702, %v4168
        %v4326 = vmul.f32 %v3704, %v4173
        %v4327 = vmul.f32 %v3707, %v4178
        %v4328 = vmul.f32 %v3709, %v4183
        %v4329 = vmul.f32 %v3712, %v4188
        %v4330 = vmul.f32 %v3714, %v4193
        %v4331 = vmul.f32 %v3717, %v4198
        %v4332 = vmul.f32 %v3719, %v4203
        %v4333 = vmul.f32 %v3722, %v4208
        %v4334 = vmul.f32 %v3724, %v4213
        %v4335 = vmul.f32 %v3727, %v4218
        %v4336 = vmul.f32 %v3729, %v4223
        %v4337 = vmul.f32 %v3732, %v4228
        %v4338 = vmul.f32 %v3734, %v4233
        %v4339 = vmul.f32 %v3737, %v4238
        %v4340 = vmul.f32 %v3739, %v4243
        %v4341 = vmul.f32 %v3742, %v4248
        %v4342 = vmul.f32 %v3744, %v4253
        %v4343 = vmul.f32 %v3747, %v4258
        %v4344 = vmul.f32 %v3749, %v4263
        %v4345 = vmul.f32 %v3752, %v4268
        %v4346 = vmul.f32 %v3754, %v4273
        %v4347 = vmul.f32 %v3757, %v4278
        %v4348 = vmul.f32 %v3759, %v4283
        %v4349 = vmul.f32 %v3762, %v4288
        %v4350 = vmul.f32 %v3764, %v4293
        %v4351 = vmul.f32 %v3767, %v4298
        %v4352 = vmul.f32 %v3769, %v4303
        %v4353 = vmul.f32 %v3772, %v4308
        %v4354 = vmul.f32 %v3774, %v4313
        %v4355 = vmul.f32 %v3777, %v4318
        %v4356 = vmul.f32 %v3779, %v4323
        %v4357 = vpack.c.bf16 %v4038, %v4037
        %v4358 = vpack.c.bf16 %v4040, %v4039
        %v4359 = vpack.c.bf16 %v4042, %v4041
        %v4360 = vpack.c.bf16 %v4044, %v4043
        %v4361 = vpack.c.bf16 %v4046, %v4045
        %v4362 = vpack.c.bf16 %v4048, %v4047
        %v4363 = vpack.c.bf16 %v4050, %v4049
        %v4364 = vpack.c.bf16 %v4052, %v4051
        %v4365 = vpack.c.bf16 %v4054, %v4053
        %v4366 = vpack.c.bf16 %v4056, %v4055
        %v4367 = vpack.c.bf16 %v4058, %v4057
        %v4368 = vpack.c.bf16 %v4060, %v4059
        %v4369 = vpack.c.bf16 %v4062, %v4061
        %v4370 = vpack.c.bf16 %v4064, %v4063
        %v4371 = vpack.c.bf16 %v4066, %v4065
        %v4372 = vpack.c.bf16 %v4068, %v4067
        %v4373 = vld [vmem:[#allocation8] sm:$0xff]
        %v4374 = vld [vmem:[#allocation8 + $0x8] sm:$0xf]
        %v4375 = vld [vmem:[#allocation8 + $0xc] sm:$0xff]
        %v4376 = vld [vmem:[#allocation8 + $0x14] sm:$0xf]
        %v4377 = vld [vmem:[#allocation8 + $0x18] sm:$0xff]
        %v4378 = vld [vmem:[#allocation8 + $0x20] sm:$0xf]
        %v4379 = vld [vmem:[#allocation8 + $0x24] sm:$0xff]
        %v4380 = vld [vmem:[#allocation8 + $0x2c] sm:$0xf]
        %v4381 = vld [vmem:[#allocation8 + $0x30] sm:$0xff]
        %v4382 = vld [vmem:[#allocation8 + $0x38] sm:$0xf]
        %v4383 = vld [vmem:[#allocation8 + $0x3c] sm:$0xff]
        %v4384 = vld [vmem:[#allocation8 + $0x44] sm:$0xf]
        %v4385 = vld [vmem:[#allocation8 + $0x48] sm:$0xff]
        %v4386 = vld [vmem:[#allocation8 + $0x50] sm:$0xf]
        %v4387 = vld [vmem:[#allocation8 + $0x54] sm:$0xff]
        %v4388 = vld [vmem:[#allocation8 + $0x5c] sm:$0xf]
        %v4389 = vld [vmem:[#allocation8 + $0x60] sm:$0xff]
        %v4390 = vld [vmem:[#allocation8 + $0x68] sm:$0xf]
        %v4391 = vld [vmem:[#allocation8 + $0x6c] sm:$0xff]
        %v4392 = vld [vmem:[#allocation8 + $0x74] sm:$0xf]
        %v4393 = vld [vmem:[#allocation8 + $0x78] sm:$0xff]
        %v4394 = vld [vmem:[#allocation8 + $0x80] sm:$0xf]
        %v4395 = vld [vmem:[#allocation8 + $0x84] sm:$0xff]
        %v4396 = vld [vmem:[#allocation8 + $0x8c] sm:$0xf]
        %v4397 = vld [vmem:[#allocation8 + $0x90] sm:$0xff]
        %v4398 = vld [vmem:[#allocation8 + $0x98] sm:$0xf]
        %v4399 = vld [vmem:[#allocation8 + $0x9c] sm:$0xff]
        %v4400 = vld [vmem:[#allocation8 + $0xa4] sm:$0xf]
        %v4401 = vld [vmem:[#allocation8 + $0xa8] sm:$0xff]
        %v4402 = vld [vmem:[#allocation8 + $0xb0] sm:$0xf]
        %v4403 = vld [vmem:[#allocation8 + $0xb4] sm:$0xff]
        %v4404 = vld [vmem:[#allocation8 + $0xbc] sm:$0xf]
        %v4405 = vpack.c.bf16 %v4326, %v4325
        %v4406 = vpack.c.bf16 %v4328, %v4327
        %v4407 = vpack.c.bf16 %v4330, %v4329
        %v4408 = vpack.c.bf16 %v4332, %v4331
        %v4409 = vpack.c.bf16 %v4334, %v4333
        %v4410 = vpack.c.bf16 %v4336, %v4335
        %v4411 = vpack.c.bf16 %v4338, %v4337
        %v4412 = vpack.c.bf16 %v4340, %v4339
        %v4413 = vpack.c.bf16 %v4342, %v4341
        %v4414 = vpack.c.bf16 %v4344, %v4343
        %v4415 = vpack.c.bf16 %v4346, %v4345
        %v4416 = vpack.c.bf16 %v4348, %v4347
        %v4417 = vpack.c.bf16 %v4350, %v4349
        %v4418 = vpack.c.bf16 %v4352, %v4351
        %v4419 = vpack.c.bf16 %v4354, %v4353
        %v4420 = vpack.c.bf16 %v4356, %v4355
        %v4421 = vld [vmem:[#allocation10] sm:$0xff]
        %v4422 = vld [vmem:[#allocation10 + $0x8] sm:$0xf]
        %v4423 = vld [vmem:[#allocation10 + $0xc] sm:$0xff]
        %v4424 = vld [vmem:[#allocation10 + $0x14] sm:$0xf]
        %v4425 = vld [vmem:[#allocation10 + $0x18] sm:$0xff]
        %v4426 = vld [vmem:[#allocation10 + $0x20] sm:$0xf]
        %v4427 = vld [vmem:[#allocation10 + $0x24] sm:$0xff]
        %v4428 = vld [vmem:[#allocation10 + $0x2c] sm:$0xf]
        %v4429 = vld [vmem:[#allocation10 + $0x30] sm:$0xff]
        %v4430 = vld [vmem:[#allocation10 + $0x38] sm:$0xf]
        %v4431 = vld [vmem:[#allocation10 + $0x3c] sm:$0xff]
        %v4432 = vld [vmem:[#allocation10 + $0x44] sm:$0xf]
        %v4433 = vld [vmem:[#allocation10 + $0x48] sm:$0xff]
        %v4434 = vld [vmem:[#allocation10 + $0x50] sm:$0xf]
        %v4435 = vld [vmem:[#allocation10 + $0x54] sm:$0xff]
        %v4436 = vld [vmem:[#allocation10 + $0x5c] sm:$0xf]
        %v4437 = vld [vmem:[#allocation10 + $0x60] sm:$0xff]
        %v4438 = vld [vmem:[#allocation10 + $0x68] sm:$0xf]
        %v4439 = vld [vmem:[#allocation10 + $0x6c] sm:$0xff]
        %v4440 = vld [vmem:[#allocation10 + $0x74] sm:$0xf]
        %v4441 = vld [vmem:[#allocation10 + $0x78] sm:$0xff]
        %v4442 = vld [vmem:[#allocation10 + $0x80] sm:$0xf]
        %v4443 = vld [vmem:[#allocation10 + $0x84] sm:$0xff]
        %v4444 = vld [vmem:[#allocation10 + $0x8c] sm:$0xf]
        %v4445 = vld [vmem:[#allocation10 + $0x90] sm:$0xff]
        %v4446 = vld [vmem:[#allocation10 + $0x98] sm:$0xf]
        %v4447 = vld [vmem:[#allocation10 + $0x9c] sm:$0xff]
        %v4448 = vld [vmem:[#allocation10 + $0xa4] sm:$0xf]
        %v4449 = vld [vmem:[#allocation10 + $0xa8] sm:$0xff]
        %v4450 = vld [vmem:[#allocation10 + $0xb0] sm:$0xf]
        %v4451 = vld [vmem:[#allocation10 + $0xb4] sm:$0xff]
        %v4452 = vld [vmem:[#allocation10 + $0xbc] sm:$0xf]
        %v4485 = vunpack.c.l.b16 %v4421
        %v4486 = vunpack.c.h.b16 %v4421
        %v4487 = vunpack.c.l.b16 %v4422
        %v4488 = vunpack.c.l.b16 %v4423
        %v4489 = vunpack.c.h.b16 %v4423
        %v4490 = vunpack.c.l.b16 %v4424
        %v4491 = vunpack.c.l.b16 %v4425
        %v4492 = vunpack.c.h.b16 %v4425
        %v4493 = vunpack.c.l.b16 %v4426
        %v4494 = vunpack.c.l.b16 %v4427
        %v4495 = vunpack.c.h.b16 %v4427
        %v4496 = vunpack.c.l.b16 %v4428
        %v4497 = vunpack.c.l.b16 %v4429
        %v4498 = vunpack.c.h.b16 %v4429
        %v4499 = vunpack.c.l.b16 %v4430
        %v4500 = vunpack.c.l.b16 %v4431
        %v4501 = vunpack.c.h.b16 %v4431
        %v4502 = vunpack.c.l.b16 %v4432
        %v4503 = vunpack.c.l.b16 %v4433
        %v4504 = vunpack.c.h.b16 %v4433
        %v4505 = vunpack.c.l.b16 %v4434
        %v4506 = vunpack.c.l.b16 %v4435
        %v4507 = vunpack.c.h.b16 %v4435
        %v4508 = vunpack.c.l.b16 %v4436
        %v4509 = vunpack.c.l.b16 %v4437
        %v4510 = vunpack.c.h.b16 %v4437
        %v4511 = vunpack.c.l.b16 %v4438
        %v4512 = vunpack.c.l.b16 %v4439
        %v4513 = vunpack.c.h.b16 %v4439
        %v4514 = vunpack.c.l.b16 %v4440
        %v4515 = vunpack.c.l.b16 %v4441
        %v4516 = vunpack.c.h.b16 %v4441
        %v4517 = vunpack.c.l.b16 %v4442
        %v4518 = vunpack.c.l.b16 %v4443
        %v4519 = vunpack.c.h.b16 %v4443
        %v4520 = vunpack.c.l.b16 %v4444
        %v4521 = vunpack.c.l.b16 %v4445
        %v4522 = vunpack.c.h.b16 %v4445
        %v4523 = vunpack.c.l.b16 %v4446
        %v4524 = vunpack.c.l.b16 %v4447
        %v4525 = vunpack.c.h.b16 %v4447
        %v4526 = vunpack.c.l.b16 %v4448
        %v4527 = vunpack.c.l.b16 %v4449
        %v4528 = vunpack.c.h.b16 %v4449
        %v4529 = vunpack.c.l.b16 %v4450
        %v4530 = vunpack.c.l.b16 %v4451
        %v4531 = vunpack.c.h.b16 %v4451
        %v4532 = vunpack.c.l.b16 %v4452
        %v4533 = vpack.c.b16 %v4488, %v4485
        %v4534 = vpack.c.b16 %v4489, %v4486
        %v4535 = vpack.c.b16 %v4490, %v4487
        %v4536 = vpack.c.b16 %v4494, %v4491
        %v4537 = vpack.c.b16 %v4495, %v4492
        %v4538 = vpack.c.b16 %v4496, %v4493
        %v4539 = vpack.c.b16 %v4500, %v4497
        %v4540 = vpack.c.b16 %v4501, %v4498
        %v4541 = vpack.c.b16 %v4502, %v4499
        %v4542 = vpack.c.b16 %v4506, %v4503
        %v4543 = vpack.c.b16 %v4507, %v4504
        %v4544 = vpack.c.b16 %v4508, %v4505
        %v4545 = vpack.c.b16 %v4512, %v4509
        %v4546 = vpack.c.b16 %v4513, %v4510
        %v4547 = vpack.c.b16 %v4514, %v4511
        %v4548 = vpack.c.b16 %v4518, %v4515
        %v4549 = vpack.c.b16 %v4519, %v4516
        %v4550 = vpack.c.b16 %v4520, %v4517
        %v4551 = vpack.c.b16 %v4524, %v4521
        %v4552 = vpack.c.b16 %v4525, %v4522
        %v4553 = vpack.c.b16 %v4526, %v4523
        %v4554 = vpack.c.b16 %v4530, %v4527
        %v4555 = vpack.c.b16 %v4531, %v4528
        %v4556 = vpack.c.b16 %v4532, %v4529
        %4581 = vmatpush.bf16.msra.mxu0 %v4554
        %4582 = vmatpush.bf16.msra.mxu0 %v4551
        %4583 = vmatpush.bf16.msra.mxu0 %v4548
        %4584 = vmatpush.bf16.msra.mxu0 %v4545
        %4585 = vmatpush.bf16.msra.mxu0 %v4542
        %4586 = vmatpush.bf16.msra.mxu0 %v4539
        %4587 = vmatpush.bf16.msra.mxu0 %v4536
        %4588 = vmatpush.bf16.msra.mxu0 %v4533
        %4589 = vmatmul.bf16.gmra.mxu0 %v4405
        %v4590 = vpop.f32.mrf.mxu0
        %v4591 = vadd.f32 0.0, %v4590
        %v4592 = vpop.f32.mrf.mxu0
        %v4593 = vadd.f32 0.0, %v4592
        %4594 = vmatmul.bf16.gmra.mxu0 %v4406
        %v4595 = vpop.f32.mrf.mxu0
        %v4596 = vadd.f32 0.0, %v4595
        %v4597 = vpop.f32.mrf.mxu0
        %v4598 = vadd.f32 0.0, %v4597
        %4599 = vmatmul.bf16.gmra.mxu0 %v4407
        %v4600 = vpop.f32.mrf.mxu0
        %v4601 = vadd.f32 0.0, %v4600
        %v4602 = vpop.f32.mrf.mxu0
        %v4603 = vadd.f32 0.0, %v4602
        %4604 = vmatmul.bf16.gmra.mxu0 %v4408
        %v4605 = vpop.f32.mrf.mxu0
        %v4606 = vadd.f32 0.0, %v4605
        %v4607 = vpop.f32.mrf.mxu0
        %v4608 = vadd.f32 0.0, %v4607
        %4609 = vmatmul.bf16.gmra.mxu0 %v4409
        %v4610 = vpop.f32.mrf.mxu0
        %v4611 = vadd.f32 0.0, %v4610
        %v4612 = vpop.f32.mrf.mxu0
        %v4613 = vadd.f32 0.0, %v4612
        %4614 = vmatmul.bf16.gmra.mxu0 %v4410
        %v4615 = vpop.f32.mrf.mxu0
        %v4616 = vadd.f32 0.0, %v4615
        %v4617 = vpop.f32.mrf.mxu0
        %v4618 = vadd.f32 0.0, %v4617
        %4619 = vmatmul.bf16.gmra.mxu0 %v4411
        %v4620 = vpop.f32.mrf.mxu0
        %v4621 = vadd.f32 0.0, %v4620
        %v4622 = vpop.f32.mrf.mxu0
        %v4623 = vadd.f32 0.0, %v4622
        %4624 = vmatmul.bf16.gmra.mxu0 %v4412
        %v4625 = vpop.f32.mrf.mxu0
        %v4626 = vadd.f32 0.0, %v4625
        %v4627 = vpop.f32.mrf.mxu0
        %v4628 = vadd.f32 0.0, %v4627
        %4629 = vmatmul.bf16.gmra.mxu0 %v4413
        %v4630 = vpop.f32.mrf.mxu0
        %v4631 = vadd.f32 0.0, %v4630
        %v4632 = vpop.f32.mrf.mxu0
        %v4633 = vadd.f32 0.0, %v4632
        %4634 = vmatmul.bf16.gmra.mxu0 %v4414
        %v4635 = vpop.f32.mrf.mxu0
        %v4636 = vadd.f32 0.0, %v4635
        %v4637 = vpop.f32.mrf.mxu0
        %v4638 = vadd.f32 0.0, %v4637
        %4639 = vmatmul.bf16.gmra.mxu0 %v4415
        %v4640 = vpop.f32.mrf.mxu0
        %v4641 = vadd.f32 0.0, %v4640
        %v4642 = vpop.f32.mrf.mxu0
        %v4643 = vadd.f32 0.0, %v4642
        %4644 = vmatmul.bf16.gmra.mxu0 %v4416
        %v4645 = vpop.f32.mrf.mxu0
        %v4646 = vadd.f32 0.0, %v4645
        %v4647 = vpop.f32.mrf.mxu0
        %v4648 = vadd.f32 0.0, %v4647
        %4649 = vmatmul.bf16.gmra.mxu0 %v4417
        %v4650 = vpop.f32.mrf.mxu0
        %v4651 = vadd.f32 0.0, %v4650
        %v4652 = vpop.f32.mrf.mxu0
        %v4653 = vadd.f32 0.0, %v4652
        %4654 = vmatmul.bf16.gmra.mxu0 %v4418
        %v4655 = vpop.f32.mrf.mxu0
        %v4656 = vadd.f32 0.0, %v4655
        %v4657 = vpop.f32.mrf.mxu0
        %v4658 = vadd.f32 0.0, %v4657
        %4659 = vmatmul.bf16.gmra.mxu0 %v4419
        %v4660 = vpop.f32.mrf.mxu0
        %v4661 = vadd.f32 0.0, %v4660
        %v4662 = vpop.f32.mrf.mxu0
        %v4663 = vadd.f32 0.0, %v4662
        %4664 = vmatmul.bf16.gmra.mxu0 %v4420
        %v4665 = vpop.f32.mrf.mxu0
        %v4666 = vadd.f32 0.0, %v4665
        %v4667 = vpop.f32.mrf.mxu0
        %v4668 = vadd.f32 0.0, %v4667
        %4669 = vdwg.mxu0
        %4670 = vmatpush.bf16.msra.mxu0 %v4555
        %4671 = vmatpush.bf16.msra.mxu0 %v4552
        %4672 = vmatpush.bf16.msra.mxu0 %v4549
        %4673 = vmatpush.bf16.msra.mxu0 %v4546
        %4674 = vmatpush.bf16.msra.mxu0 %v4543
        %4675 = vmatpush.bf16.msra.mxu0 %v4540
        %4676 = vmatpush.bf16.msra.mxu0 %v4537
        %4677 = vmatpush.bf16.msra.mxu0 %v4534
        %4678 = vmatmul.bf16.gmra.mxu0 %v4405
        %v4679 = vpop.f32.mrf.mxu0
        %v4680 = vadd.f32 0.0, %v4679
        %v4681 = vpop.f32.mrf.mxu0
        %v4682 = vadd.f32 0.0, %v4681
        %4683 = vmatmul.bf16.gmra.mxu0 %v4406
        %v4684 = vpop.f32.mrf.mxu0
        %v4685 = vadd.f32 0.0, %v4684
        %v4686 = vpop.f32.mrf.mxu0
        %v4687 = vadd.f32 0.0, %v4686
        %4688 = vmatmul.bf16.gmra.mxu0 %v4407
        %v4689 = vpop.f32.mrf.mxu0
        %v4690 = vadd.f32 0.0, %v4689
        %v4691 = vpop.f32.mrf.mxu0
        %v4692 = vadd.f32 0.0, %v4691
        %4693 = vmatmul.bf16.gmra.mxu0 %v4408
        %v4694 = vpop.f32.mrf.mxu0
        %v4695 = vadd.f32 0.0, %v4694
        %v4696 = vpop.f32.mrf.mxu0
        %v4697 = vadd.f32 0.0, %v4696
        %4698 = vmatmul.bf16.gmra.mxu0 %v4409
        %v4699 = vpop.f32.mrf.mxu0
        %v4700 = vadd.f32 0.0, %v4699
        %v4701 = vpop.f32.mrf.mxu0
        %v4702 = vadd.f32 0.0, %v4701
        %4703 = vmatmul.bf16.gmra.mxu0 %v4410
        %v4704 = vpop.f32.mrf.mxu0
        %v4705 = vadd.f32 0.0, %v4704
        %v4706 = vpop.f32.mrf.mxu0
        %v4707 = vadd.f32 0.0, %v4706
        %4708 = vmatmul.bf16.gmra.mxu0 %v4411
        %v4709 = vpop.f32.mrf.mxu0
        %v4710 = vadd.f32 0.0, %v4709
        %v4711 = vpop.f32.mrf.mxu0
        %v4712 = vadd.f32 0.0, %v4711
        %4713 = vmatmul.bf16.gmra.mxu0 %v4412
        %v4714 = vpop.f32.mrf.mxu0
        %v4715 = vadd.f32 0.0, %v4714
        %v4716 = vpop.f32.mrf.mxu0
        %v4717 = vadd.f32 0.0, %v4716
        %4718 = vmatmul.bf16.gmra.mxu0 %v4413
        %v4719 = vpop.f32.mrf.mxu0
        %v4720 = vadd.f32 0.0, %v4719
        %v4721 = vpop.f32.mrf.mxu0
        %v4722 = vadd.f32 0.0, %v4721
        %4723 = vmatmul.bf16.gmra.mxu0 %v4414
        %v4724 = vpop.f32.mrf.mxu0
        %v4725 = vadd.f32 0.0, %v4724
        %v4726 = vpop.f32.mrf.mxu0
        %v4727 = vadd.f32 0.0, %v4726
        %4728 = vmatmul.bf16.gmra.mxu0 %v4415
        %v4729 = vpop.f32.mrf.mxu0
        %v4730 = vadd.f32 0.0, %v4729
        %v4731 = vpop.f32.mrf.mxu0
        %v4732 = vadd.f32 0.0, %v4731
        %4733 = vmatmul.bf16.gmra.mxu0 %v4416
        %v4734 = vpop.f32.mrf.mxu0
        %v4735 = vadd.f32 0.0, %v4734
        %v4736 = vpop.f32.mrf.mxu0
        %v4737 = vadd.f32 0.0, %v4736
        %4738 = vmatmul.bf16.gmra.mxu0 %v4417
        %v4739 = vpop.f32.mrf.mxu0
        %v4740 = vadd.f32 0.0, %v4739
        %v4741 = vpop.f32.mrf.mxu0
        %v4742 = vadd.f32 0.0, %v4741
        %4743 = vmatmul.bf16.gmra.mxu0 %v4418
        %v4744 = vpop.f32.mrf.mxu0
        %v4745 = vadd.f32 0.0, %v4744
        %v4746 = vpop.f32.mrf.mxu0
        %v4747 = vadd.f32 0.0, %v4746
        %4748 = vmatmul.bf16.gmra.mxu0 %v4419
        %v4749 = vpop.f32.mrf.mxu0
        %v4750 = vadd.f32 0.0, %v4749
        %v4751 = vpop.f32.mrf.mxu0
        %v4752 = vadd.f32 0.0, %v4751
        %4753 = vmatmul.bf16.gmra.mxu0 %v4420
        %v4754 = vpop.f32.mrf.mxu0
        %v4755 = vadd.f32 0.0, %v4754
        %v4756 = vpop.f32.mrf.mxu0
        %v4757 = vadd.f32 0.0, %v4756
        %4758 = vdwg.mxu0
        %4759 = vmatpush.bf16.msra.mxu0 %v4556
        %4760 = vmatpush.bf16.msra.mxu0 %v4553
        %4761 = vmatpush.bf16.msra.mxu0 %v4550
        %4762 = vmatpush.bf16.msra.mxu0 %v4547
        %4763 = vmatpush.bf16.msra.mxu0 %v4544
        %4764 = vmatpush.bf16.msra.mxu0 %v4541
        %4765 = vmatpush.bf16.msra.mxu0 %v4538
        %4766 = vmatpush.bf16.msra.mxu0 %v4535
        %4767 = vmatmul.bf16.gmra.mxu0 %v4405
        %v4768 = vpop.f32.mrf.mxu0
        %v4769 = vadd.f32 0.0, %v4768
        %v4770 = vpop.f32.mrf.mxu0
        %v4771 = vadd.f32 0.0, %v4770
        %4772 = vmatmul.bf16.gmra.mxu0 %v4406
        %v4773 = vpop.f32.mrf.mxu0
        %v4774 = vadd.f32 0.0, %v4773
        %v4775 = vpop.f32.mrf.mxu0
        %v4776 = vadd.f32 0.0, %v4775
        %4777 = vmatmul.bf16.gmra.mxu0 %v4407
        %v4778 = vpop.f32.mrf.mxu0
        %v4779 = vadd.f32 0.0, %v4778
        %v4780 = vpop.f32.mrf.mxu0
        %v4781 = vadd.f32 0.0, %v4780
        %4782 = vmatmul.bf16.gmra.mxu0 %v4408
        %v4783 = vpop.f32.mrf.mxu0
        %v4784 = vadd.f32 0.0, %v4783
        %v4785 = vpop.f32.mrf.mxu0
        %v4786 = vadd.f32 0.0, %v4785
        %4787 = vmatmul.bf16.gmra.mxu0 %v4409
        %v4788 = vpop.f32.mrf.mxu0
        %v4789 = vadd.f32 0.0, %v4788
        %v4790 = vpop.f32.mrf.mxu0
        %v4791 = vadd.f32 0.0, %v4790
        %4792 = vmatmul.bf16.gmra.mxu0 %v4410
        %v4793 = vpop.f32.mrf.mxu0
        %v4794 = vadd.f32 0.0, %v4793
        %v4795 = vpop.f32.mrf.mxu0
        %v4796 = vadd.f32 0.0, %v4795
        %4797 = vmatmul.bf16.gmra.mxu0 %v4411
        %v4798 = vpop.f32.mrf.mxu0
        %v4799 = vadd.f32 0.0, %v4798
        %v4800 = vpop.f32.mrf.mxu0
        %v4801 = vadd.f32 0.0, %v4800
        %4802 = vmatmul.bf16.gmra.mxu0 %v4412
        %v4803 = vpop.f32.mrf.mxu0
        %v4804 = vadd.f32 0.0, %v4803
        %v4805 = vpop.f32.mrf.mxu0
        %v4806 = vadd.f32 0.0, %v4805
        %4807 = vmatmul.bf16.gmra.mxu0 %v4413
        %v4808 = vpop.f32.mrf.mxu0
        %v4809 = vadd.f32 0.0, %v4808
        %v4810 = vpop.f32.mrf.mxu0
        %v4811 = vadd.f32 0.0, %v4810
        %4812 = vmatmul.bf16.gmra.mxu0 %v4414
        %v4813 = vpop.f32.mrf.mxu0
        %v4814 = vadd.f32 0.0, %v4813
        %v4815 = vpop.f32.mrf.mxu0
        %v4816 = vadd.f32 0.0, %v4815
        %4817 = vmatmul.bf16.gmra.mxu0 %v4415
        %v4818 = vpop.f32.mrf.mxu0
        %v4819 = vadd.f32 0.0, %v4818
        %v4820 = vpop.f32.mrf.mxu0
        %v4821 = vadd.f32 0.0, %v4820
        %4822 = vmatmul.bf16.gmra.mxu0 %v4416
        %v4823 = vpop.f32.mrf.mxu0
        %v4824 = vadd.f32 0.0, %v4823
        %v4825 = vpop.f32.mrf.mxu0
        %v4826 = vadd.f32 0.0, %v4825
        %4827 = vmatmul.bf16.gmra.mxu0 %v4417
        %v4828 = vpop.f32.mrf.mxu0
        %v4829 = vadd.f32 0.0, %v4828
        %v4830 = vpop.f32.mrf.mxu0
        %v4831 = vadd.f32 0.0, %v4830
        %4832 = vmatmul.bf16.gmra.mxu0 %v4418
        %v4833 = vpop.f32.mrf.mxu0
        %v4834 = vadd.f32 0.0, %v4833
        %v4835 = vpop.f32.mrf.mxu0
        %v4836 = vadd.f32 0.0, %v4835
        %4837 = vmatmul.bf16.gmra.mxu0 %v4419
        %v4838 = vpop.f32.mrf.mxu0
        %v4839 = vadd.f32 0.0, %v4838
        %v4840 = vpop.f32.mrf.mxu0
        %v4841 = vadd.f32 0.0, %v4840
        %4842 = vmatmul.bf16.gmra.mxu0 %v4420
        %v4843 = vpop.f32.mrf.mxu0
        %v4844 = vadd.f32 0.0, %v4843
        %v4845 = vpop.f32.mrf.mxu0
        %v4846 = vadd.f32 0.0, %v4845
        %4847 = vdwg.mxu0
        %v4880 = vunpack.c.l.b16 %v4373
        %v4881 = vunpack.c.h.b16 %v4373
        %v4882 = vunpack.c.l.b16 %v4374
        %v4883 = vunpack.c.l.b16 %v4375
        %v4884 = vunpack.c.h.b16 %v4375
        %v4885 = vunpack.c.l.b16 %v4376
        %v4886 = vunpack.c.l.b16 %v4377
        %v4887 = vunpack.c.h.b16 %v4377
        %v4888 = vunpack.c.l.b16 %v4378
        %v4889 = vunpack.c.l.b16 %v4379
        %v4890 = vunpack.c.h.b16 %v4379
        %v4891 = vunpack.c.l.b16 %v4380
        %v4892 = vunpack.c.l.b16 %v4381
        %v4893 = vunpack.c.h.b16 %v4381
        %v4894 = vunpack.c.l.b16 %v4382
        %v4895 = vunpack.c.l.b16 %v4383
        %v4896 = vunpack.c.h.b16 %v4383
        %v4897 = vunpack.c.l.b16 %v4384
        %v4898 = vunpack.c.l.b16 %v4385
        %v4899 = vunpack.c.h.b16 %v4385
        %v4900 = vunpack.c.l.b16 %v4386
        %v4901 = vunpack.c.l.b16 %v4387
        %v4902 = vunpack.c.h.b16 %v4387
        %v4903 = vunpack.c.l.b16 %v4388
        %v4904 = vunpack.c.l.b16 %v4389
        %v4905 = vunpack.c.h.b16 %v4389
        %v4906 = vunpack.c.l.b16 %v4390
        %v4907 = vunpack.c.l.b16 %v4391
        %v4908 = vunpack.c.h.b16 %v4391
        %v4909 = vunpack.c.l.b16 %v4392
        %v4910 = vunpack.c.l.b16 %v4393
        %v4911 = vunpack.c.h.b16 %v4393
        %v4912 = vunpack.c.l.b16 %v4394
        %v4913 = vunpack.c.l.b16 %v4395
        %v4914 = vunpack.c.h.b16 %v4395
        %v4915 = vunpack.c.l.b16 %v4396
        %v4916 = vunpack.c.l.b16 %v4397
        %v4917 = vunpack.c.h.b16 %v4397
        %v4918 = vunpack.c.l.b16 %v4398
        %v4919 = vunpack.c.l.b16 %v4399
        %v4920 = vunpack.c.h.b16 %v4399
        %v4921 = vunpack.c.l.b16 %v4400
        %v4922 = vunpack.c.l.b16 %v4401
        %v4923 = vunpack.c.h.b16 %v4401
        %v4924 = vunpack.c.l.b16 %v4402
        %v4925 = vunpack.c.l.b16 %v4403
        %v4926 = vunpack.c.h.b16 %v4403
        %v4927 = vunpack.c.l.b16 %v4404
        %v4928 = vpack.c.b16 %v4883, %v4880
        %v4929 = vpack.c.b16 %v4884, %v4881
        %v4930 = vpack.c.b16 %v4885, %v4882
        %v4931 = vpack.c.b16 %v4889, %v4886
        %v4932 = vpack.c.b16 %v4890, %v4887
        %v4933 = vpack.c.b16 %v4891, %v4888
        %v4934 = vpack.c.b16 %v4895, %v4892
        %v4935 = vpack.c.b16 %v4896, %v4893
        %v4936 = vpack.c.b16 %v4897, %v4894
        %v4937 = vpack.c.b16 %v4901, %v4898
        %v4938 = vpack.c.b16 %v4902, %v4899
        %v4939 = vpack.c.b16 %v4903, %v4900
        %v4940 = vpack.c.b16 %v4907, %v4904
        %v4941 = vpack.c.b16 %v4908, %v4905
        %v4942 = vpack.c.b16 %v4909, %v4906
        %v4943 = vpack.c.b16 %v4913, %v4910
        %v4944 = vpack.c.b16 %v4914, %v4911
        %v4945 = vpack.c.b16 %v4915, %v4912
        %v4946 = vpack.c.b16 %v4919, %v4916
        %v4947 = vpack.c.b16 %v4920, %v4917
        %v4948 = vpack.c.b16 %v4921, %v4918
        %v4949 = vpack.c.b16 %v4925, %v4922
        %v4950 = vpack.c.b16 %v4926, %v4923
        %v4951 = vpack.c.b16 %v4927, %v4924
        %4976 = vmatpush.bf16.msra.mxu0 %v4949
        %4977 = vmatpush.bf16.msra.mxu0 %v4946
        %4978 = vmatpush.bf16.msra.mxu0 %v4943
        %4979 = vmatpush.bf16.msra.mxu0 %v4940
        %4980 = vmatpush.bf16.msra.mxu0 %v4937
        %4981 = vmatpush.bf16.msra.mxu0 %v4934
        %4982 = vmatpush.bf16.msra.mxu0 %v4931
        %4983 = vmatpush.bf16.msra.mxu0 %v4928
        %4984 = vmatmul.bf16.gmra.mxu0 %v4357
        %v4985 = vpop.f32.mrf.mxu0
        %v4986 = vadd.f32 %v4591, %v4985
        %v4987 = vpop.f32.mrf.mxu0
        %v4988 = vadd.f32 %v4593, %v4987
        %4989 = vmatmul.bf16.gmra.mxu0 %v4358
        %v4990 = vpop.f32.mrf.mxu0
        %v4991 = vadd.f32 %v4596, %v4990
        %v4992 = vpop.f32.mrf.mxu0
        %v4993 = vadd.f32 %v4598, %v4992
        %4994 = vmatmul.bf16.gmra.mxu0 %v4359
        %v4995 = vpop.f32.mrf.mxu0
        %v4996 = vadd.f32 %v4601, %v4995
        %v4997 = vpop.f32.mrf.mxu0
        %v4998 = vadd.f32 %v4603, %v4997
        %4999 = vmatmul.bf16.gmra.mxu0 %v4360
        %v5000 = vpop.f32.mrf.mxu0
        %v5001 = vadd.f32 %v4606, %v5000
        %v5002 = vpop.f32.mrf.mxu0
        %v5003 = vadd.f32 %v4608, %v5002
        %5004 = vmatmul.bf16.gmra.mxu0 %v4361
        %v5005 = vpop.f32.mrf.mxu0
        %v5006 = vadd.f32 %v4611, %v5005
        %v5007 = vpop.f32.mrf.mxu0
        %v5008 = vadd.f32 %v4613, %v5007
        %5009 = vmatmul.bf16.gmra.mxu0 %v4362
        %v5010 = vpop.f32.mrf.mxu0
        %v5011 = vadd.f32 %v4616, %v5010
        %v5012 = vpop.f32.mrf.mxu0
        %v5013 = vadd.f32 %v4618, %v5012
        %5014 = vmatmul.bf16.gmra.mxu0 %v4363
        %v5015 = vpop.f32.mrf.mxu0
        %v5016 = vadd.f32 %v4621, %v5015
        %v5017 = vpop.f32.mrf.mxu0
        %v5018 = vadd.f32 %v4623, %v5017
        %5019 = vmatmul.bf16.gmra.mxu0 %v4364
        %v5020 = vpop.f32.mrf.mxu0
        %v5021 = vadd.f32 %v4626, %v5020
        %v5022 = vpop.f32.mrf.mxu0
        %v5023 = vadd.f32 %v4628, %v5022
        %5024 = vmatmul.bf16.gmra.mxu0 %v4365
        %v5025 = vpop.f32.mrf.mxu0
        %v5026 = vadd.f32 %v4631, %v5025
        %v5027 = vpop.f32.mrf.mxu0
        %v5028 = vadd.f32 %v4633, %v5027
        %5029 = vmatmul.bf16.gmra.mxu0 %v4366
        %v5030 = vpop.f32.mrf.mxu0
        %v5031 = vadd.f32 %v4636, %v5030
        %v5032 = vpop.f32.mrf.mxu0
        %v5033 = vadd.f32 %v4638, %v5032
        %5034 = vmatmul.bf16.gmra.mxu0 %v4367
        %v5035 = vpop.f32.mrf.mxu0
        %v5036 = vadd.f32 %v4641, %v5035
        %v5037 = vpop.f32.mrf.mxu0
        %v5038 = vadd.f32 %v4643, %v5037
        %5039 = vmatmul.bf16.gmra.mxu0 %v4368
        %v5040 = vpop.f32.mrf.mxu0
        %v5041 = vadd.f32 %v4646, %v5040
        %v5042 = vpop.f32.mrf.mxu0
        %v5043 = vadd.f32 %v4648, %v5042
        %5044 = vmatmul.bf16.gmra.mxu0 %v4369
        %v5045 = vpop.f32.mrf.mxu0
        %v5046 = vadd.f32 %v4651, %v5045
        %v5047 = vpop.f32.mrf.mxu0
        %v5048 = vadd.f32 %v4653, %v5047
        %5049 = vmatmul.bf16.gmra.mxu0 %v4370
        %v5050 = vpop.f32.mrf.mxu0
        %v5051 = vadd.f32 %v4656, %v5050
        %v5052 = vpop.f32.mrf.mxu0
        %v5053 = vadd.f32 %v4658, %v5052
        %5054 = vmatmul.bf16.gmra.mxu0 %v4371
        %v5055 = vpop.f32.mrf.mxu0
        %v5056 = vadd.f32 %v4661, %v5055
        %v5057 = vpop.f32.mrf.mxu0
        %v5058 = vadd.f32 %v4663, %v5057
        %5059 = vmatmul.bf16.gmra.mxu0 %v4372
        %v5060 = vpop.f32.mrf.mxu0
        %v5061 = vadd.f32 %v4666, %v5060
        %v5062 = vpop.f32.mrf.mxu0
        %v5063 = vadd.f32 %v4668, %v5062
        %5064 = vdwg.mxu0
        %5065 = vmatpush.bf16.msra.mxu0 %v4950
        %5066 = vmatpush.bf16.msra.mxu0 %v4947
        %5067 = vmatpush.bf16.msra.mxu0 %v4944
        %5068 = vmatpush.bf16.msra.mxu0 %v4941
        %5069 = vmatpush.bf16.msra.mxu0 %v4938
        %5070 = vmatpush.bf16.msra.mxu0 %v4935
        %5071 = vmatpush.bf16.msra.mxu0 %v4932
        %5072 = vmatpush.bf16.msra.mxu0 %v4929
        %5073 = vmatmul.bf16.gmra.mxu0 %v4357
        %v5074 = vpop.f32.mrf.mxu0
        %v5075 = vadd.f32 %v4680, %v5074
        %v5076 = vpop.f32.mrf.mxu0
        %v5077 = vadd.f32 %v4682, %v5076
        %5078 = vmatmul.bf16.gmra.mxu0 %v4358
        %v5079 = vpop.f32.mrf.mxu0
        %v5080 = vadd.f32 %v4685, %v5079
        %v5081 = vpop.f32.mrf.mxu0
        %v5082 = vadd.f32 %v4687, %v5081
        %5083 = vmatmul.bf16.gmra.mxu0 %v4359
        %v5084 = vpop.f32.mrf.mxu0
        %v5085 = vadd.f32 %v4690, %v5084
        %v5086 = vpop.f32.mrf.mxu0
        %v5087 = vadd.f32 %v4692, %v5086
        %5088 = vmatmul.bf16.gmra.mxu0 %v4360
        %v5089 = vpop.f32.mrf.mxu0
        %v5090 = vadd.f32 %v4695, %v5089
        %v5091 = vpop.f32.mrf.mxu0
        %v5092 = vadd.f32 %v4697, %v5091
        %5093 = vmatmul.bf16.gmra.mxu0 %v4361
        %v5094 = vpop.f32.mrf.mxu0
        %v5095 = vadd.f32 %v4700, %v5094
        %v5096 = vpop.f32.mrf.mxu0
        %v5097 = vadd.f32 %v4702, %v5096
        %5098 = vmatmul.bf16.gmra.mxu0 %v4362
        %v5099 = vpop.f32.mrf.mxu0
        %v5100 = vadd.f32 %v4705, %v5099
        %v5101 = vpop.f32.mrf.mxu0
        %v5102 = vadd.f32 %v4707, %v5101
        %5103 = vmatmul.bf16.gmra.mxu0 %v4363
        %v5104 = vpop.f32.mrf.mxu0
        %v5105 = vadd.f32 %v4710, %v5104
        %v5106 = vpop.f32.mrf.mxu0
        %v5107 = vadd.f32 %v4712, %v5106
        %5108 = vmatmul.bf16.gmra.mxu0 %v4364
        %v5109 = vpop.f32.mrf.mxu0
        %v5110 = vadd.f32 %v4715, %v5109
        %v5111 = vpop.f32.mrf.mxu0
        %v5112 = vadd.f32 %v4717, %v5111
        %5113 = vmatmul.bf16.gmra.mxu0 %v4365
        %v5114 = vpop.f32.mrf.mxu0
        %v5115 = vadd.f32 %v4720, %v5114
        %v5116 = vpop.f32.mrf.mxu0
        %v5117 = vadd.f32 %v4722, %v5116
        %5118 = vmatmul.bf16.gmra.mxu0 %v4366
        %v5119 = vpop.f32.mrf.mxu0
        %v5120 = vadd.f32 %v4725, %v5119
        %v5121 = vpop.f32.mrf.mxu0
        %v5122 = vadd.f32 %v4727, %v5121
        %5123 = vmatmul.bf16.gmra.mxu0 %v4367
        %v5124 = vpop.f32.mrf.mxu0
        %v5125 = vadd.f32 %v4730, %v5124
        %v5126 = vpop.f32.mrf.mxu0
        %v5127 = vadd.f32 %v4732, %v5126
        %5128 = vmatmul.bf16.gmra.mxu0 %v4368
        %v5129 = vpop.f32.mrf.mxu0
        %v5130 = vadd.f32 %v4735, %v5129
        %v5131 = vpop.f32.mrf.mxu0
        %v5132 = vadd.f32 %v4737, %v5131
        %5133 = vmatmul.bf16.gmra.mxu0 %v4369
        %v5134 = vpop.f32.mrf.mxu0
        %v5135 = vadd.f32 %v4740, %v5134
        %v5136 = vpop.f32.mrf.mxu0
        %v5137 = vadd.f32 %v4742, %v5136
        %5138 = vmatmul.bf16.gmra.mxu0 %v4370
        %v5139 = vpop.f32.mrf.mxu0
        %v5140 = vadd.f32 %v4745, %v5139
        %v5141 = vpop.f32.mrf.mxu0
        %v5142 = vadd.f32 %v4747, %v5141
        %5143 = vmatmul.bf16.gmra.mxu0 %v4371
        %v5144 = vpop.f32.mrf.mxu0
        %v5145 = vadd.f32 %v4750, %v5144
        %v5146 = vpop.f32.mrf.mxu0
        %v5147 = vadd.f32 %v4752, %v5146
        %5148 = vmatmul.bf16.gmra.mxu0 %v4372
        %v5149 = vpop.f32.mrf.mxu0
        %v5150 = vadd.f32 %v4755, %v5149
        %v5151 = vpop.f32.mrf.mxu0
        %v5152 = vadd.f32 %v4757, %v5151
        %5153 = vdwg.mxu0
        %5154 = vmatpush.bf16.msra.mxu0 %v4951
        %5155 = vmatpush.bf16.msra.mxu0 %v4948
        %5156 = vmatpush.bf16.msra.mxu0 %v4945
        %5157 = vmatpush.bf16.msra.mxu0 %v4942
        %5158 = vmatpush.bf16.msra.mxu0 %v4939
        %5159 = vmatpush.bf16.msra.mxu0 %v4936
        %5160 = vmatpush.bf16.msra.mxu0 %v4933
        %5161 = vmatpush.bf16.msra.mxu0 %v4930
        %5162 = vmatmul.bf16.gmra.mxu0 %v4357
        %v5163 = vpop.f32.mrf.mxu0
        %v5164 = vadd.f32 %v4769, %v5163
        %v5165 = vpop.f32.mrf.mxu0
        %v5166 = vadd.f32 %v4771, %v5165
        %5167 = vmatmul.bf16.gmra.mxu0 %v4358
        %v5168 = vpop.f32.mrf.mxu0
        %v5169 = vadd.f32 %v4774, %v5168
        %v5170 = vpop.f32.mrf.mxu0
        %v5171 = vadd.f32 %v4776, %v5170
        %5172 = vmatmul.bf16.gmra.mxu0 %v4359
        %v5173 = vpop.f32.mrf.mxu0
        %v5174 = vadd.f32 %v4779, %v5173
        %v5175 = vpop.f32.mrf.mxu0
        %v5176 = vadd.f32 %v4781, %v5175
        %5177 = vmatmul.bf16.gmra.mxu0 %v4360
        %v5178 = vpop.f32.mrf.mxu0
        %v5179 = vadd.f32 %v4784, %v5178
        %v5180 = vpop.f32.mrf.mxu0
        %v5181 = vadd.f32 %v4786, %v5180
        %5182 = vmatmul.bf16.gmra.mxu0 %v4361
        %v5183 = vpop.f32.mrf.mxu0
        %v5184 = vadd.f32 %v4789, %v5183
        %v5185 = vpop.f32.mrf.mxu0
        %v5186 = vadd.f32 %v4791, %v5185
        %5187 = vmatmul.bf16.gmra.mxu0 %v4362
        %v5188 = vpop.f32.mrf.mxu0
        %v5189 = vadd.f32 %v4794, %v5188
        %v5190 = vpop.f32.mrf.mxu0
        %v5191 = vadd.f32 %v4796, %v5190
        %5192 = vmatmul.bf16.gmra.mxu0 %v4363
        %v5193 = vpop.f32.mrf.mxu0
        %v5194 = vadd.f32 %v4799, %v5193
        %v5195 = vpop.f32.mrf.mxu0
        %v5196 = vadd.f32 %v4801, %v5195
        %5197 = vmatmul.bf16.gmra.mxu0 %v4364
        %v5198 = vpop.f32.mrf.mxu0
        %v5199 = vadd.f32 %v4804, %v5198
        %v5200 = vpop.f32.mrf.mxu0
        %v5201 = vadd.f32 %v4806, %v5200
        %5202 = vmatmul.bf16.gmra.mxu0 %v4365
        %v5203 = vpop.f32.mrf.mxu0
        %v5204 = vadd.f32 %v4809, %v5203
        %v5205 = vpop.f32.mrf.mxu0
        %v5206 = vadd.f32 %v4811, %v5205
        %5207 = vmatmul.bf16.gmra.mxu0 %v4366
        %v5208 = vpop.f32.mrf.mxu0
        %v5209 = vadd.f32 %v4814, %v5208
        %v5210 = vpop.f32.mrf.mxu0
        %v5211 = vadd.f32 %v4816, %v5210
        %5212 = vmatmul.bf16.gmra.mxu0 %v4367
        %v5213 = vpop.f32.mrf.mxu0
        %v5214 = vadd.f32 %v4819, %v5213
        %v5215 = vpop.f32.mrf.mxu0
        %v5216 = vadd.f32 %v4821, %v5215
        %5217 = vmatmul.bf16.gmra.mxu0 %v4368
        %v5218 = vpop.f32.mrf.mxu0
        %v5219 = vadd.f32 %v4824, %v5218
        %v5220 = vpop.f32.mrf.mxu0
        %v5221 = vadd.f32 %v4826, %v5220
        %5222 = vmatmul.bf16.gmra.mxu0 %v4369
        %v5223 = vpop.f32.mrf.mxu0
        %v5224 = vadd.f32 %v4829, %v5223
        %v5225 = vpop.f32.mrf.mxu0
        %v5226 = vadd.f32 %v4831, %v5225
        %5227 = vmatmul.bf16.gmra.mxu0 %v4370
        %v5228 = vpop.f32.mrf.mxu0
        %v5229 = vadd.f32 %v4834, %v5228
        %v5230 = vpop.f32.mrf.mxu0
        %v5231 = vadd.f32 %v4836, %v5230
        %5232 = vmatmul.bf16.gmra.mxu0 %v4371
        %v5233 = vpop.f32.mrf.mxu0
        %v5234 = vadd.f32 %v4839, %v5233
        %v5235 = vpop.f32.mrf.mxu0
        %v5236 = vadd.f32 %v4841, %v5235
        %5237 = vmatmul.bf16.gmra.mxu0 %v4372
        %v5238 = vpop.f32.mrf.mxu0
        %v5239 = vadd.f32 %v4844, %v5238
        %v5240 = vpop.f32.mrf.mxu0
        %v5241 = vadd.f32 %v4846, %v5240
        %5242 = vdwg.mxu0
        %v5243 = vld [vmem:[%s6] sm:$0x7]
        %v5245 = vperm.slane %v5243, 0
        %v5246 = vperm.slane %v5243, 1
        %v5247 = vperm.slane %v5243, 2
        %v5251 = vadd.f32 %v4986, %v5245
        %v5252 = vadd.f32 %v5075, %v5246
        %v5253 = vadd.f32 %v5164, %v5247
        %v5254 = vadd.f32 %v4988, %v5245
        %v5255 = vadd.f32 %v5077, %v5246
        %v5256 = vadd.f32 %v5166, %v5247
        %v5257 = vadd.f32 %v4991, %v5245
        %v5258 = vadd.f32 %v5080, %v5246
        %v5259 = vadd.f32 %v5169, %v5247
        %v5260 = vadd.f32 %v4993, %v5245
        %v5261 = vadd.f32 %v5082, %v5246
        %v5262 = vadd.f32 %v5171, %v5247
        %v5263 = vadd.f32 %v4996, %v5245
        %v5264 = vadd.f32 %v5085, %v5246
        %v5265 = vadd.f32 %v5174, %v5247
        %v5266 = vadd.f32 %v4998, %v5245
        %v5267 = vadd.f32 %v5087, %v5246
        %v5268 = vadd.f32 %v5176, %v5247
        %v5269 = vadd.f32 %v5001, %v5245
        %v5270 = vadd.f32 %v5090, %v5246
        %v5271 = vadd.f32 %v5179, %v5247
        %v5272 = vadd.f32 %v5003, %v5245
        %v5273 = vadd.f32 %v5092, %v5246
        %v5274 = vadd.f32 %v5181, %v5247
        %v5275 = vadd.f32 %v5006, %v5245
        %v5276 = vadd.f32 %v5095, %v5246
        %v5277 = vadd.f32 %v5184, %v5247
        %v5278 = vadd.f32 %v5008, %v5245
        %v5279 = vadd.f32 %v5097, %v5246
        %v5280 = vadd.f32 %v5186, %v5247
        %v5281 = vadd.f32 %v5011, %v5245
        %v5282 = vadd.f32 %v5100, %v5246
        %v5283 = vadd.f32 %v5189, %v5247
        %v5284 = vadd.f32 %v5013, %v5245
        %v5285 = vadd.f32 %v5102, %v5246
        %v5286 = vadd.f32 %v5191, %v5247
        %v5287 = vadd.f32 %v5016, %v5245
        %v5288 = vadd.f32 %v5105, %v5246
        %v5289 = vadd.f32 %v5194, %v5247
        %v5290 = vadd.f32 %v5018, %v5245
        %v5291 = vadd.f32 %v5107, %v5246
        %v5292 = vadd.f32 %v5196, %v5247
        %v5293 = vadd.f32 %v5021, %v5245
        %v5294 = vadd.f32 %v5110, %v5246
        %v5295 = vadd.f32 %v5199, %v5247
        %v5296 = vadd.f32 %v5023, %v5245
        %v5297 = vadd.f32 %v5112, %v5246
        %v5298 = vadd.f32 %v5201, %v5247
        %v5299 = vadd.f32 %v5026, %v5245
        %v5300 = vadd.f32 %v5115, %v5246
        %v5301 = vadd.f32 %v5204, %v5247
        %v5302 = vadd.f32 %v5028, %v5245
        %v5303 = vadd.f32 %v5117, %v5246
        %v5304 = vadd.f32 %v5206, %v5247
        %v5305 = vadd.f32 %v5031, %v5245
        %v5306 = vadd.f32 %v5120, %v5246
        %v5307 = vadd.f32 %v5209, %v5247
        %v5308 = vadd.f32 %v5033, %v5245
        %v5309 = vadd.f32 %v5122, %v5246
        %v5310 = vadd.f32 %v5211, %v5247
        %v5311 = vadd.f32 %v5036, %v5245
        %v5312 = vadd.f32 %v5125, %v5246
        %v5313 = vadd.f32 %v5214, %v5247
        %v5314 = vadd.f32 %v5038, %v5245
        %v5315 = vadd.f32 %v5127, %v5246
        %v5316 = vadd.f32 %v5216, %v5247
        %v5317 = vadd.f32 %v5041, %v5245
        %v5318 = vadd.f32 %v5130, %v5246
        %v5319 = vadd.f32 %v5219, %v5247
        %v5320 = vadd.f32 %v5043, %v5245
        %v5321 = vadd.f32 %v5132, %v5246
        %v5322 = vadd.f32 %v5221, %v5247
        %v5323 = vadd.f32 %v5046, %v5245
        %v5324 = vadd.f32 %v5135, %v5246
        %v5325 = vadd.f32 %v5224, %v5247
        %v5326 = vadd.f32 %v5048, %v5245
        %v5327 = vadd.f32 %v5137, %v5246
        %v5328 = vadd.f32 %v5226, %v5247
        %v5329 = vadd.f32 %v5051, %v5245
        %v5330 = vadd.f32 %v5140, %v5246
        %v5331 = vadd.f32 %v5229, %v5247
        %v5332 = vadd.f32 %v5053, %v5245
        %v5333 = vadd.f32 %v5142, %v5246
        %v5334 = vadd.f32 %v5231, %v5247
        %v5335 = vadd.f32 %v5056, %v5245
        %v5336 = vadd.f32 %v5145, %v5246
        %v5337 = vadd.f32 %v5234, %v5247
        %v5338 = vadd.f32 %v5058, %v5245
        %v5339 = vadd.f32 %v5147, %v5246
        %v5340 = vadd.f32 %v5236, %v5247
        %v5341 = vadd.f32 %v5061, %v5245
        %v5342 = vadd.f32 %v5150, %v5246
        %v5343 = vadd.f32 %v5239, %v5247
        %v5344 = vadd.f32 %v5063, %v5245
        %v5345 = vadd.f32 %v5152, %v5246
        %v5346 = vadd.f32 %v5241, %v5247
        %s5347 = smul.u32 %s28, 256
        %s5348 = scalar_lea.vmem [#allocation2], %s5347
        %v5349 = vld [vmem:[%s5348] sm:$0xff]
        %v5350 = vld [vmem:[%s5348 + $0x8] sm:$0xff]
        %v5351 = vld [vmem:[%s5348 + $0x10] sm:$0xff]
        %v5352 = vld [vmem:[%s5348 + $0x18] sm:$0xff]
        %v5353 = vld [vmem:[%s5348 + $0x20] sm:$0xff]
        %v5354 = vld [vmem:[%s5348 + $0x28] sm:$0xff]
        %v5355 = vld [vmem:[%s5348 + $0x30] sm:$0xff]
        %v5356 = vld [vmem:[%s5348 + $0x38] sm:$0xff]
        %v5357 = vld [vmem:[%s5348 + $0x40] sm:$0xff]
        %v5358 = vld [vmem:[%s5348 + $0x48] sm:$0xff]
        %v5359 = vld [vmem:[%s5348 + $0x50] sm:$0xff]
        %v5360 = vld [vmem:[%s5348 + $0x58] sm:$0xff]
        %v5361 = vld [vmem:[%s5348 + $0x60] sm:$0xff]
        %v5362 = vld [vmem:[%s5348 + $0x68] sm:$0xff]
        %v5363 = vld [vmem:[%s5348 + $0x70] sm:$0xff]
        %v5364 = vld [vmem:[%s5348 + $0x78] sm:$0xff]
        %v5365 = vld [vmem:[%s5348 + $0x80] sm:$0xff]
        %v5366 = vld [vmem:[%s5348 + $0x88] sm:$0xff]
        %v5367 = vld [vmem:[%s5348 + $0x90] sm:$0xff]
        %v5368 = vld [vmem:[%s5348 + $0x98] sm:$0xff]
        %v5369 = vld [vmem:[%s5348 + $0xa0] sm:$0xff]
        %v5370 = vld [vmem:[%s5348 + $0xa8] sm:$0xff]
        %v5371 = vld [vmem:[%s5348 + $0xb0] sm:$0xff]
        %v5372 = vld [vmem:[%s5348 + $0xb8] sm:$0xff]
        %v5373 = vld [vmem:[%s5348 + $0xc0] sm:$0xff]
        %v5374 = vld [vmem:[%s5348 + $0xc8] sm:$0xff]
        %v5375 = vld [vmem:[%s5348 + $0xd0] sm:$0xff]
        %v5376 = vld [vmem:[%s5348 + $0xd8] sm:$0xff]
        %v5377 = vld [vmem:[%s5348 + $0xe0] sm:$0xff]
        %v5378 = vld [vmem:[%s5348 + $0xe8] sm:$0xff]
        %v5379 = vld [vmem:[%s5348 + $0xf0] sm:$0xff]
        %v5380 = vld [vmem:[%s5348 + $0xf8] sm:$0xff]
        %v5381 = vmul.f32 %v5349, %v5349
        %v5382 = vmul.f32 %v5350, %v5350
        %v5383 = vmul.f32 %v5351, %v5351
        %v5384 = vmul.f32 %v5352, %v5352
        %v5385 = vmul.f32 %v5353, %v5353
        %v5386 = vmul.f32 %v5354, %v5354
        %v5387 = vmul.f32 %v5355, %v5355
        %v5388 = vmul.f32 %v5356, %v5356
        %v5389 = vmul.f32 %v5357, %v5357
        %v5390 = vmul.f32 %v5358, %v5358
        %v5391 = vmul.f32 %v5359, %v5359
        %v5392 = vmul.f32 %v5360, %v5360
        %v5393 = vmul.f32 %v5361, %v5361
        %v5394 = vmul.f32 %v5362, %v5362
        %v5395 = vmul.f32 %v5363, %v5363
        %v5396 = vmul.f32 %v5364, %v5364
        %v5397 = vmul.f32 %v5365, %v5365
        %v5398 = vmul.f32 %v5366, %v5366
        %v5399 = vmul.f32 %v5367, %v5367
        %v5400 = vmul.f32 %v5368, %v5368
        %v5401 = vmul.f32 %v5369, %v5369
        %v5402 = vmul.f32 %v5370, %v5370
        %v5403 = vmul.f32 %v5371, %v5371
        %v5404 = vmul.f32 %v5372, %v5372
        %v5405 = vmul.f32 %v5373, %v5373
        %v5406 = vmul.f32 %v5374, %v5374
        %v5407 = vmul.f32 %v5375, %v5375
        %v5408 = vmul.f32 %v5376, %v5376
        %v5409 = vmul.f32 %v5377, %v5377
        %v5410 = vmul.f32 %v5378, %v5378
        %v5411 = vmul.f32 %v5379, %v5379
        %v5412 = vmul.f32 %v5380, %v5380
        %5413 = vadd.xlane.f32.xlu0 %v5381
        %v5414 = vpop.xlane.xlu0 %5413
        %5415 = vadd.xlane.f32.xlu0 %v5382
        %v5416 = vpop.xlane.xlu0 %5415
        %5417 = vadd.xlane.f32.xlu0 %v5383
        %v5418 = vpop.xlane.xlu0 %5417
        %5419 = vadd.xlane.f32.xlu0 %v5384
        %v5420 = vpop.xlane.xlu0 %5419
        %5421 = vadd.xlane.f32.xlu0 %v5385
        %v5422 = vpop.xlane.xlu0 %5421
        %5423 = vadd.xlane.f32.xlu0 %v5386
        %v5424 = vpop.xlane.xlu0 %5423
        %5425 = vadd.xlane.f32.xlu0 %v5387
        %v5426 = vpop.xlane.xlu0 %5425
        %5427 = vadd.xlane.f32.xlu0 %v5388
        %v5428 = vpop.xlane.xlu0 %5427
        %5429 = vadd.xlane.f32.xlu0 %v5389
        %v5430 = vpop.xlane.xlu0 %5429
        %5431 = vadd.xlane.f32.xlu0 %v5390
        %v5432 = vpop.xlane.xlu0 %5431
        %5433 = vadd.xlane.f32.xlu0 %v5391
        %v5434 = vpop.xlane.xlu0 %5433
        %5435 = vadd.xlane.f32.xlu0 %v5392
        %v5436 = vpop.xlane.xlu0 %5435
        %5437 = vadd.xlane.f32.xlu0 %v5393
        %v5438 = vpop.xlane.xlu0 %5437
        %5439 = vadd.xlane.f32.xlu0 %v5394
        %v5440 = vpop.xlane.xlu0 %5439
        %5441 = vadd.xlane.f32.xlu0 %v5395
        %v5442 = vpop.xlane.xlu0 %5441
        %5443 = vadd.xlane.f32.xlu0 %v5396
        %v5444 = vpop.xlane.xlu0 %5443
        %5445 = vadd.xlane.f32.xlu0 %v5397
        %v5446 = vpop.xlane.xlu0 %5445
        %5447 = vadd.xlane.f32.xlu0 %v5398
        %v5448 = vpop.xlane.xlu0 %5447
        %5449 = vadd.xlane.f32.xlu0 %v5399
        %v5450 = vpop.xlane.xlu0 %5449
        %5451 = vadd.xlane.f32.xlu0 %v5400
        %v5452 = vpop.xlane.xlu0 %5451
        %5453 = vadd.xlane.f32.xlu0 %v5401
        %v5454 = vpop.xlane.xlu0 %5453
        %5455 = vadd.xlane.f32.xlu0 %v5402
        %v5456 = vpop.xlane.xlu0 %5455
        %5457 = vadd.xlane.f32.xlu0 %v5403
        %v5458 = vpop.xlane.xlu0 %5457
        %5459 = vadd.xlane.f32.xlu0 %v5404
        %v5460 = vpop.xlane.xlu0 %5459
        %5461 = vadd.xlane.f32.xlu0 %v5405
        %v5462 = vpop.xlane.xlu0 %5461
        %5463 = vadd.xlane.f32.xlu0 %v5406
        %v5464 = vpop.xlane.xlu0 %5463
        %5465 = vadd.xlane.f32.xlu0 %v5407
        %v5466 = vpop.xlane.xlu0 %5465
        %5467 = vadd.xlane.f32.xlu0 %v5408
        %v5468 = vpop.xlane.xlu0 %5467
        %5469 = vadd.xlane.f32.xlu0 %v5409
        %v5470 = vpop.xlane.xlu0 %5469
        %5471 = vadd.xlane.f32.xlu0 %v5410
        %v5472 = vpop.xlane.xlu0 %5471
        %5473 = vadd.xlane.f32.xlu0 %v5411
        %v5474 = vpop.xlane.xlu0 %5473
        %5475 = vadd.xlane.f32.xlu0 %v5412
        %v5476 = vpop.xlane.xlu0 %5475
        %v5477 = vadd.f32 %v5414, 1e-24
        %v5478 = vadd.f32 %v5416, 1e-24
        %v5479 = vadd.f32 %v5418, 1e-24
        %v5480 = vadd.f32 %v5420, 1e-24
        %v5481 = vadd.f32 %v5422, 1e-24
        %v5482 = vadd.f32 %v5424, 1e-24
        %v5483 = vadd.f32 %v5426, 1e-24
        %v5484 = vadd.f32 %v5428, 1e-24
        %v5485 = vadd.f32 %v5430, 1e-24
        %v5486 = vadd.f32 %v5432, 1e-24
        %v5487 = vadd.f32 %v5434, 1e-24
        %v5488 = vadd.f32 %v5436, 1e-24
        %v5489 = vadd.f32 %v5438, 1e-24
        %v5490 = vadd.f32 %v5440, 1e-24
        %v5491 = vadd.f32 %v5442, 1e-24
        %v5492 = vadd.f32 %v5444, 1e-24
        %v5493 = vadd.f32 %v5446, 1e-24
        %v5494 = vadd.f32 %v5448, 1e-24
        %v5495 = vadd.f32 %v5450, 1e-24
        %v5496 = vadd.f32 %v5452, 1e-24
        %v5497 = vadd.f32 %v5454, 1e-24
        %v5498 = vadd.f32 %v5456, 1e-24
        %v5499 = vadd.f32 %v5458, 1e-24
        %v5500 = vadd.f32 %v5460, 1e-24
        %v5501 = vadd.f32 %v5462, 1e-24
        %v5502 = vadd.f32 %v5464, 1e-24
        %v5503 = vadd.f32 %v5466, 1e-24
        %v5504 = vadd.f32 %v5468, 1e-24
        %v5505 = vadd.f32 %v5470, 1e-24
        %v5506 = vadd.f32 %v5472, 1e-24
        %v5507 = vadd.f32 %v5474, 1e-24
        %v5508 = vadd.f32 %v5476, 1e-24
        %v5509 = vrsqrt.pop %v5477
        %v5510 = vmul.f32 %v5509, %v5477
        %v5511 = vmul.f32 %v5510, %v5509
        %v5512 = vmul.f32 0.5, %v5511
        %v5513 = vsub.f32 1.5, %v5512
        %v5514 = vmul.f32 %v5509, %v5513
        %vm5515 = vweird.f32 %v5477
        %vm5516 = vweird.f32 %v5509
        %vm5517 = vmor %vm5515, %vm5516
        %v5518 = vsel %vm5517, %v5509, %v5514
        %v5519 = vrsqrt.pop %v5478
        %v5520 = vmul.f32 %v5519, %v5478
        %v5521 = vmul.f32 %v5520, %v5519
        %v5522 = vmul.f32 0.5, %v5521
        %v5523 = vsub.f32 1.5, %v5522
        %v5524 = vmul.f32 %v5519, %v5523
        %vm5525 = vweird.f32 %v5478
        %vm5526 = vweird.f32 %v5519
        %vm5527 = vmor %vm5525, %vm5526
        %v5528 = vsel %vm5527, %v5519, %v5524
        %v5529 = vrsqrt.pop %v5479
        %v5530 = vmul.f32 %v5529, %v5479
        %v5531 = vmul.f32 %v5530, %v5529
        %v5532 = vmul.f32 0.5, %v5531
        %v5533 = vsub.f32 1.5, %v5532
        %v5534 = vmul.f32 %v5529, %v5533
        %vm5535 = vweird.f32 %v5479
        %vm5536 = vweird.f32 %v5529
        %vm5537 = vmor %vm5535, %vm5536
        %v5538 = vsel %vm5537, %v5529, %v5534
        %v5539 = vrsqrt.pop %v5480
        %v5540 = vmul.f32 %v5539, %v5480
        %v5541 = vmul.f32 %v5540, %v5539
        %v5542 = vmul.f32 0.5, %v5541
        %v5543 = vsub.f32 1.5, %v5542
        %v5544 = vmul.f32 %v5539, %v5543
        %vm5545 = vweird.f32 %v5480
        %vm5546 = vweird.f32 %v5539
        %vm5547 = vmor %vm5545, %vm5546
        %v5548 = vsel %vm5547, %v5539, %v5544
        %v5549 = vrsqrt.pop %v5481
        %v5550 = vmul.f32 %v5549, %v5481
        %v5551 = vmul.f32 %v5550, %v5549
        %v5552 = vmul.f32 0.5, %v5551
        %v5553 = vsub.f32 1.5, %v5552
        %v5554 = vmul.f32 %v5549, %v5553
        %vm5555 = vweird.f32 %v5481
        %vm5556 = vweird.f32 %v5549
        %vm5557 = vmor %vm5555, %vm5556
        %v5558 = vsel %vm5557, %v5549, %v5554
        %v5559 = vrsqrt.pop %v5482
        %v5560 = vmul.f32 %v5559, %v5482
        %v5561 = vmul.f32 %v5560, %v5559
        %v5562 = vmul.f32 0.5, %v5561
        %v5563 = vsub.f32 1.5, %v5562
        %v5564 = vmul.f32 %v5559, %v5563
        %vm5565 = vweird.f32 %v5482
        %vm5566 = vweird.f32 %v5559
        %vm5567 = vmor %vm5565, %vm5566
        %v5568 = vsel %vm5567, %v5559, %v5564
        %v5569 = vrsqrt.pop %v5483
        %v5570 = vmul.f32 %v5569, %v5483
        %v5571 = vmul.f32 %v5570, %v5569
        %v5572 = vmul.f32 0.5, %v5571
        %v5573 = vsub.f32 1.5, %v5572
        %v5574 = vmul.f32 %v5569, %v5573
        %vm5575 = vweird.f32 %v5483
        %vm5576 = vweird.f32 %v5569
        %vm5577 = vmor %vm5575, %vm5576
        %v5578 = vsel %vm5577, %v5569, %v5574
        %v5579 = vrsqrt.pop %v5484
        %v5580 = vmul.f32 %v5579, %v5484
        %v5581 = vmul.f32 %v5580, %v5579
        %v5582 = vmul.f32 0.5, %v5581
        %v5583 = vsub.f32 1.5, %v5582
        %v5584 = vmul.f32 %v5579, %v5583
        %vm5585 = vweird.f32 %v5484
        %vm5586 = vweird.f32 %v5579
        %vm5587 = vmor %vm5585, %vm5586
        %v5588 = vsel %vm5587, %v5579, %v5584
        %v5589 = vrsqrt.pop %v5485
        %v5590 = vmul.f32 %v5589, %v5485
        %v5591 = vmul.f32 %v5590, %v5589
        %v5592 = vmul.f32 0.5, %v5591
        %v5593 = vsub.f32 1.5, %v5592
        %v5594 = vmul.f32 %v5589, %v5593
        %vm5595 = vweird.f32 %v5485
        %vm5596 = vweird.f32 %v5589
        %vm5597 = vmor %vm5595, %vm5596
        %v5598 = vsel %vm5597, %v5589, %v5594
        %v5599 = vrsqrt.pop %v5486
        %v5600 = vmul.f32 %v5599, %v5486
        %v5601 = vmul.f32 %v5600, %v5599
        %v5602 = vmul.f32 0.5, %v5601
        %v5603 = vsub.f32 1.5, %v5602
        %v5604 = vmul.f32 %v5599, %v5603
        %vm5605 = vweird.f32 %v5486
        %vm5606 = vweird.f32 %v5599
        %vm5607 = vmor %vm5605, %vm5606
        %v5608 = vsel %vm5607, %v5599, %v5604
        %v5609 = vrsqrt.pop %v5487
        %v5610 = vmul.f32 %v5609, %v5487
        %v5611 = vmul.f32 %v5610, %v5609
        %v5612 = vmul.f32 0.5, %v5611
        %v5613 = vsub.f32 1.5, %v5612
        %v5614 = vmul.f32 %v5609, %v5613
        %vm5615 = vweird.f32 %v5487
        %vm5616 = vweird.f32 %v5609
        %vm5617 = vmor %vm5615, %vm5616
        %v5618 = vsel %vm5617, %v5609, %v5614
        %v5619 = vrsqrt.pop %v5488
        %v5620 = vmul.f32 %v5619, %v5488
        %v5621 = vmul.f32 %v5620, %v5619
        %v5622 = vmul.f32 0.5, %v5621
        %v5623 = vsub.f32 1.5, %v5622
        %v5624 = vmul.f32 %v5619, %v5623
        %vm5625 = vweird.f32 %v5488
        %vm5626 = vweird.f32 %v5619
        %vm5627 = vmor %vm5625, %vm5626
        %v5628 = vsel %vm5627, %v5619, %v5624
        %v5629 = vrsqrt.pop %v5489
        %v5630 = vmul.f32 %v5629, %v5489
        %v5631 = vmul.f32 %v5630, %v5629
        %v5632 = vmul.f32 0.5, %v5631
        %v5633 = vsub.f32 1.5, %v5632
        %v5634 = vmul.f32 %v5629, %v5633
        %vm5635 = vweird.f32 %v5489
        %vm5636 = vweird.f32 %v5629
        %vm5637 = vmor %vm5635, %vm5636
        %v5638 = vsel %vm5637, %v5629, %v5634
        %v5639 = vrsqrt.pop %v5490
        %v5640 = vmul.f32 %v5639, %v5490
        %v5641 = vmul.f32 %v5640, %v5639
        %v5642 = vmul.f32 0.5, %v5641
        %v5643 = vsub.f32 1.5, %v5642
        %v5644 = vmul.f32 %v5639, %v5643
        %vm5645 = vweird.f32 %v5490
        %vm5646 = vweird.f32 %v5639
        %vm5647 = vmor %vm5645, %vm5646
        %v5648 = vsel %vm5647, %v5639, %v5644
        %v5649 = vrsqrt.pop %v5491
        %v5650 = vmul.f32 %v5649, %v5491
        %v5651 = vmul.f32 %v5650, %v5649
        %v5652 = vmul.f32 0.5, %v5651
        %v5653 = vsub.f32 1.5, %v5652
        %v5654 = vmul.f32 %v5649, %v5653
        %vm5655 = vweird.f32 %v5491
        %vm5656 = vweird.f32 %v5649
        %vm5657 = vmor %vm5655, %vm5656
        %v5658 = vsel %vm5657, %v5649, %v5654
        %v5659 = vrsqrt.pop %v5492
        %v5660 = vmul.f32 %v5659, %v5492
        %v5661 = vmul.f32 %v5660, %v5659
        %v5662 = vmul.f32 0.5, %v5661
        %v5663 = vsub.f32 1.5, %v5662
        %v5664 = vmul.f32 %v5659, %v5663
        %vm5665 = vweird.f32 %v5492
        %vm5666 = vweird.f32 %v5659
        %vm5667 = vmor %vm5665, %vm5666
        %v5668 = vsel %vm5667, %v5659, %v5664
        %v5669 = vrsqrt.pop %v5493
        %v5670 = vmul.f32 %v5669, %v5493
        %v5671 = vmul.f32 %v5670, %v5669
        %v5672 = vmul.f32 0.5, %v5671
        %v5673 = vsub.f32 1.5, %v5672
        %v5674 = vmul.f32 %v5669, %v5673
        %vm5675 = vweird.f32 %v5493
        %vm5676 = vweird.f32 %v5669
        %vm5677 = vmor %vm5675, %vm5676
        %v5678 = vsel %vm5677, %v5669, %v5674
        %v5679 = vrsqrt.pop %v5494
        %v5680 = vmul.f32 %v5679, %v5494
        %v5681 = vmul.f32 %v5680, %v5679
        %v5682 = vmul.f32 0.5, %v5681
        %v5683 = vsub.f32 1.5, %v5682
        %v5684 = vmul.f32 %v5679, %v5683
        %vm5685 = vweird.f32 %v5494
        %vm5686 = vweird.f32 %v5679
        %vm5687 = vmor %vm5685, %vm5686
        %v5688 = vsel %vm5687, %v5679, %v5684
        %v5689 = vrsqrt.pop %v5495
        %v5690 = vmul.f32 %v5689, %v5495
        %v5691 = vmul.f32 %v5690, %v5689
        %v5692 = vmul.f32 0.5, %v5691
        %v5693 = vsub.f32 1.5, %v5692
        %v5694 = vmul.f32 %v5689, %v5693
        %vm5695 = vweird.f32 %v5495
        %vm5696 = vweird.f32 %v5689
        %vm5697 = vmor %vm5695, %vm5696
        %v5698 = vsel %vm5697, %v5689, %v5694
        %v5699 = vrsqrt.pop %v5496
        %v5700 = vmul.f32 %v5699, %v5496
        %v5701 = vmul.f32 %v5700, %v5699
        %v5702 = vmul.f32 0.5, %v5701
        %v5703 = vsub.f32 1.5, %v5702
        %v5704 = vmul.f32 %v5699, %v5703
        %vm5705 = vweird.f32 %v5496
        %vm5706 = vweird.f32 %v5699
        %vm5707 = vmor %vm5705, %vm5706
        %v5708 = vsel %vm5707, %v5699, %v5704
        %v5709 = vrsqrt.pop %v5497
        %v5710 = vmul.f32 %v5709, %v5497
        %v5711 = vmul.f32 %v5710, %v5709
        %v5712 = vmul.f32 0.5, %v5711
        %v5713 = vsub.f32 1.5, %v5712
        %v5714 = vmul.f32 %v5709, %v5713
        %vm5715 = vweird.f32 %v5497
        %vm5716 = vweird.f32 %v5709
        %vm5717 = vmor %vm5715, %vm5716
        %v5718 = vsel %vm5717, %v5709, %v5714
        %v5719 = vrsqrt.pop %v5498
        %v5720 = vmul.f32 %v5719, %v5498
        %v5721 = vmul.f32 %v5720, %v5719
        %v5722 = vmul.f32 0.5, %v5721
        %v5723 = vsub.f32 1.5, %v5722
        %v5724 = vmul.f32 %v5719, %v5723
        %vm5725 = vweird.f32 %v5498
        %vm5726 = vweird.f32 %v5719
        %vm5727 = vmor %vm5725, %vm5726
        %v5728 = vsel %vm5727, %v5719, %v5724
        %v5729 = vrsqrt.pop %v5499
        %v5730 = vmul.f32 %v5729, %v5499
        %v5731 = vmul.f32 %v5730, %v5729
        %v5732 = vmul.f32 0.5, %v5731
        %v5733 = vsub.f32 1.5, %v5732
        %v5734 = vmul.f32 %v5729, %v5733
        %vm5735 = vweird.f32 %v5499
        %vm5736 = vweird.f32 %v5729
        %vm5737 = vmor %vm5735, %vm5736
        %v5738 = vsel %vm5737, %v5729, %v5734
        %v5739 = vrsqrt.pop %v5500
        %v5740 = vmul.f32 %v5739, %v5500
        %v5741 = vmul.f32 %v5740, %v5739
        %v5742 = vmul.f32 0.5, %v5741
        %v5743 = vsub.f32 1.5, %v5742
        %v5744 = vmul.f32 %v5739, %v5743
        %vm5745 = vweird.f32 %v5500
        %vm5746 = vweird.f32 %v5739
        %vm5747 = vmor %vm5745, %vm5746
        %v5748 = vsel %vm5747, %v5739, %v5744
        %v5749 = vrsqrt.pop %v5501
        %v5750 = vmul.f32 %v5749, %v5501
        %v5751 = vmul.f32 %v5750, %v5749
        %v5752 = vmul.f32 0.5, %v5751
        %v5753 = vsub.f32 1.5, %v5752
        %v5754 = vmul.f32 %v5749, %v5753
        %vm5755 = vweird.f32 %v5501
        %vm5756 = vweird.f32 %v5749
        %vm5757 = vmor %vm5755, %vm5756
        %v5758 = vsel %vm5757, %v5749, %v5754
        %v5759 = vrsqrt.pop %v5502
        %v5760 = vmul.f32 %v5759, %v5502
        %v5761 = vmul.f32 %v5760, %v5759
        %v5762 = vmul.f32 0.5, %v5761
        %v5763 = vsub.f32 1.5, %v5762
        %v5764 = vmul.f32 %v5759, %v5763
        %vm5765 = vweird.f32 %v5502
        %vm5766 = vweird.f32 %v5759
        %vm5767 = vmor %vm5765, %vm5766
        %v5768 = vsel %vm5767, %v5759, %v5764
        %v5769 = vrsqrt.pop %v5503
        %v5770 = vmul.f32 %v5769, %v5503
        %v5771 = vmul.f32 %v5770, %v5769
        %v5772 = vmul.f32 0.5, %v5771
        %v5773 = vsub.f32 1.5, %v5772
        %v5774 = vmul.f32 %v5769, %v5773
        %vm5775 = vweird.f32 %v5503
        %vm5776 = vweird.f32 %v5769
        %vm5777 = vmor %vm5775, %vm5776
        %v5778 = vsel %vm5777, %v5769, %v5774
        %v5779 = vrsqrt.pop %v5504
        %v5780 = vmul.f32 %v5779, %v5504
        %v5781 = vmul.f32 %v5780, %v5779
        %v5782 = vmul.f32 0.5, %v5781
        %v5783 = vsub.f32 1.5, %v5782
        %v5784 = vmul.f32 %v5779, %v5783
        %vm5785 = vweird.f32 %v5504
        %vm5786 = vweird.f32 %v5779
        %vm5787 = vmor %vm5785, %vm5786
        %v5788 = vsel %vm5787, %v5779, %v5784
        %v5789 = vrsqrt.pop %v5505
        %v5790 = vmul.f32 %v5789, %v5505
        %v5791 = vmul.f32 %v5790, %v5789
        %v5792 = vmul.f32 0.5, %v5791
        %v5793 = vsub.f32 1.5, %v5792
        %v5794 = vmul.f32 %v5789, %v5793
        %vm5795 = vweird.f32 %v5505
        %vm5796 = vweird.f32 %v5789
        %vm5797 = vmor %vm5795, %vm5796
        %v5798 = vsel %vm5797, %v5789, %v5794
        %v5799 = vrsqrt.pop %v5506
        %v5800 = vmul.f32 %v5799, %v5506
        %v5801 = vmul.f32 %v5800, %v5799
        %v5802 = vmul.f32 0.5, %v5801
        %v5803 = vsub.f32 1.5, %v5802
        %v5804 = vmul.f32 %v5799, %v5803
        %vm5805 = vweird.f32 %v5506
        %vm5806 = vweird.f32 %v5799
        %vm5807 = vmor %vm5805, %vm5806
        %v5808 = vsel %vm5807, %v5799, %v5804
        %v5809 = vrsqrt.pop %v5507
        %v5810 = vmul.f32 %v5809, %v5507
        %v5811 = vmul.f32 %v5810, %v5809
        %v5812 = vmul.f32 0.5, %v5811
        %v5813 = vsub.f32 1.5, %v5812
        %v5814 = vmul.f32 %v5809, %v5813
        %vm5815 = vweird.f32 %v5507
        %vm5816 = vweird.f32 %v5809
        %vm5817 = vmor %vm5815, %vm5816
        %v5818 = vsel %vm5817, %v5809, %v5814
        %v5819 = vrsqrt.pop %v5508
        %v5820 = vmul.f32 %v5819, %v5508
        %v5821 = vmul.f32 %v5820, %v5819
        %v5822 = vmul.f32 0.5, %v5821
        %v5823 = vsub.f32 1.5, %v5822
        %v5824 = vmul.f32 %v5819, %v5823
        %vm5825 = vweird.f32 %v5508
        %vm5826 = vweird.f32 %v5819
        %vm5827 = vmor %vm5825, %vm5826
        %v5828 = vsel %vm5827, %v5819, %v5824
        %v5829 = vmul.f32 %v5349, %v5518
        %v5830 = vmul.f32 %v5350, %v5528
        %v5831 = vmul.f32 %v5351, %v5538
        %v5832 = vmul.f32 %v5352, %v5548
        %v5833 = vmul.f32 %v5353, %v5558
        %v5834 = vmul.f32 %v5354, %v5568
        %v5835 = vmul.f32 %v5355, %v5578
        %v5836 = vmul.f32 %v5356, %v5588
        %v5837 = vmul.f32 %v5357, %v5598
        %v5838 = vmul.f32 %v5358, %v5608
        %v5839 = vmul.f32 %v5359, %v5618
        %v5840 = vmul.f32 %v5360, %v5628
        %v5841 = vmul.f32 %v5361, %v5638
        %v5842 = vmul.f32 %v5362, %v5648
        %v5843 = vmul.f32 %v5363, %v5658
        %v5844 = vmul.f32 %v5364, %v5668
        %v5845 = vmul.f32 %v5365, %v5678
        %v5846 = vmul.f32 %v5366, %v5688
        %v5847 = vmul.f32 %v5367, %v5698
        %v5848 = vmul.f32 %v5368, %v5708
        %v5849 = vmul.f32 %v5369, %v5718
        %v5850 = vmul.f32 %v5370, %v5728
        %v5851 = vmul.f32 %v5371, %v5738
        %v5852 = vmul.f32 %v5372, %v5748
        %v5853 = vmul.f32 %v5373, %v5758
        %v5854 = vmul.f32 %v5374, %v5768
        %v5855 = vmul.f32 %v5375, %v5778
        %v5856 = vmul.f32 %v5376, %v5788
        %v5857 = vmul.f32 %v5377, %v5798
        %v5858 = vmul.f32 %v5378, %v5808
        %v5859 = vmul.f32 %v5379, %v5818
        %v5860 = vmul.f32 %v5380, %v5828
        %v5861 = vpack.c.bf16 %v5830, %v5829
        %v5862 = vpack.c.bf16 %v5832, %v5831
        %v5863 = vpack.c.bf16 %v5834, %v5833
        %v5864 = vpack.c.bf16 %v5836, %v5835
        %v5865 = vpack.c.bf16 %v5838, %v5837
        %v5866 = vpack.c.bf16 %v5840, %v5839
        %v5867 = vpack.c.bf16 %v5842, %v5841
        %v5868 = vpack.c.bf16 %v5844, %v5843
        %v5869 = vpack.c.bf16 %v5846, %v5845
        %v5870 = vpack.c.bf16 %v5848, %v5847
        %v5871 = vpack.c.bf16 %v5850, %v5849
        %v5872 = vpack.c.bf16 %v5852, %v5851
        %v5873 = vpack.c.bf16 %v5854, %v5853
        %v5874 = vpack.c.bf16 %v5856, %v5855
        %v5875 = vpack.c.bf16 %v5858, %v5857
        %v5876 = vpack.c.bf16 %v5860, %v5859
        %v5877 = vld [vmem:[#allocation11] sm:$0xff]
        %v5878 = vld [vmem:[#allocation11 + $0x8] sm:$0xf]
        %v5879 = vld [vmem:[#allocation11 + $0xc] sm:$0xff]
        %v5880 = vld [vmem:[#allocation11 + $0x14] sm:$0xf]
        %v5881 = vld [vmem:[#allocation11 + $0x18] sm:$0xff]
        %v5882 = vld [vmem:[#allocation11 + $0x20] sm:$0xf]
        %v5883 = vld [vmem:[#allocation11 + $0x24] sm:$0xff]
        %v5884 = vld [vmem:[#allocation11 + $0x2c] sm:$0xf]
        %v5885 = vld [vmem:[#allocation11 + $0x30] sm:$0xff]
        %v5886 = vld [vmem:[#allocation11 + $0x38] sm:$0xf]
        %v5887 = vld [vmem:[#allocation11 + $0x3c] sm:$0xff]
        %v5888 = vld [vmem:[#allocation11 + $0x44] sm:$0xf]
        %v5889 = vld [vmem:[#allocation11 + $0x48] sm:$0xff]
        %v5890 = vld [vmem:[#allocation11 + $0x50] sm:$0xf]
        %v5891 = vld [vmem:[#allocation11 + $0x54] sm:$0xff]
        %v5892 = vld [vmem:[#allocation11 + $0x5c] sm:$0xf]
        %v5893 = vld [vmem:[#allocation11 + $0x60] sm:$0xff]
        %v5894 = vld [vmem:[#allocation11 + $0x68] sm:$0xf]
        %v5895 = vld [vmem:[#allocation11 + $0x6c] sm:$0xff]
        %v5896 = vld [vmem:[#allocation11 + $0x74] sm:$0xf]
        %v5897 = vld [vmem:[#allocation11 + $0x78] sm:$0xff]
        %v5898 = vld [vmem:[#allocation11 + $0x80] sm:$0xf]
        %v5899 = vld [vmem:[#allocation11 + $0x84] sm:$0xff]
        %v5900 = vld [vmem:[#allocation11 + $0x8c] sm:$0xf]
        %v5901 = vld [vmem:[#allocation11 + $0x90] sm:$0xff]
        %v5902 = vld [vmem:[#allocation11 + $0x98] sm:$0xf]
        %v5903 = vld [vmem:[#allocation11 + $0x9c] sm:$0xff]
        %v5904 = vld [vmem:[#allocation11 + $0xa4] sm:$0xf]
        %v5905 = vld [vmem:[#allocation11 + $0xa8] sm:$0xff]
        %v5906 = vld [vmem:[#allocation11 + $0xb0] sm:$0xf]
        %v5907 = vld [vmem:[#allocation11 + $0xb4] sm:$0xff]
        %v5908 = vld [vmem:[#allocation11 + $0xbc] sm:$0xf]
        %v5909 = vld [vmem:[%s7] sm:$0x7]
        %v5911 = vperm.slane %v5909, 0
        %v5912 = vperm.slane %v5909, 1
        %v5913 = vperm.slane %v5909, 2
        %v5949 = vunpack.c.l.b16 %v5877
        %v5950 = vunpack.c.h.b16 %v5877
        %v5951 = vunpack.c.l.b16 %v5878
        %v5952 = vunpack.c.l.b16 %v5879
        %v5953 = vunpack.c.h.b16 %v5879
        %v5954 = vunpack.c.l.b16 %v5880
        %v5955 = vunpack.c.l.b16 %v5881
        %v5956 = vunpack.c.h.b16 %v5881
        %v5957 = vunpack.c.l.b16 %v5882
        %v5958 = vunpack.c.l.b16 %v5883
        %v5959 = vunpack.c.h.b16 %v5883
        %v5960 = vunpack.c.l.b16 %v5884
        %v5961 = vunpack.c.l.b16 %v5885
        %v5962 = vunpack.c.h.b16 %v5885
        %v5963 = vunpack.c.l.b16 %v5886
        %v5964 = vunpack.c.l.b16 %v5887
        %v5965 = vunpack.c.h.b16 %v5887
        %v5966 = vunpack.c.l.b16 %v5888
        %v5967 = vunpack.c.l.b16 %v5889
        %v5968 = vunpack.c.h.b16 %v5889
        %v5969 = vunpack.c.l.b16 %v5890
        %v5970 = vunpack.c.l.b16 %v5891
        %v5971 = vunpack.c.h.b16 %v5891
        %v5972 = vunpack.c.l.b16 %v5892
        %v5973 = vunpack.c.l.b16 %v5893
        %v5974 = vunpack.c.h.b16 %v5893
        %v5975 = vunpack.c.l.b16 %v5894
        %v5976 = vunpack.c.l.b16 %v5895
        %v5977 = vunpack.c.h.b16 %v5895
        %v5978 = vunpack.c.l.b16 %v5896
        %v5979 = vunpack.c.l.b16 %v5897
        %v5980 = vunpack.c.h.b16 %v5897
        %v5981 = vunpack.c.l.b16 %v5898
        %v5982 = vunpack.c.l.b16 %v5899
        %v5983 = vunpack.c.h.b16 %v5899
        %v5984 = vunpack.c.l.b16 %v5900
        %v5985 = vunpack.c.l.b16 %v5901
        %v5986 = vunpack.c.h.b16 %v5901
        %v5987 = vunpack.c.l.b16 %v5902
        %v5988 = vunpack.c.l.b16 %v5903
        %v5989 = vunpack.c.h.b16 %v5903
        %v5990 = vunpack.c.l.b16 %v5904
        %v5991 = vunpack.c.l.b16 %v5905
        %v5992 = vunpack.c.h.b16 %v5905
        %v5993 = vunpack.c.l.b16 %v5906
        %v5994 = vunpack.c.l.b16 %v5907
        %v5995 = vunpack.c.h.b16 %v5907
        %v5996 = vunpack.c.l.b16 %v5908
        %v5997 = vpack.c.b16 %v5952, %v5949
        %v5998 = vpack.c.b16 %v5953, %v5950
        %v5999 = vpack.c.b16 %v5954, %v5951
        %v6000 = vpack.c.b16 %v5958, %v5955
        %v6001 = vpack.c.b16 %v5959, %v5956
        %v6002 = vpack.c.b16 %v5960, %v5957
        %v6003 = vpack.c.b16 %v5964, %v5961
        %v6004 = vpack.c.b16 %v5965, %v5962
        %v6005 = vpack.c.b16 %v5966, %v5963
        %v6006 = vpack.c.b16 %v5970, %v5967
        %v6007 = vpack.c.b16 %v5971, %v5968
        %v6008 = vpack.c.b16 %v5972, %v5969
        %v6009 = vpack.c.b16 %v5976, %v5973
        %v6010 = vpack.c.b16 %v5977, %v5974
        %v6011 = vpack.c.b16 %v5978, %v5975
        %v6012 = vpack.c.b16 %v5982, %v5979
        %v6013 = vpack.c.b16 %v5983, %v5980
        %v6014 = vpack.c.b16 %v5984, %v5981
        %v6015 = vpack.c.b16 %v5988, %v5985
        %v6016 = vpack.c.b16 %v5989, %v5986
        %v6017 = vpack.c.b16 %v5990, %v5987
        %v6018 = vpack.c.b16 %v5994, %v5991
        %v6019 = vpack.c.b16 %v5995, %v5992
        %v6020 = vpack.c.b16 %v5996, %v5993
        %6045 = vmatpush.bf16.msra.mxu0 %v6018
        %6046 = vmatpush.bf16.msra.mxu0 %v6015
        %6047 = vmatpush.bf16.msra.mxu0 %v6012
        %6048 = vmatpush.bf16.msra.mxu0 %v6009
        %6049 = vmatpush.bf16.msra.mxu0 %v6006
        %6050 = vmatpush.bf16.msra.mxu0 %v6003
        %6051 = vmatpush.bf16.msra.mxu0 %v6000
        %6052 = vmatpush.bf16.msra.mxu0 %v5997
        %6053 = vmatmul.bf16.gmra.mxu0 %v5861
        %v6054 = vpop.f32.mrf.mxu0
        %v6055 = vadd.f32 %v5911, %v6054
        %v6056 = vpop.f32.mrf.mxu0
        %v6057 = vadd.f32 %v5911, %v6056
        %6058 = vmatmul.bf16.gmra.mxu0 %v5862
        %v6059 = vpop.f32.mrf.mxu0
        %v6060 = vadd.f32 %v5911, %v6059
        %v6061 = vpop.f32.mrf.mxu0
        %v6062 = vadd.f32 %v5911, %v6061
        %6063 = vmatmul.bf16.gmra.mxu0 %v5863
        %v6064 = vpop.f32.mrf.mxu0
        %v6065 = vadd.f32 %v5911, %v6064
        %v6066 = vpop.f32.mrf.mxu0
        %v6067 = vadd.f32 %v5911, %v6066
        %6068 = vmatmul.bf16.gmra.mxu0 %v5864
        %v6069 = vpop.f32.mrf.mxu0
        %v6070 = vadd.f32 %v5911, %v6069
        %v6071 = vpop.f32.mrf.mxu0
        %v6072 = vadd.f32 %v5911, %v6071
        %6073 = vmatmul.bf16.gmra.mxu0 %v5865
        %v6074 = vpop.f32.mrf.mxu0
        %v6075 = vadd.f32 %v5911, %v6074
        %v6076 = vpop.f32.mrf.mxu0
        %v6077 = vadd.f32 %v5911, %v6076
        %6078 = vmatmul.bf16.gmra.mxu0 %v5866
        %v6079 = vpop.f32.mrf.mxu0
        %v6080 = vadd.f32 %v5911, %v6079
        %v6081 = vpop.f32.mrf.mxu0
        %v6082 = vadd.f32 %v5911, %v6081
        %6083 = vmatmul.bf16.gmra.mxu0 %v5867
        %v6084 = vpop.f32.mrf.mxu0
        %v6085 = vadd.f32 %v5911, %v6084
        %v6086 = vpop.f32.mrf.mxu0
        %v6087 = vadd.f32 %v5911, %v6086
        %6088 = vmatmul.bf16.gmra.mxu0 %v5868
        %v6089 = vpop.f32.mrf.mxu0
        %v6090 = vadd.f32 %v5911, %v6089
        %v6091 = vpop.f32.mrf.mxu0
        %v6092 = vadd.f32 %v5911, %v6091
        %6093 = vmatmul.bf16.gmra.mxu0 %v5869
        %v6094 = vpop.f32.mrf.mxu0
        %v6095 = vadd.f32 %v5911, %v6094
        %v6096 = vpop.f32.mrf.mxu0
        %v6097 = vadd.f32 %v5911, %v6096
        %6098 = vmatmul.bf16.gmra.mxu0 %v5870
        %v6099 = vpop.f32.mrf.mxu0
        %v6100 = vadd.f32 %v5911, %v6099
        %v6101 = vpop.f32.mrf.mxu0
        %v6102 = vadd.f32 %v5911, %v6101
        %6103 = vmatmul.bf16.gmra.mxu0 %v5871
        %v6104 = vpop.f32.mrf.mxu0
        %v6105 = vadd.f32 %v5911, %v6104
        %v6106 = vpop.f32.mrf.mxu0
        %v6107 = vadd.f32 %v5911, %v6106
        %6108 = vmatmul.bf16.gmra.mxu0 %v5872
        %v6109 = vpop.f32.mrf.mxu0
        %v6110 = vadd.f32 %v5911, %v6109
        %v6111 = vpop.f32.mrf.mxu0
        %v6112 = vadd.f32 %v5911, %v6111
        %6113 = vmatmul.bf16.gmra.mxu0 %v5873
        %v6114 = vpop.f32.mrf.mxu0
        %v6115 = vadd.f32 %v5911, %v6114
        %v6116 = vpop.f32.mrf.mxu0
        %v6117 = vadd.f32 %v5911, %v6116
        %6118 = vmatmul.bf16.gmra.mxu0 %v5874
        %v6119 = vpop.f32.mrf.mxu0
        %v6120 = vadd.f32 %v5911, %v6119
        %v6121 = vpop.f32.mrf.mxu0
        %v6122 = vadd.f32 %v5911, %v6121
        %6123 = vmatmul.bf16.gmra.mxu0 %v5875
        %v6124 = vpop.f32.mrf.mxu0
        %v6125 = vadd.f32 %v5911, %v6124
        %v6126 = vpop.f32.mrf.mxu0
        %v6127 = vadd.f32 %v5911, %v6126
        %6128 = vmatmul.bf16.gmra.mxu0 %v5876
        %v6129 = vpop.f32.mrf.mxu0
        %v6130 = vadd.f32 %v5911, %v6129
        %v6131 = vpop.f32.mrf.mxu0
        %v6132 = vadd.f32 %v5911, %v6131
        %6133 = vdwg.mxu0
        %6134 = vmatpush.bf16.msra.mxu0 %v6019
        %6135 = vmatpush.bf16.msra.mxu0 %v6016
        %6136 = vmatpush.bf16.msra.mxu0 %v6013
        %6137 = vmatpush.bf16.msra.mxu0 %v6010
        %6138 = vmatpush.bf16.msra.mxu0 %v6007
        %6139 = vmatpush.bf16.msra.mxu0 %v6004
        %6140 = vmatpush.bf16.msra.mxu0 %v6001
        %6141 = vmatpush.bf16.msra.mxu0 %v5998
        %6142 = vmatmul.bf16.gmra.mxu0 %v5861
        %v6143 = vpop.f32.mrf.mxu0
        %v6144 = vadd.f32 %v5912, %v6143
        %v6145 = vpop.f32.mrf.mxu0
        %v6146 = vadd.f32 %v5912, %v6145
        %6147 = vmatmul.bf16.gmra.mxu0 %v5862
        %v6148 = vpop.f32.mrf.mxu0
        %v6149 = vadd.f32 %v5912, %v6148
        %v6150 = vpop.f32.mrf.mxu0
        %v6151 = vadd.f32 %v5912, %v6150
        %6152 = vmatmul.bf16.gmra.mxu0 %v5863
        %v6153 = vpop.f32.mrf.mxu0
        %v6154 = vadd.f32 %v5912, %v6153
        %v6155 = vpop.f32.mrf.mxu0
        %v6156 = vadd.f32 %v5912, %v6155
        %6157 = vmatmul.bf16.gmra.mxu0 %v5864
        %v6158 = vpop.f32.mrf.mxu0
        %v6159 = vadd.f32 %v5912, %v6158
        %v6160 = vpop.f32.mrf.mxu0
        %v6161 = vadd.f32 %v5912, %v6160
        %6162 = vmatmul.bf16.gmra.mxu0 %v5865
        %v6163 = vpop.f32.mrf.mxu0
        %v6164 = vadd.f32 %v5912, %v6163
        %v6165 = vpop.f32.mrf.mxu0
        %v6166 = vadd.f32 %v5912, %v6165
        %6167 = vmatmul.bf16.gmra.mxu0 %v5866
        %v6168 = vpop.f32.mrf.mxu0
        %v6169 = vadd.f32 %v5912, %v6168
        %v6170 = vpop.f32.mrf.mxu0
        %v6171 = vadd.f32 %v5912, %v6170
        %6172 = vmatmul.bf16.gmra.mxu0 %v5867
        %v6173 = vpop.f32.mrf.mxu0
        %v6174 = vadd.f32 %v5912, %v6173
        %v6175 = vpop.f32.mrf.mxu0
        %v6176 = vadd.f32 %v5912, %v6175
        %6177 = vmatmul.bf16.gmra.mxu0 %v5868
        %v6178 = vpop.f32.mrf.mxu0
        %v6179 = vadd.f32 %v5912, %v6178
        %v6180 = vpop.f32.mrf.mxu0
        %v6181 = vadd.f32 %v5912, %v6180
        %6182 = vmatmul.bf16.gmra.mxu0 %v5869
        %v6183 = vpop.f32.mrf.mxu0
        %v6184 = vadd.f32 %v5912, %v6183
        %v6185 = vpop.f32.mrf.mxu0
        %v6186 = vadd.f32 %v5912, %v6185
        %6187 = vmatmul.bf16.gmra.mxu0 %v5870
        %v6188 = vpop.f32.mrf.mxu0
        %v6189 = vadd.f32 %v5912, %v6188
        %v6190 = vpop.f32.mrf.mxu0
        %v6191 = vadd.f32 %v5912, %v6190
        %6192 = vmatmul.bf16.gmra.mxu0 %v5871
        %v6193 = vpop.f32.mrf.mxu0
        %v6194 = vadd.f32 %v5912, %v6193
        %v6195 = vpop.f32.mrf.mxu0
        %v6196 = vadd.f32 %v5912, %v6195
        %6197 = vmatmul.bf16.gmra.mxu0 %v5872
        %v6198 = vpop.f32.mrf.mxu0
        %v6199 = vadd.f32 %v5912, %v6198
        %v6200 = vpop.f32.mrf.mxu0
        %v6201 = vadd.f32 %v5912, %v6200
        %6202 = vmatmul.bf16.gmra.mxu0 %v5873
        %v6203 = vpop.f32.mrf.mxu0
        %v6204 = vadd.f32 %v5912, %v6203
        %v6205 = vpop.f32.mrf.mxu0
        %v6206 = vadd.f32 %v5912, %v6205
        %6207 = vmatmul.bf16.gmra.mxu0 %v5874
        %v6208 = vpop.f32.mrf.mxu0
        %v6209 = vadd.f32 %v5912, %v6208
        %v6210 = vpop.f32.mrf.mxu0
        %v6211 = vadd.f32 %v5912, %v6210
        %6212 = vmatmul.bf16.gmra.mxu0 %v5875
        %v6213 = vpop.f32.mrf.mxu0
        %v6214 = vadd.f32 %v5912, %v6213
        %v6215 = vpop.f32.mrf.mxu0
        %v6216 = vadd.f32 %v5912, %v6215
        %6217 = vmatmul.bf16.gmra.mxu0 %v5876
        %v6218 = vpop.f32.mrf.mxu0
        %v6219 = vadd.f32 %v5912, %v6218
        %v6220 = vpop.f32.mrf.mxu0
        %v6221 = vadd.f32 %v5912, %v6220
        %6222 = vdwg.mxu0
        %6223 = vmatpush.bf16.msra.mxu0 %v6020
        %6224 = vmatpush.bf16.msra.mxu0 %v6017
        %6225 = vmatpush.bf16.msra.mxu0 %v6014
        %6226 = vmatpush.bf16.msra.mxu0 %v6011
        %6227 = vmatpush.bf16.msra.mxu0 %v6008
        %6228 = vmatpush.bf16.msra.mxu0 %v6005
        %6229 = vmatpush.bf16.msra.mxu0 %v6002
        %6230 = vmatpush.bf16.msra.mxu0 %v5999
        %6231 = vmatmul.bf16.gmra.mxu0 %v5861
        %v6232 = vpop.f32.mrf.mxu0
        %v6233 = vadd.f32 %v5913, %v6232
        %v6234 = vpop.f32.mrf.mxu0
        %v6235 = vadd.f32 %v5913, %v6234
        %6236 = vmatmul.bf16.gmra.mxu0 %v5862
        %v6237 = vpop.f32.mrf.mxu0
        %v6238 = vadd.f32 %v5913, %v6237
        %v6239 = vpop.f32.mrf.mxu0
        %v6240 = vadd.f32 %v5913, %v6239
        %6241 = vmatmul.bf16.gmra.mxu0 %v5863
        %v6242 = vpop.f32.mrf.mxu0
        %v6243 = vadd.f32 %v5913, %v6242
        %v6244 = vpop.f32.mrf.mxu0
        %v6245 = vadd.f32 %v5913, %v6244
        %6246 = vmatmul.bf16.gmra.mxu0 %v5864
        %v6247 = vpop.f32.mrf.mxu0
        %v6248 = vadd.f32 %v5913, %v6247
        %v6249 = vpop.f32.mrf.mxu0
        %v6250 = vadd.f32 %v5913, %v6249
        %6251 = vmatmul.bf16.gmra.mxu0 %v5865
        %v6252 = vpop.f32.mrf.mxu0
        %v6253 = vadd.f32 %v5913, %v6252
        %v6254 = vpop.f32.mrf.mxu0
        %v6255 = vadd.f32 %v5913, %v6254
        %6256 = vmatmul.bf16.gmra.mxu0 %v5866
        %v6257 = vpop.f32.mrf.mxu0
        %v6258 = vadd.f32 %v5913, %v6257
        %v6259 = vpop.f32.mrf.mxu0
        %v6260 = vadd.f32 %v5913, %v6259
        %6261 = vmatmul.bf16.gmra.mxu0 %v5867
        %v6262 = vpop.f32.mrf.mxu0
        %v6263 = vadd.f32 %v5913, %v6262
        %v6264 = vpop.f32.mrf.mxu0
        %v6265 = vadd.f32 %v5913, %v6264
        %6266 = vmatmul.bf16.gmra.mxu0 %v5868
        %v6267 = vpop.f32.mrf.mxu0
        %v6268 = vadd.f32 %v5913, %v6267
        %v6269 = vpop.f32.mrf.mxu0
        %v6270 = vadd.f32 %v5913, %v6269
        %6271 = vmatmul.bf16.gmra.mxu0 %v5869
        %v6272 = vpop.f32.mrf.mxu0
        %v6273 = vadd.f32 %v5913, %v6272
        %v6274 = vpop.f32.mrf.mxu0
        %v6275 = vadd.f32 %v5913, %v6274
        %6276 = vmatmul.bf16.gmra.mxu0 %v5870
        %v6277 = vpop.f32.mrf.mxu0
        %v6278 = vadd.f32 %v5913, %v6277
        %v6279 = vpop.f32.mrf.mxu0
        %v6280 = vadd.f32 %v5913, %v6279
        %6281 = vmatmul.bf16.gmra.mxu0 %v5871
        %v6282 = vpop.f32.mrf.mxu0
        %v6283 = vadd.f32 %v5913, %v6282
        %v6284 = vpop.f32.mrf.mxu0
        %v6285 = vadd.f32 %v5913, %v6284
        %6286 = vmatmul.bf16.gmra.mxu0 %v5872
        %v6287 = vpop.f32.mrf.mxu0
        %v6288 = vadd.f32 %v5913, %v6287
        %v6289 = vpop.f32.mrf.mxu0
        %v6290 = vadd.f32 %v5913, %v6289
        %6291 = vmatmul.bf16.gmra.mxu0 %v5873
        %v6292 = vpop.f32.mrf.mxu0
        %v6293 = vadd.f32 %v5913, %v6292
        %v6294 = vpop.f32.mrf.mxu0
        %v6295 = vadd.f32 %v5913, %v6294
        %6296 = vmatmul.bf16.gmra.mxu0 %v5874
        %v6297 = vpop.f32.mrf.mxu0
        %v6298 = vadd.f32 %v5913, %v6297
        %v6299 = vpop.f32.mrf.mxu0
        %v6300 = vadd.f32 %v5913, %v6299
        %6301 = vmatmul.bf16.gmra.mxu0 %v5875
        %v6302 = vpop.f32.mrf.mxu0
        %v6303 = vadd.f32 %v5913, %v6302
        %v6304 = vpop.f32.mrf.mxu0
        %v6305 = vadd.f32 %v5913, %v6304
        %6306 = vmatmul.bf16.gmra.mxu0 %v5876
        %v6307 = vpop.f32.mrf.mxu0
        %v6308 = vadd.f32 %v5913, %v6307
        %v6309 = vpop.f32.mrf.mxu0
        %v6310 = vadd.f32 %v5913, %v6309
        %6311 = vdwg.mxu0
        %v6312 = vadd.f32 %v5251, %v6055
        %v6313 = vadd.f32 %v5254, %v6057
        %v6314 = vadd.f32 %v5257, %v6060
        %v6315 = vadd.f32 %v5260, %v6062
        %v6316 = vadd.f32 %v5263, %v6065
        %v6317 = vadd.f32 %v5266, %v6067
        %v6318 = vadd.f32 %v5269, %v6070
        %v6319 = vadd.f32 %v5272, %v6072
        %v6320 = vadd.f32 %v5275, %v6075
        %v6321 = vadd.f32 %v5278, %v6077
        %v6322 = vadd.f32 %v5281, %v6080
        %v6323 = vadd.f32 %v5284, %v6082
        %v6324 = vadd.f32 %v5287, %v6085
        %v6325 = vadd.f32 %v5290, %v6087
        %v6326 = vadd.f32 %v5293, %v6090
        %v6327 = vadd.f32 %v5296, %v6092
        %v6328 = vadd.f32 %v5299, %v6095
        %v6329 = vadd.f32 %v5302, %v6097
        %v6330 = vadd.f32 %v5305, %v6100
        %v6331 = vadd.f32 %v5308, %v6102
        %v6332 = vadd.f32 %v5311, %v6105
        %v6333 = vadd.f32 %v5314, %v6107
        %v6334 = vadd.f32 %v5317, %v6110
        %v6335 = vadd.f32 %v5320, %v6112
        %v6336 = vadd.f32 %v5323, %v6115
        %v6337 = vadd.f32 %v5326, %v6117
        %v6338 = vadd.f32 %v5329, %v6120
        %v6339 = vadd.f32 %v5332, %v6122
        %v6340 = vadd.f32 %v5335, %v6125
        %v6341 = vadd.f32 %v5338, %v6127
        %v6342 = vadd.f32 %v5341, %v6130
        %v6343 = vadd.f32 %v5344, %v6132
        %v6344 = vxor.u32 %v6312, 2147483648
        %v6345 = vxor.u32 %v6313, 2147483648
        %v6346 = vxor.u32 %v6314, 2147483648
        %v6347 = vxor.u32 %v6315, 2147483648
        %v6348 = vxor.u32 %v6316, 2147483648
        %v6349 = vxor.u32 %v6317, 2147483648
        %v6350 = vxor.u32 %v6318, 2147483648
        %v6351 = vxor.u32 %v6319, 2147483648
        %v6352 = vxor.u32 %v6320, 2147483648
        %v6353 = vxor.u32 %v6321, 2147483648
        %v6354 = vxor.u32 %v6322, 2147483648
        %v6355 = vxor.u32 %v6323, 2147483648
        %v6356 = vxor.u32 %v6324, 2147483648
        %v6357 = vxor.u32 %v6325, 2147483648
        %v6358 = vxor.u32 %v6326, 2147483648
        %v6359 = vxor.u32 %v6327, 2147483648
        %v6360 = vxor.u32 %v6328, 2147483648
        %v6361 = vxor.u32 %v6329, 2147483648
        %v6362 = vxor.u32 %v6330, 2147483648
        %v6363 = vxor.u32 %v6331, 2147483648
        %v6364 = vxor.u32 %v6332, 2147483648
        %v6365 = vxor.u32 %v6333, 2147483648
        %v6366 = vxor.u32 %v6334, 2147483648
        %v6367 = vxor.u32 %v6335, 2147483648
        %v6368 = vxor.u32 %v6336, 2147483648
        %v6369 = vxor.u32 %v6337, 2147483648
        %v6370 = vxor.u32 %v6338, 2147483648
        %v6371 = vxor.u32 %v6339, 2147483648
        %v6372 = vxor.u32 %v6340, 2147483648
        %v6373 = vxor.u32 %v6341, 2147483648
        %v6374 = vxor.u32 %v6342, 2147483648
        %v6375 = vxor.u32 %v6343, 2147483648
        %v6376 = vmul.f32 %v6344, 1.442695
        %v6377 = vpow.pop %v6376
        %v6378 = vmul.f32 %v6345, 1.442695
        %v6379 = vpow.pop %v6378
        %v6380 = vmul.f32 %v6346, 1.442695
        %v6381 = vpow.pop %v6380
        %v6382 = vmul.f32 %v6347, 1.442695
        %v6383 = vpow.pop %v6382
        %v6384 = vmul.f32 %v6348, 1.442695
        %v6385 = vpow.pop %v6384
        %v6386 = vmul.f32 %v6349, 1.442695
        %v6387 = vpow.pop %v6386
        %v6388 = vmul.f32 %v6350, 1.442695
        %v6389 = vpow.pop %v6388
        %v6390 = vmul.f32 %v6351, 1.442695
        %v6391 = vpow.pop %v6390
        %v6392 = vmul.f32 %v6352, 1.442695
        %v6393 = vpow.pop %v6392
        %v6394 = vmul.f32 %v6353, 1.442695
        %v6395 = vpow.pop %v6394
        %v6396 = vmul.f32 %v6354, 1.442695
        %v6397 = vpow.pop %v6396
        %v6398 = vmul.f32 %v6355, 1.442695
        %v6399 = vpow.pop %v6398
        %v6400 = vmul.f32 %v6356, 1.442695
        %v6401 = vpow.pop %v6400
        %v6402 = vmul.f32 %v6357, 1.442695
        %v6403 = vpow.pop %v6402
        %v6404 = vmul.f32 %v6358, 1.442695
        %v6405 = vpow.pop %v6404
        %v6406 = vmul.f32 %v6359, 1.442695
        %v6407 = vpow.pop %v6406
        %v6408 = vmul.f32 %v6360, 1.442695
        %v6409 = vpow.pop %v6408
        %v6410 = vmul.f32 %v6361, 1.442695
        %v6411 = vpow.pop %v6410
        %v6412 = vmul.f32 %v6362, 1.442695
        %v6413 = vpow.pop %v6412
        %v6414 = vmul.f32 %v6363, 1.442695
        %v6415 = vpow.pop %v6414
        %v6416 = vmul.f32 %v6364, 1.442695
        %v6417 = vpow.pop %v6416
        %v6418 = vmul.f32 %v6365, 1.442695
        %v6419 = vpow.pop %v6418
        %v6420 = vmul.f32 %v6366, 1.442695
        %v6421 = vpow.pop %v6420
        %v6422 = vmul.f32 %v6367, 1.442695
        %v6423 = vpow.pop %v6422
        %v6424 = vmul.f32 %v6368, 1.442695
        %v6425 = vpow.pop %v6424
        %v6426 = vmul.f32 %v6369, 1.442695
        %v6427 = vpow.pop %v6426
        %v6428 = vmul.f32 %v6370, 1.442695
        %v6429 = vpow.pop %v6428
        %v6430 = vmul.f32 %v6371, 1.442695
        %v6431 = vpow.pop %v6430
        %v6432 = vmul.f32 %v6372, 1.442695
        %v6433 = vpow.pop %v6432
        %v6434 = vmul.f32 %v6373, 1.442695
        %v6435 = vpow.pop %v6434
        %v6436 = vmul.f32 %v6374, 1.442695
        %v6437 = vpow.pop %v6436
        %v6438 = vmul.f32 %v6375, 1.442695
        %v6439 = vpow.pop %v6438
        %v6440 = vadd.f32 %v6377, 1.0
        %v6441 = vadd.f32 %v6379, 1.0
        %v6442 = vadd.f32 %v6381, 1.0
        %v6443 = vadd.f32 %v6383, 1.0
        %v6444 = vadd.f32 %v6385, 1.0
        %v6445 = vadd.f32 %v6387, 1.0
        %v6446 = vadd.f32 %v6389, 1.0
        %v6447 = vadd.f32 %v6391, 1.0
        %v6448 = vadd.f32 %v6393, 1.0
        %v6449 = vadd.f32 %v6395, 1.0
        %v6450 = vadd.f32 %v6397, 1.0
        %v6451 = vadd.f32 %v6399, 1.0
        %v6452 = vadd.f32 %v6401, 1.0
        %v6453 = vadd.f32 %v6403, 1.0
        %v6454 = vadd.f32 %v6405, 1.0
        %v6455 = vadd.f32 %v6407, 1.0
        %v6456 = vadd.f32 %v6409, 1.0
        %v6457 = vadd.f32 %v6411, 1.0
        %v6458 = vadd.f32 %v6413, 1.0
        %v6459 = vadd.f32 %v6415, 1.0
        %v6460 = vadd.f32 %v6417, 1.0
        %v6461 = vadd.f32 %v6419, 1.0
        %v6462 = vadd.f32 %v6421, 1.0
        %v6463 = vadd.f32 %v6423, 1.0
        %v6464 = vadd.f32 %v6425, 1.0
        %v6465 = vadd.f32 %v6427, 1.0
        %v6466 = vadd.f32 %v6429, 1.0
        %v6467 = vadd.f32 %v6431, 1.0
        %v6468 = vadd.f32 %v6433, 1.0
        %v6469 = vadd.f32 %v6435, 1.0
        %v6470 = vadd.f32 %v6437, 1.0
        %v6471 = vadd.f32 %v6439, 1.0
        %v6472 = vrcp.pop %v6440
        %v6473 = vmul.f32 %v6440, %v6472
        %v6474 = vsub.f32 1.0, %v6473
        %v6475 = vmul.f32 %v6472, %v6474
        %v6476 = vadd.f32 %v6472, %v6475
        %vm6477 = vweird.f32 %v6440
        %vm6478 = vweird.f32 %v6472
        %vm6479 = vmor %vm6477, %vm6478
        %v6480 = vsel %vm6479, %v6472, %v6476
        %v6481 = vand.u32 2147483647, %v6440
        %vm6482 = vcmp.eq.f32.partialorder %v6481, 8.507059e+37
        %v6483 = vand.u32 %v6440, 2147483648
        %v6484 = vor.u32 1.1754944e-38, %v6483
        %v6485 = vsel %vm6482, %v6484, %v6480
        %v6486 = vmul.f32 1.0, %v6485
        %v6487 = vrcp.pop %v6441
        %v6488 = vmul.f32 %v6441, %v6487
        %v6489 = vsub.f32 1.0, %v6488
        %v6490 = vmul.f32 %v6487, %v6489
        %v6491 = vadd.f32 %v6487, %v6490
        %vm6492 = vweird.f32 %v6441
        %vm6493 = vweird.f32 %v6487
        %vm6494 = vmor %vm6492, %vm6493
        %v6495 = vsel %vm6494, %v6487, %v6491
        %v6496 = vand.u32 2147483647, %v6441
        %vm6497 = vcmp.eq.f32.partialorder %v6496, 8.507059e+37
        %v6498 = vand.u32 %v6441, 2147483648
        %v6499 = vor.u32 1.1754944e-38, %v6498
        %v6500 = vsel %vm6497, %v6499, %v6495
        %v6501 = vmul.f32 1.0, %v6500
        %v6502 = vrcp.pop %v6442
        %v6503 = vmul.f32 %v6442, %v6502
        %v6504 = vsub.f32 1.0, %v6503
        %v6505 = vmul.f32 %v6502, %v6504
        %v6506 = vadd.f32 %v6502, %v6505
        %vm6507 = vweird.f32 %v6442
        %vm6508 = vweird.f32 %v6502
        %vm6509 = vmor %vm6507, %vm6508
        %v6510 = vsel %vm6509, %v6502, %v6506
        %v6511 = vand.u32 2147483647, %v6442
        %vm6512 = vcmp.eq.f32.partialorder %v6511, 8.507059e+37
        %v6513 = vand.u32 %v6442, 2147483648
        %v6514 = vor.u32 1.1754944e-38, %v6513
        %v6515 = vsel %vm6512, %v6514, %v6510
        %v6516 = vmul.f32 1.0, %v6515
        %v6517 = vrcp.pop %v6443
        %v6518 = vmul.f32 %v6443, %v6517
        %v6519 = vsub.f32 1.0, %v6518
        %v6520 = vmul.f32 %v6517, %v6519
        %v6521 = vadd.f32 %v6517, %v6520
        %vm6522 = vweird.f32 %v6443
        %vm6523 = vweird.f32 %v6517
        %vm6524 = vmor %vm6522, %vm6523
        %v6525 = vsel %vm6524, %v6517, %v6521
        %v6526 = vand.u32 2147483647, %v6443
        %vm6527 = vcmp.eq.f32.partialorder %v6526, 8.507059e+37
        %v6528 = vand.u32 %v6443, 2147483648
        %v6529 = vor.u32 1.1754944e-38, %v6528
        %v6530 = vsel %vm6527, %v6529, %v6525
        %v6531 = vmul.f32 1.0, %v6530
        %v6532 = vrcp.pop %v6444
        %v6533 = vmul.f32 %v6444, %v6532
        %v6534 = vsub.f32 1.0, %v6533
        %v6535 = vmul.f32 %v6532, %v6534
        %v6536 = vadd.f32 %v6532, %v6535
        %vm6537 = vweird.f32 %v6444
        %vm6538 = vweird.f32 %v6532
        %vm6539 = vmor %vm6537, %vm6538
        %v6540 = vsel %vm6539, %v6532, %v6536
        %v6541 = vand.u32 2147483647, %v6444
        %vm6542 = vcmp.eq.f32.partialorder %v6541, 8.507059e+37
        %v6543 = vand.u32 %v6444, 2147483648
        %v6544 = vor.u32 1.1754944e-38, %v6543
        %v6545 = vsel %vm6542, %v6544, %v6540
        %v6546 = vmul.f32 1.0, %v6545
        %v6547 = vrcp.pop %v6445
        %v6548 = vmul.f32 %v6445, %v6547
        %v6549 = vsub.f32 1.0, %v6548
        %v6550 = vmul.f32 %v6547, %v6549
        %v6551 = vadd.f32 %v6547, %v6550
        %vm6552 = vweird.f32 %v6445
        %vm6553 = vweird.f32 %v6547
        %vm6554 = vmor %vm6552, %vm6553
        %v6555 = vsel %vm6554, %v6547, %v6551
        %v6556 = vand.u32 2147483647, %v6445
        %vm6557 = vcmp.eq.f32.partialorder %v6556, 8.507059e+37
        %v6558 = vand.u32 %v6445, 2147483648
        %v6559 = vor.u32 1.1754944e-38, %v6558
        %v6560 = vsel %vm6557, %v6559, %v6555
        %v6561 = vmul.f32 1.0, %v6560
        %v6562 = vrcp.pop %v6446
        %v6563 = vmul.f32 %v6446, %v6562
        %v6564 = vsub.f32 1.0, %v6563
        %v6565 = vmul.f32 %v6562, %v6564
        %v6566 = vadd.f32 %v6562, %v6565
        %vm6567 = vweird.f32 %v6446
        %vm6568 = vweird.f32 %v6562
        %vm6569 = vmor %vm6567, %vm6568
        %v6570 = vsel %vm6569, %v6562, %v6566
        %v6571 = vand.u32 2147483647, %v6446
        %vm6572 = vcmp.eq.f32.partialorder %v6571, 8.507059e+37
        %v6573 = vand.u32 %v6446, 2147483648
        %v6574 = vor.u32 1.1754944e-38, %v6573
        %v6575 = vsel %vm6572, %v6574, %v6570
        %v6576 = vmul.f32 1.0, %v6575
        %v6577 = vrcp.pop %v6447
        %v6578 = vmul.f32 %v6447, %v6577
        %v6579 = vsub.f32 1.0, %v6578
        %v6580 = vmul.f32 %v6577, %v6579
        %v6581 = vadd.f32 %v6577, %v6580
        %vm6582 = vweird.f32 %v6447
        %vm6583 = vweird.f32 %v6577
        %vm6584 = vmor %vm6582, %vm6583
        %v6585 = vsel %vm6584, %v6577, %v6581
        %v6586 = vand.u32 2147483647, %v6447
        %vm6587 = vcmp.eq.f32.partialorder %v6586, 8.507059e+37
        %v6588 = vand.u32 %v6447, 2147483648
        %v6589 = vor.u32 1.1754944e-38, %v6588
        %v6590 = vsel %vm6587, %v6589, %v6585
        %v6591 = vmul.f32 1.0, %v6590
        %v6592 = vrcp.pop %v6448
        %v6593 = vmul.f32 %v6448, %v6592
        %v6594 = vsub.f32 1.0, %v6593
        %v6595 = vmul.f32 %v6592, %v6594
        %v6596 = vadd.f32 %v6592, %v6595
        %vm6597 = vweird.f32 %v6448
        %vm6598 = vweird.f32 %v6592
        %vm6599 = vmor %vm6597, %vm6598
        %v6600 = vsel %vm6599, %v6592, %v6596
        %v6601 = vand.u32 2147483647, %v6448
        %vm6602 = vcmp.eq.f32.partialorder %v6601, 8.507059e+37
        %v6603 = vand.u32 %v6448, 2147483648
        %v6604 = vor.u32 1.1754944e-38, %v6603
        %v6605 = vsel %vm6602, %v6604, %v6600
        %v6606 = vmul.f32 1.0, %v6605
        %v6607 = vrcp.pop %v6449
        %v6608 = vmul.f32 %v6449, %v6607
        %v6609 = vsub.f32 1.0, %v6608
        %v6610 = vmul.f32 %v6607, %v6609
        %v6611 = vadd.f32 %v6607, %v6610
        %vm6612 = vweird.f32 %v6449
        %vm6613 = vweird.f32 %v6607
        %vm6614 = vmor %vm6612, %vm6613
        %v6615 = vsel %vm6614, %v6607, %v6611
        %v6616 = vand.u32 2147483647, %v6449
        %vm6617 = vcmp.eq.f32.partialorder %v6616, 8.507059e+37
        %v6618 = vand.u32 %v6449, 2147483648
        %v6619 = vor.u32 1.1754944e-38, %v6618
        %v6620 = vsel %vm6617, %v6619, %v6615
        %v6621 = vmul.f32 1.0, %v6620
        %v6622 = vrcp.pop %v6450
        %v6623 = vmul.f32 %v6450, %v6622
        %v6624 = vsub.f32 1.0, %v6623
        %v6625 = vmul.f32 %v6622, %v6624
        %v6626 = vadd.f32 %v6622, %v6625
        %vm6627 = vweird.f32 %v6450
        %vm6628 = vweird.f32 %v6622
        %vm6629 = vmor %vm6627, %vm6628
        %v6630 = vsel %vm6629, %v6622, %v6626
        %v6631 = vand.u32 2147483647, %v6450
        %vm6632 = vcmp.eq.f32.partialorder %v6631, 8.507059e+37
        %v6633 = vand.u32 %v6450, 2147483648
        %v6634 = vor.u32 1.1754944e-38, %v6633
        %v6635 = vsel %vm6632, %v6634, %v6630
        %v6636 = vmul.f32 1.0, %v6635
        %v6637 = vrcp.pop %v6451
        %v6638 = vmul.f32 %v6451, %v6637
        %v6639 = vsub.f32 1.0, %v6638
        %v6640 = vmul.f32 %v6637, %v6639
        %v6641 = vadd.f32 %v6637, %v6640
        %vm6642 = vweird.f32 %v6451
        %vm6643 = vweird.f32 %v6637
        %vm6644 = vmor %vm6642, %vm6643
        %v6645 = vsel %vm6644, %v6637, %v6641
        %v6646 = vand.u32 2147483647, %v6451
        %vm6647 = vcmp.eq.f32.partialorder %v6646, 8.507059e+37
        %v6648 = vand.u32 %v6451, 2147483648
        %v6649 = vor.u32 1.1754944e-38, %v6648
        %v6650 = vsel %vm6647, %v6649, %v6645
        %v6651 = vmul.f32 1.0, %v6650
        %v6652 = vrcp.pop %v6452
        %v6653 = vmul.f32 %v6452, %v6652
        %v6654 = vsub.f32 1.0, %v6653
        %v6655 = vmul.f32 %v6652, %v6654
        %v6656 = vadd.f32 %v6652, %v6655
        %vm6657 = vweird.f32 %v6452
        %vm6658 = vweird.f32 %v6652
        %vm6659 = vmor %vm6657, %vm6658
        %v6660 = vsel %vm6659, %v6652, %v6656
        %v6661 = vand.u32 2147483647, %v6452
        %vm6662 = vcmp.eq.f32.partialorder %v6661, 8.507059e+37
        %v6663 = vand.u32 %v6452, 2147483648
        %v6664 = vor.u32 1.1754944e-38, %v6663
        %v6665 = vsel %vm6662, %v6664, %v6660
        %v6666 = vmul.f32 1.0, %v6665
        %v6667 = vrcp.pop %v6453
        %v6668 = vmul.f32 %v6453, %v6667
        %v6669 = vsub.f32 1.0, %v6668
        %v6670 = vmul.f32 %v6667, %v6669
        %v6671 = vadd.f32 %v6667, %v6670
        %vm6672 = vweird.f32 %v6453
        %vm6673 = vweird.f32 %v6667
        %vm6674 = vmor %vm6672, %vm6673
        %v6675 = vsel %vm6674, %v6667, %v6671
        %v6676 = vand.u32 2147483647, %v6453
        %vm6677 = vcmp.eq.f32.partialorder %v6676, 8.507059e+37
        %v6678 = vand.u32 %v6453, 2147483648
        %v6679 = vor.u32 1.1754944e-38, %v6678
        %v6680 = vsel %vm6677, %v6679, %v6675
        %v6681 = vmul.f32 1.0, %v6680
        %v6682 = vrcp.pop %v6454
        %v6683 = vmul.f32 %v6454, %v6682
        %v6684 = vsub.f32 1.0, %v6683
        %v6685 = vmul.f32 %v6682, %v6684
        %v6686 = vadd.f32 %v6682, %v6685
        %vm6687 = vweird.f32 %v6454
        %vm6688 = vweird.f32 %v6682
        %vm6689 = vmor %vm6687, %vm6688
        %v6690 = vsel %vm6689, %v6682, %v6686
        %v6691 = vand.u32 2147483647, %v6454
        %vm6692 = vcmp.eq.f32.partialorder %v6691, 8.507059e+37
        %v6693 = vand.u32 %v6454, 2147483648
        %v6694 = vor.u32 1.1754944e-38, %v6693
        %v6695 = vsel %vm6692, %v6694, %v6690
        %v6696 = vmul.f32 1.0, %v6695
        %v6697 = vrcp.pop %v6455
        %v6698 = vmul.f32 %v6455, %v6697
        %v6699 = vsub.f32 1.0, %v6698
        %v6700 = vmul.f32 %v6697, %v6699
        %v6701 = vadd.f32 %v6697, %v6700
        %vm6702 = vweird.f32 %v6455
        %vm6703 = vweird.f32 %v6697
        %vm6704 = vmor %vm6702, %vm6703
        %v6705 = vsel %vm6704, %v6697, %v6701
        %v6706 = vand.u32 2147483647, %v6455
        %vm6707 = vcmp.eq.f32.partialorder %v6706, 8.507059e+37
        %v6708 = vand.u32 %v6455, 2147483648
        %v6709 = vor.u32 1.1754944e-38, %v6708
        %v6710 = vsel %vm6707, %v6709, %v6705
        %v6711 = vmul.f32 1.0, %v6710
        %v6712 = vrcp.pop %v6456
        %v6713 = vmul.f32 %v6456, %v6712
        %v6714 = vsub.f32 1.0, %v6713
        %v6715 = vmul.f32 %v6712, %v6714
        %v6716 = vadd.f32 %v6712, %v6715
        %vm6717 = vweird.f32 %v6456
        %vm6718 = vweird.f32 %v6712
        %vm6719 = vmor %vm6717, %vm6718
        %v6720 = vsel %vm6719, %v6712, %v6716
        %v6721 = vand.u32 2147483647, %v6456
        %vm6722 = vcmp.eq.f32.partialorder %v6721, 8.507059e+37
        %v6723 = vand.u32 %v6456, 2147483648
        %v6724 = vor.u32 1.1754944e-38, %v6723
        %v6725 = vsel %vm6722, %v6724, %v6720
        %v6726 = vmul.f32 1.0, %v6725
        %v6727 = vrcp.pop %v6457
        %v6728 = vmul.f32 %v6457, %v6727
        %v6729 = vsub.f32 1.0, %v6728
        %v6730 = vmul.f32 %v6727, %v6729
        %v6731 = vadd.f32 %v6727, %v6730
        %vm6732 = vweird.f32 %v6457
        %vm6733 = vweird.f32 %v6727
        %vm6734 = vmor %vm6732, %vm6733
        %v6735 = vsel %vm6734, %v6727, %v6731
        %v6736 = vand.u32 2147483647, %v6457
        %vm6737 = vcmp.eq.f32.partialorder %v6736, 8.507059e+37
        %v6738 = vand.u32 %v6457, 2147483648
        %v6739 = vor.u32 1.1754944e-38, %v6738
        %v6740 = vsel %vm6737, %v6739, %v6735
        %v6741 = vmul.f32 1.0, %v6740
        %v6742 = vrcp.pop %v6458
        %v6743 = vmul.f32 %v6458, %v6742
        %v6744 = vsub.f32 1.0, %v6743
        %v6745 = vmul.f32 %v6742, %v6744
        %v6746 = vadd.f32 %v6742, %v6745
        %vm6747 = vweird.f32 %v6458
        %vm6748 = vweird.f32 %v6742
        %vm6749 = vmor %vm6747, %vm6748
        %v6750 = vsel %vm6749, %v6742, %v6746
        %v6751 = vand.u32 2147483647, %v6458
        %vm6752 = vcmp.eq.f32.partialorder %v6751, 8.507059e+37
        %v6753 = vand.u32 %v6458, 2147483648
        %v6754 = vor.u32 1.1754944e-38, %v6753
        %v6755 = vsel %vm6752, %v6754, %v6750
        %v6756 = vmul.f32 1.0, %v6755
        %v6757 = vrcp.pop %v6459
        %v6758 = vmul.f32 %v6459, %v6757
        %v6759 = vsub.f32 1.0, %v6758
        %v6760 = vmul.f32 %v6757, %v6759
        %v6761 = vadd.f32 %v6757, %v6760
        %vm6762 = vweird.f32 %v6459
        %vm6763 = vweird.f32 %v6757
        %vm6764 = vmor %vm6762, %vm6763
        %v6765 = vsel %vm6764, %v6757, %v6761
        %v6766 = vand.u32 2147483647, %v6459
        %vm6767 = vcmp.eq.f32.partialorder %v6766, 8.507059e+37
        %v6768 = vand.u32 %v6459, 2147483648
        %v6769 = vor.u32 1.1754944e-38, %v6768
        %v6770 = vsel %vm6767, %v6769, %v6765
        %v6771 = vmul.f32 1.0, %v6770
        %v6772 = vrcp.pop %v6460
        %v6773 = vmul.f32 %v6460, %v6772
        %v6774 = vsub.f32 1.0, %v6773
        %v6775 = vmul.f32 %v6772, %v6774
        %v6776 = vadd.f32 %v6772, %v6775
        %vm6777 = vweird.f32 %v6460
        %vm6778 = vweird.f32 %v6772
        %vm6779 = vmor %vm6777, %vm6778
        %v6780 = vsel %vm6779, %v6772, %v6776
        %v6781 = vand.u32 2147483647, %v6460
        %vm6782 = vcmp.eq.f32.partialorder %v6781, 8.507059e+37
        %v6783 = vand.u32 %v6460, 2147483648
        %v6784 = vor.u32 1.1754944e-38, %v6783
        %v6785 = vsel %vm6782, %v6784, %v6780
        %v6786 = vmul.f32 1.0, %v6785
        %v6787 = vrcp.pop %v6461
        %v6788 = vmul.f32 %v6461, %v6787
        %v6789 = vsub.f32 1.0, %v6788
        %v6790 = vmul.f32 %v6787, %v6789
        %v6791 = vadd.f32 %v6787, %v6790
        %vm6792 = vweird.f32 %v6461
        %vm6793 = vweird.f32 %v6787
        %vm6794 = vmor %vm6792, %vm6793
        %v6795 = vsel %vm6794, %v6787, %v6791
        %v6796 = vand.u32 2147483647, %v6461
        %vm6797 = vcmp.eq.f32.partialorder %v6796, 8.507059e+37
        %v6798 = vand.u32 %v6461, 2147483648
        %v6799 = vor.u32 1.1754944e-38, %v6798
        %v6800 = vsel %vm6797, %v6799, %v6795
        %v6801 = vmul.f32 1.0, %v6800
        %v6802 = vrcp.pop %v6462
        %v6803 = vmul.f32 %v6462, %v6802
        %v6804 = vsub.f32 1.0, %v6803
        %v6805 = vmul.f32 %v6802, %v6804
        %v6806 = vadd.f32 %v6802, %v6805
        %vm6807 = vweird.f32 %v6462
        %vm6808 = vweird.f32 %v6802
        %vm6809 = vmor %vm6807, %vm6808
        %v6810 = vsel %vm6809, %v6802, %v6806
        %v6811 = vand.u32 2147483647, %v6462
        %vm6812 = vcmp.eq.f32.partialorder %v6811, 8.507059e+37
        %v6813 = vand.u32 %v6462, 2147483648
        %v6814 = vor.u32 1.1754944e-38, %v6813
        %v6815 = vsel %vm6812, %v6814, %v6810
        %v6816 = vmul.f32 1.0, %v6815
        %v6817 = vrcp.pop %v6463
        %v6818 = vmul.f32 %v6463, %v6817
        %v6819 = vsub.f32 1.0, %v6818
        %v6820 = vmul.f32 %v6817, %v6819
        %v6821 = vadd.f32 %v6817, %v6820
        %vm6822 = vweird.f32 %v6463
        %vm6823 = vweird.f32 %v6817
        %vm6824 = vmor %vm6822, %vm6823
        %v6825 = vsel %vm6824, %v6817, %v6821
        %v6826 = vand.u32 2147483647, %v6463
        %vm6827 = vcmp.eq.f32.partialorder %v6826, 8.507059e+37
        %v6828 = vand.u32 %v6463, 2147483648
        %v6829 = vor.u32 1.1754944e-38, %v6828
        %v6830 = vsel %vm6827, %v6829, %v6825
        %v6831 = vmul.f32 1.0, %v6830
        %v6832 = vrcp.pop %v6464
        %v6833 = vmul.f32 %v6464, %v6832
        %v6834 = vsub.f32 1.0, %v6833
        %v6835 = vmul.f32 %v6832, %v6834
        %v6836 = vadd.f32 %v6832, %v6835
        %vm6837 = vweird.f32 %v6464
        %vm6838 = vweird.f32 %v6832
        %vm6839 = vmor %vm6837, %vm6838
        %v6840 = vsel %vm6839, %v6832, %v6836
        %v6841 = vand.u32 2147483647, %v6464
        %vm6842 = vcmp.eq.f32.partialorder %v6841, 8.507059e+37
        %v6843 = vand.u32 %v6464, 2147483648
        %v6844 = vor.u32 1.1754944e-38, %v6843
        %v6845 = vsel %vm6842, %v6844, %v6840
        %v6846 = vmul.f32 1.0, %v6845
        %v6847 = vrcp.pop %v6465
        %v6848 = vmul.f32 %v6465, %v6847
        %v6849 = vsub.f32 1.0, %v6848
        %v6850 = vmul.f32 %v6847, %v6849
        %v6851 = vadd.f32 %v6847, %v6850
        %vm6852 = vweird.f32 %v6465
        %vm6853 = vweird.f32 %v6847
        %vm6854 = vmor %vm6852, %vm6853
        %v6855 = vsel %vm6854, %v6847, %v6851
        %v6856 = vand.u32 2147483647, %v6465
        %vm6857 = vcmp.eq.f32.partialorder %v6856, 8.507059e+37
        %v6858 = vand.u32 %v6465, 2147483648
        %v6859 = vor.u32 1.1754944e-38, %v6858
        %v6860 = vsel %vm6857, %v6859, %v6855
        %v6861 = vmul.f32 1.0, %v6860
        %v6862 = vrcp.pop %v6466
        %v6863 = vmul.f32 %v6466, %v6862
        %v6864 = vsub.f32 1.0, %v6863
        %v6865 = vmul.f32 %v6862, %v6864
        %v6866 = vadd.f32 %v6862, %v6865
        %vm6867 = vweird.f32 %v6466
        %vm6868 = vweird.f32 %v6862
        %vm6869 = vmor %vm6867, %vm6868
        %v6870 = vsel %vm6869, %v6862, %v6866
        %v6871 = vand.u32 2147483647, %v6466
        %vm6872 = vcmp.eq.f32.partialorder %v6871, 8.507059e+37
        %v6873 = vand.u32 %v6466, 2147483648
        %v6874 = vor.u32 1.1754944e-38, %v6873
        %v6875 = vsel %vm6872, %v6874, %v6870
        %v6876 = vmul.f32 1.0, %v6875
        %v6877 = vrcp.pop %v6467
        %v6878 = vmul.f32 %v6467, %v6877
        %v6879 = vsub.f32 1.0, %v6878
        %v6880 = vmul.f32 %v6877, %v6879
        %v6881 = vadd.f32 %v6877, %v6880
        %vm6882 = vweird.f32 %v6467
        %vm6883 = vweird.f32 %v6877
        %vm6884 = vmor %vm6882, %vm6883
        %v6885 = vsel %vm6884, %v6877, %v6881
        %v6886 = vand.u32 2147483647, %v6467
        %vm6887 = vcmp.eq.f32.partialorder %v6886, 8.507059e+37
        %v6888 = vand.u32 %v6467, 2147483648
        %v6889 = vor.u32 1.1754944e-38, %v6888
        %v6890 = vsel %vm6887, %v6889, %v6885
        %v6891 = vmul.f32 1.0, %v6890
        %v6892 = vrcp.pop %v6468
        %v6893 = vmul.f32 %v6468, %v6892
        %v6894 = vsub.f32 1.0, %v6893
        %v6895 = vmul.f32 %v6892, %v6894
        %v6896 = vadd.f32 %v6892, %v6895
        %vm6897 = vweird.f32 %v6468
        %vm6898 = vweird.f32 %v6892
        %vm6899 = vmor %vm6897, %vm6898
        %v6900 = vsel %vm6899, %v6892, %v6896
        %v6901 = vand.u32 2147483647, %v6468
        %vm6902 = vcmp.eq.f32.partialorder %v6901, 8.507059e+37
        %v6903 = vand.u32 %v6468, 2147483648
        %v6904 = vor.u32 1.1754944e-38, %v6903
        %v6905 = vsel %vm6902, %v6904, %v6900
        %v6906 = vmul.f32 1.0, %v6905
        %v6907 = vrcp.pop %v6469
        %v6908 = vmul.f32 %v6469, %v6907
        %v6909 = vsub.f32 1.0, %v6908
        %v6910 = vmul.f32 %v6907, %v6909
        %v6911 = vadd.f32 %v6907, %v6910
        %vm6912 = vweird.f32 %v6469
        %vm6913 = vweird.f32 %v6907
        %vm6914 = vmor %vm6912, %vm6913
        %v6915 = vsel %vm6914, %v6907, %v6911
        %v6916 = vand.u32 2147483647, %v6469
        %vm6917 = vcmp.eq.f32.partialorder %v6916, 8.507059e+37
        %v6918 = vand.u32 %v6469, 2147483648
        %v6919 = vor.u32 1.1754944e-38, %v6918
        %v6920 = vsel %vm6917, %v6919, %v6915
        %v6921 = vmul.f32 1.0, %v6920
        %v6922 = vrcp.pop %v6470
        %v6923 = vmul.f32 %v6470, %v6922
        %v6924 = vsub.f32 1.0, %v6923
        %v6925 = vmul.f32 %v6922, %v6924
        %v6926 = vadd.f32 %v6922, %v6925
        %vm6927 = vweird.f32 %v6470
        %vm6928 = vweird.f32 %v6922
        %vm6929 = vmor %vm6927, %vm6928
        %v6930 = vsel %vm6929, %v6922, %v6926
        %v6931 = vand.u32 2147483647, %v6470
        %vm6932 = vcmp.eq.f32.partialorder %v6931, 8.507059e+37
        %v6933 = vand.u32 %v6470, 2147483648
        %v6934 = vor.u32 1.1754944e-38, %v6933
        %v6935 = vsel %vm6932, %v6934, %v6930
        %v6936 = vmul.f32 1.0, %v6935
        %v6937 = vrcp.pop %v6471
        %v6938 = vmul.f32 %v6471, %v6937
        %v6939 = vsub.f32 1.0, %v6938
        %v6940 = vmul.f32 %v6937, %v6939
        %v6941 = vadd.f32 %v6937, %v6940
        %vm6942 = vweird.f32 %v6471
        %vm6943 = vweird.f32 %v6937
        %vm6944 = vmor %vm6942, %vm6943
        %v6945 = vsel %vm6944, %v6937, %v6941
        %v6946 = vand.u32 2147483647, %v6471
        %vm6947 = vcmp.eq.f32.partialorder %v6946, 8.507059e+37
        %v6948 = vand.u32 %v6471, 2147483648
        %v6949 = vor.u32 1.1754944e-38, %v6948
        %v6950 = vsel %vm6947, %v6949, %v6945
        %v6951 = vmul.f32 1.0, %v6950
        %v6952 = vadd.f32 %v5252, %v6144
        %v6953 = vadd.f32 %v5255, %v6146
        %v6954 = vadd.f32 %v5258, %v6149
        %v6955 = vadd.f32 %v5261, %v6151
        %v6956 = vadd.f32 %v5264, %v6154
        %v6957 = vadd.f32 %v5267, %v6156
        %v6958 = vadd.f32 %v5270, %v6159
        %v6959 = vadd.f32 %v5273, %v6161
        %v6960 = vadd.f32 %v5276, %v6164
        %v6961 = vadd.f32 %v5279, %v6166
        %v6962 = vadd.f32 %v5282, %v6169
        %v6963 = vadd.f32 %v5285, %v6171
        %v6964 = vadd.f32 %v5288, %v6174
        %v6965 = vadd.f32 %v5291, %v6176
        %v6966 = vadd.f32 %v5294, %v6179
        %v6967 = vadd.f32 %v5297, %v6181
        %v6968 = vadd.f32 %v5300, %v6184
        %v6969 = vadd.f32 %v5303, %v6186
        %v6970 = vadd.f32 %v5306, %v6189
        %v6971 = vadd.f32 %v5309, %v6191
        %v6972 = vadd.f32 %v5312, %v6194
        %v6973 = vadd.f32 %v5315, %v6196
        %v6974 = vadd.f32 %v5318, %v6199
        %v6975 = vadd.f32 %v5321, %v6201
        %v6976 = vadd.f32 %v5324, %v6204
        %v6977 = vadd.f32 %v5327, %v6206
        %v6978 = vadd.f32 %v5330, %v6209
        %v6979 = vadd.f32 %v5333, %v6211
        %v6980 = vadd.f32 %v5336, %v6214
        %v6981 = vadd.f32 %v5339, %v6216
        %v6982 = vadd.f32 %v5342, %v6219
        %v6983 = vadd.f32 %v5345, %v6221
        %v6984 = vxor.u32 %v6952, 2147483648
        %v6985 = vxor.u32 %v6953, 2147483648
        %v6986 = vxor.u32 %v6954, 2147483648
        %v6987 = vxor.u32 %v6955, 2147483648
        %v6988 = vxor.u32 %v6956, 2147483648
        %v6989 = vxor.u32 %v6957, 2147483648
        %v6990 = vxor.u32 %v6958, 2147483648
        %v6991 = vxor.u32 %v6959, 2147483648
        %v6992 = vxor.u32 %v6960, 2147483648
        %v6993 = vxor.u32 %v6961, 2147483648
        %v6994 = vxor.u32 %v6962, 2147483648
        %v6995 = vxor.u32 %v6963, 2147483648
        %v6996 = vxor.u32 %v6964, 2147483648
        %v6997 = vxor.u32 %v6965, 2147483648
        %v6998 = vxor.u32 %v6966, 2147483648
        %v6999 = vxor.u32 %v6967, 2147483648
        %v7000 = vxor.u32 %v6968, 2147483648
        %v7001 = vxor.u32 %v6969, 2147483648
        %v7002 = vxor.u32 %v6970, 2147483648
        %v7003 = vxor.u32 %v6971, 2147483648
        %v7004 = vxor.u32 %v6972, 2147483648
        %v7005 = vxor.u32 %v6973, 2147483648
        %v7006 = vxor.u32 %v6974, 2147483648
        %v7007 = vxor.u32 %v6975, 2147483648
        %v7008 = vxor.u32 %v6976, 2147483648
        %v7009 = vxor.u32 %v6977, 2147483648
        %v7010 = vxor.u32 %v6978, 2147483648
        %v7011 = vxor.u32 %v6979, 2147483648
        %v7012 = vxor.u32 %v6980, 2147483648
        %v7013 = vxor.u32 %v6981, 2147483648
        %v7014 = vxor.u32 %v6982, 2147483648
        %v7015 = vxor.u32 %v6983, 2147483648
        %v7016 = vmul.f32 %v6984, 1.442695
        %v7017 = vpow.pop %v7016
        %v7018 = vmul.f32 %v6985, 1.442695
        %v7019 = vpow.pop %v7018
        %v7020 = vmul.f32 %v6986, 1.442695
        %v7021 = vpow.pop %v7020
        %v7022 = vmul.f32 %v6987, 1.442695
        %v7023 = vpow.pop %v7022
        %v7024 = vmul.f32 %v6988, 1.442695
        %v7025 = vpow.pop %v7024
        %v7026 = vmul.f32 %v6989, 1.442695
        %v7027 = vpow.pop %v7026
        %v7028 = vmul.f32 %v6990, 1.442695
        %v7029 = vpow.pop %v7028
        %v7030 = vmul.f32 %v6991, 1.442695
        %v7031 = vpow.pop %v7030
        %v7032 = vmul.f32 %v6992, 1.442695
        %v7033 = vpow.pop %v7032
        %v7034 = vmul.f32 %v6993, 1.442695
        %v7035 = vpow.pop %v7034
        %v7036 = vmul.f32 %v6994, 1.442695
        %v7037 = vpow.pop %v7036
        %v7038 = vmul.f32 %v6995, 1.442695
        %v7039 = vpow.pop %v7038
        %v7040 = vmul.f32 %v6996, 1.442695
        %v7041 = vpow.pop %v7040
        %v7042 = vmul.f32 %v6997, 1.442695
        %v7043 = vpow.pop %v7042
        %v7044 = vmul.f32 %v6998, 1.442695
        %v7045 = vpow.pop %v7044
        %v7046 = vmul.f32 %v6999, 1.442695
        %v7047 = vpow.pop %v7046
        %v7048 = vmul.f32 %v7000, 1.442695
        %v7049 = vpow.pop %v7048
        %v7050 = vmul.f32 %v7001, 1.442695
        %v7051 = vpow.pop %v7050
        %v7052 = vmul.f32 %v7002, 1.442695
        %v7053 = vpow.pop %v7052
        %v7054 = vmul.f32 %v7003, 1.442695
        %v7055 = vpow.pop %v7054
        %v7056 = vmul.f32 %v7004, 1.442695
        %v7057 = vpow.pop %v7056
        %v7058 = vmul.f32 %v7005, 1.442695
        %v7059 = vpow.pop %v7058
        %v7060 = vmul.f32 %v7006, 1.442695
        %v7061 = vpow.pop %v7060
        %v7062 = vmul.f32 %v7007, 1.442695
        %v7063 = vpow.pop %v7062
        %v7064 = vmul.f32 %v7008, 1.442695
        %v7065 = vpow.pop %v7064
        %v7066 = vmul.f32 %v7009, 1.442695
        %v7067 = vpow.pop %v7066
        %v7068 = vmul.f32 %v7010, 1.442695
        %v7069 = vpow.pop %v7068
        %v7070 = vmul.f32 %v7011, 1.442695
        %v7071 = vpow.pop %v7070
        %v7072 = vmul.f32 %v7012, 1.442695
        %v7073 = vpow.pop %v7072
        %v7074 = vmul.f32 %v7013, 1.442695
        %v7075 = vpow.pop %v7074
        %v7076 = vmul.f32 %v7014, 1.442695
        %v7077 = vpow.pop %v7076
        %v7078 = vmul.f32 %v7015, 1.442695
        %v7079 = vpow.pop %v7078
        %v7080 = vadd.f32 %v7017, 1.0
        %v7081 = vadd.f32 %v7019, 1.0
        %v7082 = vadd.f32 %v7021, 1.0
        %v7083 = vadd.f32 %v7023, 1.0
        %v7084 = vadd.f32 %v7025, 1.0
        %v7085 = vadd.f32 %v7027, 1.0
        %v7086 = vadd.f32 %v7029, 1.0
        %v7087 = vadd.f32 %v7031, 1.0
        %v7088 = vadd.f32 %v7033, 1.0
        %v7089 = vadd.f32 %v7035, 1.0
        %v7090 = vadd.f32 %v7037, 1.0
        %v7091 = vadd.f32 %v7039, 1.0
        %v7092 = vadd.f32 %v7041, 1.0
        %v7093 = vadd.f32 %v7043, 1.0
        %v7094 = vadd.f32 %v7045, 1.0
        %v7095 = vadd.f32 %v7047, 1.0
        %v7096 = vadd.f32 %v7049, 1.0
        %v7097 = vadd.f32 %v7051, 1.0
        %v7098 = vadd.f32 %v7053, 1.0
        %v7099 = vadd.f32 %v7055, 1.0
        %v7100 = vadd.f32 %v7057, 1.0
        %v7101 = vadd.f32 %v7059, 1.0
        %v7102 = vadd.f32 %v7061, 1.0
        %v7103 = vadd.f32 %v7063, 1.0
        %v7104 = vadd.f32 %v7065, 1.0
        %v7105 = vadd.f32 %v7067, 1.0
        %v7106 = vadd.f32 %v7069, 1.0
        %v7107 = vadd.f32 %v7071, 1.0
        %v7108 = vadd.f32 %v7073, 1.0
        %v7109 = vadd.f32 %v7075, 1.0
        %v7110 = vadd.f32 %v7077, 1.0
        %v7111 = vadd.f32 %v7079, 1.0
        %v7112 = vrcp.pop %v7080
        %v7113 = vmul.f32 %v7080, %v7112
        %v7114 = vsub.f32 1.0, %v7113
        %v7115 = vmul.f32 %v7112, %v7114
        %v7116 = vadd.f32 %v7112, %v7115
        %vm7117 = vweird.f32 %v7080
        %vm7118 = vweird.f32 %v7112
        %vm7119 = vmor %vm7117, %vm7118
        %v7120 = vsel %vm7119, %v7112, %v7116
        %v7121 = vand.u32 2147483647, %v7080
        %vm7122 = vcmp.eq.f32.partialorder %v7121, 8.507059e+37
        %v7123 = vand.u32 %v7080, 2147483648
        %v7124 = vor.u32 1.1754944e-38, %v7123
        %v7125 = vsel %vm7122, %v7124, %v7120
        %v7126 = vmul.f32 1.0, %v7125
        %v7127 = vrcp.pop %v7081
        %v7128 = vmul.f32 %v7081, %v7127
        %v7129 = vsub.f32 1.0, %v7128
        %v7130 = vmul.f32 %v7127, %v7129
        %v7131 = vadd.f32 %v7127, %v7130
        %vm7132 = vweird.f32 %v7081
        %vm7133 = vweird.f32 %v7127
        %vm7134 = vmor %vm7132, %vm7133
        %v7135 = vsel %vm7134, %v7127, %v7131
        %v7136 = vand.u32 2147483647, %v7081
        %vm7137 = vcmp.eq.f32.partialorder %v7136, 8.507059e+37
        %v7138 = vand.u32 %v7081, 2147483648
        %v7139 = vor.u32 1.1754944e-38, %v7138
        %v7140 = vsel %vm7137, %v7139, %v7135
        %v7141 = vmul.f32 1.0, %v7140
        %v7142 = vrcp.pop %v7082
        %v7143 = vmul.f32 %v7082, %v7142
        %v7144 = vsub.f32 1.0, %v7143
        %v7145 = vmul.f32 %v7142, %v7144
        %v7146 = vadd.f32 %v7142, %v7145
        %vm7147 = vweird.f32 %v7082
        %vm7148 = vweird.f32 %v7142
        %vm7149 = vmor %vm7147, %vm7148
        %v7150 = vsel %vm7149, %v7142, %v7146
        %v7151 = vand.u32 2147483647, %v7082
        %vm7152 = vcmp.eq.f32.partialorder %v7151, 8.507059e+37
        %v7153 = vand.u32 %v7082, 2147483648
        %v7154 = vor.u32 1.1754944e-38, %v7153
        %v7155 = vsel %vm7152, %v7154, %v7150
        %v7156 = vmul.f32 1.0, %v7155
        %v7157 = vrcp.pop %v7083
        %v7158 = vmul.f32 %v7083, %v7157
        %v7159 = vsub.f32 1.0, %v7158
        %v7160 = vmul.f32 %v7157, %v7159
        %v7161 = vadd.f32 %v7157, %v7160
        %vm7162 = vweird.f32 %v7083
        %vm7163 = vweird.f32 %v7157
        %vm7164 = vmor %vm7162, %vm7163
        %v7165 = vsel %vm7164, %v7157, %v7161
        %v7166 = vand.u32 2147483647, %v7083
        %vm7167 = vcmp.eq.f32.partialorder %v7166, 8.507059e+37
        %v7168 = vand.u32 %v7083, 2147483648
        %v7169 = vor.u32 1.1754944e-38, %v7168
        %v7170 = vsel %vm7167, %v7169, %v7165
        %v7171 = vmul.f32 1.0, %v7170
        %v7172 = vrcp.pop %v7084
        %v7173 = vmul.f32 %v7084, %v7172
        %v7174 = vsub.f32 1.0, %v7173
        %v7175 = vmul.f32 %v7172, %v7174
        %v7176 = vadd.f32 %v7172, %v7175
        %vm7177 = vweird.f32 %v7084
        %vm7178 = vweird.f32 %v7172
        %vm7179 = vmor %vm7177, %vm7178
        %v7180 = vsel %vm7179, %v7172, %v7176
        %v7181 = vand.u32 2147483647, %v7084
        %vm7182 = vcmp.eq.f32.partialorder %v7181, 8.507059e+37
        %v7183 = vand.u32 %v7084, 2147483648
        %v7184 = vor.u32 1.1754944e-38, %v7183
        %v7185 = vsel %vm7182, %v7184, %v7180
        %v7186 = vmul.f32 1.0, %v7185
        %v7187 = vrcp.pop %v7085
        %v7188 = vmul.f32 %v7085, %v7187
        %v7189 = vsub.f32 1.0, %v7188
        %v7190 = vmul.f32 %v7187, %v7189
        %v7191 = vadd.f32 %v7187, %v7190
        %vm7192 = vweird.f32 %v7085
        %vm7193 = vweird.f32 %v7187
        %vm7194 = vmor %vm7192, %vm7193
        %v7195 = vsel %vm7194, %v7187, %v7191
        %v7196 = vand.u32 2147483647, %v7085
        %vm7197 = vcmp.eq.f32.partialorder %v7196, 8.507059e+37
        %v7198 = vand.u32 %v7085, 2147483648
        %v7199 = vor.u32 1.1754944e-38, %v7198
        %v7200 = vsel %vm7197, %v7199, %v7195
        %v7201 = vmul.f32 1.0, %v7200
        %v7202 = vrcp.pop %v7086
        %v7203 = vmul.f32 %v7086, %v7202
        %v7204 = vsub.f32 1.0, %v7203
        %v7205 = vmul.f32 %v7202, %v7204
        %v7206 = vadd.f32 %v7202, %v7205
        %vm7207 = vweird.f32 %v7086
        %vm7208 = vweird.f32 %v7202
        %vm7209 = vmor %vm7207, %vm7208
        %v7210 = vsel %vm7209, %v7202, %v7206
        %v7211 = vand.u32 2147483647, %v7086
        %vm7212 = vcmp.eq.f32.partialorder %v7211, 8.507059e+37
        %v7213 = vand.u32 %v7086, 2147483648
        %v7214 = vor.u32 1.1754944e-38, %v7213
        %v7215 = vsel %vm7212, %v7214, %v7210
        %v7216 = vmul.f32 1.0, %v7215
        %v7217 = vrcp.pop %v7087
        %v7218 = vmul.f32 %v7087, %v7217
        %v7219 = vsub.f32 1.0, %v7218
        %v7220 = vmul.f32 %v7217, %v7219
        %v7221 = vadd.f32 %v7217, %v7220
        %vm7222 = vweird.f32 %v7087
        %vm7223 = vweird.f32 %v7217
        %vm7224 = vmor %vm7222, %vm7223
        %v7225 = vsel %vm7224, %v7217, %v7221
        %v7226 = vand.u32 2147483647, %v7087
        %vm7227 = vcmp.eq.f32.partialorder %v7226, 8.507059e+37
        %v7228 = vand.u32 %v7087, 2147483648
        %v7229 = vor.u32 1.1754944e-38, %v7228
        %v7230 = vsel %vm7227, %v7229, %v7225
        %v7231 = vmul.f32 1.0, %v7230
        %v7232 = vrcp.pop %v7088
        %v7233 = vmul.f32 %v7088, %v7232
        %v7234 = vsub.f32 1.0, %v7233
        %v7235 = vmul.f32 %v7232, %v7234
        %v7236 = vadd.f32 %v7232, %v7235
        %vm7237 = vweird.f32 %v7088
        %vm7238 = vweird.f32 %v7232
        %vm7239 = vmor %vm7237, %vm7238
        %v7240 = vsel %vm7239, %v7232, %v7236
        %v7241 = vand.u32 2147483647, %v7088
        %vm7242 = vcmp.eq.f32.partialorder %v7241, 8.507059e+37
        %v7243 = vand.u32 %v7088, 2147483648
        %v7244 = vor.u32 1.1754944e-38, %v7243
        %v7245 = vsel %vm7242, %v7244, %v7240
        %v7246 = vmul.f32 1.0, %v7245
        %v7247 = vrcp.pop %v7089
        %v7248 = vmul.f32 %v7089, %v7247
        %v7249 = vsub.f32 1.0, %v7248
        %v7250 = vmul.f32 %v7247, %v7249
        %v7251 = vadd.f32 %v7247, %v7250
        %vm7252 = vweird.f32 %v7089
        %vm7253 = vweird.f32 %v7247
        %vm7254 = vmor %vm7252, %vm7253
        %v7255 = vsel %vm7254, %v7247, %v7251
        %v7256 = vand.u32 2147483647, %v7089
        %vm7257 = vcmp.eq.f32.partialorder %v7256, 8.507059e+37
        %v7258 = vand.u32 %v7089, 2147483648
        %v7259 = vor.u32 1.1754944e-38, %v7258
        %v7260 = vsel %vm7257, %v7259, %v7255
        %v7261 = vmul.f32 1.0, %v7260
        %v7262 = vrcp.pop %v7090
        %v7263 = vmul.f32 %v7090, %v7262
        %v7264 = vsub.f32 1.0, %v7263
        %v7265 = vmul.f32 %v7262, %v7264
        %v7266 = vadd.f32 %v7262, %v7265
        %vm7267 = vweird.f32 %v7090
        %vm7268 = vweird.f32 %v7262
        %vm7269 = vmor %vm7267, %vm7268
        %v7270 = vsel %vm7269, %v7262, %v7266
        %v7271 = vand.u32 2147483647, %v7090
        %vm7272 = vcmp.eq.f32.partialorder %v7271, 8.507059e+37
        %v7273 = vand.u32 %v7090, 2147483648
        %v7274 = vor.u32 1.1754944e-38, %v7273
        %v7275 = vsel %vm7272, %v7274, %v7270
        %v7276 = vmul.f32 1.0, %v7275
        %v7277 = vrcp.pop %v7091
        %v7278 = vmul.f32 %v7091, %v7277
        %v7279 = vsub.f32 1.0, %v7278
        %v7280 = vmul.f32 %v7277, %v7279
        %v7281 = vadd.f32 %v7277, %v7280
        %vm7282 = vweird.f32 %v7091
        %vm7283 = vweird.f32 %v7277
        %vm7284 = vmor %vm7282, %vm7283
        %v7285 = vsel %vm7284, %v7277, %v7281
        %v7286 = vand.u32 2147483647, %v7091
        %vm7287 = vcmp.eq.f32.partialorder %v7286, 8.507059e+37
        %v7288 = vand.u32 %v7091, 2147483648
        %v7289 = vor.u32 1.1754944e-38, %v7288
        %v7290 = vsel %vm7287, %v7289, %v7285
        %v7291 = vmul.f32 1.0, %v7290
        %v7292 = vrcp.pop %v7092
        %v7293 = vmul.f32 %v7092, %v7292
        %v7294 = vsub.f32 1.0, %v7293
        %v7295 = vmul.f32 %v7292, %v7294
        %v7296 = vadd.f32 %v7292, %v7295
        %vm7297 = vweird.f32 %v7092
        %vm7298 = vweird.f32 %v7292
        %vm7299 = vmor %vm7297, %vm7298
        %v7300 = vsel %vm7299, %v7292, %v7296
        %v7301 = vand.u32 2147483647, %v7092
        %vm7302 = vcmp.eq.f32.partialorder %v7301, 8.507059e+37
        %v7303 = vand.u32 %v7092, 2147483648
        %v7304 = vor.u32 1.1754944e-38, %v7303
        %v7305 = vsel %vm7302, %v7304, %v7300
        %v7306 = vmul.f32 1.0, %v7305
        %v7307 = vrcp.pop %v7093
        %v7308 = vmul.f32 %v7093, %v7307
        %v7309 = vsub.f32 1.0, %v7308
        %v7310 = vmul.f32 %v7307, %v7309
        %v7311 = vadd.f32 %v7307, %v7310
        %vm7312 = vweird.f32 %v7093
        %vm7313 = vweird.f32 %v7307
        %vm7314 = vmor %vm7312, %vm7313
        %v7315 = vsel %vm7314, %v7307, %v7311
        %v7316 = vand.u32 2147483647, %v7093
        %vm7317 = vcmp.eq.f32.partialorder %v7316, 8.507059e+37
        %v7318 = vand.u32 %v7093, 2147483648
        %v7319 = vor.u32 1.1754944e-38, %v7318
        %v7320 = vsel %vm7317, %v7319, %v7315
        %v7321 = vmul.f32 1.0, %v7320
        %v7322 = vrcp.pop %v7094
        %v7323 = vmul.f32 %v7094, %v7322
        %v7324 = vsub.f32 1.0, %v7323
        %v7325 = vmul.f32 %v7322, %v7324
        %v7326 = vadd.f32 %v7322, %v7325
        %vm7327 = vweird.f32 %v7094
        %vm7328 = vweird.f32 %v7322
        %vm7329 = vmor %vm7327, %vm7328
        %v7330 = vsel %vm7329, %v7322, %v7326
        %v7331 = vand.u32 2147483647, %v7094
        %vm7332 = vcmp.eq.f32.partialorder %v7331, 8.507059e+37
        %v7333 = vand.u32 %v7094, 2147483648
        %v7334 = vor.u32 1.1754944e-38, %v7333
        %v7335 = vsel %vm7332, %v7334, %v7330
        %v7336 = vmul.f32 1.0, %v7335
        %v7337 = vrcp.pop %v7095
        %v7338 = vmul.f32 %v7095, %v7337
        %v7339 = vsub.f32 1.0, %v7338
        %v7340 = vmul.f32 %v7337, %v7339
        %v7341 = vadd.f32 %v7337, %v7340
        %vm7342 = vweird.f32 %v7095
        %vm7343 = vweird.f32 %v7337
        %vm7344 = vmor %vm7342, %vm7343
        %v7345 = vsel %vm7344, %v7337, %v7341
        %v7346 = vand.u32 2147483647, %v7095
        %vm7347 = vcmp.eq.f32.partialorder %v7346, 8.507059e+37
        %v7348 = vand.u32 %v7095, 2147483648
        %v7349 = vor.u32 1.1754944e-38, %v7348
        %v7350 = vsel %vm7347, %v7349, %v7345
        %v7351 = vmul.f32 1.0, %v7350
        %v7352 = vrcp.pop %v7096
        %v7353 = vmul.f32 %v7096, %v7352
        %v7354 = vsub.f32 1.0, %v7353
        %v7355 = vmul.f32 %v7352, %v7354
        %v7356 = vadd.f32 %v7352, %v7355
        %vm7357 = vweird.f32 %v7096
        %vm7358 = vweird.f32 %v7352
        %vm7359 = vmor %vm7357, %vm7358
        %v7360 = vsel %vm7359, %v7352, %v7356
        %v7361 = vand.u32 2147483647, %v7096
        %vm7362 = vcmp.eq.f32.partialorder %v7361, 8.507059e+37
        %v7363 = vand.u32 %v7096, 2147483648
        %v7364 = vor.u32 1.1754944e-38, %v7363
        %v7365 = vsel %vm7362, %v7364, %v7360
        %v7366 = vmul.f32 1.0, %v7365
        %v7367 = vrcp.pop %v7097
        %v7368 = vmul.f32 %v7097, %v7367
        %v7369 = vsub.f32 1.0, %v7368
        %v7370 = vmul.f32 %v7367, %v7369
        %v7371 = vadd.f32 %v7367, %v7370
        %vm7372 = vweird.f32 %v7097
        %vm7373 = vweird.f32 %v7367
        %vm7374 = vmor %vm7372, %vm7373
        %v7375 = vsel %vm7374, %v7367, %v7371
        %v7376 = vand.u32 2147483647, %v7097
        %vm7377 = vcmp.eq.f32.partialorder %v7376, 8.507059e+37
        %v7378 = vand.u32 %v7097, 2147483648
        %v7379 = vor.u32 1.1754944e-38, %v7378
        %v7380 = vsel %vm7377, %v7379, %v7375
        %v7381 = vmul.f32 1.0, %v7380
        %v7382 = vrcp.pop %v7098
        %v7383 = vmul.f32 %v7098, %v7382
        %v7384 = vsub.f32 1.0, %v7383
        %v7385 = vmul.f32 %v7382, %v7384
        %v7386 = vadd.f32 %v7382, %v7385
        %vm7387 = vweird.f32 %v7098
        %vm7388 = vweird.f32 %v7382
        %vm7389 = vmor %vm7387, %vm7388
        %v7390 = vsel %vm7389, %v7382, %v7386
        %v7391 = vand.u32 2147483647, %v7098
        %vm7392 = vcmp.eq.f32.partialorder %v7391, 8.507059e+37
        %v7393 = vand.u32 %v7098, 2147483648
        %v7394 = vor.u32 1.1754944e-38, %v7393
        %v7395 = vsel %vm7392, %v7394, %v7390
        %v7396 = vmul.f32 1.0, %v7395
        %v7397 = vrcp.pop %v7099
        %v7398 = vmul.f32 %v7099, %v7397
        %v7399 = vsub.f32 1.0, %v7398
        %v7400 = vmul.f32 %v7397, %v7399
        %v7401 = vadd.f32 %v7397, %v7400
        %vm7402 = vweird.f32 %v7099
        %vm7403 = vweird.f32 %v7397
        %vm7404 = vmor %vm7402, %vm7403
        %v7405 = vsel %vm7404, %v7397, %v7401
        %v7406 = vand.u32 2147483647, %v7099
        %vm7407 = vcmp.eq.f32.partialorder %v7406, 8.507059e+37
        %v7408 = vand.u32 %v7099, 2147483648
        %v7409 = vor.u32 1.1754944e-38, %v7408
        %v7410 = vsel %vm7407, %v7409, %v7405
        %v7411 = vmul.f32 1.0, %v7410
        %v7412 = vrcp.pop %v7100
        %v7413 = vmul.f32 %v7100, %v7412
        %v7414 = vsub.f32 1.0, %v7413
        %v7415 = vmul.f32 %v7412, %v7414
        %v7416 = vadd.f32 %v7412, %v7415
        %vm7417 = vweird.f32 %v7100
        %vm7418 = vweird.f32 %v7412
        %vm7419 = vmor %vm7417, %vm7418
        %v7420 = vsel %vm7419, %v7412, %v7416
        %v7421 = vand.u32 2147483647, %v7100
        %vm7422 = vcmp.eq.f32.partialorder %v7421, 8.507059e+37
        %v7423 = vand.u32 %v7100, 2147483648
        %v7424 = vor.u32 1.1754944e-38, %v7423
        %v7425 = vsel %vm7422, %v7424, %v7420
        %v7426 = vmul.f32 1.0, %v7425
        %v7427 = vrcp.pop %v7101
        %v7428 = vmul.f32 %v7101, %v7427
        %v7429 = vsub.f32 1.0, %v7428
        %v7430 = vmul.f32 %v7427, %v7429
        %v7431 = vadd.f32 %v7427, %v7430
        %vm7432 = vweird.f32 %v7101
        %vm7433 = vweird.f32 %v7427
        %vm7434 = vmor %vm7432, %vm7433
        %v7435 = vsel %vm7434, %v7427, %v7431
        %v7436 = vand.u32 2147483647, %v7101
        %vm7437 = vcmp.eq.f32.partialorder %v7436, 8.507059e+37
        %v7438 = vand.u32 %v7101, 2147483648
        %v7439 = vor.u32 1.1754944e-38, %v7438
        %v7440 = vsel %vm7437, %v7439, %v7435
        %v7441 = vmul.f32 1.0, %v7440
        %v7442 = vrcp.pop %v7102
        %v7443 = vmul.f32 %v7102, %v7442
        %v7444 = vsub.f32 1.0, %v7443
        %v7445 = vmul.f32 %v7442, %v7444
        %v7446 = vadd.f32 %v7442, %v7445
        %vm7447 = vweird.f32 %v7102
        %vm7448 = vweird.f32 %v7442
        %vm7449 = vmor %vm7447, %vm7448
        %v7450 = vsel %vm7449, %v7442, %v7446
        %v7451 = vand.u32 2147483647, %v7102
        %vm7452 = vcmp.eq.f32.partialorder %v7451, 8.507059e+37
        %v7453 = vand.u32 %v7102, 2147483648
        %v7454 = vor.u32 1.1754944e-38, %v7453
        %v7455 = vsel %vm7452, %v7454, %v7450
        %v7456 = vmul.f32 1.0, %v7455
        %v7457 = vrcp.pop %v7103
        %v7458 = vmul.f32 %v7103, %v7457
        %v7459 = vsub.f32 1.0, %v7458
        %v7460 = vmul.f32 %v7457, %v7459
        %v7461 = vadd.f32 %v7457, %v7460
        %vm7462 = vweird.f32 %v7103
        %vm7463 = vweird.f32 %v7457
        %vm7464 = vmor %vm7462, %vm7463
        %v7465 = vsel %vm7464, %v7457, %v7461
        %v7466 = vand.u32 2147483647, %v7103
        %vm7467 = vcmp.eq.f32.partialorder %v7466, 8.507059e+37
        %v7468 = vand.u32 %v7103, 2147483648
        %v7469 = vor.u32 1.1754944e-38, %v7468
        %v7470 = vsel %vm7467, %v7469, %v7465
        %v7471 = vmul.f32 1.0, %v7470
        %v7472 = vrcp.pop %v7104
        %v7473 = vmul.f32 %v7104, %v7472
        %v7474 = vsub.f32 1.0, %v7473
        %v7475 = vmul.f32 %v7472, %v7474
        %v7476 = vadd.f32 %v7472, %v7475
        %vm7477 = vweird.f32 %v7104
        %vm7478 = vweird.f32 %v7472
        %vm7479 = vmor %vm7477, %vm7478
        %v7480 = vsel %vm7479, %v7472, %v7476
        %v7481 = vand.u32 2147483647, %v7104
        %vm7482 = vcmp.eq.f32.partialorder %v7481, 8.507059e+37
        %v7483 = vand.u32 %v7104, 2147483648
        %v7484 = vor.u32 1.1754944e-38, %v7483
        %v7485 = vsel %vm7482, %v7484, %v7480
        %v7486 = vmul.f32 1.0, %v7485
        %v7487 = vrcp.pop %v7105
        %v7488 = vmul.f32 %v7105, %v7487
        %v7489 = vsub.f32 1.0, %v7488
        %v7490 = vmul.f32 %v7487, %v7489
        %v7491 = vadd.f32 %v7487, %v7490
        %vm7492 = vweird.f32 %v7105
        %vm7493 = vweird.f32 %v7487
        %vm7494 = vmor %vm7492, %vm7493
        %v7495 = vsel %vm7494, %v7487, %v7491
        %v7496 = vand.u32 2147483647, %v7105
        %vm7497 = vcmp.eq.f32.partialorder %v7496, 8.507059e+37
        %v7498 = vand.u32 %v7105, 2147483648
        %v7499 = vor.u32 1.1754944e-38, %v7498
        %v7500 = vsel %vm7497, %v7499, %v7495
        %v7501 = vmul.f32 1.0, %v7500
        %v7502 = vrcp.pop %v7106
        %v7503 = vmul.f32 %v7106, %v7502
        %v7504 = vsub.f32 1.0, %v7503
        %v7505 = vmul.f32 %v7502, %v7504
        %v7506 = vadd.f32 %v7502, %v7505
        %vm7507 = vweird.f32 %v7106
        %vm7508 = vweird.f32 %v7502
        %vm7509 = vmor %vm7507, %vm7508
        %v7510 = vsel %vm7509, %v7502, %v7506
        %v7511 = vand.u32 2147483647, %v7106
        %vm7512 = vcmp.eq.f32.partialorder %v7511, 8.507059e+37
        %v7513 = vand.u32 %v7106, 2147483648
        %v7514 = vor.u32 1.1754944e-38, %v7513
        %v7515 = vsel %vm7512, %v7514, %v7510
        %v7516 = vmul.f32 1.0, %v7515
        %v7517 = vrcp.pop %v7107
        %v7518 = vmul.f32 %v7107, %v7517
        %v7519 = vsub.f32 1.0, %v7518
        %v7520 = vmul.f32 %v7517, %v7519
        %v7521 = vadd.f32 %v7517, %v7520
        %vm7522 = vweird.f32 %v7107
        %vm7523 = vweird.f32 %v7517
        %vm7524 = vmor %vm7522, %vm7523
        %v7525 = vsel %vm7524, %v7517, %v7521
        %v7526 = vand.u32 2147483647, %v7107
        %vm7527 = vcmp.eq.f32.partialorder %v7526, 8.507059e+37
        %v7528 = vand.u32 %v7107, 2147483648
        %v7529 = vor.u32 1.1754944e-38, %v7528
        %v7530 = vsel %vm7527, %v7529, %v7525
        %v7531 = vmul.f32 1.0, %v7530
        %v7532 = vrcp.pop %v7108
        %v7533 = vmul.f32 %v7108, %v7532
        %v7534 = vsub.f32 1.0, %v7533
        %v7535 = vmul.f32 %v7532, %v7534
        %v7536 = vadd.f32 %v7532, %v7535
        %vm7537 = vweird.f32 %v7108
        %vm7538 = vweird.f32 %v7532
        %vm7539 = vmor %vm7537, %vm7538
        %v7540 = vsel %vm7539, %v7532, %v7536
        %v7541 = vand.u32 2147483647, %v7108
        %vm7542 = vcmp.eq.f32.partialorder %v7541, 8.507059e+37
        %v7543 = vand.u32 %v7108, 2147483648
        %v7544 = vor.u32 1.1754944e-38, %v7543
        %v7545 = vsel %vm7542, %v7544, %v7540
        %v7546 = vmul.f32 1.0, %v7545
        %v7547 = vrcp.pop %v7109
        %v7548 = vmul.f32 %v7109, %v7547
        %v7549 = vsub.f32 1.0, %v7548
        %v7550 = vmul.f32 %v7547, %v7549
        %v7551 = vadd.f32 %v7547, %v7550
        %vm7552 = vweird.f32 %v7109
        %vm7553 = vweird.f32 %v7547
        %vm7554 = vmor %vm7552, %vm7553
        %v7555 = vsel %vm7554, %v7547, %v7551
        %v7556 = vand.u32 2147483647, %v7109
        %vm7557 = vcmp.eq.f32.partialorder %v7556, 8.507059e+37
        %v7558 = vand.u32 %v7109, 2147483648
        %v7559 = vor.u32 1.1754944e-38, %v7558
        %v7560 = vsel %vm7557, %v7559, %v7555
        %v7561 = vmul.f32 1.0, %v7560
        %v7562 = vrcp.pop %v7110
        %v7563 = vmul.f32 %v7110, %v7562
        %v7564 = vsub.f32 1.0, %v7563
        %v7565 = vmul.f32 %v7562, %v7564
        %v7566 = vadd.f32 %v7562, %v7565
        %vm7567 = vweird.f32 %v7110
        %vm7568 = vweird.f32 %v7562
        %vm7569 = vmor %vm7567, %vm7568
        %v7570 = vsel %vm7569, %v7562, %v7566
        %v7571 = vand.u32 2147483647, %v7110
        %vm7572 = vcmp.eq.f32.partialorder %v7571, 8.507059e+37
        %v7573 = vand.u32 %v7110, 2147483648
        %v7574 = vor.u32 1.1754944e-38, %v7573
        %v7575 = vsel %vm7572, %v7574, %v7570
        %v7576 = vmul.f32 1.0, %v7575
        %v7577 = vrcp.pop %v7111
        %v7578 = vmul.f32 %v7111, %v7577
        %v7579 = vsub.f32 1.0, %v7578
        %v7580 = vmul.f32 %v7577, %v7579
        %v7581 = vadd.f32 %v7577, %v7580
        %vm7582 = vweird.f32 %v7111
        %vm7583 = vweird.f32 %v7577
        %vm7584 = vmor %vm7582, %vm7583
        %v7585 = vsel %vm7584, %v7577, %v7581
        %v7586 = vand.u32 2147483647, %v7111
        %vm7587 = vcmp.eq.f32.partialorder %v7586, 8.507059e+37
        %v7588 = vand.u32 %v7111, 2147483648
        %v7589 = vor.u32 1.1754944e-38, %v7588
        %v7590 = vsel %vm7587, %v7589, %v7585
        %v7591 = vmul.f32 1.0, %v7590
        %v7592 = vmul.f32 %v6486, %v6233
        %v7593 = vmul.f32 %v6501, %v6235
        %v7594 = vmul.f32 %v6516, %v6238
        %v7595 = vmul.f32 %v6531, %v6240
        %v7596 = vmul.f32 %v6546, %v6243
        %v7597 = vmul.f32 %v6561, %v6245
        %v7598 = vmul.f32 %v6576, %v6248
        %v7599 = vmul.f32 %v6591, %v6250
        %v7600 = vmul.f32 %v6606, %v6253
        %v7601 = vmul.f32 %v6621, %v6255
        %v7602 = vmul.f32 %v6636, %v6258
        %v7603 = vmul.f32 %v6651, %v6260
        %v7604 = vmul.f32 %v6666, %v6263
        %v7605 = vmul.f32 %v6681, %v6265
        %v7606 = vmul.f32 %v6696, %v6268
        %v7607 = vmul.f32 %v6711, %v6270
        %v7608 = vmul.f32 %v6726, %v6273
        %v7609 = vmul.f32 %v6741, %v6275
        %v7610 = vmul.f32 %v6756, %v6278
        %v7611 = vmul.f32 %v6771, %v6280
        %v7612 = vmul.f32 %v6786, %v6283
        %v7613 = vmul.f32 %v6801, %v6285
        %v7614 = vmul.f32 %v6816, %v6288
        %v7615 = vmul.f32 %v6831, %v6290
        %v7616 = vmul.f32 %v6846, %v6293
        %v7617 = vmul.f32 %v6861, %v6295
        %v7618 = vmul.f32 %v6876, %v6298
        %v7619 = vmul.f32 %v6891, %v6300
        %v7620 = vmul.f32 %v6906, %v6303
        %v7621 = vmul.f32 %v6921, %v6305
        %v7622 = vmul.f32 %v6936, %v6308
        %v7623 = vmul.f32 %v6951, %v6310
        %v7624 = vadd.f32 %v5253, %v7592
        %v7625 = vadd.f32 %v5256, %v7593
        %v7626 = vadd.f32 %v5259, %v7594
        %v7627 = vadd.f32 %v5262, %v7595
        %v7628 = vadd.f32 %v5265, %v7596
        %v7629 = vadd.f32 %v5268, %v7597
        %v7630 = vadd.f32 %v5271, %v7598
        %v7631 = vadd.f32 %v5274, %v7599
        %v7632 = vadd.f32 %v5277, %v7600
        %v7633 = vadd.f32 %v5280, %v7601
        %v7634 = vadd.f32 %v5283, %v7602
        %v7635 = vadd.f32 %v5286, %v7603
        %v7636 = vadd.f32 %v5289, %v7604
        %v7637 = vadd.f32 %v5292, %v7605
        %v7638 = vadd.f32 %v5295, %v7606
        %v7639 = vadd.f32 %v5298, %v7607
        %v7640 = vadd.f32 %v5301, %v7608
        %v7641 = vadd.f32 %v5304, %v7609
        %v7642 = vadd.f32 %v5307, %v7610
        %v7643 = vadd.f32 %v5310, %v7611
        %v7644 = vadd.f32 %v5313, %v7612
        %v7645 = vadd.f32 %v5316, %v7613
        %v7646 = vadd.f32 %v5319, %v7614
        %v7647 = vadd.f32 %v5322, %v7615
        %v7648 = vadd.f32 %v5325, %v7616
        %v7649 = vadd.f32 %v5328, %v7617
        %v7650 = vadd.f32 %v5331, %v7618
        %v7651 = vadd.f32 %v5334, %v7619
        %v7652 = vadd.f32 %v5337, %v7620
        %v7653 = vadd.f32 %v5340, %v7621
        %v7654 = vadd.f32 %v5343, %v7622
        %v7655 = vadd.f32 %v5346, %v7623
        %v7656 = vtanh.pop %v7624
        %v7657 = vtanh.pop %v7625
        %v7658 = vtanh.pop %v7626
        %v7659 = vtanh.pop %v7627
        %v7660 = vtanh.pop %v7628
        %v7661 = vtanh.pop %v7629
        %v7662 = vtanh.pop %v7630
        %v7663 = vtanh.pop %v7631
        %v7664 = vtanh.pop %v7632
        %v7665 = vtanh.pop %v7633
        %v7666 = vtanh.pop %v7634
        %v7667 = vtanh.pop %v7635
        %v7668 = vtanh.pop %v7636
        %v7669 = vtanh.pop %v7637
        %v7670 = vtanh.pop %v7638
        %v7671 = vtanh.pop %v7639
        %v7672 = vtanh.pop %v7640
        %v7673 = vtanh.pop %v7641
        %v7674 = vtanh.pop %v7642
        %v7675 = vtanh.pop %v7643
        %v7676 = vtanh.pop %v7644
        %v7677 = vtanh.pop %v7645
        %v7678 = vtanh.pop %v7646
        %v7679 = vtanh.pop %v7647
        %v7680 = vtanh.pop %v7648
        %v7681 = vtanh.pop %v7649
        %v7682 = vtanh.pop %v7650
        %v7683 = vtanh.pop %v7651
        %v7684 = vtanh.pop %v7652
        %v7685 = vtanh.pop %v7653
        %v7686 = vtanh.pop %v7654
        %v7687 = vtanh.pop %v7655
        %v7688 = vsub.f32 1.0, %v7126
        %v7689 = vsub.f32 1.0, %v7141
        %v7690 = vsub.f32 1.0, %v7156
        %v7691 = vsub.f32 1.0, %v7171
        %v7692 = vsub.f32 1.0, %v7186
        %v7693 = vsub.f32 1.0, %v7201
        %v7694 = vsub.f32 1.0, %v7216
        %v7695 = vsub.f32 1.0, %v7231
        %v7696 = vsub.f32 1.0, %v7246
        %v7697 = vsub.f32 1.0, %v7261
        %v7698 = vsub.f32 1.0, %v7276
        %v7699 = vsub.f32 1.0, %v7291
        %v7700 = vsub.f32 1.0, %v7306
        %v7701 = vsub.f32 1.0, %v7321
        %v7702 = vsub.f32 1.0, %v7336
        %v7703 = vsub.f32 1.0, %v7351
        %v7704 = vsub.f32 1.0, %v7366
        %v7705 = vsub.f32 1.0, %v7381
        %v7706 = vsub.f32 1.0, %v7396
        %v7707 = vsub.f32 1.0, %v7411
        %v7708 = vsub.f32 1.0, %v7426
        %v7709 = vsub.f32 1.0, %v7441
        %v7710 = vsub.f32 1.0, %v7456
        %v7711 = vsub.f32 1.0, %v7471
        %v7712 = vsub.f32 1.0, %v7486
        %v7713 = vsub.f32 1.0, %v7501
        %v7714 = vsub.f32 1.0, %v7516
        %v7715 = vsub.f32 1.0, %v7531
        %v7716 = vsub.f32 1.0, %v7546
        %v7717 = vsub.f32 1.0, %v7561
        %v7718 = vsub.f32 1.0, %v7576
        %v7719 = vsub.f32 1.0, %v7591
        %v7720 = vmul.f32 %v7688, %v7656
        %v7721 = vmul.f32 %v7689, %v7657
        %v7722 = vmul.f32 %v7690, %v7658
        %v7723 = vmul.f32 %v7691, %v7659
        %v7724 = vmul.f32 %v7692, %v7660
        %v7725 = vmul.f32 %v7693, %v7661
        %v7726 = vmul.f32 %v7694, %v7662
        %v7727 = vmul.f32 %v7695, %v7663
        %v7728 = vmul.f32 %v7696, %v7664
        %v7729 = vmul.f32 %v7697, %v7665
        %v7730 = vmul.f32 %v7698, %v7666
        %v7731 = vmul.f32 %v7699, %v7667
        %v7732 = vmul.f32 %v7700, %v7668
        %v7733 = vmul.f32 %v7701, %v7669
        %v7734 = vmul.f32 %v7702, %v7670
        %v7735 = vmul.f32 %v7703, %v7671
        %v7736 = vmul.f32 %v7704, %v7672
        %v7737 = vmul.f32 %v7705, %v7673
        %v7738 = vmul.f32 %v7706, %v7674
        %v7739 = vmul.f32 %v7707, %v7675
        %v7740 = vmul.f32 %v7708, %v7676
        %v7741 = vmul.f32 %v7709, %v7677
        %v7742 = vmul.f32 %v7710, %v7678
        %v7743 = vmul.f32 %v7711, %v7679
        %v7744 = vmul.f32 %v7712, %v7680
        %v7745 = vmul.f32 %v7713, %v7681
        %v7746 = vmul.f32 %v7714, %v7682
        %v7747 = vmul.f32 %v7715, %v7683
        %v7748 = vmul.f32 %v7716, %v7684
        %v7749 = vmul.f32 %v7717, %v7685
        %v7750 = vmul.f32 %v7718, %v7686
        %v7751 = vmul.f32 %v7719, %v7687
        %v7752 = vmul.f32 %v7126, %v5829
        %v7753 = vmul.f32 %v7141, %v5830
        %v7754 = vmul.f32 %v7156, %v5831
        %v7755 = vmul.f32 %v7171, %v5832
        %v7756 = vmul.f32 %v7186, %v5833
        %v7757 = vmul.f32 %v7201, %v5834
        %v7758 = vmul.f32 %v7216, %v5835
        %v7759 = vmul.f32 %v7231, %v5836
        %v7760 = vmul.f32 %v7246, %v5837
        %v7761 = vmul.f32 %v7261, %v5838
        %v7762 = vmul.f32 %v7276, %v5839
        %v7763 = vmul.f32 %v7291, %v5840
        %v7764 = vmul.f32 %v7306, %v5841
        %v7765 = vmul.f32 %v7321, %v5842
        %v7766 = vmul.f32 %v7336, %v5843
        %v7767 = vmul.f32 %v7351, %v5844
        %v7768 = vmul.f32 %v7366, %v5845
        %v7769 = vmul.f32 %v7381, %v5846
        %v7770 = vmul.f32 %v7396, %v5847
        %v7771 = vmul.f32 %v7411, %v5848
        %v7772 = vmul.f32 %v7426, %v5849
        %v7773 = vmul.f32 %v7441, %v5850
        %v7774 = vmul.f32 %v7456, %v5851
        %v7775 = vmul.f32 %v7471, %v5852
        %v7776 = vmul.f32 %v7486, %v5853
        %v7777 = vmul.f32 %v7501, %v5854
        %v7778 = vmul.f32 %v7516, %v5855
        %v7779 = vmul.f32 %v7531, %v5856
        %v7780 = vmul.f32 %v7546, %v5857
        %v7781 = vmul.f32 %v7561, %v5858
        %v7782 = vmul.f32 %v7576, %v5859
        %v7783 = vmul.f32 %v7591, %v5860
        %v7784 = vadd.f32 %v7720, %v7752
        %v7785 = vadd.f32 %v7721, %v7753
        %v7786 = vadd.f32 %v7722, %v7754
        %v7787 = vadd.f32 %v7723, %v7755
        %v7788 = vadd.f32 %v7724, %v7756
        %v7789 = vadd.f32 %v7725, %v7757
        %v7790 = vadd.f32 %v7726, %v7758
        %v7791 = vadd.f32 %v7727, %v7759
        %v7792 = vadd.f32 %v7728, %v7760
        %v7793 = vadd.f32 %v7729, %v7761
        %v7794 = vadd.f32 %v7730, %v7762
        %v7795 = vadd.f32 %v7731, %v7763
        %v7796 = vadd.f32 %v7732, %v7764
        %v7797 = vadd.f32 %v7733, %v7765
        %v7798 = vadd.f32 %v7734, %v7766
        %v7799 = vadd.f32 %v7735, %v7767
        %v7800 = vadd.f32 %v7736, %v7768
        %v7801 = vadd.f32 %v7737, %v7769
        %v7802 = vadd.f32 %v7738, %v7770
        %v7803 = vadd.f32 %v7739, %v7771
        %v7804 = vadd.f32 %v7740, %v7772
        %v7805 = vadd.f32 %v7741, %v7773
        %v7806 = vadd.f32 %v7742, %v7774
        %v7807 = vadd.f32 %v7743, %v7775
        %v7808 = vadd.f32 %v7744, %v7776
        %v7809 = vadd.f32 %v7745, %v7777
        %v7810 = vadd.f32 %v7746, %v7778
        %v7811 = vadd.f32 %v7747, %v7779
        %v7812 = vadd.f32 %v7748, %v7780
        %v7813 = vadd.f32 %v7749, %v7781
        %v7814 = vadd.f32 %v7750, %v7782
        %v7815 = vadd.f32 %v7751, %v7783
        %7816 = vst [vmem:[%s432] sm:$0xff] %v7784
        %7817 = vst [vmem:[%s432 + $0x8] sm:$0xff] %v7785
        %7818 = vst [vmem:[%s432 + $0x10] sm:$0xff] %v7786
        %7819 = vst [vmem:[%s432 + $0x18] sm:$0xff] %v7787
        %7820 = vst [vmem:[%s432 + $0x20] sm:$0xff] %v7788
        %7821 = vst [vmem:[%s432 + $0x28] sm:$0xff] %v7789
        %7822 = vst [vmem:[%s432 + $0x30] sm:$0xff] %v7790
        %7823 = vst [vmem:[%s432 + $0x38] sm:$0xff] %v7791
        %7824 = vst [vmem:[%s432 + $0x40] sm:$0xff] %v7792
        %7825 = vst [vmem:[%s432 + $0x48] sm:$0xff] %v7793
        %7826 = vst [vmem:[%s432 + $0x50] sm:$0xff] %v7794
        %7827 = vst [vmem:[%s432 + $0x58] sm:$0xff] %v7795
        %7828 = vst [vmem:[%s432 + $0x60] sm:$0xff] %v7796
        %7829 = vst [vmem:[%s432 + $0x68] sm:$0xff] %v7797
        %7830 = vst [vmem:[%s432 + $0x70] sm:$0xff] %v7798
        %7831 = vst [vmem:[%s432 + $0x78] sm:$0xff] %v7799
        %7832 = vst [vmem:[%s432 + $0x80] sm:$0xff] %v7800
        %7833 = vst [vmem:[%s432 + $0x88] sm:$0xff] %v7801
        %7834 = vst [vmem:[%s432 + $0x90] sm:$0xff] %v7802
        %7835 = vst [vmem:[%s432 + $0x98] sm:$0xff] %v7803
        %7836 = vst [vmem:[%s432 + $0xa0] sm:$0xff] %v7804
        %7837 = vst [vmem:[%s432 + $0xa8] sm:$0xff] %v7805
        %7838 = vst [vmem:[%s432 + $0xb0] sm:$0xff] %v7806
        %7839 = vst [vmem:[%s432 + $0xb8] sm:$0xff] %v7807
        %7840 = vst [vmem:[%s432 + $0xc0] sm:$0xff] %v7808
        %7841 = vst [vmem:[%s432 + $0xc8] sm:$0xff] %v7809
        %7842 = vst [vmem:[%s432 + $0xd0] sm:$0xff] %v7810
        %7843 = vst [vmem:[%s432 + $0xd8] sm:$0xff] %v7811
        %7844 = vst [vmem:[%s432 + $0xe0] sm:$0xff] %v7812
        %7845 = vst [vmem:[%s432 + $0xe8] sm:$0xff] %v7813
        %7846 = vst [vmem:[%s432 + $0xf0] sm:$0xff] %v7814
        %7847 = vst [vmem:[%s432 + $0xf8] sm:$0xff] %v7815
        %s7848 = sand.u32 %s214, 1
        %s7849 = scalar_lea.sflag [#allocation4], %s7848
        %s7850 = sand.u32 %s214, 1
        %s7851 = smul.addr %s7850, 256
        %s7852 = scalar_lea.vmem [#allocation13], %s7851
        // Predicated region
        $region77: #{tpu_custom_call.1} parent=51 // pred_check
          %p7853 = pneg %p224
        $region78: #{tpu_custom_call.1} parent=51 // pred_check_branch
          %7855 = sbr.rel (%p7853) target = $region80
        $region79: #{tpu_custom_call.1} parent=51 // pred_region
          %s7856 = smul.u32 32, %s28
          %7858 = vsyncadd %s7849, 0
          %s7859 = smul.addr %s7856, 8
          %s7860 = scalar_lea.hbm %s8, %s7859
          %s7861 = sshll.u32 %s7852, 4
          %s7862 = int_to_ptr.vmem [resolvable:$true] %s7861
          %s7863 = sshll.u32 %s7860, 4
          %s7864 = int_to_ptr.hbm [resolvable:$true] %s7863
          %7869 = dma.vmem_to_hbm [thread:$0]  %s7862, 4096, %s7864, %s7849, 128, 128, 8
        $region80: #{tpu_custom_call.1} parent=51 // pred_fallthru
          _
      $region52: #{tpu_custom_call.1} parent=5 // pred_fallthru
        _
      %p7870 = scmp.le.s32.totalorder 2, %s23
      // Predicated region
      $region81: #{tpu_custom_call.1} parent=5 // pred_check
        %p7871 = pneg %p7870
      $region82: #{tpu_custom_call.1} parent=5 // pred_check_branch
        %7873 = sbr.rel (%p7871) target = $region84
      $region83: #{tpu_custom_call.1} parent=5 // pred_region
        %s7874 = ssub.s32 %s23, 2
        // Predicated region
        $region85: #{tpu_custom_call.1} parent=83 // pred_check
          %p7875 = pneg %p230
        $region86: #{tpu_custom_call.1} parent=83 // pred_check_branch
          %7877 = sbr.rel (%p7875) target = $region88
        $region87: #{tpu_custom_call.1} parent=83 // pred_region
          %s7878 = sand.u32 %s215, 1
          %s7879 = scalar_lea.sflag [#allocation4], %s7878
          %s7880 = sand.u32 %s215, 1
          %s7881 = smul.addr %s7880, 256
          %s7882 = scalar_lea.vmem [#allocation13], %s7881
          %7884 = dma.done %s7879, 4096
        $region88: #{tpu_custom_call.1} parent=83 // pred_fallthru
          _
      $region84: #{tpu_custom_call.1} parent=5 // pred_fallthru
        _
    $region6: #{tpu_custom_call.1} parent=1 // loop_footer
      %s27 = sadd.s32 1, %s23
    $region7: #{tpu_custom_call.1} parent=1 // loop_footer_branch
      %22 = sbr.rel target = $region3
    $region8: #{tpu_custom_call.1} parent=1 // loop_exit
      _
    %7885 = vsyncpa [#allocation3], 1
    %s7886 = scalar_lea.sflag [#allocation3], 1
    %7887 = vsyncpa %s7886, 1
    %7888 = vsyncpa [#allocation6], 1
    %s7889 = scalar_lea.sflag [#allocation6], 1
    %7890 = vsyncpa %s7889, 1
    %7891 = vsyncpa [#allocation9], 1
    %7892 = vsyncpa [#allocation12], 1
    %7893 = vsyncpa [#allocation4], 1
    %s7894 = scalar_lea.sflag [#allocation4], 1
    %7895 = vsyncpa %s7894, 1

</llo_original>
